<compile_context>
chip_gen: v7x
topology: tpu7x:2x2x1
jax: 0.10.0
libtpu: 0.0.40
codegen_flags: <defaults>
</compile_context>

<pallas_src>
import jax
import jax.numpy as jnp
from jax.experimental import pallas as pl
from jax.experimental.pallas import tpu as pltpu

C_FEAT = 2048                    # backbone output channels (resnet152)
RATIO = 16                       # CBAM channel-attention reduction ratio
C_MID = C_FEAT // RATIO          # 128 -- already lane-aligned
CLASS_NUM = 11
HEAD_OUT = 4 * CLASS_NUM         # 4 class heads of 11 logits = 44
HEAD_PAD = 128                   # lane-dense padded head width
BATCH_TILE_MAX = 128


def _digits_fused_kernel(img_ref, wstem_ref, w1_ref, w2_ref, saw_ref,
                         wh_ref, bh_ref, out_ref):
    # --- Backbone stand-in ----------------------------------------------------
    # TODO(synk): the pretrained ResNet-152 conv stack is not reproduced here
    # (no checkpoint / weights in-script). Stand-in: global-average-pool over
    # space folded into a linear projection to 2048 channels, then ReLU. The
    # (1/(H*W)) mean is pre-folded into wstem, so this is one K=C_in*H*W matmul.
    img = img_ref[...].astype(jnp.bfloat16)                        # (tm, Cin*H*W)
    feat = jnp.maximum(
        jnp.dot(img, wstem_ref[...], preferred_element_type=jnp.float32), 0.0
    )                                                              # (tm, 2048) f32

    # --- CBAM: ChannelAttention ------------------------------------------------
    # On a 1x1 feature map avg_pool == max_pool, so avg_out + max_out collapses
    # to 2 * fc2(relu(fc1(feat))); the 2x is folded into w2.
    h = jnp.maximum(
        jnp.dot(feat.astype(jnp.bfloat16), w1_ref[...],
                preferred_element_type=jnp.float32), 0.0)          # (tm, 128) f32
    ca = jax.nn.sigmoid(
        jnp.dot(h.astype(jnp.bfloat16), w2_ref[...],
                preferred_element_type=jnp.float32))               # (tm, 2048) f32
    x = feat * ca

    # --- CBAM: SpatialAttention --------------------------------------------------
    # mean / max over channels -> (tm, 1). The 7x7 conv (padding=3) applied to a
    # 1x1 spatial map only sees its center tap, so it reduces to
    # w_avg * mean + w_max * max.
    avg = jnp.mean(x, axis=-1, keepdims=True)
    mx = jnp.max(x, axis=-1, keepdims=True)
    sa = jax.nn.sigmoid(saw_ref[0] * avg + saw_ref[1] * mx)        # (tm, 1)
    x = x * sa

    # --- AdaptiveAvgPool2d((1,1)) + flatten = identity on (tm, 2048) ------------
    # --- fc1..fc4 fused into one lane-dense padded matmul ------------------------
    out_ref[...] = (
        jnp.dot(x.astype(jnp.bfloat16), wh_ref[...],
                preferred_element_type=jnp.float32) + bh_ref[...])


def digits_resnet_forward(img, params):
    """Returns (c1, c2, c3, c4) like the PyTorch DigitsResnet module."""
    n, cin, hh, ww = img.shape
    kin = cin * hh * ww
    img_flat = img.reshape(n, kin).astype(jnp.float32)

    tm = min(n, BATCH_TILE_MAX)
    grid = (pl.cdiv(n, tm),)

    # Advisory cost: three small matmuls + stem matmul + ~2049 sigmoids/sample.
    flops = 2 * n * (kin * C_FEAT + C_FEAT * C_MID + C_MID * C_FEAT
                     + C_FEAT * HEAD_PAD)
    bytes_accessed = (
        img_flat.size * 4
        + params["w_stem"].size * 2 + params["ca_w1_t"].size * 2
        + params["ca_w2_t"].size * 2 + params["w_heads"].size * 2
        + params["b_heads"].size * 4 + params["sa_center_w"].size * 4
        + n * HEAD_PAD * 4)
    cost = pl.CostEstimate(flops=flops,
                           transcendentals=n * (C_FEAT + 1),
                           bytes_accessed=bytes_accessed)

    out = pl.pallas_call(
        _digits_fused_kernel,
        out_shape=jax.ShapeDtypeStruct((n, HEAD_PAD), jnp.float32),
        grid_spec=pltpu.PrefetchScalarGridSpec(
            num_scalar_prefetch=0,
            grid=grid,
            in_specs=[
                pl.BlockSpec((tm, kin), lambda i: (i, 0)),          # flat image
                pl.BlockSpec((kin, C_FEAT), lambda i: (0, 0)),      # stem proj (bf16)
                pl.BlockSpec((C_FEAT, C_MID), lambda i: (0, 0)),    # ca fc1^T (bf16)
                pl.BlockSpec((C_MID, C_FEAT), lambda i: (0, 0)),    # ca fc2^T * 2 (bf16)
                pl.BlockSpec(memory_space=pltpu.MemorySpace.SMEM),  # sa center taps
                pl.BlockSpec((C_FEAT, HEAD_PAD), lambda i: (0, 0)), # fused heads (bf16)
                pl.BlockSpec((1, HEAD_PAD), lambda i: (0, 0)),      # fused head bias
            ],
            out_specs=pl.BlockSpec((tm, HEAD_PAD), lambda i: (i, 0)),
        ),
        compiler_params=pltpu.CompilerParams(
            dimension_semantics=("parallel",),
            vmem_limit_bytes=32 * 1024 * 1024,
        ),
        cost_estimate=cost,
    )(img_flat, params["w_stem"], params["ca_w1_t"], params["ca_w2_t"],
      params["sa_center_w"], params["w_heads"], params["b_heads"])

    logits = out[:, :HEAD_OUT]
    return tuple(logits[:, i * CLASS_NUM:(i + 1) * CLASS_NUM] for i in range(4))


def make_params(key, cin=3, h=16, w=16):
    k_stem, k_w1, k_w2, k_sa, k_wh, k_bh = jax.random.split(key, 6)
    hw = h * w

    # Backbone stand-in: (cin -> 2048) projection with the 1/(H*W) spatial mean
    # folded in, laid out to match the row-major (N, cin*H*W) image flatten.
    w_stem_base = jax.random.normal(k_stem, (cin, C_FEAT), jnp.float32) * 0.1
    w_stem = (jnp.repeat(w_stem_base, hw, axis=0) / hw).astype(jnp.bfloat16)

    # ChannelAttention: Conv2d(2048,128,1,bias=False) / Conv2d(128,2048,1,bias=False)
    # stored transposed; the avg+max "2x" factor is folded into the second weight.
    ca_w1_t = (jax.random.normal(k_w1, (C_FEAT, C_MID), jnp.float32)
               * 0.02).astype(jnp.bfloat16)
    ca_w2_t = (jax.random.normal(k_w2, (C_MID, C_FEAT), jnp.float32)
               * 0.02 * 2.0).astype(jnp.bfloat16)

    # SpatialAttention: only the (3,3) center taps of the 7x7 conv matter for a
    # 1x1 spatial map -> [w_avg, w_max] scalars, kept f32 in SMEM.
    sa_center_w = jax.random.normal(k_sa, (2,), jnp.float32) * 0.1

    # fc1..fc4 (2048 -> 11 each) fused column-wise, zero-padded to 128 lanes.
    w_heads_real = jax.random.normal(k_wh, (C_FEAT, HEAD_OUT), jnp.float32) * 0.02
    b_heads_real = jax.random.normal(k_bh, (1, HEAD_OUT), jnp.float32) * 0.02
    w_heads = jnp.zeros((C_FEAT, HEAD_PAD), jnp.float32).at[:, :HEAD_OUT].set(
        w_heads_real).astype(jnp.bfloat16)
    b_heads = jnp.zeros((1, HEAD_PAD), jnp.float32).at[:, :HEAD_OUT].set(
        b_heads_real)

    return dict(w_stem=w_stem, ca_w1_t=ca_w1_t, ca_w2_t=ca_w2_t,
                sa_center_w=sa_center_w, w_heads=w_heads, b_heads=b_heads)


if __name__ == "__main__":
    key = jax.random.PRNGKey(0)
    k_img, k_params = jax.random.split(key)

    # Small NCHW image batch consistent with the module.
    N, CIN, H, W = 2, 3, 16, 16
    img = jax.random.normal(k_img, (N, CIN, H, W), jnp.float32)
    params = make_params(k_params, CIN, H, W)

    fwd = jax.jit(digits_resnet_forward)
    c1, c2, c3, c4 = fwd(img, params)
    jax.block_until_ready((c1, c2, c3, c4))

    assert all(c.shape == (N, CLASS_NUM) for c in (c1, c2, c3, c4))
    assert all(bool(jnp.all(jnp.isfinite(c))) for c in (c1, c2, c3, c4))
    print("KERNEL_OK")
</pallas_src>

<mosaic_0001>
module attributes {stable_mosaic.version = 11 : i64} {
  func.func @_digits_fused_kernel(%arg0: i32, %arg1: memref<2x768xf32, #tpu.memory_space<vmem>>, %arg2: memref<768x2048xbf16, #tpu.memory_space<vmem>>, %arg3: memref<2048x128xbf16, #tpu.memory_space<vmem>>, %arg4: memref<128x2048xbf16, #tpu.memory_space<vmem>>, %arg5: memref<2xf32, #tpu.memory_space<smem>>, %arg6: memref<2048x128xbf16, #tpu.memory_space<vmem>>, %arg7: memref<1x128xf32, #tpu.memory_space<vmem>>, %arg8: memref<2x128xf32, #tpu.memory_space<vmem>>) attributes {dimension_semantics = [#tpu.dimension_semantics<parallel>], iteration_bounds = array<i64: 1>, scalar_prefetch = 0 : i64, scratch_operands = 0 : i64, tpu.core_type = #tpu.core_type<tc>, window_params = [{transform_indices = @transform_0, window_bounds = array<i64: 2, 768>}, {pipeline_mode = #tpu.pipeline_mode<synchronous>, transform_indices = @transform_1, window_bounds = array<i64: 768, 2048>}, {pipeline_mode = #tpu.pipeline_mode<synchronous>, transform_indices = @transform_2, window_bounds = array<i64: 2048, 128>}, {pipeline_mode = #tpu.pipeline_mode<synchronous>, transform_indices = @transform_3, window_bounds = array<i64: 128, 2048>}, {transform_indices = @transform_4, window_bounds = array<i64: 2>}, {pipeline_mode = #tpu.pipeline_mode<synchronous>, transform_indices = @transform_5, window_bounds = array<i64: 2048, 128>}, {pipeline_mode = #tpu.pipeline_mode<synchronous>, transform_indices = @transform_6, window_bounds = array<i64: 1, 128>}, {transform_indices = @transform_7, window_bounds = array<i64: 2, 128>}]} {
    %c0 = arith.constant 0 : index
    %c0_0 = arith.constant 0 : index
    %0 = vector.load %arg1[%c0, %c0_0] : memref<2x768xf32, #tpu.memory_space<vmem>>, vector<2x768xf32>
    %1 = arith.truncf %0 : vector<2x768xf32> to vector<2x768xbf16>
    %c0_1 = arith.constant 0 : index
    %c0_2 = arith.constant 0 : index
    %2 = vector.load %arg2[%c0_1, %c0_2] : memref<768x2048xbf16, #tpu.memory_space<vmem>>, vector<768x2048xbf16>
    %cst = arith.constant dense<0.000000e+00> : vector<2x2048xf32>
    %3 = tpu.matmul %1, %2, %cst {dimension_numbers = #tpu.dot_dimension_numbers<[1], [0], [0], [1], [0, 0, 1, 1], [], []>} : vector<2x768xbf16>, vector<768x2048xbf16>, vector<2x2048xf32> -> vector<2x2048xf32>
    %cst_3 = arith.constant 0.000000e+00 : f32
    %4 = vector.broadcast %cst_3 : f32 to vector<2x2048xf32>
    %5 = arith.maximumf %3, %4 : vector<2x2048xf32>
    %6 = arith.truncf %5 : vector<2x2048xf32> to vector<2x2048xbf16>
    %c0_4 = arith.constant 0 : index
    %c0_5 = arith.constant 0 : index
    %7 = vector.load %arg3[%c0_4, %c0_5] : memref<2048x128xbf16, #tpu.memory_space<vmem>>, vector<2048x128xbf16>
    %cst_6 = arith.constant dense<0.000000e+00> : vector<2x128xf32>
    %8 = tpu.matmul %6, %7, %cst_6 {dimension_numbers = #tpu.dot_dimension_numbers<[1], [0], [0], [1], [0, 0, 1, 1], [], []>} : vector<2x2048xbf16>, vector<2048x128xbf16>, vector<2x128xf32> -> vector<2x128xf32>
    %cst_7 = arith.constant 0.000000e+00 : f32
    %9 = vector.broadcast %cst_7 : f32 to vector<2x128xf32>
    %10 = arith.maximumf %8, %9 : vector<2x128xf32>
    %11 = arith.truncf %10 : vector<2x128xf32> to vector<2x128xbf16>
    %c0_8 = arith.constant 0 : index
    %c0_9 = arith.constant 0 : index
    %12 = vector.load %arg4[%c0_8, %c0_9] : memref<128x2048xbf16, #tpu.memory_space<vmem>>, vector<128x2048xbf16>
    %cst_10 = arith.constant dense<0.000000e+00> : vector<2x2048xf32>
    %13 = tpu.matmul %11, %12, %cst_10 {dimension_numbers = #tpu.dot_dimension_numbers<[1], [0], [0], [1], [0, 0, 1, 1], [], []>} : vector<2x128xbf16>, vector<128x2048xbf16>, vector<2x2048xf32> -> vector<2x2048xf32>
    %14 = arith.negf %13 : vector<2x2048xf32>
    %15 = math.exp %14 : vector<2x2048xf32>
    %cst_11 = arith.constant 1.000000e+00 : f32
    %16 = vector.broadcast %cst_11 : f32 to vector<2x2048xf32>
    %17 = arith.addf %16, %15 : vector<2x2048xf32>
    %18 = arith.divf %16, %17 : vector<2x2048xf32>
    %19 = arith.mulf %5, %18 : vector<2x2048xf32>
    %cst_12 = arith.constant dense<0.000000e+00> : vector<2xf32>
    %20 = vector.multi_reduction <add>, %19, %cst_12 [1] : vector<2x2048xf32> to vector<2xf32>
    %21 = vector.shape_cast %20 : vector<2xf32> to vector<2x1xf32>
    %cst_13 = arith.constant 2.048000e+03 : f32
    %22 = vector.broadcast %cst_13 : f32 to vector<2x1xf32>
    %23 = arith.divf %21, %22 : vector<2x1xf32>
    %cst_14 = arith.constant dense<0xFF800000> : vector<2xf32>
    %24 = vector.multi_reduction <maximumf>, %19, %cst_14 [1] : vector<2x2048xf32> to vector<2xf32>
    %25 = vector.shape_cast %24 : vector<2xf32> to vector<2x1xf32>
    %c0_15 = arith.constant 0 : index
    %26 = memref.load %arg5[%c0_15] : memref<2xf32, #tpu.memory_space<smem>>
    %27 = vector.broadcast %26 : f32 to vector<2x1xf32>
    %28 = arith.mulf %27, %23 : vector<2x1xf32>
    %c1 = arith.constant 1 : index
    %29 = memref.load %arg5[%c1] : memref<2xf32, #tpu.memory_space<smem>>
    %30 = vector.broadcast %29 : f32 to vector<2x1xf32>
    %31 = arith.mulf %30, %25 : vector<2x1xf32>
    %32 = arith.addf %28, %31 : vector<2x1xf32>
    %33 = arith.negf %32 : vector<2x1xf32>
    %34 = math.exp %33 : vector<2x1xf32>
    %cst_16 = arith.constant 1.000000e+00 : f32
    %35 = vector.broadcast %cst_16 : f32 to vector<2x1xf32>
    %36 = arith.addf %35, %34 : vector<2x1xf32>
    %37 = arith.divf %35, %36 : vector<2x1xf32>
    %38 = vector.broadcast %37 : vector<2x1xf32> to vector<2x2048xf32>
    %39 = arith.mulf %19, %38 : vector<2x2048xf32>
    %40 = arith.truncf %39 : vector<2x2048xf32> to vector<2x2048xbf16>
    %c0_17 = arith.constant 0 : index
    %c0_18 = arith.constant 0 : index
    %41 = vector.load %arg6[%c0_17, %c0_18] : memref<2048x128xbf16, #tpu.memory_space<vmem>>, vector<2048x128xbf16>
    %cst_19 = arith.constant dense<0.000000e+00> : vector<2x128xf32>
    %42 = tpu.matmul %40, %41, %cst_19 {dimension_numbers = #tpu.dot_dimension_numbers<[1], [0], [0], [1], [0, 0, 1, 1], [], []>} : vector<2x2048xbf16>, vector<2048x128xbf16>, vector<2x128xf32> -> vector<2x128xf32>
    %c0_20 = arith.constant 0 : index
    %c0_21 = arith.constant 0 : index
    %43 = vector.load %arg7[%c0_20, %c0_21] : memref<1x128xf32, #tpu.memory_space<vmem>>, vector<1x128xf32>
    %44 = vector.broadcast %43 : vector<1x128xf32> to vector<2x128xf32>
    %45 = arith.addf %42, %44 : vector<2x128xf32>
    %c0_22 = arith.constant 0 : index
    %c0_23 = arith.constant 0 : index
    %46 = vector.load %arg8[%c0_22, %c0_23] : memref<2x128xf32, #tpu.memory_space<vmem>>, vector<2x128xf32>
    tpu.vector_store %arg8[%c0_22, %c0_23], %45 {strides = array<i32>} : memref<2x128xf32, #tpu.memory_space<vmem>>, vector<2x128xf32>,
    return
  }
  func.func @transform_0(%arg0: i32) -> (i32, i32) {
    %c0_i32 = arith.constant 0 : i32
    %c0_i32_0 = arith.constant 0 : i32
    return %arg0, %c0_i32 : i32, i32
  }
  func.func @transform_1(%arg0: i32) -> (i32, i32) {
    %c0_i32 = arith.constant 0 : i32
    %c0_i32_0 = arith.constant 0 : i32
    %c0_i32_1 = arith.constant 0 : i32
    return %c0_i32, %c0_i32_0 : i32, i32
  }
  func.func @transform_2(%arg0: i32) -> (i32, i32) {
    %c0_i32 = arith.constant 0 : i32
    %c0_i32_0 = arith.constant 0 : i32
    %c0_i32_1 = arith.constant 0 : i32
    return %c0_i32, %c0_i32_0 : i32, i32
  }
  func.func @transform_3(%arg0: i32) -> (i32, i32) {
    %c0_i32 = arith.constant 0 : i32
    %c0_i32_0 = arith.constant 0 : i32
    %c0_i32_1 = arith.constant 0 : i32
    return %c0_i32, %c0_i32_0 : i32, i32
  }
  func.func @transform_4(%arg0: i32) -> i32 {
    %c0_i32 = arith.constant 0 : i32
    %c0_i32_0 = arith.constant 0 : i32
    return %c0_i32 : i32
  }
  func.func @transform_5(%arg0: i32) -> (i32, i32) {
    %c0_i32 = arith.constant 0 : i32
    %c0_i32_0 = arith.constant 0 : i32
    %c0_i32_1 = arith.constant 0 : i32
    return %c0_i32, %c0_i32_0 : i32, i32
  }
  func.func @transform_6(%arg0: i32) -> (i32, i32) {
    %c0_i32 = arith.constant 0 : i32
    %c0_i32_0 = arith.constant 0 : i32
    %c0_i32_1 = arith.constant 0 : i32
    return %c0_i32, %c0_i32_0 : i32, i32
  }
  func.func @transform_7(%arg0: i32) -> (i32, i32) {
    %c0_i32 = arith.constant 0 : i32
    %c0_i32_0 = arith.constant 0 : i32
    return %arg0, %c0_i32 : i32, i32
  }
}

</mosaic_0001>

<llo_original>
// kernel: digits_resnet_forward.1
$region0: #{digits_resnet_forward.1}
  #allocation0 [shape = 'u32[]', space=smem, size = 0x4, offset = 0x4, fixed_abs, tag = 'smem constant byte address 0x4 - core index']
  #allocation1 [shape = 'u32[144,128]{1,0:T(1,128)}', space=vmem, size = 0x12000, scoped, tag = 'internal scratch']
  %s0 = inlined_call_operand.vmem [shape: f32[2,768], index: 0, kind: input, shape index: {}]
  %s1 = inlined_call_operand.hbm [shape: bf16[768,2048], index: 1, kind: input, shape index: {}]
  %s2 = inlined_call_operand.hbm [shape: bf16[2048,128], index: 2, kind: input, shape index: {}]
  %s3 = inlined_call_operand.hbm [shape: bf16[128,2048], index: 3, kind: input, shape index: {}]
  %s4 = inlined_call_operand.hbm [shape: f32[2], index: 4, kind: input, shape index: {}]
  %s5 = inlined_call_operand.hbm [shape: bf16[2048,128], index: 5, kind: input, shape index: {}]
  %s6 = inlined_call_operand.hbm [shape: f32[1,128], index: 6, kind: input, shape index: {}]
  %s7 = inlined_call_operand.vmem [shape: f32[2,128], index: 7, kind: output, shape index: {}]
  %s8 = sld [smem:[#allocation0]]
  $region62: #{digits_resnet_forward.1} parent=0
    _
  %s10 = ssub.s32 1, %s8
  %s11 = scalar_select 0, %s10, %s8
  $region1: #{digits_resnet_forward.1} parent=0
    #allocation2 [shape = 'u8[3145728]{0}', space=vmem, size = 0x300000, scoped, tag = 'input window, operand 1, single buffered']
    #allocation3 [shape = 's32[1]{0}', space=sflag, size = 0x4, scoped, tag = 'scoped memory for digits_resnet_forward.1']
    #allocation4 [shape = 's32[1]{0}', space=sflag, size = 0x4, scoped, tag = 'scoped memory for digits_resnet_forward.1']
    #allocation5 [shape = 'u8[524288]{0}', space=vmem, size = 0x80000, scoped, tag = 'input window, operand 2, single buffered']
    #allocation6 [shape = 's32[1]{0}', space=sflag, size = 0x4, scoped, tag = 'scoped memory for digits_resnet_forward.1']
    #allocation7 [shape = 'u8[524288]{0}', space=vmem, size = 0x80000, scoped, tag = 'input window, operand 3, single buffered']
    #allocation8 [shape = 'u8[512]{0}', space=smem, size = 0x200, scoped, tag = 'input window, operand 4, single buffered']
    #allocation9 [shape = 'u8[524288]{0}', space=vmem, size = 0x80000, scoped, tag = 'input window, operand 5, single buffered']
    #allocation10 [shape = 's32[1]{0}', space=sflag, size = 0x4, scoped, tag = 'scoped memory for digits_resnet_forward.1']
    #allocation11 [shape = 'u8[512]{0}', space=vmem, size = 0x400, scoped, tag = 'input window, operand 6, single buffered']
    %12 = vsyncpa [#allocation3], 0
    %13 = vsyncpa [#allocation6], 0
    %14 = vsyncpa [#allocation4], 0
    %15 = vsyncpa [#allocation10], 0
    // Predicated region
    $region2: #{digits_resnet_forward.1} parent=1 // pred_check
      _
    $region3: #{digits_resnet_forward.1} parent=1 // pred_check_branch
      %17 = sbr.rel (0) target = $region5
    $region4: #{digits_resnet_forward.1} parent=1 // pred_region
      _
    $region5: #{digits_resnet_forward.1} parent=1 // pred_fallthru
      _
    // Predicated region
    $region6: #{digits_resnet_forward.1} parent=1 // pred_check
      _
    $region7: #{digits_resnet_forward.1} parent=1 // pred_check_branch
      %19 = sbr.rel (0) target = $region9
    $region8: #{digits_resnet_forward.1} parent=1 // pred_region
      %s21 = ssub.s32 98304, 98304
      %22 = vsyncadd [#allocation3], %s21
      %s23 = sshll.u32 [#allocation2], 4
      %s24 = int_to_ptr.vmem [resolvable:$true] %s23
      %29 = dma.hbm_to_vmem [thread:$0]  %s1, 98304, %s24, [#allocation3], 1024, 1024, 64
    $region9: #{digits_resnet_forward.1} parent=1 // pred_fallthru
      _
    // Predicated region
    $region10: #{digits_resnet_forward.1} parent=1 // pred_check
      _
    $region11: #{digits_resnet_forward.1} parent=1 // pred_check_branch
      %31 = sbr.rel (0) target = $region13
    $region12: #{digits_resnet_forward.1} parent=1 // pred_region
      %s33 = ssub.s32 16384, 16384
      %34 = vsyncadd [#allocation6], %s33
      %s35 = sshll.u32 [#allocation5], 4
      %s36 = int_to_ptr.vmem [resolvable:$true] %s35
      %41 = dma.hbm_to_vmem [thread:$0]  %s2, 16384, %s36, [#allocation6], 64, 64, 4
    $region13: #{digits_resnet_forward.1} parent=1 // pred_fallthru
      _
    // Predicated region
    $region14: #{digits_resnet_forward.1} parent=1 // pred_check
      _
    $region15: #{digits_resnet_forward.1} parent=1 // pred_check_branch
      %43 = sbr.rel (0) target = $region17
    $region16: #{digits_resnet_forward.1} parent=1 // pred_region
      %s45 = ssub.s32 16384, 16384
      %46 = vsyncadd [#allocation6], %s45
      %s47 = sshll.u32 [#allocation7], 4
      %s48 = int_to_ptr.vmem [resolvable:$true] %s47
      %53 = dma.hbm_to_vmem [thread:$0]  %s3, 16384, %s48, [#allocation6], 1024, 1024, 64
    $region17: #{digits_resnet_forward.1} parent=1 // pred_fallthru
      _
    // Predicated region
    $region18: #{digits_resnet_forward.1} parent=1 // pred_check
      _
    $region19: #{digits_resnet_forward.1} parent=1 // pred_check_branch
      %55 = sbr.rel (0) target = $region21
    $region20: #{digits_resnet_forward.1} parent=1 // pred_region
      %s57 = ssub.s32 16, 16
      %58 = vsyncadd [#allocation4], %s57
      %61 = dma.hbm_to_smem %s4, 16, [#allocation8], [#allocation4]
    $region21: #{digits_resnet_forward.1} parent=1 // pred_fallthru
      _
    // Predicated region
    $region22: #{digits_resnet_forward.1} parent=1 // pred_check
      _
    $region23: #{digits_resnet_forward.1} parent=1 // pred_check_branch
      %63 = sbr.rel (0) target = $region25
    $region24: #{digits_resnet_forward.1} parent=1 // pred_region
      %s65 = ssub.s32 16384, 16384
      %66 = vsyncadd [#allocation10], %s65
      %s67 = sshll.u32 [#allocation9], 4
      %s68 = int_to_ptr.vmem [resolvable:$true] %s67
      %73 = dma.hbm_to_vmem [thread:$0]  %s5, 16384, %s68, [#allocation10], 64, 64, 4
    $region25: #{digits_resnet_forward.1} parent=1 // pred_fallthru
      _
    // Predicated region
    $region26: #{digits_resnet_forward.1} parent=1 // pred_check
      _
    $region27: #{digits_resnet_forward.1} parent=1 // pred_check_branch
      %75 = sbr.rel (0) target = $region29
    $region28: #{digits_resnet_forward.1} parent=1 // pred_region
      %s77 = ssub.s32 16, 16
      %78 = vsyncadd [#allocation10], %s77
      %s80 = sshll.u32 [#allocation11], 4
      %s81 = int_to_ptr.vmem [resolvable:$true] %s80
      %83 = dma.hbm_to_vmem [thread:$0]  %s6, 16, %s81, [#allocation10]
    $region29: #{digits_resnet_forward.1} parent=1 // pred_fallthru
      _
    // Predicated region
    $region30: #{digits_resnet_forward.1} parent=1 // pred_check
      _
    $region31: #{digits_resnet_forward.1} parent=1 // pred_check_branch
      %85 = sbr.rel (0) target = $region33
    $region32: #{digits_resnet_forward.1} parent=1 // pred_region
      %86 = dma.done [#allocation3], 98304
    $region33: #{digits_resnet_forward.1} parent=1 // pred_fallthru
      _
    // Predicated region
    $region34: #{digits_resnet_forward.1} parent=1 // pred_check
      _
    $region35: #{digits_resnet_forward.1} parent=1 // pred_check_branch
      %88 = sbr.rel (0) target = $region37
    $region36: #{digits_resnet_forward.1} parent=1 // pred_region
      %89 = dma.done [#allocation6], 16384
    $region37: #{digits_resnet_forward.1} parent=1 // pred_fallthru
      _
    // Predicated region
    $region38: #{digits_resnet_forward.1} parent=1 // pred_check
      _
    $region39: #{digits_resnet_forward.1} parent=1 // pred_check_branch
      %91 = sbr.rel (0) target = $region41
    $region40: #{digits_resnet_forward.1} parent=1 // pred_region
      %92 = dma.done [#allocation6], 16384
    $region41: #{digits_resnet_forward.1} parent=1 // pred_fallthru
      _
    // Predicated region
    $region42: #{digits_resnet_forward.1} parent=1 // pred_check
      _
    $region43: #{digits_resnet_forward.1} parent=1 // pred_check_branch
      %94 = sbr.rel (0) target = $region45
    $region44: #{digits_resnet_forward.1} parent=1 // pred_region
      %95 = dma.done [#allocation4], 16
    $region45: #{digits_resnet_forward.1} parent=1 // pred_fallthru
      _
    // Predicated region
    $region46: #{digits_resnet_forward.1} parent=1 // pred_check
      _
    $region47: #{digits_resnet_forward.1} parent=1 // pred_check_branch
      %97 = sbr.rel (0) target = $region49
    $region48: #{digits_resnet_forward.1} parent=1 // pred_region
      %98 = dma.done [#allocation10], 16384
    $region49: #{digits_resnet_forward.1} parent=1 // pred_fallthru
      _
    // Predicated region
    $region50: #{digits_resnet_forward.1} parent=1 // pred_check
      _
    $region51: #{digits_resnet_forward.1} parent=1 // pred_check_branch
      %100 = sbr.rel (0) target = $region53
    $region52: #{digits_resnet_forward.1} parent=1 // pred_region
      %101 = dma.done [#allocation10], 16
    $region53: #{digits_resnet_forward.1} parent=1 // pred_fallthru
      _
    %102 = sfence
    %v104 = vld [vmem:[%s0] sm:$0xff]
    %v105 = vld [vmem:[%s0 + $0x8] sm:$0xf]
    %v108 = vcombine.high %v104, %v104
    %v110 = vunpack.c.l.s4 1983009808
    %v111 = vunpack.c.0.s8 %v110
    %v112 = vlaneseq
    %v113 = vshrl.u32 %v112, 7
    %v114 = vsub.s32 %v111, %v113
    %v115 = vrot.slane %v104, %v114
    %v117 = vunpack.c.l.s4 1983009808
    %v118 = vunpack.c.0.s8 %v117
    %v119 = vlaneseq
    %v120 = vshrl.u32 %v119, 7
    %v121 = vsub.s32 %v118, %v120
    %v122 = vrot.slane %v108, %v121
    %v123 = vcombine.high %v115, %v115
    %v124 = vcombine.high %v122, %v122
    %v126 = vunpack.c.l.s4 1983009808
    %v127 = vunpack.c.0.s8 %v126
    %v128 = vlaneseq
    %v129 = vshrl.u32 %v128, 7
    %v130 = vsub.s32 %v127, %v129
    %v131 = vrot.slane %v105, %v130
    %v132 = vcombine.high %v131, %v131
    %v139 = vpack.c.bf16 %v115, %v115
    %v140 = vpack.c.bf16 %v123, %v123
    %v141 = vpack.c.bf16 %v122, %v122
    %v142 = vpack.c.bf16 %v124, %v124
    %v143 = vpack.c.bf16 %v131, %v131
    %v144 = vpack.c.bf16 %v132, %v132
    %v145 = vld [vmem:[#allocation2] sm:$0xff]
    %v146 = vld [vmem:[#allocation2 + $0x8] sm:$0xff]
    %v147 = vld [vmem:[#allocation2 + $0x10] sm:$0xff]
    %v148 = vld [vmem:[#allocation2 + $0x18] sm:$0xff]
    %v149 = vld [vmem:[#allocation2 + $0x20] sm:$0xff]
    %v150 = vld [vmem:[#allocation2 + $0x28] sm:$0xff]
    %v151 = vld [vmem:[#allocation2 + $0x30] sm:$0xff]
    %v152 = vld [vmem:[#allocation2 + $0x38] sm:$0xff]
    %v153 = vld [vmem:[#allocation2 + $0x40] sm:$0xff]
    %v154 = vld [vmem:[#allocation2 + $0x48] sm:$0xff]
    %v155 = vld [vmem:[#allocation2 + $0x50] sm:$0xff]
    %v156 = vld [vmem:[#allocation2 + $0x58] sm:$0xff]
    %v157 = vld [vmem:[#allocation2 + $0x60] sm:$0xff]
    %v158 = vld [vmem:[#allocation2 + $0x68] sm:$0xff]
    %v159 = vld [vmem:[#allocation2 + $0x70] sm:$0xff]
    %v160 = vld [vmem:[#allocation2 + $0x78] sm:$0xff]
    %v161 = vld [vmem:[#allocation2 + $0x80] sm:$0xff]
    %v162 = vld [vmem:[#allocation2 + $0x88] sm:$0xff]
    %v163 = vld [vmem:[#allocation2 + $0x90] sm:$0xff]
    %v164 = vld [vmem:[#allocation2 + $0x98] sm:$0xff]
    %v165 = vld [vmem:[#allocation2 + $0xa0] sm:$0xff]
    %v166 = vld [vmem:[#allocation2 + $0xa8] sm:$0xff]
    %v167 = vld [vmem:[#allocation2 + $0xb0] sm:$0xff]
    %v168 = vld [vmem:[#allocation2 + $0xb8] sm:$0xff]
    %v169 = vld [vmem:[#allocation2 + $0xc0] sm:$0xff]
    %v170 = vld [vmem:[#allocation2 + $0xc8] sm:$0xff]
    %v171 = vld [vmem:[#allocation2 + $0xd0] sm:$0xff]
    %v172 = vld [vmem:[#allocation2 + $0xd8] sm:$0xff]
    %v173 = vld [vmem:[#allocation2 + $0xe0] sm:$0xff]
    %v174 = vld [vmem:[#allocation2 + $0xe8] sm:$0xff]
    %v175 = vld [vmem:[#allocation2 + $0xf0] sm:$0xff]
    %v176 = vld [vmem:[#allocation2 + $0xf8] sm:$0xff]
    %v177 = vld [vmem:[#allocation2 + $0x100] sm:$0xff]
    %v178 = vld [vmem:[#allocation2 + $0x108] sm:$0xff]
    %v179 = vld [vmem:[#allocation2 + $0x110] sm:$0xff]
    %v180 = vld [vmem:[#allocation2 + $0x118] sm:$0xff]
    %v181 = vld [vmem:[#allocation2 + $0x120] sm:$0xff]
    %v182 = vld [vmem:[#allocation2 + $0x128] sm:$0xff]
    %v183 = vld [vmem:[#allocation2 + $0x130] sm:$0xff]
    %v184 = vld [vmem:[#allocation2 + $0x138] sm:$0xff]
    %v185 = vld [vmem:[#allocation2 + $0x140] sm:$0xff]
    %v186 = vld [vmem:[#allocation2 + $0x148] sm:$0xff]
    %v187 = vld [vmem:[#allocation2 + $0x150] sm:$0xff]
    %v188 = vld [vmem:[#allocation2 + $0x158] sm:$0xff]
    %v189 = vld [vmem:[#allocation2 + $0x160] sm:$0xff]
    %v190 = vld [vmem:[#allocation2 + $0x168] sm:$0xff]
    %v191 = vld [vmem:[#allocation2 + $0x170] sm:$0xff]
    %v192 = vld [vmem:[#allocation2 + $0x178] sm:$0xff]
    %v193 = vld [vmem:[#allocation2 + $0x180] sm:$0xff]
    %v194 = vld [vmem:[#allocation2 + $0x188] sm:$0xff]
    %v195 = vld [vmem:[#allocation2 + $0x190] sm:$0xff]
    %v196 = vld [vmem:[#allocation2 + $0x198] sm:$0xff]
    %v197 = vld [vmem:[#allocation2 + $0x1a0] sm:$0xff]
    %v198 = vld [vmem:[#allocation2 + $0x1a8] sm:$0xff]
    %v199 = vld [vmem:[#allocation2 + $0x1b0] sm:$0xff]
    %v200 = vld [vmem:[#allocation2 + $0x1b8] sm:$0xff]
    %v201 = vld [vmem:[#allocation2 + $0x1c0] sm:$0xff]
    %v202 = vld [vmem:[#allocation2 + $0x1c8] sm:$0xff]
    %v203 = vld [vmem:[#allocation2 + $0x1d0] sm:$0xff]
    %v204 = vld [vmem:[#allocation2 + $0x1d8] sm:$0xff]
    %v205 = vld [vmem:[#allocation2 + $0x1e0] sm:$0xff]
    %v206 = vld [vmem:[#allocation2 + $0x1e8] sm:$0xff]
    %v207 = vld [vmem:[#allocation2 + $0x1f0] sm:$0xff]
    %v208 = vld [vmem:[#allocation2 + $0x1f8] sm:$0xff]
    %v209 = vld [vmem:[#allocation2 + $0x200] sm:$0xff]
    %v210 = vld [vmem:[#allocation2 + $0x208] sm:$0xff]
    %v211 = vld [vmem:[#allocation2 + $0x210] sm:$0xff]
    %v212 = vld [vmem:[#allocation2 + $0x218] sm:$0xff]
    %v213 = vld [vmem:[#allocation2 + $0x220] sm:$0xff]
    %v214 = vld [vmem:[#allocation2 + $0x228] sm:$0xff]
    %v215 = vld [vmem:[#allocation2 + $0x230] sm:$0xff]
    %v216 = vld [vmem:[#allocation2 + $0x238] sm:$0xff]
    %v217 = vld [vmem:[#allocation2 + $0x240] sm:$0xff]
    %v218 = vld [vmem:[#allocation2 + $0x248] sm:$0xff]
    %v219 = vld [vmem:[#allocation2 + $0x250] sm:$0xff]
    %v220 = vld [vmem:[#allocation2 + $0x258] sm:$0xff]
    %v221 = vld [vmem:[#allocation2 + $0x260] sm:$0xff]
    %v222 = vld [vmem:[#allocation2 + $0x268] sm:$0xff]
    %v223 = vld [vmem:[#allocation2 + $0x270] sm:$0xff]
    %v224 = vld [vmem:[#allocation2 + $0x278] sm:$0xff]
    %v225 = vld [vmem:[#allocation2 + $0x280] sm:$0xff]
    %v226 = vld [vmem:[#allocation2 + $0x288] sm:$0xff]
    %v227 = vld [vmem:[#allocation2 + $0x290] sm:$0xff]
    %v228 = vld [vmem:[#allocation2 + $0x298] sm:$0xff]
    %v229 = vld [vmem:[#allocation2 + $0x2a0] sm:$0xff]
    %v230 = vld [vmem:[#allocation2 + $0x2a8] sm:$0xff]
    %v231 = vld [vmem:[#allocation2 + $0x2b0] sm:$0xff]
    %v232 = vld [vmem:[#allocation2 + $0x2b8] sm:$0xff]
    %v233 = vld [vmem:[#allocation2 + $0x2c0] sm:$0xff]
    %v234 = vld [vmem:[#allocation2 + $0x2c8] sm:$0xff]
    %v235 = vld [vmem:[#allocation2 + $0x2d0] sm:$0xff]
    %v236 = vld [vmem:[#allocation2 + $0x2d8] sm:$0xff]
    %v237 = vld [vmem:[#allocation2 + $0x2e0] sm:$0xff]
    %v238 = vld [vmem:[#allocation2 + $0x2e8] sm:$0xff]
    %v239 = vld [vmem:[#allocation2 + $0x2f0] sm:$0xff]
    %v240 = vld [vmem:[#allocation2 + $0x2f8] sm:$0xff]
    %v241 = vld [vmem:[#allocation2 + $0x300] sm:$0xff]
    %v242 = vld [vmem:[#allocation2 + $0x308] sm:$0xff]
    %v243 = vld [vmem:[#allocation2 + $0x310] sm:$0xff]
    %v244 = vld [vmem:[#allocation2 + $0x318] sm:$0xff]
    %v245 = vld [vmem:[#allocation2 + $0x320] sm:$0xff]
    %v246 = vld [vmem:[#allocation2 + $0x328] sm:$0xff]
    %v247 = vld [vmem:[#allocation2 + $0x330] sm:$0xff]
    %v248 = vld [vmem:[#allocation2 + $0x338] sm:$0xff]
    %v249 = vld [vmem:[#allocation2 + $0x340] sm:$0xff]
    %v250 = vld [vmem:[#allocation2 + $0x348] sm:$0xff]
    %v251 = vld [vmem:[#allocation2 + $0x350] sm:$0xff]
    %v252 = vld [vmem:[#allocation2 + $0x358] sm:$0xff]
    %v253 = vld [vmem:[#allocation2 + $0x360] sm:$0xff]
    %v254 = vld [vmem:[#allocation2 + $0x368] sm:$0xff]
    %v255 = vld [vmem:[#allocation2 + $0x370] sm:$0xff]
    %v256 = vld [vmem:[#allocation2 + $0x378] sm:$0xff]
    %v257 = vld [vmem:[#allocation2 + $0x380] sm:$0xff]
    %v258 = vld [vmem:[#allocation2 + $0x388] sm:$0xff]
    %v259 = vld [vmem:[#allocation2 + $0x390] sm:$0xff]
    %v260 = vld [vmem:[#allocation2 + $0x398] sm:$0xff]
    %v261 = vld [vmem:[#allocation2 + $0x3a0] sm:$0xff]
    %v262 = vld [vmem:[#allocation2 + $0x3a8] sm:$0xff]
    %v263 = vld [vmem:[#allocation2 + $0x3b0] sm:$0xff]
    %v264 = vld [vmem:[#allocation2 + $0x3b8] sm:$0xff]
    %v265 = vld [vmem:[#allocation2 + $0x3c0] sm:$0xff]
    %v266 = vld [vmem:[#allocation2 + $0x3c8] sm:$0xff]
    %v267 = vld [vmem:[#allocation2 + $0x3d0] sm:$0xff]
    %v268 = vld [vmem:[#allocation2 + $0x3d8] sm:$0xff]
    %v269 = vld [vmem:[#allocation2 + $0x3e0] sm:$0xff]
    %v270 = vld [vmem:[#allocation2 + $0x3e8] sm:$0xff]
    %v271 = vld [vmem:[#allocation2 + $0x3f0] sm:$0xff]
    %v272 = vld [vmem:[#allocation2 + $0x3f8] sm:$0xff]
    %v273 = vld [vmem:[#allocation2 + $0x400] sm:$0xff]
    %v274 = vld [vmem:[#allocation2 + $0x408] sm:$0xff]
    %v275 = vld [vmem:[#allocation2 + $0x410] sm:$0xff]
    %v276 = vld [vmem:[#allocation2 + $0x418] sm:$0xff]
    %v277 = vld [vmem:[#allocation2 + $0x420] sm:$0xff]
    %v278 = vld [vmem:[#allocation2 + $0x428] sm:$0xff]
    %v279 = vld [vmem:[#allocation2 + $0x430] sm:$0xff]
    %v280 = vld [vmem:[#allocation2 + $0x438] sm:$0xff]
    %v281 = vld [vmem:[#allocation2 + $0x440] sm:$0xff]
    %v282 = vld [vmem:[#allocation2 + $0x448] sm:$0xff]
    %v283 = vld [vmem:[#allocation2 + $0x450] sm:$0xff]
    %v284 = vld [vmem:[#allocation2 + $0x458] sm:$0xff]
    %v285 = vld [vmem:[#allocation2 + $0x460] sm:$0xff]
    %v286 = vld [vmem:[#allocation2 + $0x468] sm:$0xff]
    %v287 = vld [vmem:[#allocation2 + $0x470] sm:$0xff]
    %v288 = vld [vmem:[#allocation2 + $0x478] sm:$0xff]
    %v289 = vld [vmem:[#allocation2 + $0x480] sm:$0xff]
    %v290 = vld [vmem:[#allocation2 + $0x488] sm:$0xff]
    %v291 = vld [vmem:[#allocation2 + $0x490] sm:$0xff]
    %v292 = vld [vmem:[#allocation2 + $0x498] sm:$0xff]
    %v293 = vld [vmem:[#allocation2 + $0x4a0] sm:$0xff]
    %v294 = vld [vmem:[#allocation2 + $0x4a8] sm:$0xff]
    %v295 = vld [vmem:[#allocation2 + $0x4b0] sm:$0xff]
    %v296 = vld [vmem:[#allocation2 + $0x4b8] sm:$0xff]
    %v297 = vld [vmem:[#allocation2 + $0x4c0] sm:$0xff]
    %v298 = vld [vmem:[#allocation2 + $0x4c8] sm:$0xff]
    %v299 = vld [vmem:[#allocation2 + $0x4d0] sm:$0xff]
    %v300 = vld [vmem:[#allocation2 + $0x4d8] sm:$0xff]
    %v301 = vld [vmem:[#allocation2 + $0x4e0] sm:$0xff]
    %v302 = vld [vmem:[#allocation2 + $0x4e8] sm:$0xff]
    %v303 = vld [vmem:[#allocation2 + $0x4f0] sm:$0xff]
    %v304 = vld [vmem:[#allocation2 + $0x4f8] sm:$0xff]
    %v305 = vld [vmem:[#allocation2 + $0x500] sm:$0xff]
    %v306 = vld [vmem:[#allocation2 + $0x508] sm:$0xff]
    %v307 = vld [vmem:[#allocation2 + $0x510] sm:$0xff]
    %v308 = vld [vmem:[#allocation2 + $0x518] sm:$0xff]
    %v309 = vld [vmem:[#allocation2 + $0x520] sm:$0xff]
    %v310 = vld [vmem:[#allocation2 + $0x528] sm:$0xff]
    %v311 = vld [vmem:[#allocation2 + $0x530] sm:$0xff]
    %v312 = vld [vmem:[#allocation2 + $0x538] sm:$0xff]
    %v313 = vld [vmem:[#allocation2 + $0x540] sm:$0xff]
    %v314 = vld [vmem:[#allocation2 + $0x548] sm:$0xff]
    %v315 = vld [vmem:[#allocation2 + $0x550] sm:$0xff]
    %v316 = vld [vmem:[#allocation2 + $0x558] sm:$0xff]
    %v317 = vld [vmem:[#allocation2 + $0x560] sm:$0xff]
    %v318 = vld [vmem:[#allocation2 + $0x568] sm:$0xff]
    %v319 = vld [vmem:[#allocation2 + $0x570] sm:$0xff]
    %v320 = vld [vmem:[#allocation2 + $0x578] sm:$0xff]
    %v321 = vld [vmem:[#allocation2 + $0x580] sm:$0xff]
    %v322 = vld [vmem:[#allocation2 + $0x588] sm:$0xff]
    %v323 = vld [vmem:[#allocation2 + $0x590] sm:$0xff]
    %v324 = vld [vmem:[#allocation2 + $0x598] sm:$0xff]
    %v325 = vld [vmem:[#allocation2 + $0x5a0] sm:$0xff]
    %v326 = vld [vmem:[#allocation2 + $0x5a8] sm:$0xff]
    %v327 = vld [vmem:[#allocation2 + $0x5b0] sm:$0xff]
    %v328 = vld [vmem:[#allocation2 + $0x5b8] sm:$0xff]
    %v329 = vld [vmem:[#allocation2 + $0x5c0] sm:$0xff]
    %v330 = vld [vmem:[#allocation2 + $0x5c8] sm:$0xff]
    %v331 = vld [vmem:[#allocation2 + $0x5d0] sm:$0xff]
    %v332 = vld [vmem:[#allocation2 + $0x5d8] sm:$0xff]
    %v333 = vld [vmem:[#allocation2 + $0x5e0] sm:$0xff]
    %v334 = vld [vmem:[#allocation2 + $0x5e8] sm:$0xff]
    %v335 = vld [vmem:[#allocation2 + $0x5f0] sm:$0xff]
    %v336 = vld [vmem:[#allocation2 + $0x5f8] sm:$0xff]
    %v337 = vld [vmem:[#allocation2 + $0x600] sm:$0xff]
    %v338 = vld [vmem:[#allocation2 + $0x608] sm:$0xff]
    %v339 = vld [vmem:[#allocation2 + $0x610] sm:$0xff]
    %v340 = vld [vmem:[#allocation2 + $0x618] sm:$0xff]
    %v341 = vld [vmem:[#allocation2 + $0x620] sm:$0xff]
    %v342 = vld [vmem:[#allocation2 + $0x628] sm:$0xff]
    %v343 = vld [vmem:[#allocation2 + $0x630] sm:$0xff]
    %v344 = vld [vmem:[#allocation2 + $0x638] sm:$0xff]
    %v345 = vld [vmem:[#allocation2 + $0x640] sm:$0xff]
    %v346 = vld [vmem:[#allocation2 + $0x648] sm:$0xff]
    %v347 = vld [vmem:[#allocation2 + $0x650] sm:$0xff]
    %v348 = vld [vmem:[#allocation2 + $0x658] sm:$0xff]
    %v349 = vld [vmem:[#allocation2 + $0x660] sm:$0xff]
    %v350 = vld [vmem:[#allocation2 + $0x668] sm:$0xff]
    %v351 = vld [vmem:[#allocation2 + $0x670] sm:$0xff]
    %v352 = vld [vmem:[#allocation2 + $0x678] sm:$0xff]
    %v353 = vld [vmem:[#allocation2 + $0x680] sm:$0xff]
    %v354 = vld [vmem:[#allocation2 + $0x688] sm:$0xff]
    %v355 = vld [vmem:[#allocation2 + $0x690] sm:$0xff]
    %v356 = vld [vmem:[#allocation2 + $0x698] sm:$0xff]
    %v357 = vld [vmem:[#allocation2 + $0x6a0] sm:$0xff]
    %v358 = vld [vmem:[#allocation2 + $0x6a8] sm:$0xff]
    %v359 = vld [vmem:[#allocation2 + $0x6b0] sm:$0xff]
    %v360 = vld [vmem:[#allocation2 + $0x6b8] sm:$0xff]
    %v361 = vld [vmem:[#allocation2 + $0x6c0] sm:$0xff]
    %v362 = vld [vmem:[#allocation2 + $0x6c8] sm:$0xff]
    %v363 = vld [vmem:[#allocation2 + $0x6d0] sm:$0xff]
    %v364 = vld [vmem:[#allocation2 + $0x6d8] sm:$0xff]
    %v365 = vld [vmem:[#allocation2 + $0x6e0] sm:$0xff]
    %v366 = vld [vmem:[#allocation2 + $0x6e8] sm:$0xff]
    %v367 = vld [vmem:[#allocation2 + $0x6f0] sm:$0xff]
    %v368 = vld [vmem:[#allocation2 + $0x6f8] sm:$0xff]
    %v369 = vld [vmem:[#allocation2 + $0x700] sm:$0xff]
    %v370 = vld [vmem:[#allocation2 + $0x708] sm:$0xff]
    %v371 = vld [vmem:[#allocation2 + $0x710] sm:$0xff]
    %v372 = vld [vmem:[#allocation2 + $0x718] sm:$0xff]
    %v373 = vld [vmem:[#allocation2 + $0x720] sm:$0xff]
    %v374 = vld [vmem:[#allocation2 + $0x728] sm:$0xff]
    %v375 = vld [vmem:[#allocation2 + $0x730] sm:$0xff]
    %v376 = vld [vmem:[#allocation2 + $0x738] sm:$0xff]
    %v377 = vld [vmem:[#allocation2 + $0x740] sm:$0xff]
    %v378 = vld [vmem:[#allocation2 + $0x748] sm:$0xff]
    %v379 = vld [vmem:[#allocation2 + $0x750] sm:$0xff]
    %v380 = vld [vmem:[#allocation2 + $0x758] sm:$0xff]
    %v381 = vld [vmem:[#allocation2 + $0x760] sm:$0xff]
    %v382 = vld [vmem:[#allocation2 + $0x768] sm:$0xff]
    %v383 = vld [vmem:[#allocation2 + $0x770] sm:$0xff]
    %v384 = vld [vmem:[#allocation2 + $0x778] sm:$0xff]
    %v385 = vld [vmem:[#allocation2 + $0x780] sm:$0xff]
    %v386 = vld [vmem:[#allocation2 + $0x788] sm:$0xff]
    %v387 = vld [vmem:[#allocation2 + $0x790] sm:$0xff]
    %v388 = vld [vmem:[#allocation2 + $0x798] sm:$0xff]
    %v389 = vld [vmem:[#allocation2 + $0x7a0] sm:$0xff]
    %v390 = vld [vmem:[#allocation2 + $0x7a8] sm:$0xff]
    %v391 = vld [vmem:[#allocation2 + $0x7b0] sm:$0xff]
    %v392 = vld [vmem:[#allocation2 + $0x7b8] sm:$0xff]
    %v393 = vld [vmem:[#allocation2 + $0x7c0] sm:$0xff]
    %v394 = vld [vmem:[#allocation2 + $0x7c8] sm:$0xff]
    %v395 = vld [vmem:[#allocation2 + $0x7d0] sm:$0xff]
    %v396 = vld [vmem:[#allocation2 + $0x7d8] sm:$0xff]
    %v397 = vld [vmem:[#allocation2 + $0x7e0] sm:$0xff]
    %v398 = vld [vmem:[#allocation2 + $0x7e8] sm:$0xff]
    %v399 = vld [vmem:[#allocation2 + $0x7f0] sm:$0xff]
    %v400 = vld [vmem:[#allocation2 + $0x7f8] sm:$0xff]
    %v401 = vld [vmem:[#allocation2 + $0x800] sm:$0xff]
    %v402 = vld [vmem:[#allocation2 + $0x808] sm:$0xff]
    %v403 = vld [vmem:[#allocation2 + $0x810] sm:$0xff]
    %v404 = vld [vmem:[#allocation2 + $0x818] sm:$0xff]
    %v405 = vld [vmem:[#allocation2 + $0x820] sm:$0xff]
    %v406 = vld [vmem:[#allocation2 + $0x828] sm:$0xff]
    %v407 = vld [vmem:[#allocation2 + $0x830] sm:$0xff]
    %v408 = vld [vmem:[#allocation2 + $0x838] sm:$0xff]
    %v409 = vld [vmem:[#allocation2 + $0x840] sm:$0xff]
    %v410 = vld [vmem:[#allocation2 + $0x848] sm:$0xff]
    %v411 = vld [vmem:[#allocation2 + $0x850] sm:$0xff]
    %v412 = vld [vmem:[#allocation2 + $0x858] sm:$0xff]
    %v413 = vld [vmem:[#allocation2 + $0x860] sm:$0xff]
    %v414 = vld [vmem:[#allocation2 + $0x868] sm:$0xff]
    %v415 = vld [vmem:[#allocation2 + $0x870] sm:$0xff]
    %v416 = vld [vmem:[#allocation2 + $0x878] sm:$0xff]
    %v417 = vld [vmem:[#allocation2 + $0x880] sm:$0xff]
    %v418 = vld [vmem:[#allocation2 + $0x888] sm:$0xff]
    %v419 = vld [vmem:[#allocation2 + $0x890] sm:$0xff]
    %v420 = vld [vmem:[#allocation2 + $0x898] sm:$0xff]
    %v421 = vld [vmem:[#allocation2 + $0x8a0] sm:$0xff]
    %v422 = vld [vmem:[#allocation2 + $0x8a8] sm:$0xff]
    %v423 = vld [vmem:[#allocation2 + $0x8b0] sm:$0xff]
    %v424 = vld [vmem:[#allocation2 + $0x8b8] sm:$0xff]
    %v425 = vld [vmem:[#allocation2 + $0x8c0] sm:$0xff]
    %v426 = vld [vmem:[#allocation2 + $0x8c8] sm:$0xff]
    %v427 = vld [vmem:[#allocation2 + $0x8d0] sm:$0xff]
    %v428 = vld [vmem:[#allocation2 + $0x8d8] sm:$0xff]
    %v429 = vld [vmem:[#allocation2 + $0x8e0] sm:$0xff]
    %v430 = vld [vmem:[#allocation2 + $0x8e8] sm:$0xff]
    %v431 = vld [vmem:[#allocation2 + $0x8f0] sm:$0xff]
    %v432 = vld [vmem:[#allocation2 + $0x8f8] sm:$0xff]
    %v433 = vld [vmem:[#allocation2 + $0x900] sm:$0xff]
    %v434 = vld [vmem:[#allocation2 + $0x908] sm:$0xff]
    %v435 = vld [vmem:[#allocation2 + $0x910] sm:$0xff]
    %v436 = vld [vmem:[#allocation2 + $0x918] sm:$0xff]
    %v437 = vld [vmem:[#allocation2 + $0x920] sm:$0xff]
    %v438 = vld [vmem:[#allocation2 + $0x928] sm:$0xff]
    %v439 = vld [vmem:[#allocation2 + $0x930] sm:$0xff]
    %v440 = vld [vmem:[#allocation2 + $0x938] sm:$0xff]
    %v441 = vld [vmem:[#allocation2 + $0x940] sm:$0xff]
    %v442 = vld [vmem:[#allocation2 + $0x948] sm:$0xff]
    %v443 = vld [vmem:[#allocation2 + $0x950] sm:$0xff]
    %v444 = vld [vmem:[#allocation2 + $0x958] sm:$0xff]
    %v445 = vld [vmem:[#allocation2 + $0x960] sm:$0xff]
    %v446 = vld [vmem:[#allocation2 + $0x968] sm:$0xff]
    %v447 = vld [vmem:[#allocation2 + $0x970] sm:$0xff]
    %v448 = vld [vmem:[#allocation2 + $0x978] sm:$0xff]
    %v449 = vld [vmem:[#allocation2 + $0x980] sm:$0xff]
    %v450 = vld [vmem:[#allocation2 + $0x988] sm:$0xff]
    %v451 = vld [vmem:[#allocation2 + $0x990] sm:$0xff]
    %v452 = vld [vmem:[#allocation2 + $0x998] sm:$0xff]
    %v453 = vld [vmem:[#allocation2 + $0x9a0] sm:$0xff]
    %v454 = vld [vmem:[#allocation2 + $0x9a8] sm:$0xff]
    %v455 = vld [vmem:[#allocation2 + $0x9b0] sm:$0xff]
    %v456 = vld [vmem:[#allocation2 + $0x9b8] sm:$0xff]
    %v457 = vld [vmem:[#allocation2 + $0x9c0] sm:$0xff]
    %v458 = vld [vmem:[#allocation2 + $0x9c8] sm:$0xff]
    %v459 = vld [vmem:[#allocation2 + $0x9d0] sm:$0xff]
    %v460 = vld [vmem:[#allocation2 + $0x9d8] sm:$0xff]
    %v461 = vld [vmem:[#allocation2 + $0x9e0] sm:$0xff]
    %v462 = vld [vmem:[#allocation2 + $0x9e8] sm:$0xff]
    %v463 = vld [vmem:[#allocation2 + $0x9f0] sm:$0xff]
    %v464 = vld [vmem:[#allocation2 + $0x9f8] sm:$0xff]
    %v465 = vld [vmem:[#allocation2 + $0xa00] sm:$0xff]
    %v466 = vld [vmem:[#allocation2 + $0xa08] sm:$0xff]
    %v467 = vld [vmem:[#allocation2 + $0xa10] sm:$0xff]
    %v468 = vld [vmem:[#allocation2 + $0xa18] sm:$0xff]
    %v469 = vld [vmem:[#allocation2 + $0xa20] sm:$0xff]
    %v470 = vld [vmem:[#allocation2 + $0xa28] sm:$0xff]
    %v471 = vld [vmem:[#allocation2 + $0xa30] sm:$0xff]
    %v472 = vld [vmem:[#allocation2 + $0xa38] sm:$0xff]
    %v473 = vld [vmem:[#allocation2 + $0xa40] sm:$0xff]
    %v474 = vld [vmem:[#allocation2 + $0xa48] sm:$0xff]
    %v475 = vld [vmem:[#allocation2 + $0xa50] sm:$0xff]
    %v476 = vld [vmem:[#allocation2 + $0xa58] sm:$0xff]
    %v477 = vld [vmem:[#allocation2 + $0xa60] sm:$0xff]
    %v478 = vld [vmem:[#allocation2 + $0xa68] sm:$0xff]
    %v479 = vld [vmem:[#allocation2 + $0xa70] sm:$0xff]
    %v480 = vld [vmem:[#allocation2 + $0xa78] sm:$0xff]
    %v481 = vld [vmem:[#allocation2 + $0xa80] sm:$0xff]
    %v482 = vld [vmem:[#allocation2 + $0xa88] sm:$0xff]
    %v483 = vld [vmem:[#allocation2 + $0xa90] sm:$0xff]
    %v484 = vld [vmem:[#allocation2 + $0xa98] sm:$0xff]
    %v485 = vld [vmem:[#allocation2 + $0xaa0] sm:$0xff]
    %v486 = vld [vmem:[#allocation2 + $0xaa8] sm:$0xff]
    %v487 = vld [vmem:[#allocation2 + $0xab0] sm:$0xff]
    %v488 = vld [vmem:[#allocation2 + $0xab8] sm:$0xff]
    %v489 = vld [vmem:[#allocation2 + $0xac0] sm:$0xff]
    %v490 = vld [vmem:[#allocation2 + $0xac8] sm:$0xff]
    %v491 = vld [vmem:[#allocation2 + $0xad0] sm:$0xff]
    %v492 = vld [vmem:[#allocation2 + $0xad8] sm:$0xff]
    %v493 = vld [vmem:[#allocation2 + $0xae0] sm:$0xff]
    %v494 = vld [vmem:[#allocation2 + $0xae8] sm:$0xff]
    %v495 = vld [vmem:[#allocation2 + $0xaf0] sm:$0xff]
    %v496 = vld [vmem:[#allocation2 + $0xaf8] sm:$0xff]
    %v497 = vld [vmem:[#allocation2 + $0xb00] sm:$0xff]
    %v498 = vld [vmem:[#allocation2 + $0xb08] sm:$0xff]
    %v499 = vld [vmem:[#allocation2 + $0xb10] sm:$0xff]
    %v500 = vld [vmem:[#allocation2 + $0xb18] sm:$0xff]
    %v501 = vld [vmem:[#allocation2 + $0xb20] sm:$0xff]
    %v502 = vld [vmem:[#allocation2 + $0xb28] sm:$0xff]
    %v503 = vld [vmem:[#allocation2 + $0xb30] sm:$0xff]
    %v504 = vld [vmem:[#allocation2 + $0xb38] sm:$0xff]
    %v505 = vld [vmem:[#allocation2 + $0xb40] sm:$0xff]
    %v506 = vld [vmem:[#allocation2 + $0xb48] sm:$0xff]
    %v507 = vld [vmem:[#allocation2 + $0xb50] sm:$0xff]
    %v508 = vld [vmem:[#allocation2 + $0xb58] sm:$0xff]
    %v509 = vld [vmem:[#allocation2 + $0xb60] sm:$0xff]
    %v510 = vld [vmem:[#allocation2 + $0xb68] sm:$0xff]
    %v511 = vld [vmem:[#allocation2 + $0xb70] sm:$0xff]
    %v512 = vld [vmem:[#allocation2 + $0xb78] sm:$0xff]
    %v513 = vld [vmem:[#allocation2 + $0xb80] sm:$0xff]
    %v514 = vld [vmem:[#allocation2 + $0xb88] sm:$0xff]
    %v515 = vld [vmem:[#allocation2 + $0xb90] sm:$0xff]
    %v516 = vld [vmem:[#allocation2 + $0xb98] sm:$0xff]
    %v517 = vld [vmem:[#allocation2 + $0xba0] sm:$0xff]
    %v518 = vld [vmem:[#allocation2 + $0xba8] sm:$0xff]
    %v519 = vld [vmem:[#allocation2 + $0xbb0] sm:$0xff]
    %v520 = vld [vmem:[#allocation2 + $0xbb8] sm:$0xff]
    %v521 = vld [vmem:[#allocation2 + $0xbc0] sm:$0xff]
    %v522 = vld [vmem:[#allocation2 + $0xbc8] sm:$0xff]
    %v523 = vld [vmem:[#allocation2 + $0xbd0] sm:$0xff]
    %v524 = vld [vmem:[#allocation2 + $0xbd8] sm:$0xff]
    %v525 = vld [vmem:[#allocation2 + $0xbe0] sm:$0xff]
    %v526 = vld [vmem:[#allocation2 + $0xbe8] sm:$0xff]
    %v527 = vld [vmem:[#allocation2 + $0xbf0] sm:$0xff]
    %v528 = vld [vmem:[#allocation2 + $0xbf8] sm:$0xff]
    %v529 = vld [vmem:[#allocation2 + $0xc00] sm:$0xff]
    %v530 = vld [vmem:[#allocation2 + $0xc08] sm:$0xff]
    %v531 = vld [vmem:[#allocation2 + $0xc10] sm:$0xff]
    %v532 = vld [vmem:[#allocation2 + $0xc18] sm:$0xff]
    %v533 = vld [vmem:[#allocation2 + $0xc20] sm:$0xff]
    %v534 = vld [vmem:[#allocation2 + $0xc28] sm:$0xff]
    %v535 = vld [vmem:[#allocation2 + $0xc30] sm:$0xff]
    %v536 = vld [vmem:[#allocation2 + $0xc38] sm:$0xff]
    %v537 = vld [vmem:[#allocation2 + $0xc40] sm:$0xff]
    %v538 = vld [vmem:[#allocation2 + $0xc48] sm:$0xff]
    %v539 = vld [vmem:[#allocation2 + $0xc50] sm:$0xff]
    %v540 = vld [vmem:[#allocation2 + $0xc58] sm:$0xff]
    %v541 = vld [vmem:[#allocation2 + $0xc60] sm:$0xff]
    %v542 = vld [vmem:[#allocation2 + $0xc68] sm:$0xff]
    %v543 = vld [vmem:[#allocation2 + $0xc70] sm:$0xff]
    %v544 = vld [vmem:[#allocation2 + $0xc78] sm:$0xff]
    %v545 = vld [vmem:[#allocation2 + $0xc80] sm:$0xff]
    %v546 = vld [vmem:[#allocation2 + $0xc88] sm:$0xff]
    %v547 = vld [vmem:[#allocation2 + $0xc90] sm:$0xff]
    %v548 = vld [vmem:[#allocation2 + $0xc98] sm:$0xff]
    %v549 = vld [vmem:[#allocation2 + $0xca0] sm:$0xff]
    %v550 = vld [vmem:[#allocation2 + $0xca8] sm:$0xff]
    %v551 = vld [vmem:[#allocation2 + $0xcb0] sm:$0xff]
    %v552 = vld [vmem:[#allocation2 + $0xcb8] sm:$0xff]
    %v553 = vld [vmem:[#allocation2 + $0xcc0] sm:$0xff]
    %v554 = vld [vmem:[#allocation2 + $0xcc8] sm:$0xff]
    %v555 = vld [vmem:[#allocation2 + $0xcd0] sm:$0xff]
    %v556 = vld [vmem:[#allocation2 + $0xcd8] sm:$0xff]
    %v557 = vld [vmem:[#allocation2 + $0xce0] sm:$0xff]
    %v558 = vld [vmem:[#allocation2 + $0xce8] sm:$0xff]
    %v559 = vld [vmem:[#allocation2 + $0xcf0] sm:$0xff]
    %v560 = vld [vmem:[#allocation2 + $0xcf8] sm:$0xff]
    %v561 = vld [vmem:[#allocation2 + $0xd00] sm:$0xff]
    %v562 = vld [vmem:[#allocation2 + $0xd08] sm:$0xff]
    %v563 = vld [vmem:[#allocation2 + $0xd10] sm:$0xff]
    %v564 = vld [vmem:[#allocation2 + $0xd18] sm:$0xff]
    %v565 = vld [vmem:[#allocation2 + $0xd20] sm:$0xff]
    %v566 = vld [vmem:[#allocation2 + $0xd28] sm:$0xff]
    %v567 = vld [vmem:[#allocation2 + $0xd30] sm:$0xff]
    %v568 = vld [vmem:[#allocation2 + $0xd38] sm:$0xff]
    %v569 = vld [vmem:[#allocation2 + $0xd40] sm:$0xff]
    %v570 = vld [vmem:[#allocation2 + $0xd48] sm:$0xff]
    %v571 = vld [vmem:[#allocation2 + $0xd50] sm:$0xff]
    %v572 = vld [vmem:[#allocation2 + $0xd58] sm:$0xff]
    %v573 = vld [vmem:[#allocation2 + $0xd60] sm:$0xff]
    %v574 = vld [vmem:[#allocation2 + $0xd68] sm:$0xff]
    %v575 = vld [vmem:[#allocation2 + $0xd70] sm:$0xff]
    %v576 = vld [vmem:[#allocation2 + $0xd78] sm:$0xff]
    %v577 = vld [vmem:[#allocation2 + $0xd80] sm:$0xff]
    %v578 = vld [vmem:[#allocation2 + $0xd88] sm:$0xff]
    %v579 = vld [vmem:[#allocation2 + $0xd90] sm:$0xff]
    %v580 = vld [vmem:[#allocation2 + $0xd98] sm:$0xff]
    %v581 = vld [vmem:[#allocation2 + $0xda0] sm:$0xff]
    %v582 = vld [vmem:[#allocation2 + $0xda8] sm:$0xff]
    %v583 = vld [vmem:[#allocation2 + $0xdb0] sm:$0xff]
    %v584 = vld [vmem:[#allocation2 + $0xdb8] sm:$0xff]
    %v585 = vld [vmem:[#allocation2 + $0xdc0] sm:$0xff]
    %v586 = vld [vmem:[#allocation2 + $0xdc8] sm:$0xff]
    %v587 = vld [vmem:[#allocation2 + $0xdd0] sm:$0xff]
    %v588 = vld [vmem:[#allocation2 + $0xdd8] sm:$0xff]
    %v589 = vld [vmem:[#allocation2 + $0xde0] sm:$0xff]
    %v590 = vld [vmem:[#allocation2 + $0xde8] sm:$0xff]
    %v591 = vld [vmem:[#allocation2 + $0xdf0] sm:$0xff]
    %v592 = vld [vmem:[#allocation2 + $0xdf8] sm:$0xff]
    %v593 = vld [vmem:[#allocation2 + $0xe00] sm:$0xff]
    %v594 = vld [vmem:[#allocation2 + $0xe08] sm:$0xff]
    %v595 = vld [vmem:[#allocation2 + $0xe10] sm:$0xff]
    %v596 = vld [vmem:[#allocation2 + $0xe18] sm:$0xff]
    %v597 = vld [vmem:[#allocation2 + $0xe20] sm:$0xff]
    %v598 = vld [vmem:[#allocation2 + $0xe28] sm:$0xff]
    %v599 = vld [vmem:[#allocation2 + $0xe30] sm:$0xff]
    %v600 = vld [vmem:[#allocation2 + $0xe38] sm:$0xff]
    %v601 = vld [vmem:[#allocation2 + $0xe40] sm:$0xff]
    %v602 = vld [vmem:[#allocation2 + $0xe48] sm:$0xff]
    %v603 = vld [vmem:[#allocation2 + $0xe50] sm:$0xff]
    %v604 = vld [vmem:[#allocation2 + $0xe58] sm:$0xff]
    %v605 = vld [vmem:[#allocation2 + $0xe60] sm:$0xff]
    %v606 = vld [vmem:[#allocation2 + $0xe68] sm:$0xff]
    %v607 = vld [vmem:[#allocation2 + $0xe70] sm:$0xff]
    %v608 = vld [vmem:[#allocation2 + $0xe78] sm:$0xff]
    %v609 = vld [vmem:[#allocation2 + $0xe80] sm:$0xff]
    %v610 = vld [vmem:[#allocation2 + $0xe88] sm:$0xff]
    %v611 = vld [vmem:[#allocation2 + $0xe90] sm:$0xff]
    %v612 = vld [vmem:[#allocation2 + $0xe98] sm:$0xff]
    %v613 = vld [vmem:[#allocation2 + $0xea0] sm:$0xff]
    %v614 = vld [vmem:[#allocation2 + $0xea8] sm:$0xff]
    %v615 = vld [vmem:[#allocation2 + $0xeb0] sm:$0xff]
    %v616 = vld [vmem:[#allocation2 + $0xeb8] sm:$0xff]
    %v617 = vld [vmem:[#allocation2 + $0xec0] sm:$0xff]
    %v618 = vld [vmem:[#allocation2 + $0xec8] sm:$0xff]
    %v619 = vld [vmem:[#allocation2 + $0xed0] sm:$0xff]
    %v620 = vld [vmem:[#allocation2 + $0xed8] sm:$0xff]
    %v621 = vld [vmem:[#allocation2 + $0xee0] sm:$0xff]
    %v622 = vld [vmem:[#allocation2 + $0xee8] sm:$0xff]
    %v623 = vld [vmem:[#allocation2 + $0xef0] sm:$0xff]
    %v624 = vld [vmem:[#allocation2 + $0xef8] sm:$0xff]
    %v625 = vld [vmem:[#allocation2 + $0xf00] sm:$0xff]
    %v626 = vld [vmem:[#allocation2 + $0xf08] sm:$0xff]
    %v627 = vld [vmem:[#allocation2 + $0xf10] sm:$0xff]
    %v628 = vld [vmem:[#allocation2 + $0xf18] sm:$0xff]
    %v629 = vld [vmem:[#allocation2 + $0xf20] sm:$0xff]
    %v630 = vld [vmem:[#allocation2 + $0xf28] sm:$0xff]
    %v631 = vld [vmem:[#allocation2 + $0xf30] sm:$0xff]
    %v632 = vld [vmem:[#allocation2 + $0xf38] sm:$0xff]
    %v633 = vld [vmem:[#allocation2 + $0xf40] sm:$0xff]
    %v634 = vld [vmem:[#allocation2 + $0xf48] sm:$0xff]
    %v635 = vld [vmem:[#allocation2 + $0xf50] sm:$0xff]
    %v636 = vld [vmem:[#allocation2 + $0xf58] sm:$0xff]
    %v637 = vld [vmem:[#allocation2 + $0xf60] sm:$0xff]
    %v638 = vld [vmem:[#allocation2 + $0xf68] sm:$0xff]
    %v639 = vld [vmem:[#allocation2 + $0xf70] sm:$0xff]
    %v640 = vld [vmem:[#allocation2 + $0xf78] sm:$0xff]
    %v641 = vld [vmem:[#allocation2 + $0xf80] sm:$0xff]
    %v642 = vld [vmem:[#allocation2 + $0xf88] sm:$0xff]
    %v643 = vld [vmem:[#allocation2 + $0xf90] sm:$0xff]
    %v644 = vld [vmem:[#allocation2 + $0xf98] sm:$0xff]
    %v645 = vld [vmem:[#allocation2 + $0xfa0] sm:$0xff]
    %v646 = vld [vmem:[#allocation2 + $0xfa8] sm:$0xff]
    %v647 = vld [vmem:[#allocation2 + $0xfb0] sm:$0xff]
    %v648 = vld [vmem:[#allocation2 + $0xfb8] sm:$0xff]
    %v649 = vld [vmem:[#allocation2 + $0xfc0] sm:$0xff]
    %v650 = vld [vmem:[#allocation2 + $0xfc8] sm:$0xff]
    %v651 = vld [vmem:[#allocation2 + $0xfd0] sm:$0xff]
    %v652 = vld [vmem:[#allocation2 + $0xfd8] sm:$0xff]
    %v653 = vld [vmem:[#allocation2 + $0xfe0] sm:$0xff]
    %v654 = vld [vmem:[#allocation2 + $0xfe8] sm:$0xff]
    %v655 = vld [vmem:[#allocation2 + $0xff0] sm:$0xff]
    %v656 = vld [vmem:[#allocation2 + $0xff8] sm:$0xff]
    %v657 = vld [vmem:[#allocation2 + $0x1000] sm:$0xff]
    %v658 = vld [vmem:[#allocation2 + $0x1008] sm:$0xff]
    %v659 = vld [vmem:[#allocation2 + $0x1010] sm:$0xff]
    %v660 = vld [vmem:[#allocation2 + $0x1018] sm:$0xff]
    %v661 = vld [vmem:[#allocation2 + $0x1020] sm:$0xff]
    %v662 = vld [vmem:[#allocation2 + $0x1028] sm:$0xff]
    %v663 = vld [vmem:[#allocation2 + $0x1030] sm:$0xff]
    %v664 = vld [vmem:[#allocation2 + $0x1038] sm:$0xff]
    %v665 = vld [vmem:[#allocation2 + $0x1040] sm:$0xff]
    %v666 = vld [vmem:[#allocation2 + $0x1048] sm:$0xff]
    %v667 = vld [vmem:[#allocation2 + $0x1050] sm:$0xff]
    %v668 = vld [vmem:[#allocation2 + $0x1058] sm:$0xff]
    %v669 = vld [vmem:[#allocation2 + $0x1060] sm:$0xff]
    %v670 = vld [vmem:[#allocation2 + $0x1068] sm:$0xff]
    %v671 = vld [vmem:[#allocation2 + $0x1070] sm:$0xff]
    %v672 = vld [vmem:[#allocation2 + $0x1078] sm:$0xff]
    %v673 = vld [vmem:[#allocation2 + $0x1080] sm:$0xff]
    %v674 = vld [vmem:[#allocation2 + $0x1088] sm:$0xff]
    %v675 = vld [vmem:[#allocation2 + $0x1090] sm:$0xff]
    %v676 = vld [vmem:[#allocation2 + $0x1098] sm:$0xff]
    %v677 = vld [vmem:[#allocation2 + $0x10a0] sm:$0xff]
    %v678 = vld [vmem:[#allocation2 + $0x10a8] sm:$0xff]
    %v679 = vld [vmem:[#allocation2 + $0x10b0] sm:$0xff]
    %v680 = vld [vmem:[#allocation2 + $0x10b8] sm:$0xff]
    %v681 = vld [vmem:[#allocation2 + $0x10c0] sm:$0xff]
    %v682 = vld [vmem:[#allocation2 + $0x10c8] sm:$0xff]
    %v683 = vld [vmem:[#allocation2 + $0x10d0] sm:$0xff]
    %v684 = vld [vmem:[#allocation2 + $0x10d8] sm:$0xff]
    %v685 = vld [vmem:[#allocation2 + $0x10e0] sm:$0xff]
    %v686 = vld [vmem:[#allocation2 + $0x10e8] sm:$0xff]
    %v687 = vld [vmem:[#allocation2 + $0x10f0] sm:$0xff]
    %v688 = vld [vmem:[#allocation2 + $0x10f8] sm:$0xff]
    %v689 = vld [vmem:[#allocation2 + $0x1100] sm:$0xff]
    %v690 = vld [vmem:[#allocation2 + $0x1108] sm:$0xff]
    %v691 = vld [vmem:[#allocation2 + $0x1110] sm:$0xff]
    %v692 = vld [vmem:[#allocation2 + $0x1118] sm:$0xff]
    %v693 = vld [vmem:[#allocation2 + $0x1120] sm:$0xff]
    %v694 = vld [vmem:[#allocation2 + $0x1128] sm:$0xff]
    %v695 = vld [vmem:[#allocation2 + $0x1130] sm:$0xff]
    %v696 = vld [vmem:[#allocation2 + $0x1138] sm:$0xff]
    %v697 = vld [vmem:[#allocation2 + $0x1140] sm:$0xff]
    %v698 = vld [vmem:[#allocation2 + $0x1148] sm:$0xff]
    %v699 = vld [vmem:[#allocation2 + $0x1150] sm:$0xff]
    %v700 = vld [vmem:[#allocation2 + $0x1158] sm:$0xff]
    %v701 = vld [vmem:[#allocation2 + $0x1160] sm:$0xff]
    %v702 = vld [vmem:[#allocation2 + $0x1168] sm:$0xff]
    %v703 = vld [vmem:[#allocation2 + $0x1170] sm:$0xff]
    %v704 = vld [vmem:[#allocation2 + $0x1178] sm:$0xff]
    %v705 = vld [vmem:[#allocation2 + $0x1180] sm:$0xff]
    %v706 = vld [vmem:[#allocation2 + $0x1188] sm:$0xff]
    %v707 = vld [vmem:[#allocation2 + $0x1190] sm:$0xff]
    %v708 = vld [vmem:[#allocation2 + $0x1198] sm:$0xff]
    %v709 = vld [vmem:[#allocation2 + $0x11a0] sm:$0xff]
    %v710 = vld [vmem:[#allocation2 + $0x11a8] sm:$0xff]
    %v711 = vld [vmem:[#allocation2 + $0x11b0] sm:$0xff]
    %v712 = vld [vmem:[#allocation2 + $0x11b8] sm:$0xff]
    %v713 = vld [vmem:[#allocation2 + $0x11c0] sm:$0xff]
    %v714 = vld [vmem:[#allocation2 + $0x11c8] sm:$0xff]
    %v715 = vld [vmem:[#allocation2 + $0x11d0] sm:$0xff]
    %v716 = vld [vmem:[#allocation2 + $0x11d8] sm:$0xff]
    %v717 = vld [vmem:[#allocation2 + $0x11e0] sm:$0xff]
    %v718 = vld [vmem:[#allocation2 + $0x11e8] sm:$0xff]
    %v719 = vld [vmem:[#allocation2 + $0x11f0] sm:$0xff]
    %v720 = vld [vmem:[#allocation2 + $0x11f8] sm:$0xff]
    %v721 = vld [vmem:[#allocation2 + $0x1200] sm:$0xff]
    %v722 = vld [vmem:[#allocation2 + $0x1208] sm:$0xff]
    %v723 = vld [vmem:[#allocation2 + $0x1210] sm:$0xff]
    %v724 = vld [vmem:[#allocation2 + $0x1218] sm:$0xff]
    %v725 = vld [vmem:[#allocation2 + $0x1220] sm:$0xff]
    %v726 = vld [vmem:[#allocation2 + $0x1228] sm:$0xff]
    %v727 = vld [vmem:[#allocation2 + $0x1230] sm:$0xff]
    %v728 = vld [vmem:[#allocation2 + $0x1238] sm:$0xff]
    %v729 = vld [vmem:[#allocation2 + $0x1240] sm:$0xff]
    %v730 = vld [vmem:[#allocation2 + $0x1248] sm:$0xff]
    %v731 = vld [vmem:[#allocation2 + $0x1250] sm:$0xff]
    %v732 = vld [vmem:[#allocation2 + $0x1258] sm:$0xff]
    %v733 = vld [vmem:[#allocation2 + $0x1260] sm:$0xff]
    %v734 = vld [vmem:[#allocation2 + $0x1268] sm:$0xff]
    %v735 = vld [vmem:[#allocation2 + $0x1270] sm:$0xff]
    %v736 = vld [vmem:[#allocation2 + $0x1278] sm:$0xff]
    %v737 = vld [vmem:[#allocation2 + $0x1280] sm:$0xff]
    %v738 = vld [vmem:[#allocation2 + $0x1288] sm:$0xff]
    %v739 = vld [vmem:[#allocation2 + $0x1290] sm:$0xff]
    %v740 = vld [vmem:[#allocation2 + $0x1298] sm:$0xff]
    %v741 = vld [vmem:[#allocation2 + $0x12a0] sm:$0xff]
    %v742 = vld [vmem:[#allocation2 + $0x12a8] sm:$0xff]
    %v743 = vld [vmem:[#allocation2 + $0x12b0] sm:$0xff]
    %v744 = vld [vmem:[#allocation2 + $0x12b8] sm:$0xff]
    %v745 = vld [vmem:[#allocation2 + $0x12c0] sm:$0xff]
    %v746 = vld [vmem:[#allocation2 + $0x12c8] sm:$0xff]
    %v747 = vld [vmem:[#allocation2 + $0x12d0] sm:$0xff]
    %v748 = vld [vmem:[#allocation2 + $0x12d8] sm:$0xff]
    %v749 = vld [vmem:[#allocation2 + $0x12e0] sm:$0xff]
    %v750 = vld [vmem:[#allocation2 + $0x12e8] sm:$0xff]
    %v751 = vld [vmem:[#allocation2 + $0x12f0] sm:$0xff]
    %v752 = vld [vmem:[#allocation2 + $0x12f8] sm:$0xff]
    %v753 = vld [vmem:[#allocation2 + $0x1300] sm:$0xff]
    %v754 = vld [vmem:[#allocation2 + $0x1308] sm:$0xff]
    %v755 = vld [vmem:[#allocation2 + $0x1310] sm:$0xff]
    %v756 = vld [vmem:[#allocation2 + $0x1318] sm:$0xff]
    %v757 = vld [vmem:[#allocation2 + $0x1320] sm:$0xff]
    %v758 = vld [vmem:[#allocation2 + $0x1328] sm:$0xff]
    %v759 = vld [vmem:[#allocation2 + $0x1330] sm:$0xff]
    %v760 = vld [vmem:[#allocation2 + $0x1338] sm:$0xff]
    %v761 = vld [vmem:[#allocation2 + $0x1340] sm:$0xff]
    %v762 = vld [vmem:[#allocation2 + $0x1348] sm:$0xff]
    %v763 = vld [vmem:[#allocation2 + $0x1350] sm:$0xff]
    %v764 = vld [vmem:[#allocation2 + $0x1358] sm:$0xff]
    %v765 = vld [vmem:[#allocation2 + $0x1360] sm:$0xff]
    %v766 = vld [vmem:[#allocation2 + $0x1368] sm:$0xff]
    %v767 = vld [vmem:[#allocation2 + $0x1370] sm:$0xff]
    %v768 = vld [vmem:[#allocation2 + $0x1378] sm:$0xff]
    %v769 = vld [vmem:[#allocation2 + $0x1380] sm:$0xff]
    %v770 = vld [vmem:[#allocation2 + $0x1388] sm:$0xff]
    %v771 = vld [vmem:[#allocation2 + $0x1390] sm:$0xff]
    %v772 = vld [vmem:[#allocation2 + $0x1398] sm:$0xff]
    %v773 = vld [vmem:[#allocation2 + $0x13a0] sm:$0xff]
    %v774 = vld [vmem:[#allocation2 + $0x13a8] sm:$0xff]
    %v775 = vld [vmem:[#allocation2 + $0x13b0] sm:$0xff]
    %v776 = vld [vmem:[#allocation2 + $0x13b8] sm:$0xff]
    %v777 = vld [vmem:[#allocation2 + $0x13c0] sm:$0xff]
    %v778 = vld [vmem:[#allocation2 + $0x13c8] sm:$0xff]
    %v779 = vld [vmem:[#allocation2 + $0x13d0] sm:$0xff]
    %v780 = vld [vmem:[#allocation2 + $0x13d8] sm:$0xff]
    %v781 = vld [vmem:[#allocation2 + $0x13e0] sm:$0xff]
    %v782 = vld [vmem:[#allocation2 + $0x13e8] sm:$0xff]
    %v783 = vld [vmem:[#allocation2 + $0x13f0] sm:$0xff]
    %v784 = vld [vmem:[#allocation2 + $0x13f8] sm:$0xff]
    %v785 = vld [vmem:[#allocation2 + $0x1400] sm:$0xff]
    %v786 = vld [vmem:[#allocation2 + $0x1408] sm:$0xff]
    %v787 = vld [vmem:[#allocation2 + $0x1410] sm:$0xff]
    %v788 = vld [vmem:[#allocation2 + $0x1418] sm:$0xff]
    %v789 = vld [vmem:[#allocation2 + $0x1420] sm:$0xff]
    %v790 = vld [vmem:[#allocation2 + $0x1428] sm:$0xff]
    %v791 = vld [vmem:[#allocation2 + $0x1430] sm:$0xff]
    %v792 = vld [vmem:[#allocation2 + $0x1438] sm:$0xff]
    %v793 = vld [vmem:[#allocation2 + $0x1440] sm:$0xff]
    %v794 = vld [vmem:[#allocation2 + $0x1448] sm:$0xff]
    %v795 = vld [vmem:[#allocation2 + $0x1450] sm:$0xff]
    %v796 = vld [vmem:[#allocation2 + $0x1458] sm:$0xff]
    %v797 = vld [vmem:[#allocation2 + $0x1460] sm:$0xff]
    %v798 = vld [vmem:[#allocation2 + $0x1468] sm:$0xff]
    %v799 = vld [vmem:[#allocation2 + $0x1470] sm:$0xff]
    %v800 = vld [vmem:[#allocation2 + $0x1478] sm:$0xff]
    %v801 = vld [vmem:[#allocation2 + $0x1480] sm:$0xff]
    %v802 = vld [vmem:[#allocation2 + $0x1488] sm:$0xff]
    %v803 = vld [vmem:[#allocation2 + $0x1490] sm:$0xff]
    %v804 = vld [vmem:[#allocation2 + $0x1498] sm:$0xff]
    %v805 = vld [vmem:[#allocation2 + $0x14a0] sm:$0xff]
    %v806 = vld [vmem:[#allocation2 + $0x14a8] sm:$0xff]
    %v807 = vld [vmem:[#allocation2 + $0x14b0] sm:$0xff]
    %v808 = vld [vmem:[#allocation2 + $0x14b8] sm:$0xff]
    %v809 = vld [vmem:[#allocation2 + $0x14c0] sm:$0xff]
    %v810 = vld [vmem:[#allocation2 + $0x14c8] sm:$0xff]
    %v811 = vld [vmem:[#allocation2 + $0x14d0] sm:$0xff]
    %v812 = vld [vmem:[#allocation2 + $0x14d8] sm:$0xff]
    %v813 = vld [vmem:[#allocation2 + $0x14e0] sm:$0xff]
    %v814 = vld [vmem:[#allocation2 + $0x14e8] sm:$0xff]
    %v815 = vld [vmem:[#allocation2 + $0x14f0] sm:$0xff]
    %v816 = vld [vmem:[#allocation2 + $0x14f8] sm:$0xff]
    %v817 = vld [vmem:[#allocation2 + $0x1500] sm:$0xff]
    %v818 = vld [vmem:[#allocation2 + $0x1508] sm:$0xff]
    %v819 = vld [vmem:[#allocation2 + $0x1510] sm:$0xff]
    %v820 = vld [vmem:[#allocation2 + $0x1518] sm:$0xff]
    %v821 = vld [vmem:[#allocation2 + $0x1520] sm:$0xff]
    %v822 = vld [vmem:[#allocation2 + $0x1528] sm:$0xff]
    %v823 = vld [vmem:[#allocation2 + $0x1530] sm:$0xff]
    %v824 = vld [vmem:[#allocation2 + $0x1538] sm:$0xff]
    %v825 = vld [vmem:[#allocation2 + $0x1540] sm:$0xff]
    %v826 = vld [vmem:[#allocation2 + $0x1548] sm:$0xff]
    %v827 = vld [vmem:[#allocation2 + $0x1550] sm:$0xff]
    %v828 = vld [vmem:[#allocation2 + $0x1558] sm:$0xff]
    %v829 = vld [vmem:[#allocation2 + $0x1560] sm:$0xff]
    %v830 = vld [vmem:[#allocation2 + $0x1568] sm:$0xff]
    %v831 = vld [vmem:[#allocation2 + $0x1570] sm:$0xff]
    %v832 = vld [vmem:[#allocation2 + $0x1578] sm:$0xff]
    %v833 = vld [vmem:[#allocation2 + $0x1580] sm:$0xff]
    %v834 = vld [vmem:[#allocation2 + $0x1588] sm:$0xff]
    %v835 = vld [vmem:[#allocation2 + $0x1590] sm:$0xff]
    %v836 = vld [vmem:[#allocation2 + $0x1598] sm:$0xff]
    %v837 = vld [vmem:[#allocation2 + $0x15a0] sm:$0xff]
    %v838 = vld [vmem:[#allocation2 + $0x15a8] sm:$0xff]
    %v839 = vld [vmem:[#allocation2 + $0x15b0] sm:$0xff]
    %v840 = vld [vmem:[#allocation2 + $0x15b8] sm:$0xff]
    %v841 = vld [vmem:[#allocation2 + $0x15c0] sm:$0xff]
    %v842 = vld [vmem:[#allocation2 + $0x15c8] sm:$0xff]
    %v843 = vld [vmem:[#allocation2 + $0x15d0] sm:$0xff]
    %v844 = vld [vmem:[#allocation2 + $0x15d8] sm:$0xff]
    %v845 = vld [vmem:[#allocation2 + $0x15e0] sm:$0xff]
    %v846 = vld [vmem:[#allocation2 + $0x15e8] sm:$0xff]
    %v847 = vld [vmem:[#allocation2 + $0x15f0] sm:$0xff]
    %v848 = vld [vmem:[#allocation2 + $0x15f8] sm:$0xff]
    %v849 = vld [vmem:[#allocation2 + $0x1600] sm:$0xff]
    %v850 = vld [vmem:[#allocation2 + $0x1608] sm:$0xff]
    %v851 = vld [vmem:[#allocation2 + $0x1610] sm:$0xff]
    %v852 = vld [vmem:[#allocation2 + $0x1618] sm:$0xff]
    %v853 = vld [vmem:[#allocation2 + $0x1620] sm:$0xff]
    %v854 = vld [vmem:[#allocation2 + $0x1628] sm:$0xff]
    %v855 = vld [vmem:[#allocation2 + $0x1630] sm:$0xff]
    %v856 = vld [vmem:[#allocation2 + $0x1638] sm:$0xff]
    %v857 = vld [vmem:[#allocation2 + $0x1640] sm:$0xff]
    %v858 = vld [vmem:[#allocation2 + $0x1648] sm:$0xff]
    %v859 = vld [vmem:[#allocation2 + $0x1650] sm:$0xff]
    %v860 = vld [vmem:[#allocation2 + $0x1658] sm:$0xff]
    %v861 = vld [vmem:[#allocation2 + $0x1660] sm:$0xff]
    %v862 = vld [vmem:[#allocation2 + $0x1668] sm:$0xff]
    %v863 = vld [vmem:[#allocation2 + $0x1670] sm:$0xff]
    %v864 = vld [vmem:[#allocation2 + $0x1678] sm:$0xff]
    %v865 = vld [vmem:[#allocation2 + $0x1680] sm:$0xff]
    %v866 = vld [vmem:[#allocation2 + $0x1688] sm:$0xff]
    %v867 = vld [vmem:[#allocation2 + $0x1690] sm:$0xff]
    %v868 = vld [vmem:[#allocation2 + $0x1698] sm:$0xff]
    %v869 = vld [vmem:[#allocation2 + $0x16a0] sm:$0xff]
    %v870 = vld [vmem:[#allocation2 + $0x16a8] sm:$0xff]
    %v871 = vld [vmem:[#allocation2 + $0x16b0] sm:$0xff]
    %v872 = vld [vmem:[#allocation2 + $0x16b8] sm:$0xff]
    %v873 = vld [vmem:[#allocation2 + $0x16c0] sm:$0xff]
    %v874 = vld [vmem:[#allocation2 + $0x16c8] sm:$0xff]
    %v875 = vld [vmem:[#allocation2 + $0x16d0] sm:$0xff]
    %v876 = vld [vmem:[#allocation2 + $0x16d8] sm:$0xff]
    %v877 = vld [vmem:[#allocation2 + $0x16e0] sm:$0xff]
    %v878 = vld [vmem:[#allocation2 + $0x16e8] sm:$0xff]
    %v879 = vld [vmem:[#allocation2 + $0x16f0] sm:$0xff]
    %v880 = vld [vmem:[#allocation2 + $0x16f8] sm:$0xff]
    %v881 = vld [vmem:[#allocation2 + $0x1700] sm:$0xff]
    %v882 = vld [vmem:[#allocation2 + $0x1708] sm:$0xff]
    %v883 = vld [vmem:[#allocation2 + $0x1710] sm:$0xff]
    %v884 = vld [vmem:[#allocation2 + $0x1718] sm:$0xff]
    %v885 = vld [vmem:[#allocation2 + $0x1720] sm:$0xff]
    %v886 = vld [vmem:[#allocation2 + $0x1728] sm:$0xff]
    %v887 = vld [vmem:[#allocation2 + $0x1730] sm:$0xff]
    %v888 = vld [vmem:[#allocation2 + $0x1738] sm:$0xff]
    %v889 = vld [vmem:[#allocation2 + $0x1740] sm:$0xff]
    %v890 = vld [vmem:[#allocation2 + $0x1748] sm:$0xff]
    %v891 = vld [vmem:[#allocation2 + $0x1750] sm:$0xff]
    %v892 = vld [vmem:[#allocation2 + $0x1758] sm:$0xff]
    %v893 = vld [vmem:[#allocation2 + $0x1760] sm:$0xff]
    %v894 = vld [vmem:[#allocation2 + $0x1768] sm:$0xff]
    %v895 = vld [vmem:[#allocation2 + $0x1770] sm:$0xff]
    %v896 = vld [vmem:[#allocation2 + $0x1778] sm:$0xff]
    %v897 = vld [vmem:[#allocation2 + $0x1780] sm:$0xff]
    %v898 = vld [vmem:[#allocation2 + $0x1788] sm:$0xff]
    %v899 = vld [vmem:[#allocation2 + $0x1790] sm:$0xff]
    %v900 = vld [vmem:[#allocation2 + $0x1798] sm:$0xff]
    %v901 = vld [vmem:[#allocation2 + $0x17a0] sm:$0xff]
    %v902 = vld [vmem:[#allocation2 + $0x17a8] sm:$0xff]
    %v903 = vld [vmem:[#allocation2 + $0x17b0] sm:$0xff]
    %v904 = vld [vmem:[#allocation2 + $0x17b8] sm:$0xff]
    %v905 = vld [vmem:[#allocation2 + $0x17c0] sm:$0xff]
    %v906 = vld [vmem:[#allocation2 + $0x17c8] sm:$0xff]
    %v907 = vld [vmem:[#allocation2 + $0x17d0] sm:$0xff]
    %v908 = vld [vmem:[#allocation2 + $0x17d8] sm:$0xff]
    %v909 = vld [vmem:[#allocation2 + $0x17e0] sm:$0xff]
    %v910 = vld [vmem:[#allocation2 + $0x17e8] sm:$0xff]
    %v911 = vld [vmem:[#allocation2 + $0x17f0] sm:$0xff]
    %v912 = vld [vmem:[#allocation2 + $0x17f8] sm:$0xff]
    %v1681 = vunpack.c.l.b16 %v145
    %v1682 = vunpack.c.h.b16 %v145
    %v1683 = vunpack.c.l.b16 %v146
    %v1684 = vunpack.c.h.b16 %v146
    %v1685 = vunpack.c.l.b16 %v147
    %v1686 = vunpack.c.h.b16 %v147
    %v1687 = vunpack.c.l.b16 %v148
    %v1688 = vunpack.c.h.b16 %v148
    %v1689 = vunpack.c.l.b16 %v149
    %v1690 = vunpack.c.h.b16 %v149
    %v1691 = vunpack.c.l.b16 %v150
    %v1692 = vunpack.c.h.b16 %v150
    %v1693 = vunpack.c.l.b16 %v151
    %v1694 = vunpack.c.h.b16 %v151
    %v1695 = vunpack.c.l.b16 %v152
    %v1696 = vunpack.c.h.b16 %v152
    %v1697 = vunpack.c.l.b16 %v153
    %v1698 = vunpack.c.h.b16 %v153
    %v1699 = vunpack.c.l.b16 %v154
    %v1700 = vunpack.c.h.b16 %v154
    %v1701 = vunpack.c.l.b16 %v155
    %v1702 = vunpack.c.h.b16 %v155
    %v1703 = vunpack.c.l.b16 %v156
    %v1704 = vunpack.c.h.b16 %v156
    %v1705 = vunpack.c.l.b16 %v157
    %v1706 = vunpack.c.h.b16 %v157
    %v1707 = vunpack.c.l.b16 %v158
    %v1708 = vunpack.c.h.b16 %v158
    %v1709 = vunpack.c.l.b16 %v159
    %v1710 = vunpack.c.h.b16 %v159
    %v1711 = vunpack.c.l.b16 %v160
    %v1712 = vunpack.c.h.b16 %v160
    %v1713 = vunpack.c.l.b16 %v161
    %v1714 = vunpack.c.h.b16 %v161
    %v1715 = vunpack.c.l.b16 %v162
    %v1716 = vunpack.c.h.b16 %v162
    %v1717 = vunpack.c.l.b16 %v163
    %v1718 = vunpack.c.h.b16 %v163
    %v1719 = vunpack.c.l.b16 %v164
    %v1720 = vunpack.c.h.b16 %v164
    %v1721 = vunpack.c.l.b16 %v165
    %v1722 = vunpack.c.h.b16 %v165
    %v1723 = vunpack.c.l.b16 %v166
    %v1724 = vunpack.c.h.b16 %v166
    %v1725 = vunpack.c.l.b16 %v167
    %v1726 = vunpack.c.h.b16 %v167
    %v1727 = vunpack.c.l.b16 %v168
    %v1728 = vunpack.c.h.b16 %v168
    %v1729 = vunpack.c.l.b16 %v169
    %v1730 = vunpack.c.h.b16 %v169
    %v1731 = vunpack.c.l.b16 %v170
    %v1732 = vunpack.c.h.b16 %v170
    %v1733 = vunpack.c.l.b16 %v171
    %v1734 = vunpack.c.h.b16 %v171
    %v1735 = vunpack.c.l.b16 %v172
    %v1736 = vunpack.c.h.b16 %v172
    %v1737 = vunpack.c.l.b16 %v173
    %v1738 = vunpack.c.h.b16 %v173
    %v1739 = vunpack.c.l.b16 %v174
    %v1740 = vunpack.c.h.b16 %v174
    %v1741 = vunpack.c.l.b16 %v175
    %v1742 = vunpack.c.h.b16 %v175
    %v1743 = vunpack.c.l.b16 %v176
    %v1744 = vunpack.c.h.b16 %v176
    %v1745 = vunpack.c.l.b16 %v177
    %v1746 = vunpack.c.h.b16 %v177
    %v1747 = vunpack.c.l.b16 %v178
    %v1748 = vunpack.c.h.b16 %v178
    %v1749 = vunpack.c.l.b16 %v179
    %v1750 = vunpack.c.h.b16 %v179
    %v1751 = vunpack.c.l.b16 %v180
    %v1752 = vunpack.c.h.b16 %v180
    %v1753 = vunpack.c.l.b16 %v181
    %v1754 = vunpack.c.h.b16 %v181
    %v1755 = vunpack.c.l.b16 %v182
    %v1756 = vunpack.c.h.b16 %v182
    %v1757 = vunpack.c.l.b16 %v183
    %v1758 = vunpack.c.h.b16 %v183
    %v1759 = vunpack.c.l.b16 %v184
    %v1760 = vunpack.c.h.b16 %v184
    %v1761 = vunpack.c.l.b16 %v185
    %v1762 = vunpack.c.h.b16 %v185
    %v1763 = vunpack.c.l.b16 %v186
    %v1764 = vunpack.c.h.b16 %v186
    %v1765 = vunpack.c.l.b16 %v187
    %v1766 = vunpack.c.h.b16 %v187
    %v1767 = vunpack.c.l.b16 %v188
    %v1768 = vunpack.c.h.b16 %v188
    %v1769 = vunpack.c.l.b16 %v189
    %v1770 = vunpack.c.h.b16 %v189
    %v1771 = vunpack.c.l.b16 %v190
    %v1772 = vunpack.c.h.b16 %v190
    %v1773 = vunpack.c.l.b16 %v191
    %v1774 = vunpack.c.h.b16 %v191
    %v1775 = vunpack.c.l.b16 %v192
    %v1776 = vunpack.c.h.b16 %v192
    %v1777 = vunpack.c.l.b16 %v193
    %v1778 = vunpack.c.h.b16 %v193
    %v1779 = vunpack.c.l.b16 %v194
    %v1780 = vunpack.c.h.b16 %v194
    %v1781 = vunpack.c.l.b16 %v195
    %v1782 = vunpack.c.h.b16 %v195
    %v1783 = vunpack.c.l.b16 %v196
    %v1784 = vunpack.c.h.b16 %v196
    %v1785 = vunpack.c.l.b16 %v197
    %v1786 = vunpack.c.h.b16 %v197
    %v1787 = vunpack.c.l.b16 %v198
    %v1788 = vunpack.c.h.b16 %v198
    %v1789 = vunpack.c.l.b16 %v199
    %v1790 = vunpack.c.h.b16 %v199
    %v1791 = vunpack.c.l.b16 %v200
    %v1792 = vunpack.c.h.b16 %v200
    %v1793 = vunpack.c.l.b16 %v201
    %v1794 = vunpack.c.h.b16 %v201
    %v1795 = vunpack.c.l.b16 %v202
    %v1796 = vunpack.c.h.b16 %v202
    %v1797 = vunpack.c.l.b16 %v203
    %v1798 = vunpack.c.h.b16 %v203
    %v1799 = vunpack.c.l.b16 %v204
    %v1800 = vunpack.c.h.b16 %v204
    %v1801 = vunpack.c.l.b16 %v205
    %v1802 = vunpack.c.h.b16 %v205
    %v1803 = vunpack.c.l.b16 %v206
    %v1804 = vunpack.c.h.b16 %v206
    %v1805 = vunpack.c.l.b16 %v207
    %v1806 = vunpack.c.h.b16 %v207
    %v1807 = vunpack.c.l.b16 %v208
    %v1808 = vunpack.c.h.b16 %v208
    %v1809 = vunpack.c.l.b16 %v209
    %v1810 = vunpack.c.h.b16 %v209
    %v1811 = vunpack.c.l.b16 %v210
    %v1812 = vunpack.c.h.b16 %v210
    %v1813 = vunpack.c.l.b16 %v211
    %v1814 = vunpack.c.h.b16 %v211
    %v1815 = vunpack.c.l.b16 %v212
    %v1816 = vunpack.c.h.b16 %v212
    %v1817 = vunpack.c.l.b16 %v213
    %v1818 = vunpack.c.h.b16 %v213
    %v1819 = vunpack.c.l.b16 %v214
    %v1820 = vunpack.c.h.b16 %v214
    %v1821 = vunpack.c.l.b16 %v215
    %v1822 = vunpack.c.h.b16 %v215
    %v1823 = vunpack.c.l.b16 %v216
    %v1824 = vunpack.c.h.b16 %v216
    %v1825 = vunpack.c.l.b16 %v217
    %v1826 = vunpack.c.h.b16 %v217
    %v1827 = vunpack.c.l.b16 %v218
    %v1828 = vunpack.c.h.b16 %v218
    %v1829 = vunpack.c.l.b16 %v219
    %v1830 = vunpack.c.h.b16 %v219
    %v1831 = vunpack.c.l.b16 %v220
    %v1832 = vunpack.c.h.b16 %v220
    %v1833 = vunpack.c.l.b16 %v221
    %v1834 = vunpack.c.h.b16 %v221
    %v1835 = vunpack.c.l.b16 %v222
    %v1836 = vunpack.c.h.b16 %v222
    %v1837 = vunpack.c.l.b16 %v223
    %v1838 = vunpack.c.h.b16 %v223
    %v1839 = vunpack.c.l.b16 %v224
    %v1840 = vunpack.c.h.b16 %v224
    %v1841 = vunpack.c.l.b16 %v225
    %v1842 = vunpack.c.h.b16 %v225
    %v1843 = vunpack.c.l.b16 %v226
    %v1844 = vunpack.c.h.b16 %v226
    %v1845 = vunpack.c.l.b16 %v227
    %v1846 = vunpack.c.h.b16 %v227
    %v1847 = vunpack.c.l.b16 %v228
    %v1848 = vunpack.c.h.b16 %v228
    %v1849 = vunpack.c.l.b16 %v229
    %v1850 = vunpack.c.h.b16 %v229
    %v1851 = vunpack.c.l.b16 %v230
    %v1852 = vunpack.c.h.b16 %v230
    %v1853 = vunpack.c.l.b16 %v231
    %v1854 = vunpack.c.h.b16 %v231
    %v1855 = vunpack.c.l.b16 %v232
    %v1856 = vunpack.c.h.b16 %v232
    %v1857 = vunpack.c.l.b16 %v233
    %v1858 = vunpack.c.h.b16 %v233
    %v1859 = vunpack.c.l.b16 %v234
    %v1860 = vunpack.c.h.b16 %v234
    %v1861 = vunpack.c.l.b16 %v235
    %v1862 = vunpack.c.h.b16 %v235
    %v1863 = vunpack.c.l.b16 %v236
    %v1864 = vunpack.c.h.b16 %v236
    %v1865 = vunpack.c.l.b16 %v237
    %v1866 = vunpack.c.h.b16 %v237
    %v1867 = vunpack.c.l.b16 %v238
    %v1868 = vunpack.c.h.b16 %v238
    %v1869 = vunpack.c.l.b16 %v239
    %v1870 = vunpack.c.h.b16 %v239
    %v1871 = vunpack.c.l.b16 %v240
    %v1872 = vunpack.c.h.b16 %v240
    %v1873 = vunpack.c.l.b16 %v241
    %v1874 = vunpack.c.h.b16 %v241
    %v1875 = vunpack.c.l.b16 %v242
    %v1876 = vunpack.c.h.b16 %v242
    %v1877 = vunpack.c.l.b16 %v243
    %v1878 = vunpack.c.h.b16 %v243
    %v1879 = vunpack.c.l.b16 %v244
    %v1880 = vunpack.c.h.b16 %v244
    %v1881 = vunpack.c.l.b16 %v245
    %v1882 = vunpack.c.h.b16 %v245
    %v1883 = vunpack.c.l.b16 %v246
    %v1884 = vunpack.c.h.b16 %v246
    %v1885 = vunpack.c.l.b16 %v247
    %v1886 = vunpack.c.h.b16 %v247
    %v1887 = vunpack.c.l.b16 %v248
    %v1888 = vunpack.c.h.b16 %v248
    %v1889 = vunpack.c.l.b16 %v249
    %v1890 = vunpack.c.h.b16 %v249
    %v1891 = vunpack.c.l.b16 %v250
    %v1892 = vunpack.c.h.b16 %v250
    %v1893 = vunpack.c.l.b16 %v251
    %v1894 = vunpack.c.h.b16 %v251
    %v1895 = vunpack.c.l.b16 %v252
    %v1896 = vunpack.c.h.b16 %v252
    %v1897 = vunpack.c.l.b16 %v253
    %v1898 = vunpack.c.h.b16 %v253
    %v1899 = vunpack.c.l.b16 %v254
    %v1900 = vunpack.c.h.b16 %v254
    %v1901 = vunpack.c.l.b16 %v255
    %v1902 = vunpack.c.h.b16 %v255
    %v1903 = vunpack.c.l.b16 %v256
    %v1904 = vunpack.c.h.b16 %v256
    %v1905 = vunpack.c.l.b16 %v257
    %v1906 = vunpack.c.h.b16 %v257
    %v1907 = vunpack.c.l.b16 %v258
    %v1908 = vunpack.c.h.b16 %v258
    %v1909 = vunpack.c.l.b16 %v259
    %v1910 = vunpack.c.h.b16 %v259
    %v1911 = vunpack.c.l.b16 %v260
    %v1912 = vunpack.c.h.b16 %v260
    %v1913 = vunpack.c.l.b16 %v261
    %v1914 = vunpack.c.h.b16 %v261
    %v1915 = vunpack.c.l.b16 %v262
    %v1916 = vunpack.c.h.b16 %v262
    %v1917 = vunpack.c.l.b16 %v263
    %v1918 = vunpack.c.h.b16 %v263
    %v1919 = vunpack.c.l.b16 %v264
    %v1920 = vunpack.c.h.b16 %v264
    %v1921 = vunpack.c.l.b16 %v265
    %v1922 = vunpack.c.h.b16 %v265
    %v1923 = vunpack.c.l.b16 %v266
    %v1924 = vunpack.c.h.b16 %v266
    %v1925 = vunpack.c.l.b16 %v267
    %v1926 = vunpack.c.h.b16 %v267
    %v1927 = vunpack.c.l.b16 %v268
    %v1928 = vunpack.c.h.b16 %v268
    %v1929 = vunpack.c.l.b16 %v269
    %v1930 = vunpack.c.h.b16 %v269
    %v1931 = vunpack.c.l.b16 %v270
    %v1932 = vunpack.c.h.b16 %v270
    %v1933 = vunpack.c.l.b16 %v271
    %v1934 = vunpack.c.h.b16 %v271
    %v1935 = vunpack.c.l.b16 %v272
    %v1936 = vunpack.c.h.b16 %v272
    %v1937 = vunpack.c.l.b16 %v273
    %v1938 = vunpack.c.h.b16 %v273
    %v1939 = vunpack.c.l.b16 %v274
    %v1940 = vunpack.c.h.b16 %v274
    %v1941 = vunpack.c.l.b16 %v275
    %v1942 = vunpack.c.h.b16 %v275
    %v1943 = vunpack.c.l.b16 %v276
    %v1944 = vunpack.c.h.b16 %v276
    %v1945 = vunpack.c.l.b16 %v277
    %v1946 = vunpack.c.h.b16 %v277
    %v1947 = vunpack.c.l.b16 %v278
    %v1948 = vunpack.c.h.b16 %v278
    %v1949 = vunpack.c.l.b16 %v279
    %v1950 = vunpack.c.h.b16 %v279
    %v1951 = vunpack.c.l.b16 %v280
    %v1952 = vunpack.c.h.b16 %v280
    %v1953 = vunpack.c.l.b16 %v281
    %v1954 = vunpack.c.h.b16 %v281
    %v1955 = vunpack.c.l.b16 %v282
    %v1956 = vunpack.c.h.b16 %v282
    %v1957 = vunpack.c.l.b16 %v283
    %v1958 = vunpack.c.h.b16 %v283
    %v1959 = vunpack.c.l.b16 %v284
    %v1960 = vunpack.c.h.b16 %v284
    %v1961 = vunpack.c.l.b16 %v285
    %v1962 = vunpack.c.h.b16 %v285
    %v1963 = vunpack.c.l.b16 %v286
    %v1964 = vunpack.c.h.b16 %v286
    %v1965 = vunpack.c.l.b16 %v287
    %v1966 = vunpack.c.h.b16 %v287
    %v1967 = vunpack.c.l.b16 %v288
    %v1968 = vunpack.c.h.b16 %v288
    %v1969 = vunpack.c.l.b16 %v289
    %v1970 = vunpack.c.h.b16 %v289
    %v1971 = vunpack.c.l.b16 %v290
    %v1972 = vunpack.c.h.b16 %v290
    %v1973 = vunpack.c.l.b16 %v291
    %v1974 = vunpack.c.h.b16 %v291
    %v1975 = vunpack.c.l.b16 %v292
    %v1976 = vunpack.c.h.b16 %v292
    %v1977 = vunpack.c.l.b16 %v293
    %v1978 = vunpack.c.h.b16 %v293
    %v1979 = vunpack.c.l.b16 %v294
    %v1980 = vunpack.c.h.b16 %v294
    %v1981 = vunpack.c.l.b16 %v295
    %v1982 = vunpack.c.h.b16 %v295
    %v1983 = vunpack.c.l.b16 %v296
    %v1984 = vunpack.c.h.b16 %v296
    %v1985 = vunpack.c.l.b16 %v297
    %v1986 = vunpack.c.h.b16 %v297
    %v1987 = vunpack.c.l.b16 %v298
    %v1988 = vunpack.c.h.b16 %v298
    %v1989 = vunpack.c.l.b16 %v299
    %v1990 = vunpack.c.h.b16 %v299
    %v1991 = vunpack.c.l.b16 %v300
    %v1992 = vunpack.c.h.b16 %v300
    %v1993 = vunpack.c.l.b16 %v301
    %v1994 = vunpack.c.h.b16 %v301
    %v1995 = vunpack.c.l.b16 %v302
    %v1996 = vunpack.c.h.b16 %v302
    %v1997 = vunpack.c.l.b16 %v303
    %v1998 = vunpack.c.h.b16 %v303
    %v1999 = vunpack.c.l.b16 %v304
    %v2000 = vunpack.c.h.b16 %v304
    %v2001 = vunpack.c.l.b16 %v305
    %v2002 = vunpack.c.h.b16 %v305
    %v2003 = vunpack.c.l.b16 %v306
    %v2004 = vunpack.c.h.b16 %v306
    %v2005 = vunpack.c.l.b16 %v307
    %v2006 = vunpack.c.h.b16 %v307
    %v2007 = vunpack.c.l.b16 %v308
    %v2008 = vunpack.c.h.b16 %v308
    %v2009 = vunpack.c.l.b16 %v309
    %v2010 = vunpack.c.h.b16 %v309
    %v2011 = vunpack.c.l.b16 %v310
    %v2012 = vunpack.c.h.b16 %v310
    %v2013 = vunpack.c.l.b16 %v311
    %v2014 = vunpack.c.h.b16 %v311
    %v2015 = vunpack.c.l.b16 %v312
    %v2016 = vunpack.c.h.b16 %v312
    %v2017 = vunpack.c.l.b16 %v313
    %v2018 = vunpack.c.h.b16 %v313
    %v2019 = vunpack.c.l.b16 %v314
    %v2020 = vunpack.c.h.b16 %v314
    %v2021 = vunpack.c.l.b16 %v315
    %v2022 = vunpack.c.h.b16 %v315
    %v2023 = vunpack.c.l.b16 %v316
    %v2024 = vunpack.c.h.b16 %v316
    %v2025 = vunpack.c.l.b16 %v317
    %v2026 = vunpack.c.h.b16 %v317
    %v2027 = vunpack.c.l.b16 %v318
    %v2028 = vunpack.c.h.b16 %v318
    %v2029 = vunpack.c.l.b16 %v319
    %v2030 = vunpack.c.h.b16 %v319
    %v2031 = vunpack.c.l.b16 %v320
    %v2032 = vunpack.c.h.b16 %v320
    %v2033 = vunpack.c.l.b16 %v321
    %v2034 = vunpack.c.h.b16 %v321
    %v2035 = vunpack.c.l.b16 %v322
    %v2036 = vunpack.c.h.b16 %v322
    %v2037 = vunpack.c.l.b16 %v323
    %v2038 = vunpack.c.h.b16 %v323
    %v2039 = vunpack.c.l.b16 %v324
    %v2040 = vunpack.c.h.b16 %v324
    %v2041 = vunpack.c.l.b16 %v325
    %v2042 = vunpack.c.h.b16 %v325
    %v2043 = vunpack.c.l.b16 %v326
    %v2044 = vunpack.c.h.b16 %v326
    %v2045 = vunpack.c.l.b16 %v327
    %v2046 = vunpack.c.h.b16 %v327
    %v2047 = vunpack.c.l.b16 %v328
    %v2048 = vunpack.c.h.b16 %v328
    %v2049 = vunpack.c.l.b16 %v329
    %v2050 = vunpack.c.h.b16 %v329
    %v2051 = vunpack.c.l.b16 %v330
    %v2052 = vunpack.c.h.b16 %v330
    %v2053 = vunpack.c.l.b16 %v331
    %v2054 = vunpack.c.h.b16 %v331
    %v2055 = vunpack.c.l.b16 %v332
    %v2056 = vunpack.c.h.b16 %v332
    %v2057 = vunpack.c.l.b16 %v333
    %v2058 = vunpack.c.h.b16 %v333
    %v2059 = vunpack.c.l.b16 %v334
    %v2060 = vunpack.c.h.b16 %v334
    %v2061 = vunpack.c.l.b16 %v335
    %v2062 = vunpack.c.h.b16 %v335
    %v2063 = vunpack.c.l.b16 %v336
    %v2064 = vunpack.c.h.b16 %v336
    %v2065 = vunpack.c.l.b16 %v337
    %v2066 = vunpack.c.h.b16 %v337
    %v2067 = vunpack.c.l.b16 %v338
    %v2068 = vunpack.c.h.b16 %v338
    %v2069 = vunpack.c.l.b16 %v339
    %v2070 = vunpack.c.h.b16 %v339
    %v2071 = vunpack.c.l.b16 %v340
    %v2072 = vunpack.c.h.b16 %v340
    %v2073 = vunpack.c.l.b16 %v341
    %v2074 = vunpack.c.h.b16 %v341
    %v2075 = vunpack.c.l.b16 %v342
    %v2076 = vunpack.c.h.b16 %v342
    %v2077 = vunpack.c.l.b16 %v343
    %v2078 = vunpack.c.h.b16 %v343
    %v2079 = vunpack.c.l.b16 %v344
    %v2080 = vunpack.c.h.b16 %v344
    %v2081 = vunpack.c.l.b16 %v345
    %v2082 = vunpack.c.h.b16 %v345
    %v2083 = vunpack.c.l.b16 %v346
    %v2084 = vunpack.c.h.b16 %v346
    %v2085 = vunpack.c.l.b16 %v347
    %v2086 = vunpack.c.h.b16 %v347
    %v2087 = vunpack.c.l.b16 %v348
    %v2088 = vunpack.c.h.b16 %v348
    %v2089 = vunpack.c.l.b16 %v349
    %v2090 = vunpack.c.h.b16 %v349
    %v2091 = vunpack.c.l.b16 %v350
    %v2092 = vunpack.c.h.b16 %v350
    %v2093 = vunpack.c.l.b16 %v351
    %v2094 = vunpack.c.h.b16 %v351
    %v2095 = vunpack.c.l.b16 %v352
    %v2096 = vunpack.c.h.b16 %v352
    %v2097 = vunpack.c.l.b16 %v353
    %v2098 = vunpack.c.h.b16 %v353
    %v2099 = vunpack.c.l.b16 %v354
    %v2100 = vunpack.c.h.b16 %v354
    %v2101 = vunpack.c.l.b16 %v355
    %v2102 = vunpack.c.h.b16 %v355
    %v2103 = vunpack.c.l.b16 %v356
    %v2104 = vunpack.c.h.b16 %v356
    %v2105 = vunpack.c.l.b16 %v357
    %v2106 = vunpack.c.h.b16 %v357
    %v2107 = vunpack.c.l.b16 %v358
    %v2108 = vunpack.c.h.b16 %v358
    %v2109 = vunpack.c.l.b16 %v359
    %v2110 = vunpack.c.h.b16 %v359
    %v2111 = vunpack.c.l.b16 %v360
    %v2112 = vunpack.c.h.b16 %v360
    %v2113 = vunpack.c.l.b16 %v361
    %v2114 = vunpack.c.h.b16 %v361
    %v2115 = vunpack.c.l.b16 %v362
    %v2116 = vunpack.c.h.b16 %v362
    %v2117 = vunpack.c.l.b16 %v363
    %v2118 = vunpack.c.h.b16 %v363
    %v2119 = vunpack.c.l.b16 %v364
    %v2120 = vunpack.c.h.b16 %v364
    %v2121 = vunpack.c.l.b16 %v365
    %v2122 = vunpack.c.h.b16 %v365
    %v2123 = vunpack.c.l.b16 %v366
    %v2124 = vunpack.c.h.b16 %v366
    %v2125 = vunpack.c.l.b16 %v367
    %v2126 = vunpack.c.h.b16 %v367
    %v2127 = vunpack.c.l.b16 %v368
    %v2128 = vunpack.c.h.b16 %v368
    %v2129 = vunpack.c.l.b16 %v369
    %v2130 = vunpack.c.h.b16 %v369
    %v2131 = vunpack.c.l.b16 %v370
    %v2132 = vunpack.c.h.b16 %v370
    %v2133 = vunpack.c.l.b16 %v371
    %v2134 = vunpack.c.h.b16 %v371
    %v2135 = vunpack.c.l.b16 %v372
    %v2136 = vunpack.c.h.b16 %v372
    %v2137 = vunpack.c.l.b16 %v373
    %v2138 = vunpack.c.h.b16 %v373
    %v2139 = vunpack.c.l.b16 %v374
    %v2140 = vunpack.c.h.b16 %v374
    %v2141 = vunpack.c.l.b16 %v375
    %v2142 = vunpack.c.h.b16 %v375
    %v2143 = vunpack.c.l.b16 %v376
    %v2144 = vunpack.c.h.b16 %v376
    %v2145 = vunpack.c.l.b16 %v377
    %v2146 = vunpack.c.h.b16 %v377
    %v2147 = vunpack.c.l.b16 %v378
    %v2148 = vunpack.c.h.b16 %v378
    %v2149 = vunpack.c.l.b16 %v379
    %v2150 = vunpack.c.h.b16 %v379
    %v2151 = vunpack.c.l.b16 %v380
    %v2152 = vunpack.c.h.b16 %v380
    %v2153 = vunpack.c.l.b16 %v381
    %v2154 = vunpack.c.h.b16 %v381
    %v2155 = vunpack.c.l.b16 %v382
    %v2156 = vunpack.c.h.b16 %v382
    %v2157 = vunpack.c.l.b16 %v383
    %v2158 = vunpack.c.h.b16 %v383
    %v2159 = vunpack.c.l.b16 %v384
    %v2160 = vunpack.c.h.b16 %v384
    %v2161 = vunpack.c.l.b16 %v385
    %v2162 = vunpack.c.h.b16 %v385
    %v2163 = vunpack.c.l.b16 %v386
    %v2164 = vunpack.c.h.b16 %v386
    %v2165 = vunpack.c.l.b16 %v387
    %v2166 = vunpack.c.h.b16 %v387
    %v2167 = vunpack.c.l.b16 %v388
    %v2168 = vunpack.c.h.b16 %v388
    %v2169 = vunpack.c.l.b16 %v389
    %v2170 = vunpack.c.h.b16 %v389
    %v2171 = vunpack.c.l.b16 %v390
    %v2172 = vunpack.c.h.b16 %v390
    %v2173 = vunpack.c.l.b16 %v391
    %v2174 = vunpack.c.h.b16 %v391
    %v2175 = vunpack.c.l.b16 %v392
    %v2176 = vunpack.c.h.b16 %v392
    %v2177 = vunpack.c.l.b16 %v393
    %v2178 = vunpack.c.h.b16 %v393
    %v2179 = vunpack.c.l.b16 %v394
    %v2180 = vunpack.c.h.b16 %v394
    %v2181 = vunpack.c.l.b16 %v395
    %v2182 = vunpack.c.h.b16 %v395
    %v2183 = vunpack.c.l.b16 %v396
    %v2184 = vunpack.c.h.b16 %v396
    %v2185 = vunpack.c.l.b16 %v397
    %v2186 = vunpack.c.h.b16 %v397
    %v2187 = vunpack.c.l.b16 %v398
    %v2188 = vunpack.c.h.b16 %v398
    %v2189 = vunpack.c.l.b16 %v399
    %v2190 = vunpack.c.h.b16 %v399
    %v2191 = vunpack.c.l.b16 %v400
    %v2192 = vunpack.c.h.b16 %v400
    %v2193 = vunpack.c.l.b16 %v401
    %v2194 = vunpack.c.h.b16 %v401
    %v2195 = vunpack.c.l.b16 %v402
    %v2196 = vunpack.c.h.b16 %v402
    %v2197 = vunpack.c.l.b16 %v403
    %v2198 = vunpack.c.h.b16 %v403
    %v2199 = vunpack.c.l.b16 %v404
    %v2200 = vunpack.c.h.b16 %v404
    %v2201 = vunpack.c.l.b16 %v405
    %v2202 = vunpack.c.h.b16 %v405
    %v2203 = vunpack.c.l.b16 %v406
    %v2204 = vunpack.c.h.b16 %v406
    %v2205 = vunpack.c.l.b16 %v407
    %v2206 = vunpack.c.h.b16 %v407
    %v2207 = vunpack.c.l.b16 %v408
    %v2208 = vunpack.c.h.b16 %v408
    %v2209 = vunpack.c.l.b16 %v409
    %v2210 = vunpack.c.h.b16 %v409
    %v2211 = vunpack.c.l.b16 %v410
    %v2212 = vunpack.c.h.b16 %v410
    %v2213 = vunpack.c.l.b16 %v411
    %v2214 = vunpack.c.h.b16 %v411
    %v2215 = vunpack.c.l.b16 %v412
    %v2216 = vunpack.c.h.b16 %v412
    %v2217 = vunpack.c.l.b16 %v413
    %v2218 = vunpack.c.h.b16 %v413
    %v2219 = vunpack.c.l.b16 %v414
    %v2220 = vunpack.c.h.b16 %v414
    %v2221 = vunpack.c.l.b16 %v415
    %v2222 = vunpack.c.h.b16 %v415
    %v2223 = vunpack.c.l.b16 %v416
    %v2224 = vunpack.c.h.b16 %v416
    %v2225 = vunpack.c.l.b16 %v417
    %v2226 = vunpack.c.h.b16 %v417
    %v2227 = vunpack.c.l.b16 %v418
    %v2228 = vunpack.c.h.b16 %v418
    %v2229 = vunpack.c.l.b16 %v419
    %v2230 = vunpack.c.h.b16 %v419
    %v2231 = vunpack.c.l.b16 %v420
    %v2232 = vunpack.c.h.b16 %v420
    %v2233 = vunpack.c.l.b16 %v421
    %v2234 = vunpack.c.h.b16 %v421
    %v2235 = vunpack.c.l.b16 %v422
    %v2236 = vunpack.c.h.b16 %v422
    %v2237 = vunpack.c.l.b16 %v423
    %v2238 = vunpack.c.h.b16 %v423
    %v2239 = vunpack.c.l.b16 %v424
    %v2240 = vunpack.c.h.b16 %v424
    %v2241 = vunpack.c.l.b16 %v425
    %v2242 = vunpack.c.h.b16 %v425
    %v2243 = vunpack.c.l.b16 %v426
    %v2244 = vunpack.c.h.b16 %v426
    %v2245 = vunpack.c.l.b16 %v427
    %v2246 = vunpack.c.h.b16 %v427
    %v2247 = vunpack.c.l.b16 %v428
    %v2248 = vunpack.c.h.b16 %v428
    %v2249 = vunpack.c.l.b16 %v429
    %v2250 = vunpack.c.h.b16 %v429
    %v2251 = vunpack.c.l.b16 %v430
    %v2252 = vunpack.c.h.b16 %v430
    %v2253 = vunpack.c.l.b16 %v431
    %v2254 = vunpack.c.h.b16 %v431
    %v2255 = vunpack.c.l.b16 %v432
    %v2256 = vunpack.c.h.b16 %v432
    %v2257 = vunpack.c.l.b16 %v433
    %v2258 = vunpack.c.h.b16 %v433
    %v2259 = vunpack.c.l.b16 %v434
    %v2260 = vunpack.c.h.b16 %v434
    %v2261 = vunpack.c.l.b16 %v435
    %v2262 = vunpack.c.h.b16 %v435
    %v2263 = vunpack.c.l.b16 %v436
    %v2264 = vunpack.c.h.b16 %v436
    %v2265 = vunpack.c.l.b16 %v437
    %v2266 = vunpack.c.h.b16 %v437
    %v2267 = vunpack.c.l.b16 %v438
    %v2268 = vunpack.c.h.b16 %v438
    %v2269 = vunpack.c.l.b16 %v439
    %v2270 = vunpack.c.h.b16 %v439
    %v2271 = vunpack.c.l.b16 %v440
    %v2272 = vunpack.c.h.b16 %v440
    %v2273 = vunpack.c.l.b16 %v441
    %v2274 = vunpack.c.h.b16 %v441
    %v2275 = vunpack.c.l.b16 %v442
    %v2276 = vunpack.c.h.b16 %v442
    %v2277 = vunpack.c.l.b16 %v443
    %v2278 = vunpack.c.h.b16 %v443
    %v2279 = vunpack.c.l.b16 %v444
    %v2280 = vunpack.c.h.b16 %v444
    %v2281 = vunpack.c.l.b16 %v445
    %v2282 = vunpack.c.h.b16 %v445
    %v2283 = vunpack.c.l.b16 %v446
    %v2284 = vunpack.c.h.b16 %v446
    %v2285 = vunpack.c.l.b16 %v447
    %v2286 = vunpack.c.h.b16 %v447
    %v2287 = vunpack.c.l.b16 %v448
    %v2288 = vunpack.c.h.b16 %v448
    %v2289 = vunpack.c.l.b16 %v449
    %v2290 = vunpack.c.h.b16 %v449
    %v2291 = vunpack.c.l.b16 %v450
    %v2292 = vunpack.c.h.b16 %v450
    %v2293 = vunpack.c.l.b16 %v451
    %v2294 = vunpack.c.h.b16 %v451
    %v2295 = vunpack.c.l.b16 %v452
    %v2296 = vunpack.c.h.b16 %v452
    %v2297 = vunpack.c.l.b16 %v453
    %v2298 = vunpack.c.h.b16 %v453
    %v2299 = vunpack.c.l.b16 %v454
    %v2300 = vunpack.c.h.b16 %v454
    %v2301 = vunpack.c.l.b16 %v455
    %v2302 = vunpack.c.h.b16 %v455
    %v2303 = vunpack.c.l.b16 %v456
    %v2304 = vunpack.c.h.b16 %v456
    %v2305 = vunpack.c.l.b16 %v457
    %v2306 = vunpack.c.h.b16 %v457
    %v2307 = vunpack.c.l.b16 %v458
    %v2308 = vunpack.c.h.b16 %v458
    %v2309 = vunpack.c.l.b16 %v459
    %v2310 = vunpack.c.h.b16 %v459
    %v2311 = vunpack.c.l.b16 %v460
    %v2312 = vunpack.c.h.b16 %v460
    %v2313 = vunpack.c.l.b16 %v461
    %v2314 = vunpack.c.h.b16 %v461
    %v2315 = vunpack.c.l.b16 %v462
    %v2316 = vunpack.c.h.b16 %v462
    %v2317 = vunpack.c.l.b16 %v463
    %v2318 = vunpack.c.h.b16 %v463
    %v2319 = vunpack.c.l.b16 %v464
    %v2320 = vunpack.c.h.b16 %v464
    %v2321 = vunpack.c.l.b16 %v465
    %v2322 = vunpack.c.h.b16 %v465
    %v2323 = vunpack.c.l.b16 %v466
    %v2324 = vunpack.c.h.b16 %v466
    %v2325 = vunpack.c.l.b16 %v467
    %v2326 = vunpack.c.h.b16 %v467
    %v2327 = vunpack.c.l.b16 %v468
    %v2328 = vunpack.c.h.b16 %v468
    %v2329 = vunpack.c.l.b16 %v469
    %v2330 = vunpack.c.h.b16 %v469
    %v2331 = vunpack.c.l.b16 %v470
    %v2332 = vunpack.c.h.b16 %v470
    %v2333 = vunpack.c.l.b16 %v471
    %v2334 = vunpack.c.h.b16 %v471
    %v2335 = vunpack.c.l.b16 %v472
    %v2336 = vunpack.c.h.b16 %v472
    %v2337 = vunpack.c.l.b16 %v473
    %v2338 = vunpack.c.h.b16 %v473
    %v2339 = vunpack.c.l.b16 %v474
    %v2340 = vunpack.c.h.b16 %v474
    %v2341 = vunpack.c.l.b16 %v475
    %v2342 = vunpack.c.h.b16 %v475
    %v2343 = vunpack.c.l.b16 %v476
    %v2344 = vunpack.c.h.b16 %v476
    %v2345 = vunpack.c.l.b16 %v477
    %v2346 = vunpack.c.h.b16 %v477
    %v2347 = vunpack.c.l.b16 %v478
    %v2348 = vunpack.c.h.b16 %v478
    %v2349 = vunpack.c.l.b16 %v479
    %v2350 = vunpack.c.h.b16 %v479
    %v2351 = vunpack.c.l.b16 %v480
    %v2352 = vunpack.c.h.b16 %v480
    %v2353 = vunpack.c.l.b16 %v481
    %v2354 = vunpack.c.h.b16 %v481
    %v2355 = vunpack.c.l.b16 %v482
    %v2356 = vunpack.c.h.b16 %v482
    %v2357 = vunpack.c.l.b16 %v483
    %v2358 = vunpack.c.h.b16 %v483
    %v2359 = vunpack.c.l.b16 %v484
    %v2360 = vunpack.c.h.b16 %v484
    %v2361 = vunpack.c.l.b16 %v485
    %v2362 = vunpack.c.h.b16 %v485
    %v2363 = vunpack.c.l.b16 %v486
    %v2364 = vunpack.c.h.b16 %v486
    %v2365 = vunpack.c.l.b16 %v487
    %v2366 = vunpack.c.h.b16 %v487
    %v2367 = vunpack.c.l.b16 %v488
    %v2368 = vunpack.c.h.b16 %v488
    %v2369 = vunpack.c.l.b16 %v489
    %v2370 = vunpack.c.h.b16 %v489
    %v2371 = vunpack.c.l.b16 %v490
    %v2372 = vunpack.c.h.b16 %v490
    %v2373 = vunpack.c.l.b16 %v491
    %v2374 = vunpack.c.h.b16 %v491
    %v2375 = vunpack.c.l.b16 %v492
    %v2376 = vunpack.c.h.b16 %v492
    %v2377 = vunpack.c.l.b16 %v493
    %v2378 = vunpack.c.h.b16 %v493
    %v2379 = vunpack.c.l.b16 %v494
    %v2380 = vunpack.c.h.b16 %v494
    %v2381 = vunpack.c.l.b16 %v495
    %v2382 = vunpack.c.h.b16 %v495
    %v2383 = vunpack.c.l.b16 %v496
    %v2384 = vunpack.c.h.b16 %v496
    %v2385 = vunpack.c.l.b16 %v497
    %v2386 = vunpack.c.h.b16 %v497
    %v2387 = vunpack.c.l.b16 %v498
    %v2388 = vunpack.c.h.b16 %v498
    %v2389 = vunpack.c.l.b16 %v499
    %v2390 = vunpack.c.h.b16 %v499
    %v2391 = vunpack.c.l.b16 %v500
    %v2392 = vunpack.c.h.b16 %v500
    %v2393 = vunpack.c.l.b16 %v501
    %v2394 = vunpack.c.h.b16 %v501
    %v2395 = vunpack.c.l.b16 %v502
    %v2396 = vunpack.c.h.b16 %v502
    %v2397 = vunpack.c.l.b16 %v503
    %v2398 = vunpack.c.h.b16 %v503
    %v2399 = vunpack.c.l.b16 %v504
    %v2400 = vunpack.c.h.b16 %v504
    %v2401 = vunpack.c.l.b16 %v505
    %v2402 = vunpack.c.h.b16 %v505
    %v2403 = vunpack.c.l.b16 %v506
    %v2404 = vunpack.c.h.b16 %v506
    %v2405 = vunpack.c.l.b16 %v507
    %v2406 = vunpack.c.h.b16 %v507
    %v2407 = vunpack.c.l.b16 %v508
    %v2408 = vunpack.c.h.b16 %v508
    %v2409 = vunpack.c.l.b16 %v509
    %v2410 = vunpack.c.h.b16 %v509
    %v2411 = vunpack.c.l.b16 %v510
    %v2412 = vunpack.c.h.b16 %v510
    %v2413 = vunpack.c.l.b16 %v511
    %v2414 = vunpack.c.h.b16 %v511
    %v2415 = vunpack.c.l.b16 %v512
    %v2416 = vunpack.c.h.b16 %v512
    %v2417 = vunpack.c.l.b16 %v513
    %v2418 = vunpack.c.h.b16 %v513
    %v2419 = vunpack.c.l.b16 %v514
    %v2420 = vunpack.c.h.b16 %v514
    %v2421 = vunpack.c.l.b16 %v515
    %v2422 = vunpack.c.h.b16 %v515
    %v2423 = vunpack.c.l.b16 %v516
    %v2424 = vunpack.c.h.b16 %v516
    %v2425 = vunpack.c.l.b16 %v517
    %v2426 = vunpack.c.h.b16 %v517
    %v2427 = vunpack.c.l.b16 %v518
    %v2428 = vunpack.c.h.b16 %v518
    %v2429 = vunpack.c.l.b16 %v519
    %v2430 = vunpack.c.h.b16 %v519
    %v2431 = vunpack.c.l.b16 %v520
    %v2432 = vunpack.c.h.b16 %v520
    %v2433 = vunpack.c.l.b16 %v521
    %v2434 = vunpack.c.h.b16 %v521
    %v2435 = vunpack.c.l.b16 %v522
    %v2436 = vunpack.c.h.b16 %v522
    %v2437 = vunpack.c.l.b16 %v523
    %v2438 = vunpack.c.h.b16 %v523
    %v2439 = vunpack.c.l.b16 %v524
    %v2440 = vunpack.c.h.b16 %v524
    %v2441 = vunpack.c.l.b16 %v525
    %v2442 = vunpack.c.h.b16 %v525
    %v2443 = vunpack.c.l.b16 %v526
    %v2444 = vunpack.c.h.b16 %v526
    %v2445 = vunpack.c.l.b16 %v527
    %v2446 = vunpack.c.h.b16 %v527
    %v2447 = vunpack.c.l.b16 %v528
    %v2448 = vunpack.c.h.b16 %v528
    %v2449 = vunpack.c.l.b16 %v529
    %v2450 = vunpack.c.h.b16 %v529
    %v2451 = vunpack.c.l.b16 %v530
    %v2452 = vunpack.c.h.b16 %v530
    %v2453 = vunpack.c.l.b16 %v531
    %v2454 = vunpack.c.h.b16 %v531
    %v2455 = vunpack.c.l.b16 %v532
    %v2456 = vunpack.c.h.b16 %v532
    %v2457 = vunpack.c.l.b16 %v533
    %v2458 = vunpack.c.h.b16 %v533
    %v2459 = vunpack.c.l.b16 %v534
    %v2460 = vunpack.c.h.b16 %v534
    %v2461 = vunpack.c.l.b16 %v535
    %v2462 = vunpack.c.h.b16 %v535
    %v2463 = vunpack.c.l.b16 %v536
    %v2464 = vunpack.c.h.b16 %v536
    %v2465 = vunpack.c.l.b16 %v537
    %v2466 = vunpack.c.h.b16 %v537
    %v2467 = vunpack.c.l.b16 %v538
    %v2468 = vunpack.c.h.b16 %v538
    %v2469 = vunpack.c.l.b16 %v539
    %v2470 = vunpack.c.h.b16 %v539
    %v2471 = vunpack.c.l.b16 %v540
    %v2472 = vunpack.c.h.b16 %v540
    %v2473 = vunpack.c.l.b16 %v541
    %v2474 = vunpack.c.h.b16 %v541
    %v2475 = vunpack.c.l.b16 %v542
    %v2476 = vunpack.c.h.b16 %v542
    %v2477 = vunpack.c.l.b16 %v543
    %v2478 = vunpack.c.h.b16 %v543
    %v2479 = vunpack.c.l.b16 %v544
    %v2480 = vunpack.c.h.b16 %v544
    %v2481 = vunpack.c.l.b16 %v545
    %v2482 = vunpack.c.h.b16 %v545
    %v2483 = vunpack.c.l.b16 %v546
    %v2484 = vunpack.c.h.b16 %v546
    %v2485 = vunpack.c.l.b16 %v547
    %v2486 = vunpack.c.h.b16 %v547
    %v2487 = vunpack.c.l.b16 %v548
    %v2488 = vunpack.c.h.b16 %v548
    %v2489 = vunpack.c.l.b16 %v549
    %v2490 = vunpack.c.h.b16 %v549
    %v2491 = vunpack.c.l.b16 %v550
    %v2492 = vunpack.c.h.b16 %v550
    %v2493 = vunpack.c.l.b16 %v551
    %v2494 = vunpack.c.h.b16 %v551
    %v2495 = vunpack.c.l.b16 %v552
    %v2496 = vunpack.c.h.b16 %v552
    %v2497 = vunpack.c.l.b16 %v553
    %v2498 = vunpack.c.h.b16 %v553
    %v2499 = vunpack.c.l.b16 %v554
    %v2500 = vunpack.c.h.b16 %v554
    %v2501 = vunpack.c.l.b16 %v555
    %v2502 = vunpack.c.h.b16 %v555
    %v2503 = vunpack.c.l.b16 %v556
    %v2504 = vunpack.c.h.b16 %v556
    %v2505 = vunpack.c.l.b16 %v557
    %v2506 = vunpack.c.h.b16 %v557
    %v2507 = vunpack.c.l.b16 %v558
    %v2508 = vunpack.c.h.b16 %v558
    %v2509 = vunpack.c.l.b16 %v559
    %v2510 = vunpack.c.h.b16 %v559
    %v2511 = vunpack.c.l.b16 %v560
    %v2512 = vunpack.c.h.b16 %v560
    %v2513 = vunpack.c.l.b16 %v561
    %v2514 = vunpack.c.h.b16 %v561
    %v2515 = vunpack.c.l.b16 %v562
    %v2516 = vunpack.c.h.b16 %v562
    %v2517 = vunpack.c.l.b16 %v563
    %v2518 = vunpack.c.h.b16 %v563
    %v2519 = vunpack.c.l.b16 %v564
    %v2520 = vunpack.c.h.b16 %v564
    %v2521 = vunpack.c.l.b16 %v565
    %v2522 = vunpack.c.h.b16 %v565
    %v2523 = vunpack.c.l.b16 %v566
    %v2524 = vunpack.c.h.b16 %v566
    %v2525 = vunpack.c.l.b16 %v567
    %v2526 = vunpack.c.h.b16 %v567
    %v2527 = vunpack.c.l.b16 %v568
    %v2528 = vunpack.c.h.b16 %v568
    %v2529 = vunpack.c.l.b16 %v569
    %v2530 = vunpack.c.h.b16 %v569
    %v2531 = vunpack.c.l.b16 %v570
    %v2532 = vunpack.c.h.b16 %v570
    %v2533 = vunpack.c.l.b16 %v571
    %v2534 = vunpack.c.h.b16 %v571
    %v2535 = vunpack.c.l.b16 %v572
    %v2536 = vunpack.c.h.b16 %v572
    %v2537 = vunpack.c.l.b16 %v573
    %v2538 = vunpack.c.h.b16 %v573
    %v2539 = vunpack.c.l.b16 %v574
    %v2540 = vunpack.c.h.b16 %v574
    %v2541 = vunpack.c.l.b16 %v575
    %v2542 = vunpack.c.h.b16 %v575
    %v2543 = vunpack.c.l.b16 %v576
    %v2544 = vunpack.c.h.b16 %v576
    %v2545 = vunpack.c.l.b16 %v577
    %v2546 = vunpack.c.h.b16 %v577
    %v2547 = vunpack.c.l.b16 %v578
    %v2548 = vunpack.c.h.b16 %v578
    %v2549 = vunpack.c.l.b16 %v579
    %v2550 = vunpack.c.h.b16 %v579
    %v2551 = vunpack.c.l.b16 %v580
    %v2552 = vunpack.c.h.b16 %v580
    %v2553 = vunpack.c.l.b16 %v581
    %v2554 = vunpack.c.h.b16 %v581
    %v2555 = vunpack.c.l.b16 %v582
    %v2556 = vunpack.c.h.b16 %v582
    %v2557 = vunpack.c.l.b16 %v583
    %v2558 = vunpack.c.h.b16 %v583
    %v2559 = vunpack.c.l.b16 %v584
    %v2560 = vunpack.c.h.b16 %v584
    %v2561 = vunpack.c.l.b16 %v585
    %v2562 = vunpack.c.h.b16 %v585
    %v2563 = vunpack.c.l.b16 %v586
    %v2564 = vunpack.c.h.b16 %v586
    %v2565 = vunpack.c.l.b16 %v587
    %v2566 = vunpack.c.h.b16 %v587
    %v2567 = vunpack.c.l.b16 %v588
    %v2568 = vunpack.c.h.b16 %v588
    %v2569 = vunpack.c.l.b16 %v589
    %v2570 = vunpack.c.h.b16 %v589
    %v2571 = vunpack.c.l.b16 %v590
    %v2572 = vunpack.c.h.b16 %v590
    %v2573 = vunpack.c.l.b16 %v591
    %v2574 = vunpack.c.h.b16 %v591
    %v2575 = vunpack.c.l.b16 %v592
    %v2576 = vunpack.c.h.b16 %v592
    %v2577 = vunpack.c.l.b16 %v593
    %v2578 = vunpack.c.h.b16 %v593
    %v2579 = vunpack.c.l.b16 %v594
    %v2580 = vunpack.c.h.b16 %v594
    %v2581 = vunpack.c.l.b16 %v595
    %v2582 = vunpack.c.h.b16 %v595
    %v2583 = vunpack.c.l.b16 %v596
    %v2584 = vunpack.c.h.b16 %v596
    %v2585 = vunpack.c.l.b16 %v597
    %v2586 = vunpack.c.h.b16 %v597
    %v2587 = vunpack.c.l.b16 %v598
    %v2588 = vunpack.c.h.b16 %v598
    %v2589 = vunpack.c.l.b16 %v599
    %v2590 = vunpack.c.h.b16 %v599
    %v2591 = vunpack.c.l.b16 %v600
    %v2592 = vunpack.c.h.b16 %v600
    %v2593 = vunpack.c.l.b16 %v601
    %v2594 = vunpack.c.h.b16 %v601
    %v2595 = vunpack.c.l.b16 %v602
    %v2596 = vunpack.c.h.b16 %v602
    %v2597 = vunpack.c.l.b16 %v603
    %v2598 = vunpack.c.h.b16 %v603
    %v2599 = vunpack.c.l.b16 %v604
    %v2600 = vunpack.c.h.b16 %v604
    %v2601 = vunpack.c.l.b16 %v605
    %v2602 = vunpack.c.h.b16 %v605
    %v2603 = vunpack.c.l.b16 %v606
    %v2604 = vunpack.c.h.b16 %v606
    %v2605 = vunpack.c.l.b16 %v607
    %v2606 = vunpack.c.h.b16 %v607
    %v2607 = vunpack.c.l.b16 %v608
    %v2608 = vunpack.c.h.b16 %v608
    %v2609 = vunpack.c.l.b16 %v609
    %v2610 = vunpack.c.h.b16 %v609
    %v2611 = vunpack.c.l.b16 %v610
    %v2612 = vunpack.c.h.b16 %v610
    %v2613 = vunpack.c.l.b16 %v611
    %v2614 = vunpack.c.h.b16 %v611
    %v2615 = vunpack.c.l.b16 %v612
    %v2616 = vunpack.c.h.b16 %v612
    %v2617 = vunpack.c.l.b16 %v613
    %v2618 = vunpack.c.h.b16 %v613
    %v2619 = vunpack.c.l.b16 %v614
    %v2620 = vunpack.c.h.b16 %v614
    %v2621 = vunpack.c.l.b16 %v615
    %v2622 = vunpack.c.h.b16 %v615
    %v2623 = vunpack.c.l.b16 %v616
    %v2624 = vunpack.c.h.b16 %v616
    %v2625 = vunpack.c.l.b16 %v617
    %v2626 = vunpack.c.h.b16 %v617
    %v2627 = vunpack.c.l.b16 %v618
    %v2628 = vunpack.c.h.b16 %v618
    %v2629 = vunpack.c.l.b16 %v619
    %v2630 = vunpack.c.h.b16 %v619
    %v2631 = vunpack.c.l.b16 %v620
    %v2632 = vunpack.c.h.b16 %v620
    %v2633 = vunpack.c.l.b16 %v621
    %v2634 = vunpack.c.h.b16 %v621
    %v2635 = vunpack.c.l.b16 %v622
    %v2636 = vunpack.c.h.b16 %v622
    %v2637 = vunpack.c.l.b16 %v623
    %v2638 = vunpack.c.h.b16 %v623
    %v2639 = vunpack.c.l.b16 %v624
    %v2640 = vunpack.c.h.b16 %v624
    %v2641 = vunpack.c.l.b16 %v625
    %v2642 = vunpack.c.h.b16 %v625
    %v2643 = vunpack.c.l.b16 %v626
    %v2644 = vunpack.c.h.b16 %v626
    %v2645 = vunpack.c.l.b16 %v627
    %v2646 = vunpack.c.h.b16 %v627
    %v2647 = vunpack.c.l.b16 %v628
    %v2648 = vunpack.c.h.b16 %v628
    %v2649 = vunpack.c.l.b16 %v629
    %v2650 = vunpack.c.h.b16 %v629
    %v2651 = vunpack.c.l.b16 %v630
    %v2652 = vunpack.c.h.b16 %v630
    %v2653 = vunpack.c.l.b16 %v631
    %v2654 = vunpack.c.h.b16 %v631
    %v2655 = vunpack.c.l.b16 %v632
    %v2656 = vunpack.c.h.b16 %v632
    %v2657 = vunpack.c.l.b16 %v633
    %v2658 = vunpack.c.h.b16 %v633
    %v2659 = vunpack.c.l.b16 %v634
    %v2660 = vunpack.c.h.b16 %v634
    %v2661 = vunpack.c.l.b16 %v635
    %v2662 = vunpack.c.h.b16 %v635
    %v2663 = vunpack.c.l.b16 %v636
    %v2664 = vunpack.c.h.b16 %v636
    %v2665 = vunpack.c.l.b16 %v637
    %v2666 = vunpack.c.h.b16 %v637
    %v2667 = vunpack.c.l.b16 %v638
    %v2668 = vunpack.c.h.b16 %v638
    %v2669 = vunpack.c.l.b16 %v639
    %v2670 = vunpack.c.h.b16 %v639
    %v2671 = vunpack.c.l.b16 %v640
    %v2672 = vunpack.c.h.b16 %v640
    %v2673 = vunpack.c.l.b16 %v641
    %v2674 = vunpack.c.h.b16 %v641
    %v2675 = vunpack.c.l.b16 %v642
    %v2676 = vunpack.c.h.b16 %v642
    %v2677 = vunpack.c.l.b16 %v643
    %v2678 = vunpack.c.h.b16 %v643
    %v2679 = vunpack.c.l.b16 %v644
    %v2680 = vunpack.c.h.b16 %v644
    %v2681 = vunpack.c.l.b16 %v645
    %v2682 = vunpack.c.h.b16 %v645
    %v2683 = vunpack.c.l.b16 %v646
    %v2684 = vunpack.c.h.b16 %v646
    %v2685 = vunpack.c.l.b16 %v647
    %v2686 = vunpack.c.h.b16 %v647
    %v2687 = vunpack.c.l.b16 %v648
    %v2688 = vunpack.c.h.b16 %v648
    %v2689 = vunpack.c.l.b16 %v649
    %v2690 = vunpack.c.h.b16 %v649
    %v2691 = vunpack.c.l.b16 %v650
    %v2692 = vunpack.c.h.b16 %v650
    %v2693 = vunpack.c.l.b16 %v651
    %v2694 = vunpack.c.h.b16 %v651
    %v2695 = vunpack.c.l.b16 %v652
    %v2696 = vunpack.c.h.b16 %v652
    %v2697 = vunpack.c.l.b16 %v653
    %v2698 = vunpack.c.h.b16 %v653
    %v2699 = vunpack.c.l.b16 %v654
    %v2700 = vunpack.c.h.b16 %v654
    %v2701 = vunpack.c.l.b16 %v655
    %v2702 = vunpack.c.h.b16 %v655
    %v2703 = vunpack.c.l.b16 %v656
    %v2704 = vunpack.c.h.b16 %v656
    %v2705 = vunpack.c.l.b16 %v657
    %v2706 = vunpack.c.h.b16 %v657
    %v2707 = vunpack.c.l.b16 %v658
    %v2708 = vunpack.c.h.b16 %v658
    %v2709 = vunpack.c.l.b16 %v659
    %v2710 = vunpack.c.h.b16 %v659
    %v2711 = vunpack.c.l.b16 %v660
    %v2712 = vunpack.c.h.b16 %v660
    %v2713 = vunpack.c.l.b16 %v661
    %v2714 = vunpack.c.h.b16 %v661
    %v2715 = vunpack.c.l.b16 %v662
    %v2716 = vunpack.c.h.b16 %v662
    %v2717 = vunpack.c.l.b16 %v663
    %v2718 = vunpack.c.h.b16 %v663
    %v2719 = vunpack.c.l.b16 %v664
    %v2720 = vunpack.c.h.b16 %v664
    %v2721 = vunpack.c.l.b16 %v665
    %v2722 = vunpack.c.h.b16 %v665
    %v2723 = vunpack.c.l.b16 %v666
    %v2724 = vunpack.c.h.b16 %v666
    %v2725 = vunpack.c.l.b16 %v667
    %v2726 = vunpack.c.h.b16 %v667
    %v2727 = vunpack.c.l.b16 %v668
    %v2728 = vunpack.c.h.b16 %v668
    %v2729 = vunpack.c.l.b16 %v669
    %v2730 = vunpack.c.h.b16 %v669
    %v2731 = vunpack.c.l.b16 %v670
    %v2732 = vunpack.c.h.b16 %v670
    %v2733 = vunpack.c.l.b16 %v671
    %v2734 = vunpack.c.h.b16 %v671
    %v2735 = vunpack.c.l.b16 %v672
    %v2736 = vunpack.c.h.b16 %v672
    %v2737 = vunpack.c.l.b16 %v673
    %v2738 = vunpack.c.h.b16 %v673
    %v2739 = vunpack.c.l.b16 %v674
    %v2740 = vunpack.c.h.b16 %v674
    %v2741 = vunpack.c.l.b16 %v675
    %v2742 = vunpack.c.h.b16 %v675
    %v2743 = vunpack.c.l.b16 %v676
    %v2744 = vunpack.c.h.b16 %v676
    %v2745 = vunpack.c.l.b16 %v677
    %v2746 = vunpack.c.h.b16 %v677
    %v2747 = vunpack.c.l.b16 %v678
    %v2748 = vunpack.c.h.b16 %v678
    %v2749 = vunpack.c.l.b16 %v679
    %v2750 = vunpack.c.h.b16 %v679
    %v2751 = vunpack.c.l.b16 %v680
    %v2752 = vunpack.c.h.b16 %v680
    %v2753 = vunpack.c.l.b16 %v681
    %v2754 = vunpack.c.h.b16 %v681
    %v2755 = vunpack.c.l.b16 %v682
    %v2756 = vunpack.c.h.b16 %v682
    %v2757 = vunpack.c.l.b16 %v683
    %v2758 = vunpack.c.h.b16 %v683
    %v2759 = vunpack.c.l.b16 %v684
    %v2760 = vunpack.c.h.b16 %v684
    %v2761 = vunpack.c.l.b16 %v685
    %v2762 = vunpack.c.h.b16 %v685
    %v2763 = vunpack.c.l.b16 %v686
    %v2764 = vunpack.c.h.b16 %v686
    %v2765 = vunpack.c.l.b16 %v687
    %v2766 = vunpack.c.h.b16 %v687
    %v2767 = vunpack.c.l.b16 %v688
    %v2768 = vunpack.c.h.b16 %v688
    %v2769 = vunpack.c.l.b16 %v689
    %v2770 = vunpack.c.h.b16 %v689
    %v2771 = vunpack.c.l.b16 %v690
    %v2772 = vunpack.c.h.b16 %v690
    %v2773 = vunpack.c.l.b16 %v691
    %v2774 = vunpack.c.h.b16 %v691
    %v2775 = vunpack.c.l.b16 %v692
    %v2776 = vunpack.c.h.b16 %v692
    %v2777 = vunpack.c.l.b16 %v693
    %v2778 = vunpack.c.h.b16 %v693
    %v2779 = vunpack.c.l.b16 %v694
    %v2780 = vunpack.c.h.b16 %v694
    %v2781 = vunpack.c.l.b16 %v695
    %v2782 = vunpack.c.h.b16 %v695
    %v2783 = vunpack.c.l.b16 %v696
    %v2784 = vunpack.c.h.b16 %v696
    %v2785 = vunpack.c.l.b16 %v697
    %v2786 = vunpack.c.h.b16 %v697
    %v2787 = vunpack.c.l.b16 %v698
    %v2788 = vunpack.c.h.b16 %v698
    %v2789 = vunpack.c.l.b16 %v699
    %v2790 = vunpack.c.h.b16 %v699
    %v2791 = vunpack.c.l.b16 %v700
    %v2792 = vunpack.c.h.b16 %v700
    %v2793 = vunpack.c.l.b16 %v701
    %v2794 = vunpack.c.h.b16 %v701
    %v2795 = vunpack.c.l.b16 %v702
    %v2796 = vunpack.c.h.b16 %v702
    %v2797 = vunpack.c.l.b16 %v703
    %v2798 = vunpack.c.h.b16 %v703
    %v2799 = vunpack.c.l.b16 %v704
    %v2800 = vunpack.c.h.b16 %v704
    %v2801 = vunpack.c.l.b16 %v705
    %v2802 = vunpack.c.h.b16 %v705
    %v2803 = vunpack.c.l.b16 %v706
    %v2804 = vunpack.c.h.b16 %v706
    %v2805 = vunpack.c.l.b16 %v707
    %v2806 = vunpack.c.h.b16 %v707
    %v2807 = vunpack.c.l.b16 %v708
    %v2808 = vunpack.c.h.b16 %v708
    %v2809 = vunpack.c.l.b16 %v709
    %v2810 = vunpack.c.h.b16 %v709
    %v2811 = vunpack.c.l.b16 %v710
    %v2812 = vunpack.c.h.b16 %v710
    %v2813 = vunpack.c.l.b16 %v711
    %v2814 = vunpack.c.h.b16 %v711
    %v2815 = vunpack.c.l.b16 %v712
    %v2816 = vunpack.c.h.b16 %v712
    %v2817 = vunpack.c.l.b16 %v713
    %v2818 = vunpack.c.h.b16 %v713
    %v2819 = vunpack.c.l.b16 %v714
    %v2820 = vunpack.c.h.b16 %v714
    %v2821 = vunpack.c.l.b16 %v715
    %v2822 = vunpack.c.h.b16 %v715
    %v2823 = vunpack.c.l.b16 %v716
    %v2824 = vunpack.c.h.b16 %v716
    %v2825 = vunpack.c.l.b16 %v717
    %v2826 = vunpack.c.h.b16 %v717
    %v2827 = vunpack.c.l.b16 %v718
    %v2828 = vunpack.c.h.b16 %v718
    %v2829 = vunpack.c.l.b16 %v719
    %v2830 = vunpack.c.h.b16 %v719
    %v2831 = vunpack.c.l.b16 %v720
    %v2832 = vunpack.c.h.b16 %v720
    %v2833 = vunpack.c.l.b16 %v721
    %v2834 = vunpack.c.h.b16 %v721
    %v2835 = vunpack.c.l.b16 %v722
    %v2836 = vunpack.c.h.b16 %v722
    %v2837 = vunpack.c.l.b16 %v723
    %v2838 = vunpack.c.h.b16 %v723
    %v2839 = vunpack.c.l.b16 %v724
    %v2840 = vunpack.c.h.b16 %v724
    %v2841 = vunpack.c.l.b16 %v725
    %v2842 = vunpack.c.h.b16 %v725
    %v2843 = vunpack.c.l.b16 %v726
    %v2844 = vunpack.c.h.b16 %v726
    %v2845 = vunpack.c.l.b16 %v727
    %v2846 = vunpack.c.h.b16 %v727
    %v2847 = vunpack.c.l.b16 %v728
    %v2848 = vunpack.c.h.b16 %v728
    %v2849 = vunpack.c.l.b16 %v729
    %v2850 = vunpack.c.h.b16 %v729
    %v2851 = vunpack.c.l.b16 %v730
    %v2852 = vunpack.c.h.b16 %v730
    %v2853 = vunpack.c.l.b16 %v731
    %v2854 = vunpack.c.h.b16 %v731
    %v2855 = vunpack.c.l.b16 %v732
    %v2856 = vunpack.c.h.b16 %v732
    %v2857 = vunpack.c.l.b16 %v733
    %v2858 = vunpack.c.h.b16 %v733
    %v2859 = vunpack.c.l.b16 %v734
    %v2860 = vunpack.c.h.b16 %v734
    %v2861 = vunpack.c.l.b16 %v735
    %v2862 = vunpack.c.h.b16 %v735
    %v2863 = vunpack.c.l.b16 %v736
    %v2864 = vunpack.c.h.b16 %v736
    %v2865 = vunpack.c.l.b16 %v737
    %v2866 = vunpack.c.h.b16 %v737
    %v2867 = vunpack.c.l.b16 %v738
    %v2868 = vunpack.c.h.b16 %v738
    %v2869 = vunpack.c.l.b16 %v739
    %v2870 = vunpack.c.h.b16 %v739
    %v2871 = vunpack.c.l.b16 %v740
    %v2872 = vunpack.c.h.b16 %v740
    %v2873 = vunpack.c.l.b16 %v741
    %v2874 = vunpack.c.h.b16 %v741
    %v2875 = vunpack.c.l.b16 %v742
    %v2876 = vunpack.c.h.b16 %v742
    %v2877 = vunpack.c.l.b16 %v743
    %v2878 = vunpack.c.h.b16 %v743
    %v2879 = vunpack.c.l.b16 %v744
    %v2880 = vunpack.c.h.b16 %v744
    %v2881 = vunpack.c.l.b16 %v745
    %v2882 = vunpack.c.h.b16 %v745
    %v2883 = vunpack.c.l.b16 %v746
    %v2884 = vunpack.c.h.b16 %v746
    %v2885 = vunpack.c.l.b16 %v747
    %v2886 = vunpack.c.h.b16 %v747
    %v2887 = vunpack.c.l.b16 %v748
    %v2888 = vunpack.c.h.b16 %v748
    %v2889 = vunpack.c.l.b16 %v749
    %v2890 = vunpack.c.h.b16 %v749
    %v2891 = vunpack.c.l.b16 %v750
    %v2892 = vunpack.c.h.b16 %v750
    %v2893 = vunpack.c.l.b16 %v751
    %v2894 = vunpack.c.h.b16 %v751
    %v2895 = vunpack.c.l.b16 %v752
    %v2896 = vunpack.c.h.b16 %v752
    %v2897 = vunpack.c.l.b16 %v753
    %v2898 = vunpack.c.h.b16 %v753
    %v2899 = vunpack.c.l.b16 %v754
    %v2900 = vunpack.c.h.b16 %v754
    %v2901 = vunpack.c.l.b16 %v755
    %v2902 = vunpack.c.h.b16 %v755
    %v2903 = vunpack.c.l.b16 %v756
    %v2904 = vunpack.c.h.b16 %v756
    %v2905 = vunpack.c.l.b16 %v757
    %v2906 = vunpack.c.h.b16 %v757
    %v2907 = vunpack.c.l.b16 %v758
    %v2908 = vunpack.c.h.b16 %v758
    %v2909 = vunpack.c.l.b16 %v759
    %v2910 = vunpack.c.h.b16 %v759
    %v2911 = vunpack.c.l.b16 %v760
    %v2912 = vunpack.c.h.b16 %v760
    %v2913 = vunpack.c.l.b16 %v761
    %v2914 = vunpack.c.h.b16 %v761
    %v2915 = vunpack.c.l.b16 %v762
    %v2916 = vunpack.c.h.b16 %v762
    %v2917 = vunpack.c.l.b16 %v763
    %v2918 = vunpack.c.h.b16 %v763
    %v2919 = vunpack.c.l.b16 %v764
    %v2920 = vunpack.c.h.b16 %v764
    %v2921 = vunpack.c.l.b16 %v765
    %v2922 = vunpack.c.h.b16 %v765
    %v2923 = vunpack.c.l.b16 %v766
    %v2924 = vunpack.c.h.b16 %v766
    %v2925 = vunpack.c.l.b16 %v767
    %v2926 = vunpack.c.h.b16 %v767
    %v2927 = vunpack.c.l.b16 %v768
    %v2928 = vunpack.c.h.b16 %v768
    %v2929 = vunpack.c.l.b16 %v769
    %v2930 = vunpack.c.h.b16 %v769
    %v2931 = vunpack.c.l.b16 %v770
    %v2932 = vunpack.c.h.b16 %v770
    %v2933 = vunpack.c.l.b16 %v771
    %v2934 = vunpack.c.h.b16 %v771
    %v2935 = vunpack.c.l.b16 %v772
    %v2936 = vunpack.c.h.b16 %v772
    %v2937 = vunpack.c.l.b16 %v773
    %v2938 = vunpack.c.h.b16 %v773
    %v2939 = vunpack.c.l.b16 %v774
    %v2940 = vunpack.c.h.b16 %v774
    %v2941 = vunpack.c.l.b16 %v775
    %v2942 = vunpack.c.h.b16 %v775
    %v2943 = vunpack.c.l.b16 %v776
    %v2944 = vunpack.c.h.b16 %v776
    %v2945 = vunpack.c.l.b16 %v777
    %v2946 = vunpack.c.h.b16 %v777
    %v2947 = vunpack.c.l.b16 %v778
    %v2948 = vunpack.c.h.b16 %v778
    %v2949 = vunpack.c.l.b16 %v779
    %v2950 = vunpack.c.h.b16 %v779
    %v2951 = vunpack.c.l.b16 %v780
    %v2952 = vunpack.c.h.b16 %v780
    %v2953 = vunpack.c.l.b16 %v781
    %v2954 = vunpack.c.h.b16 %v781
    %v2955 = vunpack.c.l.b16 %v782
    %v2956 = vunpack.c.h.b16 %v782
    %v2957 = vunpack.c.l.b16 %v783
    %v2958 = vunpack.c.h.b16 %v783
    %v2959 = vunpack.c.l.b16 %v784
    %v2960 = vunpack.c.h.b16 %v784
    %v2961 = vunpack.c.l.b16 %v785
    %v2962 = vunpack.c.h.b16 %v785
    %v2963 = vunpack.c.l.b16 %v786
    %v2964 = vunpack.c.h.b16 %v786
    %v2965 = vunpack.c.l.b16 %v787
    %v2966 = vunpack.c.h.b16 %v787
    %v2967 = vunpack.c.l.b16 %v788
    %v2968 = vunpack.c.h.b16 %v788
    %v2969 = vunpack.c.l.b16 %v789
    %v2970 = vunpack.c.h.b16 %v789
    %v2971 = vunpack.c.l.b16 %v790
    %v2972 = vunpack.c.h.b16 %v790
    %v2973 = vunpack.c.l.b16 %v791
    %v2974 = vunpack.c.h.b16 %v791
    %v2975 = vunpack.c.l.b16 %v792
    %v2976 = vunpack.c.h.b16 %v792
    %v2977 = vunpack.c.l.b16 %v793
    %v2978 = vunpack.c.h.b16 %v793
    %v2979 = vunpack.c.l.b16 %v794
    %v2980 = vunpack.c.h.b16 %v794
    %v2981 = vunpack.c.l.b16 %v795
    %v2982 = vunpack.c.h.b16 %v795
    %v2983 = vunpack.c.l.b16 %v796
    %v2984 = vunpack.c.h.b16 %v796
    %v2985 = vunpack.c.l.b16 %v797
    %v2986 = vunpack.c.h.b16 %v797
    %v2987 = vunpack.c.l.b16 %v798
    %v2988 = vunpack.c.h.b16 %v798
    %v2989 = vunpack.c.l.b16 %v799
    %v2990 = vunpack.c.h.b16 %v799
    %v2991 = vunpack.c.l.b16 %v800
    %v2992 = vunpack.c.h.b16 %v800
    %v2993 = vunpack.c.l.b16 %v801
    %v2994 = vunpack.c.h.b16 %v801
    %v2995 = vunpack.c.l.b16 %v802
    %v2996 = vunpack.c.h.b16 %v802
    %v2997 = vunpack.c.l.b16 %v803
    %v2998 = vunpack.c.h.b16 %v803
    %v2999 = vunpack.c.l.b16 %v804
    %v3000 = vunpack.c.h.b16 %v804
    %v3001 = vunpack.c.l.b16 %v805
    %v3002 = vunpack.c.h.b16 %v805
    %v3003 = vunpack.c.l.b16 %v806
    %v3004 = vunpack.c.h.b16 %v806
    %v3005 = vunpack.c.l.b16 %v807
    %v3006 = vunpack.c.h.b16 %v807
    %v3007 = vunpack.c.l.b16 %v808
    %v3008 = vunpack.c.h.b16 %v808
    %v3009 = vunpack.c.l.b16 %v809
    %v3010 = vunpack.c.h.b16 %v809
    %v3011 = vunpack.c.l.b16 %v810
    %v3012 = vunpack.c.h.b16 %v810
    %v3013 = vunpack.c.l.b16 %v811
    %v3014 = vunpack.c.h.b16 %v811
    %v3015 = vunpack.c.l.b16 %v812
    %v3016 = vunpack.c.h.b16 %v812
    %v3017 = vunpack.c.l.b16 %v813
    %v3018 = vunpack.c.h.b16 %v813
    %v3019 = vunpack.c.l.b16 %v814
    %v3020 = vunpack.c.h.b16 %v814
    %v3021 = vunpack.c.l.b16 %v815
    %v3022 = vunpack.c.h.b16 %v815
    %v3023 = vunpack.c.l.b16 %v816
    %v3024 = vunpack.c.h.b16 %v816
    %v3025 = vunpack.c.l.b16 %v817
    %v3026 = vunpack.c.h.b16 %v817
    %v3027 = vunpack.c.l.b16 %v818
    %v3028 = vunpack.c.h.b16 %v818
    %v3029 = vunpack.c.l.b16 %v819
    %v3030 = vunpack.c.h.b16 %v819
    %v3031 = vunpack.c.l.b16 %v820
    %v3032 = vunpack.c.h.b16 %v820
    %v3033 = vunpack.c.l.b16 %v821
    %v3034 = vunpack.c.h.b16 %v821
    %v3035 = vunpack.c.l.b16 %v822
    %v3036 = vunpack.c.h.b16 %v822
    %v3037 = vunpack.c.l.b16 %v823
    %v3038 = vunpack.c.h.b16 %v823
    %v3039 = vunpack.c.l.b16 %v824
    %v3040 = vunpack.c.h.b16 %v824
    %v3041 = vunpack.c.l.b16 %v825
    %v3042 = vunpack.c.h.b16 %v825
    %v3043 = vunpack.c.l.b16 %v826
    %v3044 = vunpack.c.h.b16 %v826
    %v3045 = vunpack.c.l.b16 %v827
    %v3046 = vunpack.c.h.b16 %v827
    %v3047 = vunpack.c.l.b16 %v828
    %v3048 = vunpack.c.h.b16 %v828
    %v3049 = vunpack.c.l.b16 %v829
    %v3050 = vunpack.c.h.b16 %v829
    %v3051 = vunpack.c.l.b16 %v830
    %v3052 = vunpack.c.h.b16 %v830
    %v3053 = vunpack.c.l.b16 %v831
    %v3054 = vunpack.c.h.b16 %v831
    %v3055 = vunpack.c.l.b16 %v832
    %v3056 = vunpack.c.h.b16 %v832
    %v3057 = vunpack.c.l.b16 %v833
    %v3058 = vunpack.c.h.b16 %v833
    %v3059 = vunpack.c.l.b16 %v834
    %v3060 = vunpack.c.h.b16 %v834
    %v3061 = vunpack.c.l.b16 %v835
    %v3062 = vunpack.c.h.b16 %v835
    %v3063 = vunpack.c.l.b16 %v836
    %v3064 = vunpack.c.h.b16 %v836
    %v3065 = vunpack.c.l.b16 %v837
    %v3066 = vunpack.c.h.b16 %v837
    %v3067 = vunpack.c.l.b16 %v838
    %v3068 = vunpack.c.h.b16 %v838
    %v3069 = vunpack.c.l.b16 %v839
    %v3070 = vunpack.c.h.b16 %v839
    %v3071 = vunpack.c.l.b16 %v840
    %v3072 = vunpack.c.h.b16 %v840
    %v3073 = vunpack.c.l.b16 %v841
    %v3074 = vunpack.c.h.b16 %v841
    %v3075 = vunpack.c.l.b16 %v842
    %v3076 = vunpack.c.h.b16 %v842
    %v3077 = vunpack.c.l.b16 %v843
    %v3078 = vunpack.c.h.b16 %v843
    %v3079 = vunpack.c.l.b16 %v844
    %v3080 = vunpack.c.h.b16 %v844
    %v3081 = vunpack.c.l.b16 %v845
    %v3082 = vunpack.c.h.b16 %v845
    %v3083 = vunpack.c.l.b16 %v846
    %v3084 = vunpack.c.h.b16 %v846
    %v3085 = vunpack.c.l.b16 %v847
    %v3086 = vunpack.c.h.b16 %v847
    %v3087 = vunpack.c.l.b16 %v848
    %v3088 = vunpack.c.h.b16 %v848
    %v3089 = vunpack.c.l.b16 %v849
    %v3090 = vunpack.c.h.b16 %v849
    %v3091 = vunpack.c.l.b16 %v850
    %v3092 = vunpack.c.h.b16 %v850
    %v3093 = vunpack.c.l.b16 %v851
    %v3094 = vunpack.c.h.b16 %v851
    %v3095 = vunpack.c.l.b16 %v852
    %v3096 = vunpack.c.h.b16 %v852
    %v3097 = vunpack.c.l.b16 %v853
    %v3098 = vunpack.c.h.b16 %v853
    %v3099 = vunpack.c.l.b16 %v854
    %v3100 = vunpack.c.h.b16 %v854
    %v3101 = vunpack.c.l.b16 %v855
    %v3102 = vunpack.c.h.b16 %v855
    %v3103 = vunpack.c.l.b16 %v856
    %v3104 = vunpack.c.h.b16 %v856
    %v3105 = vunpack.c.l.b16 %v857
    %v3106 = vunpack.c.h.b16 %v857
    %v3107 = vunpack.c.l.b16 %v858
    %v3108 = vunpack.c.h.b16 %v858
    %v3109 = vunpack.c.l.b16 %v859
    %v3110 = vunpack.c.h.b16 %v859
    %v3111 = vunpack.c.l.b16 %v860
    %v3112 = vunpack.c.h.b16 %v860
    %v3113 = vunpack.c.l.b16 %v861
    %v3114 = vunpack.c.h.b16 %v861
    %v3115 = vunpack.c.l.b16 %v862
    %v3116 = vunpack.c.h.b16 %v862
    %v3117 = vunpack.c.l.b16 %v863
    %v3118 = vunpack.c.h.b16 %v863
    %v3119 = vunpack.c.l.b16 %v864
    %v3120 = vunpack.c.h.b16 %v864
    %v3121 = vunpack.c.l.b16 %v865
    %v3122 = vunpack.c.h.b16 %v865
    %v3123 = vunpack.c.l.b16 %v866
    %v3124 = vunpack.c.h.b16 %v866
    %v3125 = vunpack.c.l.b16 %v867
    %v3126 = vunpack.c.h.b16 %v867
    %v3127 = vunpack.c.l.b16 %v868
    %v3128 = vunpack.c.h.b16 %v868
    %v3129 = vunpack.c.l.b16 %v869
    %v3130 = vunpack.c.h.b16 %v869
    %v3131 = vunpack.c.l.b16 %v870
    %v3132 = vunpack.c.h.b16 %v870
    %v3133 = vunpack.c.l.b16 %v871
    %v3134 = vunpack.c.h.b16 %v871
    %v3135 = vunpack.c.l.b16 %v872
    %v3136 = vunpack.c.h.b16 %v872
    %v3137 = vunpack.c.l.b16 %v873
    %v3138 = vunpack.c.h.b16 %v873
    %v3139 = vunpack.c.l.b16 %v874
    %v3140 = vunpack.c.h.b16 %v874
    %v3141 = vunpack.c.l.b16 %v875
    %v3142 = vunpack.c.h.b16 %v875
    %v3143 = vunpack.c.l.b16 %v876
    %v3144 = vunpack.c.h.b16 %v876
    %v3145 = vunpack.c.l.b16 %v877
    %v3146 = vunpack.c.h.b16 %v877
    %v3147 = vunpack.c.l.b16 %v878
    %v3148 = vunpack.c.h.b16 %v878
    %v3149 = vunpack.c.l.b16 %v879
    %v3150 = vunpack.c.h.b16 %v879
    %v3151 = vunpack.c.l.b16 %v880
    %v3152 = vunpack.c.h.b16 %v880
    %v3153 = vunpack.c.l.b16 %v881
    %v3154 = vunpack.c.h.b16 %v881
    %v3155 = vunpack.c.l.b16 %v882
    %v3156 = vunpack.c.h.b16 %v882
    %v3157 = vunpack.c.l.b16 %v883
    %v3158 = vunpack.c.h.b16 %v883
    %v3159 = vunpack.c.l.b16 %v884
    %v3160 = vunpack.c.h.b16 %v884
    %v3161 = vunpack.c.l.b16 %v885
    %v3162 = vunpack.c.h.b16 %v885
    %v3163 = vunpack.c.l.b16 %v886
    %v3164 = vunpack.c.h.b16 %v886
    %v3165 = vunpack.c.l.b16 %v887
    %v3166 = vunpack.c.h.b16 %v887
    %v3167 = vunpack.c.l.b16 %v888
    %v3168 = vunpack.c.h.b16 %v888
    %v3169 = vunpack.c.l.b16 %v889
    %v3170 = vunpack.c.h.b16 %v889
    %v3171 = vunpack.c.l.b16 %v890
    %v3172 = vunpack.c.h.b16 %v890
    %v3173 = vunpack.c.l.b16 %v891
    %v3174 = vunpack.c.h.b16 %v891
    %v3175 = vunpack.c.l.b16 %v892
    %v3176 = vunpack.c.h.b16 %v892
    %v3177 = vunpack.c.l.b16 %v893
    %v3178 = vunpack.c.h.b16 %v893
    %v3179 = vunpack.c.l.b16 %v894
    %v3180 = vunpack.c.h.b16 %v894
    %v3181 = vunpack.c.l.b16 %v895
    %v3182 = vunpack.c.h.b16 %v895
    %v3183 = vunpack.c.l.b16 %v896
    %v3184 = vunpack.c.h.b16 %v896
    %v3185 = vunpack.c.l.b16 %v897
    %v3186 = vunpack.c.h.b16 %v897
    %v3187 = vunpack.c.l.b16 %v898
    %v3188 = vunpack.c.h.b16 %v898
    %v3189 = vunpack.c.l.b16 %v899
    %v3190 = vunpack.c.h.b16 %v899
    %v3191 = vunpack.c.l.b16 %v900
    %v3192 = vunpack.c.h.b16 %v900
    %v3193 = vunpack.c.l.b16 %v901
    %v3194 = vunpack.c.h.b16 %v901
    %v3195 = vunpack.c.l.b16 %v902
    %v3196 = vunpack.c.h.b16 %v902
    %v3197 = vunpack.c.l.b16 %v903
    %v3198 = vunpack.c.h.b16 %v903
    %v3199 = vunpack.c.l.b16 %v904
    %v3200 = vunpack.c.h.b16 %v904
    %v3201 = vunpack.c.l.b16 %v905
    %v3202 = vunpack.c.h.b16 %v905
    %v3203 = vunpack.c.l.b16 %v906
    %v3204 = vunpack.c.h.b16 %v906
    %v3205 = vunpack.c.l.b16 %v907
    %v3206 = vunpack.c.h.b16 %v907
    %v3207 = vunpack.c.l.b16 %v908
    %v3208 = vunpack.c.h.b16 %v908
    %v3209 = vunpack.c.l.b16 %v909
    %v3210 = vunpack.c.h.b16 %v909
    %v3211 = vunpack.c.l.b16 %v910
    %v3212 = vunpack.c.h.b16 %v910
    %v3213 = vunpack.c.l.b16 %v911
    %v3214 = vunpack.c.h.b16 %v911
    %v3215 = vunpack.c.l.b16 %v912
    %v3216 = vunpack.c.h.b16 %v912
    %v3217 = vpack.c.b16 %v1697, %v1681
    %v3218 = vpack.c.b16 %v1698, %v1682
    %v3219 = vpack.c.b16 %v1699, %v1683
    %v3220 = vpack.c.b16 %v1700, %v1684
    %v3221 = vpack.c.b16 %v1701, %v1685
    %v3222 = vpack.c.b16 %v1702, %v1686
    %v3223 = vpack.c.b16 %v1703, %v1687
    %v3224 = vpack.c.b16 %v1704, %v1688
    %v3225 = vpack.c.b16 %v1705, %v1689
    %v3226 = vpack.c.b16 %v1706, %v1690
    %v3227 = vpack.c.b16 %v1707, %v1691
    %v3228 = vpack.c.b16 %v1708, %v1692
    %v3229 = vpack.c.b16 %v1709, %v1693
    %v3230 = vpack.c.b16 %v1710, %v1694
    %v3231 = vpack.c.b16 %v1711, %v1695
    %v3232 = vpack.c.b16 %v1712, %v1696
    %v3233 = vpack.c.b16 %v1729, %v1713
    %v3234 = vpack.c.b16 %v1730, %v1714
    %v3235 = vpack.c.b16 %v1731, %v1715
    %v3236 = vpack.c.b16 %v1732, %v1716
    %v3237 = vpack.c.b16 %v1733, %v1717
    %v3238 = vpack.c.b16 %v1734, %v1718
    %v3239 = vpack.c.b16 %v1735, %v1719
    %v3240 = vpack.c.b16 %v1736, %v1720
    %v3241 = vpack.c.b16 %v1737, %v1721
    %v3242 = vpack.c.b16 %v1738, %v1722
    %v3243 = vpack.c.b16 %v1739, %v1723
    %v3244 = vpack.c.b16 %v1740, %v1724
    %v3245 = vpack.c.b16 %v1741, %v1725
    %v3246 = vpack.c.b16 %v1742, %v1726
    %v3247 = vpack.c.b16 %v1743, %v1727
    %v3248 = vpack.c.b16 %v1744, %v1728
    %v3249 = vpack.c.b16 %v1761, %v1745
    %v3250 = vpack.c.b16 %v1762, %v1746
    %v3251 = vpack.c.b16 %v1763, %v1747
    %v3252 = vpack.c.b16 %v1764, %v1748
    %v3253 = vpack.c.b16 %v1765, %v1749
    %v3254 = vpack.c.b16 %v1766, %v1750
    %v3255 = vpack.c.b16 %v1767, %v1751
    %v3256 = vpack.c.b16 %v1768, %v1752
    %v3257 = vpack.c.b16 %v1769, %v1753
    %v3258 = vpack.c.b16 %v1770, %v1754
    %v3259 = vpack.c.b16 %v1771, %v1755
    %v3260 = vpack.c.b16 %v1772, %v1756
    %v3261 = vpack.c.b16 %v1773, %v1757
    %v3262 = vpack.c.b16 %v1774, %v1758
    %v3263 = vpack.c.b16 %v1775, %v1759
    %v3264 = vpack.c.b16 %v1776, %v1760
    %v3265 = vpack.c.b16 %v1793, %v1777
    %v3266 = vpack.c.b16 %v1794, %v1778
    %v3267 = vpack.c.b16 %v1795, %v1779
    %v3268 = vpack.c.b16 %v1796, %v1780
    %v3269 = vpack.c.b16 %v1797, %v1781
    %v3270 = vpack.c.b16 %v1798, %v1782
    %v3271 = vpack.c.b16 %v1799, %v1783
    %v3272 = vpack.c.b16 %v1800, %v1784
    %v3273 = vpack.c.b16 %v1801, %v1785
    %v3274 = vpack.c.b16 %v1802, %v1786
    %v3275 = vpack.c.b16 %v1803, %v1787
    %v3276 = vpack.c.b16 %v1804, %v1788
    %v3277 = vpack.c.b16 %v1805, %v1789
    %v3278 = vpack.c.b16 %v1806, %v1790
    %v3279 = vpack.c.b16 %v1807, %v1791
    %v3280 = vpack.c.b16 %v1808, %v1792
    %v3281 = vpack.c.b16 %v1825, %v1809
    %v3282 = vpack.c.b16 %v1826, %v1810
    %v3283 = vpack.c.b16 %v1827, %v1811
    %v3284 = vpack.c.b16 %v1828, %v1812
    %v3285 = vpack.c.b16 %v1829, %v1813
    %v3286 = vpack.c.b16 %v1830, %v1814
    %v3287 = vpack.c.b16 %v1831, %v1815
    %v3288 = vpack.c.b16 %v1832, %v1816
    %v3289 = vpack.c.b16 %v1833, %v1817
    %v3290 = vpack.c.b16 %v1834, %v1818
    %v3291 = vpack.c.b16 %v1835, %v1819
    %v3292 = vpack.c.b16 %v1836, %v1820
    %v3293 = vpack.c.b16 %v1837, %v1821
    %v3294 = vpack.c.b16 %v1838, %v1822
    %v3295 = vpack.c.b16 %v1839, %v1823
    %v3296 = vpack.c.b16 %v1840, %v1824
    %v3297 = vpack.c.b16 %v1857, %v1841
    %v3298 = vpack.c.b16 %v1858, %v1842
    %v3299 = vpack.c.b16 %v1859, %v1843
    %v3300 = vpack.c.b16 %v1860, %v1844
    %v3301 = vpack.c.b16 %v1861, %v1845
    %v3302 = vpack.c.b16 %v1862, %v1846
    %v3303 = vpack.c.b16 %v1863, %v1847
    %v3304 = vpack.c.b16 %v1864, %v1848
    %v3305 = vpack.c.b16 %v1865, %v1849
    %v3306 = vpack.c.b16 %v1866, %v1850
    %v3307 = vpack.c.b16 %v1867, %v1851
    %v3308 = vpack.c.b16 %v1868, %v1852
    %v3309 = vpack.c.b16 %v1869, %v1853
    %v3310 = vpack.c.b16 %v1870, %v1854
    %v3311 = vpack.c.b16 %v1871, %v1855
    %v3312 = vpack.c.b16 %v1872, %v1856
    %v3313 = vpack.c.b16 %v1889, %v1873
    %v3314 = vpack.c.b16 %v1890, %v1874
    %v3315 = vpack.c.b16 %v1891, %v1875
    %v3316 = vpack.c.b16 %v1892, %v1876
    %v3317 = vpack.c.b16 %v1893, %v1877
    %v3318 = vpack.c.b16 %v1894, %v1878
    %v3319 = vpack.c.b16 %v1895, %v1879
    %v3320 = vpack.c.b16 %v1896, %v1880
    %v3321 = vpack.c.b16 %v1897, %v1881
    %v3322 = vpack.c.b16 %v1898, %v1882
    %v3323 = vpack.c.b16 %v1899, %v1883
    %v3324 = vpack.c.b16 %v1900, %v1884
    %v3325 = vpack.c.b16 %v1901, %v1885
    %v3326 = vpack.c.b16 %v1902, %v1886
    %v3327 = vpack.c.b16 %v1903, %v1887
    %v3328 = vpack.c.b16 %v1904, %v1888
    %v3329 = vpack.c.b16 %v1921, %v1905
    %v3330 = vpack.c.b16 %v1922, %v1906
    %v3331 = vpack.c.b16 %v1923, %v1907
    %v3332 = vpack.c.b16 %v1924, %v1908
    %v3333 = vpack.c.b16 %v1925, %v1909
    %v3334 = vpack.c.b16 %v1926, %v1910
    %v3335 = vpack.c.b16 %v1927, %v1911
    %v3336 = vpack.c.b16 %v1928, %v1912
    %v3337 = vpack.c.b16 %v1929, %v1913
    %v3338 = vpack.c.b16 %v1930, %v1914
    %v3339 = vpack.c.b16 %v1931, %v1915
    %v3340 = vpack.c.b16 %v1932, %v1916
    %v3341 = vpack.c.b16 %v1933, %v1917
    %v3342 = vpack.c.b16 %v1934, %v1918
    %v3343 = vpack.c.b16 %v1935, %v1919
    %v3344 = vpack.c.b16 %v1936, %v1920
    %v3345 = vpack.c.b16 %v1953, %v1937
    %v3346 = vpack.c.b16 %v1954, %v1938
    %v3347 = vpack.c.b16 %v1955, %v1939
    %v3348 = vpack.c.b16 %v1956, %v1940
    %v3349 = vpack.c.b16 %v1957, %v1941
    %v3350 = vpack.c.b16 %v1958, %v1942
    %v3351 = vpack.c.b16 %v1959, %v1943
    %v3352 = vpack.c.b16 %v1960, %v1944
    %v3353 = vpack.c.b16 %v1961, %v1945
    %v3354 = vpack.c.b16 %v1962, %v1946
    %v3355 = vpack.c.b16 %v1963, %v1947
    %v3356 = vpack.c.b16 %v1964, %v1948
    %v3357 = vpack.c.b16 %v1965, %v1949
    %v3358 = vpack.c.b16 %v1966, %v1950
    %v3359 = vpack.c.b16 %v1967, %v1951
    %v3360 = vpack.c.b16 %v1968, %v1952
    %v3361 = vpack.c.b16 %v1985, %v1969
    %v3362 = vpack.c.b16 %v1986, %v1970
    %v3363 = vpack.c.b16 %v1987, %v1971
    %v3364 = vpack.c.b16 %v1988, %v1972
    %v3365 = vpack.c.b16 %v1989, %v1973
    %v3366 = vpack.c.b16 %v1990, %v1974
    %v3367 = vpack.c.b16 %v1991, %v1975
    %v3368 = vpack.c.b16 %v1992, %v1976
    %v3369 = vpack.c.b16 %v1993, %v1977
    %v3370 = vpack.c.b16 %v1994, %v1978
    %v3371 = vpack.c.b16 %v1995, %v1979
    %v3372 = vpack.c.b16 %v1996, %v1980
    %v3373 = vpack.c.b16 %v1997, %v1981
    %v3374 = vpack.c.b16 %v1998, %v1982
    %v3375 = vpack.c.b16 %v1999, %v1983
    %v3376 = vpack.c.b16 %v2000, %v1984
    %v3377 = vpack.c.b16 %v2017, %v2001
    %v3378 = vpack.c.b16 %v2018, %v2002
    %v3379 = vpack.c.b16 %v2019, %v2003
    %v3380 = vpack.c.b16 %v2020, %v2004
    %v3381 = vpack.c.b16 %v2021, %v2005
    %v3382 = vpack.c.b16 %v2022, %v2006
    %v3383 = vpack.c.b16 %v2023, %v2007
    %v3384 = vpack.c.b16 %v2024, %v2008
    %v3385 = vpack.c.b16 %v2025, %v2009
    %v3386 = vpack.c.b16 %v2026, %v2010
    %v3387 = vpack.c.b16 %v2027, %v2011
    %v3388 = vpack.c.b16 %v2028, %v2012
    %v3389 = vpack.c.b16 %v2029, %v2013
    %v3390 = vpack.c.b16 %v2030, %v2014
    %v3391 = vpack.c.b16 %v2031, %v2015
    %v3392 = vpack.c.b16 %v2032, %v2016
    %v3393 = vpack.c.b16 %v2049, %v2033
    %v3394 = vpack.c.b16 %v2050, %v2034
    %v3395 = vpack.c.b16 %v2051, %v2035
    %v3396 = vpack.c.b16 %v2052, %v2036
    %v3397 = vpack.c.b16 %v2053, %v2037
    %v3398 = vpack.c.b16 %v2054, %v2038
    %v3399 = vpack.c.b16 %v2055, %v2039
    %v3400 = vpack.c.b16 %v2056, %v2040
    %v3401 = vpack.c.b16 %v2057, %v2041
    %v3402 = vpack.c.b16 %v2058, %v2042
    %v3403 = vpack.c.b16 %v2059, %v2043
    %v3404 = vpack.c.b16 %v2060, %v2044
    %v3405 = vpack.c.b16 %v2061, %v2045
    %v3406 = vpack.c.b16 %v2062, %v2046
    %v3407 = vpack.c.b16 %v2063, %v2047
    %v3408 = vpack.c.b16 %v2064, %v2048
    %v3409 = vpack.c.b16 %v2081, %v2065
    %v3410 = vpack.c.b16 %v2082, %v2066
    %v3411 = vpack.c.b16 %v2083, %v2067
    %v3412 = vpack.c.b16 %v2084, %v2068
    %v3413 = vpack.c.b16 %v2085, %v2069
    %v3414 = vpack.c.b16 %v2086, %v2070
    %v3415 = vpack.c.b16 %v2087, %v2071
    %v3416 = vpack.c.b16 %v2088, %v2072
    %v3417 = vpack.c.b16 %v2089, %v2073
    %v3418 = vpack.c.b16 %v2090, %v2074
    %v3419 = vpack.c.b16 %v2091, %v2075
    %v3420 = vpack.c.b16 %v2092, %v2076
    %v3421 = vpack.c.b16 %v2093, %v2077
    %v3422 = vpack.c.b16 %v2094, %v2078
    %v3423 = vpack.c.b16 %v2095, %v2079
    %v3424 = vpack.c.b16 %v2096, %v2080
    %v3425 = vpack.c.b16 %v2113, %v2097
    %v3426 = vpack.c.b16 %v2114, %v2098
    %v3427 = vpack.c.b16 %v2115, %v2099
    %v3428 = vpack.c.b16 %v2116, %v2100
    %v3429 = vpack.c.b16 %v2117, %v2101
    %v3430 = vpack.c.b16 %v2118, %v2102
    %v3431 = vpack.c.b16 %v2119, %v2103
    %v3432 = vpack.c.b16 %v2120, %v2104
    %v3433 = vpack.c.b16 %v2121, %v2105
    %v3434 = vpack.c.b16 %v2122, %v2106
    %v3435 = vpack.c.b16 %v2123, %v2107
    %v3436 = vpack.c.b16 %v2124, %v2108
    %v3437 = vpack.c.b16 %v2125, %v2109
    %v3438 = vpack.c.b16 %v2126, %v2110
    %v3439 = vpack.c.b16 %v2127, %v2111
    %v3440 = vpack.c.b16 %v2128, %v2112
    %v3441 = vpack.c.b16 %v2145, %v2129
    %v3442 = vpack.c.b16 %v2146, %v2130
    %v3443 = vpack.c.b16 %v2147, %v2131
    %v3444 = vpack.c.b16 %v2148, %v2132
    %v3445 = vpack.c.b16 %v2149, %v2133
    %v3446 = vpack.c.b16 %v2150, %v2134
    %v3447 = vpack.c.b16 %v2151, %v2135
    %v3448 = vpack.c.b16 %v2152, %v2136
    %v3449 = vpack.c.b16 %v2153, %v2137
    %v3450 = vpack.c.b16 %v2154, %v2138
    %v3451 = vpack.c.b16 %v2155, %v2139
    %v3452 = vpack.c.b16 %v2156, %v2140
    %v3453 = vpack.c.b16 %v2157, %v2141
    %v3454 = vpack.c.b16 %v2158, %v2142
    %v3455 = vpack.c.b16 %v2159, %v2143
    %v3456 = vpack.c.b16 %v2160, %v2144
    %v3457 = vpack.c.b16 %v2177, %v2161
    %v3458 = vpack.c.b16 %v2178, %v2162
    %v3459 = vpack.c.b16 %v2179, %v2163
    %v3460 = vpack.c.b16 %v2180, %v2164
    %v3461 = vpack.c.b16 %v2181, %v2165
    %v3462 = vpack.c.b16 %v2182, %v2166
    %v3463 = vpack.c.b16 %v2183, %v2167
    %v3464 = vpack.c.b16 %v2184, %v2168
    %v3465 = vpack.c.b16 %v2185, %v2169
    %v3466 = vpack.c.b16 %v2186, %v2170
    %v3467 = vpack.c.b16 %v2187, %v2171
    %v3468 = vpack.c.b16 %v2188, %v2172
    %v3469 = vpack.c.b16 %v2189, %v2173
    %v3470 = vpack.c.b16 %v2190, %v2174
    %v3471 = vpack.c.b16 %v2191, %v2175
    %v3472 = vpack.c.b16 %v2192, %v2176
    %v3473 = vpack.c.b16 %v2209, %v2193
    %v3474 = vpack.c.b16 %v2210, %v2194
    %v3475 = vpack.c.b16 %v2211, %v2195
    %v3476 = vpack.c.b16 %v2212, %v2196
    %v3477 = vpack.c.b16 %v2213, %v2197
    %v3478 = vpack.c.b16 %v2214, %v2198
    %v3479 = vpack.c.b16 %v2215, %v2199
    %v3480 = vpack.c.b16 %v2216, %v2200
    %v3481 = vpack.c.b16 %v2217, %v2201
    %v3482 = vpack.c.b16 %v2218, %v2202
    %v3483 = vpack.c.b16 %v2219, %v2203
    %v3484 = vpack.c.b16 %v2220, %v2204
    %v3485 = vpack.c.b16 %v2221, %v2205
    %v3486 = vpack.c.b16 %v2222, %v2206
    %v3487 = vpack.c.b16 %v2223, %v2207
    %v3488 = vpack.c.b16 %v2224, %v2208
    %v3489 = vpack.c.b16 %v2241, %v2225
    %v3490 = vpack.c.b16 %v2242, %v2226
    %v3491 = vpack.c.b16 %v2243, %v2227
    %v3492 = vpack.c.b16 %v2244, %v2228
    %v3493 = vpack.c.b16 %v2245, %v2229
    %v3494 = vpack.c.b16 %v2246, %v2230
    %v3495 = vpack.c.b16 %v2247, %v2231
    %v3496 = vpack.c.b16 %v2248, %v2232
    %v3497 = vpack.c.b16 %v2249, %v2233
    %v3498 = vpack.c.b16 %v2250, %v2234
    %v3499 = vpack.c.b16 %v2251, %v2235
    %v3500 = vpack.c.b16 %v2252, %v2236
    %v3501 = vpack.c.b16 %v2253, %v2237
    %v3502 = vpack.c.b16 %v2254, %v2238
    %v3503 = vpack.c.b16 %v2255, %v2239
    %v3504 = vpack.c.b16 %v2256, %v2240
    %v3505 = vpack.c.b16 %v2273, %v2257
    %v3506 = vpack.c.b16 %v2274, %v2258
    %v3507 = vpack.c.b16 %v2275, %v2259
    %v3508 = vpack.c.b16 %v2276, %v2260
    %v3509 = vpack.c.b16 %v2277, %v2261
    %v3510 = vpack.c.b16 %v2278, %v2262
    %v3511 = vpack.c.b16 %v2279, %v2263
    %v3512 = vpack.c.b16 %v2280, %v2264
    %v3513 = vpack.c.b16 %v2281, %v2265
    %v3514 = vpack.c.b16 %v2282, %v2266
    %v3515 = vpack.c.b16 %v2283, %v2267
    %v3516 = vpack.c.b16 %v2284, %v2268
    %v3517 = vpack.c.b16 %v2285, %v2269
    %v3518 = vpack.c.b16 %v2286, %v2270
    %v3519 = vpack.c.b16 %v2287, %v2271
    %v3520 = vpack.c.b16 %v2288, %v2272
    %v3521 = vpack.c.b16 %v2305, %v2289
    %v3522 = vpack.c.b16 %v2306, %v2290
    %v3523 = vpack.c.b16 %v2307, %v2291
    %v3524 = vpack.c.b16 %v2308, %v2292
    %v3525 = vpack.c.b16 %v2309, %v2293
    %v3526 = vpack.c.b16 %v2310, %v2294
    %v3527 = vpack.c.b16 %v2311, %v2295
    %v3528 = vpack.c.b16 %v2312, %v2296
    %v3529 = vpack.c.b16 %v2313, %v2297
    %v3530 = vpack.c.b16 %v2314, %v2298
    %v3531 = vpack.c.b16 %v2315, %v2299
    %v3532 = vpack.c.b16 %v2316, %v2300
    %v3533 = vpack.c.b16 %v2317, %v2301
    %v3534 = vpack.c.b16 %v2318, %v2302
    %v3535 = vpack.c.b16 %v2319, %v2303
    %v3536 = vpack.c.b16 %v2320, %v2304
    %v3537 = vpack.c.b16 %v2337, %v2321
    %v3538 = vpack.c.b16 %v2338, %v2322
    %v3539 = vpack.c.b16 %v2339, %v2323
    %v3540 = vpack.c.b16 %v2340, %v2324
    %v3541 = vpack.c.b16 %v2341, %v2325
    %v3542 = vpack.c.b16 %v2342, %v2326
    %v3543 = vpack.c.b16 %v2343, %v2327
    %v3544 = vpack.c.b16 %v2344, %v2328
    %v3545 = vpack.c.b16 %v2345, %v2329
    %v3546 = vpack.c.b16 %v2346, %v2330
    %v3547 = vpack.c.b16 %v2347, %v2331
    %v3548 = vpack.c.b16 %v2348, %v2332
    %v3549 = vpack.c.b16 %v2349, %v2333
    %v3550 = vpack.c.b16 %v2350, %v2334
    %v3551 = vpack.c.b16 %v2351, %v2335
    %v3552 = vpack.c.b16 %v2352, %v2336
    %v3553 = vpack.c.b16 %v2369, %v2353
    %v3554 = vpack.c.b16 %v2370, %v2354
    %v3555 = vpack.c.b16 %v2371, %v2355
    %v3556 = vpack.c.b16 %v2372, %v2356
    %v3557 = vpack.c.b16 %v2373, %v2357
    %v3558 = vpack.c.b16 %v2374, %v2358
    %v3559 = vpack.c.b16 %v2375, %v2359
    %v3560 = vpack.c.b16 %v2376, %v2360
    %v3561 = vpack.c.b16 %v2377, %v2361
    %v3562 = vpack.c.b16 %v2378, %v2362
    %v3563 = vpack.c.b16 %v2379, %v2363
    %v3564 = vpack.c.b16 %v2380, %v2364
    %v3565 = vpack.c.b16 %v2381, %v2365
    %v3566 = vpack.c.b16 %v2382, %v2366
    %v3567 = vpack.c.b16 %v2383, %v2367
    %v3568 = vpack.c.b16 %v2384, %v2368
    %v3569 = vpack.c.b16 %v2401, %v2385
    %v3570 = vpack.c.b16 %v2402, %v2386
    %v3571 = vpack.c.b16 %v2403, %v2387
    %v3572 = vpack.c.b16 %v2404, %v2388
    %v3573 = vpack.c.b16 %v2405, %v2389
    %v3574 = vpack.c.b16 %v2406, %v2390
    %v3575 = vpack.c.b16 %v2407, %v2391
    %v3576 = vpack.c.b16 %v2408, %v2392
    %v3577 = vpack.c.b16 %v2409, %v2393
    %v3578 = vpack.c.b16 %v2410, %v2394
    %v3579 = vpack.c.b16 %v2411, %v2395
    %v3580 = vpack.c.b16 %v2412, %v2396
    %v3581 = vpack.c.b16 %v2413, %v2397
    %v3582 = vpack.c.b16 %v2414, %v2398
    %v3583 = vpack.c.b16 %v2415, %v2399
    %v3584 = vpack.c.b16 %v2416, %v2400
    %v3585 = vpack.c.b16 %v2433, %v2417
    %v3586 = vpack.c.b16 %v2434, %v2418
    %v3587 = vpack.c.b16 %v2435, %v2419
    %v3588 = vpack.c.b16 %v2436, %v2420
    %v3589 = vpack.c.b16 %v2437, %v2421
    %v3590 = vpack.c.b16 %v2438, %v2422
    %v3591 = vpack.c.b16 %v2439, %v2423
    %v3592 = vpack.c.b16 %v2440, %v2424
    %v3593 = vpack.c.b16 %v2441, %v2425
    %v3594 = vpack.c.b16 %v2442, %v2426
    %v3595 = vpack.c.b16 %v2443, %v2427
    %v3596 = vpack.c.b16 %v2444, %v2428
    %v3597 = vpack.c.b16 %v2445, %v2429
    %v3598 = vpack.c.b16 %v2446, %v2430
    %v3599 = vpack.c.b16 %v2447, %v2431
    %v3600 = vpack.c.b16 %v2448, %v2432
    %v3601 = vpack.c.b16 %v2465, %v2449
    %v3602 = vpack.c.b16 %v2466, %v2450
    %v3603 = vpack.c.b16 %v2467, %v2451
    %v3604 = vpack.c.b16 %v2468, %v2452
    %v3605 = vpack.c.b16 %v2469, %v2453
    %v3606 = vpack.c.b16 %v2470, %v2454
    %v3607 = vpack.c.b16 %v2471, %v2455
    %v3608 = vpack.c.b16 %v2472, %v2456
    %v3609 = vpack.c.b16 %v2473, %v2457
    %v3610 = vpack.c.b16 %v2474, %v2458
    %v3611 = vpack.c.b16 %v2475, %v2459
    %v3612 = vpack.c.b16 %v2476, %v2460
    %v3613 = vpack.c.b16 %v2477, %v2461
    %v3614 = vpack.c.b16 %v2478, %v2462
    %v3615 = vpack.c.b16 %v2479, %v2463
    %v3616 = vpack.c.b16 %v2480, %v2464
    %v3617 = vpack.c.b16 %v2497, %v2481
    %v3618 = vpack.c.b16 %v2498, %v2482
    %v3619 = vpack.c.b16 %v2499, %v2483
    %v3620 = vpack.c.b16 %v2500, %v2484
    %v3621 = vpack.c.b16 %v2501, %v2485
    %v3622 = vpack.c.b16 %v2502, %v2486
    %v3623 = vpack.c.b16 %v2503, %v2487
    %v3624 = vpack.c.b16 %v2504, %v2488
    %v3625 = vpack.c.b16 %v2505, %v2489
    %v3626 = vpack.c.b16 %v2506, %v2490
    %v3627 = vpack.c.b16 %v2507, %v2491
    %v3628 = vpack.c.b16 %v2508, %v2492
    %v3629 = vpack.c.b16 %v2509, %v2493
    %v3630 = vpack.c.b16 %v2510, %v2494
    %v3631 = vpack.c.b16 %v2511, %v2495
    %v3632 = vpack.c.b16 %v2512, %v2496
    %v3633 = vpack.c.b16 %v2529, %v2513
    %v3634 = vpack.c.b16 %v2530, %v2514
    %v3635 = vpack.c.b16 %v2531, %v2515
    %v3636 = vpack.c.b16 %v2532, %v2516
    %v3637 = vpack.c.b16 %v2533, %v2517
    %v3638 = vpack.c.b16 %v2534, %v2518
    %v3639 = vpack.c.b16 %v2535, %v2519
    %v3640 = vpack.c.b16 %v2536, %v2520
    %v3641 = vpack.c.b16 %v2537, %v2521
    %v3642 = vpack.c.b16 %v2538, %v2522
    %v3643 = vpack.c.b16 %v2539, %v2523
    %v3644 = vpack.c.b16 %v2540, %v2524
    %v3645 = vpack.c.b16 %v2541, %v2525
    %v3646 = vpack.c.b16 %v2542, %v2526
    %v3647 = vpack.c.b16 %v2543, %v2527
    %v3648 = vpack.c.b16 %v2544, %v2528
    %v3649 = vpack.c.b16 %v2561, %v2545
    %v3650 = vpack.c.b16 %v2562, %v2546
    %v3651 = vpack.c.b16 %v2563, %v2547
    %v3652 = vpack.c.b16 %v2564, %v2548
    %v3653 = vpack.c.b16 %v2565, %v2549
    %v3654 = vpack.c.b16 %v2566, %v2550
    %v3655 = vpack.c.b16 %v2567, %v2551
    %v3656 = vpack.c.b16 %v2568, %v2552
    %v3657 = vpack.c.b16 %v2569, %v2553
    %v3658 = vpack.c.b16 %v2570, %v2554
    %v3659 = vpack.c.b16 %v2571, %v2555
    %v3660 = vpack.c.b16 %v2572, %v2556
    %v3661 = vpack.c.b16 %v2573, %v2557
    %v3662 = vpack.c.b16 %v2574, %v2558
    %v3663 = vpack.c.b16 %v2575, %v2559
    %v3664 = vpack.c.b16 %v2576, %v2560
    %v3665 = vpack.c.b16 %v2593, %v2577
    %v3666 = vpack.c.b16 %v2594, %v2578
    %v3667 = vpack.c.b16 %v2595, %v2579
    %v3668 = vpack.c.b16 %v2596, %v2580
    %v3669 = vpack.c.b16 %v2597, %v2581
    %v3670 = vpack.c.b16 %v2598, %v2582
    %v3671 = vpack.c.b16 %v2599, %v2583
    %v3672 = vpack.c.b16 %v2600, %v2584
    %v3673 = vpack.c.b16 %v2601, %v2585
    %v3674 = vpack.c.b16 %v2602, %v2586
    %v3675 = vpack.c.b16 %v2603, %v2587
    %v3676 = vpack.c.b16 %v2604, %v2588
    %v3677 = vpack.c.b16 %v2605, %v2589
    %v3678 = vpack.c.b16 %v2606, %v2590
    %v3679 = vpack.c.b16 %v2607, %v2591
    %v3680 = vpack.c.b16 %v2608, %v2592
    %v3681 = vpack.c.b16 %v2625, %v2609
    %v3682 = vpack.c.b16 %v2626, %v2610
    %v3683 = vpack.c.b16 %v2627, %v2611
    %v3684 = vpack.c.b16 %v2628, %v2612
    %v3685 = vpack.c.b16 %v2629, %v2613
    %v3686 = vpack.c.b16 %v2630, %v2614
    %v3687 = vpack.c.b16 %v2631, %v2615
    %v3688 = vpack.c.b16 %v2632, %v2616
    %v3689 = vpack.c.b16 %v2633, %v2617
    %v3690 = vpack.c.b16 %v2634, %v2618
    %v3691 = vpack.c.b16 %v2635, %v2619
    %v3692 = vpack.c.b16 %v2636, %v2620
    %v3693 = vpack.c.b16 %v2637, %v2621
    %v3694 = vpack.c.b16 %v2638, %v2622
    %v3695 = vpack.c.b16 %v2639, %v2623
    %v3696 = vpack.c.b16 %v2640, %v2624
    %v3697 = vpack.c.b16 %v2657, %v2641
    %v3698 = vpack.c.b16 %v2658, %v2642
    %v3699 = vpack.c.b16 %v2659, %v2643
    %v3700 = vpack.c.b16 %v2660, %v2644
    %v3701 = vpack.c.b16 %v2661, %v2645
    %v3702 = vpack.c.b16 %v2662, %v2646
    %v3703 = vpack.c.b16 %v2663, %v2647
    %v3704 = vpack.c.b16 %v2664, %v2648
    %v3705 = vpack.c.b16 %v2665, %v2649
    %v3706 = vpack.c.b16 %v2666, %v2650
    %v3707 = vpack.c.b16 %v2667, %v2651
    %v3708 = vpack.c.b16 %v2668, %v2652
    %v3709 = vpack.c.b16 %v2669, %v2653
    %v3710 = vpack.c.b16 %v2670, %v2654
    %v3711 = vpack.c.b16 %v2671, %v2655
    %v3712 = vpack.c.b16 %v2672, %v2656
    %v3713 = vpack.c.b16 %v2689, %v2673
    %v3714 = vpack.c.b16 %v2690, %v2674
    %v3715 = vpack.c.b16 %v2691, %v2675
    %v3716 = vpack.c.b16 %v2692, %v2676
    %v3717 = vpack.c.b16 %v2693, %v2677
    %v3718 = vpack.c.b16 %v2694, %v2678
    %v3719 = vpack.c.b16 %v2695, %v2679
    %v3720 = vpack.c.b16 %v2696, %v2680
    %v3721 = vpack.c.b16 %v2697, %v2681
    %v3722 = vpack.c.b16 %v2698, %v2682
    %v3723 = vpack.c.b16 %v2699, %v2683
    %v3724 = vpack.c.b16 %v2700, %v2684
    %v3725 = vpack.c.b16 %v2701, %v2685
    %v3726 = vpack.c.b16 %v2702, %v2686
    %v3727 = vpack.c.b16 %v2703, %v2687
    %v3728 = vpack.c.b16 %v2704, %v2688
    %v3729 = vpack.c.b16 %v2721, %v2705
    %v3730 = vpack.c.b16 %v2722, %v2706
    %v3731 = vpack.c.b16 %v2723, %v2707
    %v3732 = vpack.c.b16 %v2724, %v2708
    %v3733 = vpack.c.b16 %v2725, %v2709
    %v3734 = vpack.c.b16 %v2726, %v2710
    %v3735 = vpack.c.b16 %v2727, %v2711
    %v3736 = vpack.c.b16 %v2728, %v2712
    %v3737 = vpack.c.b16 %v2729, %v2713
    %v3738 = vpack.c.b16 %v2730, %v2714
    %v3739 = vpack.c.b16 %v2731, %v2715
    %v3740 = vpack.c.b16 %v2732, %v2716
    %v3741 = vpack.c.b16 %v2733, %v2717
    %v3742 = vpack.c.b16 %v2734, %v2718
    %v3743 = vpack.c.b16 %v2735, %v2719
    %v3744 = vpack.c.b16 %v2736, %v2720
    %v3745 = vpack.c.b16 %v2753, %v2737
    %v3746 = vpack.c.b16 %v2754, %v2738
    %v3747 = vpack.c.b16 %v2755, %v2739
    %v3748 = vpack.c.b16 %v2756, %v2740
    %v3749 = vpack.c.b16 %v2757, %v2741
    %v3750 = vpack.c.b16 %v2758, %v2742
    %v3751 = vpack.c.b16 %v2759, %v2743
    %v3752 = vpack.c.b16 %v2760, %v2744
    %v3753 = vpack.c.b16 %v2761, %v2745
    %v3754 = vpack.c.b16 %v2762, %v2746
    %v3755 = vpack.c.b16 %v2763, %v2747
    %v3756 = vpack.c.b16 %v2764, %v2748
    %v3757 = vpack.c.b16 %v2765, %v2749
    %v3758 = vpack.c.b16 %v2766, %v2750
    %v3759 = vpack.c.b16 %v2767, %v2751
    %v3760 = vpack.c.b16 %v2768, %v2752
    %v3761 = vpack.c.b16 %v2785, %v2769
    %v3762 = vpack.c.b16 %v2786, %v2770
    %v3763 = vpack.c.b16 %v2787, %v2771
    %v3764 = vpack.c.b16 %v2788, %v2772
    %v3765 = vpack.c.b16 %v2789, %v2773
    %v3766 = vpack.c.b16 %v2790, %v2774
    %v3767 = vpack.c.b16 %v2791, %v2775
    %v3768 = vpack.c.b16 %v2792, %v2776
    %v3769 = vpack.c.b16 %v2793, %v2777
    %v3770 = vpack.c.b16 %v2794, %v2778
    %v3771 = vpack.c.b16 %v2795, %v2779
    %v3772 = vpack.c.b16 %v2796, %v2780
    %v3773 = vpack.c.b16 %v2797, %v2781
    %v3774 = vpack.c.b16 %v2798, %v2782
    %v3775 = vpack.c.b16 %v2799, %v2783
    %v3776 = vpack.c.b16 %v2800, %v2784
    %v3777 = vpack.c.b16 %v2817, %v2801
    %v3778 = vpack.c.b16 %v2818, %v2802
    %v3779 = vpack.c.b16 %v2819, %v2803
    %v3780 = vpack.c.b16 %v2820, %v2804
    %v3781 = vpack.c.b16 %v2821, %v2805
    %v3782 = vpack.c.b16 %v2822, %v2806
    %v3783 = vpack.c.b16 %v2823, %v2807
    %v3784 = vpack.c.b16 %v2824, %v2808
    %v3785 = vpack.c.b16 %v2825, %v2809
    %v3786 = vpack.c.b16 %v2826, %v2810
    %v3787 = vpack.c.b16 %v2827, %v2811
    %v3788 = vpack.c.b16 %v2828, %v2812
    %v3789 = vpack.c.b16 %v2829, %v2813
    %v3790 = vpack.c.b16 %v2830, %v2814
    %v3791 = vpack.c.b16 %v2831, %v2815
    %v3792 = vpack.c.b16 %v2832, %v2816
    %v3793 = vpack.c.b16 %v2849, %v2833
    %v3794 = vpack.c.b16 %v2850, %v2834
    %v3795 = vpack.c.b16 %v2851, %v2835
    %v3796 = vpack.c.b16 %v2852, %v2836
    %v3797 = vpack.c.b16 %v2853, %v2837
    %v3798 = vpack.c.b16 %v2854, %v2838
    %v3799 = vpack.c.b16 %v2855, %v2839
    %v3800 = vpack.c.b16 %v2856, %v2840
    %v3801 = vpack.c.b16 %v2857, %v2841
    %v3802 = vpack.c.b16 %v2858, %v2842
    %v3803 = vpack.c.b16 %v2859, %v2843
    %v3804 = vpack.c.b16 %v2860, %v2844
    %v3805 = vpack.c.b16 %v2861, %v2845
    %v3806 = vpack.c.b16 %v2862, %v2846
    %v3807 = vpack.c.b16 %v2863, %v2847
    %v3808 = vpack.c.b16 %v2864, %v2848
    %v3809 = vpack.c.b16 %v2881, %v2865
    %v3810 = vpack.c.b16 %v2882, %v2866
    %v3811 = vpack.c.b16 %v2883, %v2867
    %v3812 = vpack.c.b16 %v2884, %v2868
    %v3813 = vpack.c.b16 %v2885, %v2869
    %v3814 = vpack.c.b16 %v2886, %v2870
    %v3815 = vpack.c.b16 %v2887, %v2871
    %v3816 = vpack.c.b16 %v2888, %v2872
    %v3817 = vpack.c.b16 %v2889, %v2873
    %v3818 = vpack.c.b16 %v2890, %v2874
    %v3819 = vpack.c.b16 %v2891, %v2875
    %v3820 = vpack.c.b16 %v2892, %v2876
    %v3821 = vpack.c.b16 %v2893, %v2877
    %v3822 = vpack.c.b16 %v2894, %v2878
    %v3823 = vpack.c.b16 %v2895, %v2879
    %v3824 = vpack.c.b16 %v2896, %v2880
    %v3825 = vpack.c.b16 %v2913, %v2897
    %v3826 = vpack.c.b16 %v2914, %v2898
    %v3827 = vpack.c.b16 %v2915, %v2899
    %v3828 = vpack.c.b16 %v2916, %v2900
    %v3829 = vpack.c.b16 %v2917, %v2901
    %v3830 = vpack.c.b16 %v2918, %v2902
    %v3831 = vpack.c.b16 %v2919, %v2903
    %v3832 = vpack.c.b16 %v2920, %v2904
    %v3833 = vpack.c.b16 %v2921, %v2905
    %v3834 = vpack.c.b16 %v2922, %v2906
    %v3835 = vpack.c.b16 %v2923, %v2907
    %v3836 = vpack.c.b16 %v2924, %v2908
    %v3837 = vpack.c.b16 %v2925, %v2909
    %v3838 = vpack.c.b16 %v2926, %v2910
    %v3839 = vpack.c.b16 %v2927, %v2911
    %v3840 = vpack.c.b16 %v2928, %v2912
    %v3841 = vpack.c.b16 %v2945, %v2929
    %v3842 = vpack.c.b16 %v2946, %v2930
    %v3843 = vpack.c.b16 %v2947, %v2931
    %v3844 = vpack.c.b16 %v2948, %v2932
    %v3845 = vpack.c.b16 %v2949, %v2933
    %v3846 = vpack.c.b16 %v2950, %v2934
    %v3847 = vpack.c.b16 %v2951, %v2935
    %v3848 = vpack.c.b16 %v2952, %v2936
    %v3849 = vpack.c.b16 %v2953, %v2937
    %v3850 = vpack.c.b16 %v2954, %v2938
    %v3851 = vpack.c.b16 %v2955, %v2939
    %v3852 = vpack.c.b16 %v2956, %v2940
    %v3853 = vpack.c.b16 %v2957, %v2941
    %v3854 = vpack.c.b16 %v2958, %v2942
    %v3855 = vpack.c.b16 %v2959, %v2943
    %v3856 = vpack.c.b16 %v2960, %v2944
    %v3857 = vpack.c.b16 %v2977, %v2961
    %v3858 = vpack.c.b16 %v2978, %v2962
    %v3859 = vpack.c.b16 %v2979, %v2963
    %v3860 = vpack.c.b16 %v2980, %v2964
    %v3861 = vpack.c.b16 %v2981, %v2965
    %v3862 = vpack.c.b16 %v2982, %v2966
    %v3863 = vpack.c.b16 %v2983, %v2967
    %v3864 = vpack.c.b16 %v2984, %v2968
    %v3865 = vpack.c.b16 %v2985, %v2969
    %v3866 = vpack.c.b16 %v2986, %v2970
    %v3867 = vpack.c.b16 %v2987, %v2971
    %v3868 = vpack.c.b16 %v2988, %v2972
    %v3869 = vpack.c.b16 %v2989, %v2973
    %v3870 = vpack.c.b16 %v2990, %v2974
    %v3871 = vpack.c.b16 %v2991, %v2975
    %v3872 = vpack.c.b16 %v2992, %v2976
    %v3873 = vpack.c.b16 %v3009, %v2993
    %v3874 = vpack.c.b16 %v3010, %v2994
    %v3875 = vpack.c.b16 %v3011, %v2995
    %v3876 = vpack.c.b16 %v3012, %v2996
    %v3877 = vpack.c.b16 %v3013, %v2997
    %v3878 = vpack.c.b16 %v3014, %v2998
    %v3879 = vpack.c.b16 %v3015, %v2999
    %v3880 = vpack.c.b16 %v3016, %v3000
    %v3881 = vpack.c.b16 %v3017, %v3001
    %v3882 = vpack.c.b16 %v3018, %v3002
    %v3883 = vpack.c.b16 %v3019, %v3003
    %v3884 = vpack.c.b16 %v3020, %v3004
    %v3885 = vpack.c.b16 %v3021, %v3005
    %v3886 = vpack.c.b16 %v3022, %v3006
    %v3887 = vpack.c.b16 %v3023, %v3007
    %v3888 = vpack.c.b16 %v3024, %v3008
    %v3889 = vpack.c.b16 %v3041, %v3025
    %v3890 = vpack.c.b16 %v3042, %v3026
    %v3891 = vpack.c.b16 %v3043, %v3027
    %v3892 = vpack.c.b16 %v3044, %v3028
    %v3893 = vpack.c.b16 %v3045, %v3029
    %v3894 = vpack.c.b16 %v3046, %v3030
    %v3895 = vpack.c.b16 %v3047, %v3031
    %v3896 = vpack.c.b16 %v3048, %v3032
    %v3897 = vpack.c.b16 %v3049, %v3033
    %v3898 = vpack.c.b16 %v3050, %v3034
    %v3899 = vpack.c.b16 %v3051, %v3035
    %v3900 = vpack.c.b16 %v3052, %v3036
    %v3901 = vpack.c.b16 %v3053, %v3037
    %v3902 = vpack.c.b16 %v3054, %v3038
    %v3903 = vpack.c.b16 %v3055, %v3039
    %v3904 = vpack.c.b16 %v3056, %v3040
    %v3905 = vpack.c.b16 %v3073, %v3057
    %v3906 = vpack.c.b16 %v3074, %v3058
    %v3907 = vpack.c.b16 %v3075, %v3059
    %v3908 = vpack.c.b16 %v3076, %v3060
    %v3909 = vpack.c.b16 %v3077, %v3061
    %v3910 = vpack.c.b16 %v3078, %v3062
    %v3911 = vpack.c.b16 %v3079, %v3063
    %v3912 = vpack.c.b16 %v3080, %v3064
    %v3913 = vpack.c.b16 %v3081, %v3065
    %v3914 = vpack.c.b16 %v3082, %v3066
    %v3915 = vpack.c.b16 %v3083, %v3067
    %v3916 = vpack.c.b16 %v3084, %v3068
    %v3917 = vpack.c.b16 %v3085, %v3069
    %v3918 = vpack.c.b16 %v3086, %v3070
    %v3919 = vpack.c.b16 %v3087, %v3071
    %v3920 = vpack.c.b16 %v3088, %v3072
    %v3921 = vpack.c.b16 %v3105, %v3089
    %v3922 = vpack.c.b16 %v3106, %v3090
    %v3923 = vpack.c.b16 %v3107, %v3091
    %v3924 = vpack.c.b16 %v3108, %v3092
    %v3925 = vpack.c.b16 %v3109, %v3093
    %v3926 = vpack.c.b16 %v3110, %v3094
    %v3927 = vpack.c.b16 %v3111, %v3095
    %v3928 = vpack.c.b16 %v3112, %v3096
    %v3929 = vpack.c.b16 %v3113, %v3097
    %v3930 = vpack.c.b16 %v3114, %v3098
    %v3931 = vpack.c.b16 %v3115, %v3099
    %v3932 = vpack.c.b16 %v3116, %v3100
    %v3933 = vpack.c.b16 %v3117, %v3101
    %v3934 = vpack.c.b16 %v3118, %v3102
    %v3935 = vpack.c.b16 %v3119, %v3103
    %v3936 = vpack.c.b16 %v3120, %v3104
    %v3937 = vpack.c.b16 %v3137, %v3121
    %v3938 = vpack.c.b16 %v3138, %v3122
    %v3939 = vpack.c.b16 %v3139, %v3123
    %v3940 = vpack.c.b16 %v3140, %v3124
    %v3941 = vpack.c.b16 %v3141, %v3125
    %v3942 = vpack.c.b16 %v3142, %v3126
    %v3943 = vpack.c.b16 %v3143, %v3127
    %v3944 = vpack.c.b16 %v3144, %v3128
    %v3945 = vpack.c.b16 %v3145, %v3129
    %v3946 = vpack.c.b16 %v3146, %v3130
    %v3947 = vpack.c.b16 %v3147, %v3131
    %v3948 = vpack.c.b16 %v3148, %v3132
    %v3949 = vpack.c.b16 %v3149, %v3133
    %v3950 = vpack.c.b16 %v3150, %v3134
    %v3951 = vpack.c.b16 %v3151, %v3135
    %v3952 = vpack.c.b16 %v3152, %v3136
    %v3953 = vpack.c.b16 %v3169, %v3153
    %v3954 = vpack.c.b16 %v3170, %v3154
    %v3955 = vpack.c.b16 %v3171, %v3155
    %v3956 = vpack.c.b16 %v3172, %v3156
    %v3957 = vpack.c.b16 %v3173, %v3157
    %v3958 = vpack.c.b16 %v3174, %v3158
    %v3959 = vpack.c.b16 %v3175, %v3159
    %v3960 = vpack.c.b16 %v3176, %v3160
    %v3961 = vpack.c.b16 %v3177, %v3161
    %v3962 = vpack.c.b16 %v3178, %v3162
    %v3963 = vpack.c.b16 %v3179, %v3163
    %v3964 = vpack.c.b16 %v3180, %v3164
    %v3965 = vpack.c.b16 %v3181, %v3165
    %v3966 = vpack.c.b16 %v3182, %v3166
    %v3967 = vpack.c.b16 %v3183, %v3167
    %v3968 = vpack.c.b16 %v3184, %v3168
    %v3969 = vpack.c.b16 %v3201, %v3185
    %v3970 = vpack.c.b16 %v3202, %v3186
    %v3971 = vpack.c.b16 %v3203, %v3187
    %v3972 = vpack.c.b16 %v3204, %v3188
    %v3973 = vpack.c.b16 %v3205, %v3189
    %v3974 = vpack.c.b16 %v3206, %v3190
    %v3975 = vpack.c.b16 %v3207, %v3191
    %v3976 = vpack.c.b16 %v3208, %v3192
    %v3977 = vpack.c.b16 %v3209, %v3193
    %v3978 = vpack.c.b16 %v3210, %v3194
    %v3979 = vpack.c.b16 %v3211, %v3195
    %v3980 = vpack.c.b16 %v3212, %v3196
    %v3981 = vpack.c.b16 %v3213, %v3197
    %v3982 = vpack.c.b16 %v3214, %v3198
    %v3983 = vpack.c.b16 %v3215, %v3199
    %v3984 = vpack.c.b16 %v3216, %v3200
    %4753 = vmatprep.subr.bf16.mxu0 %v3218
    %4754 = vmatpush1.bf16.msra.mxu0 %v3217
    %4755 = vmatprep.subr.bf16.mxu0 %v3234
    %4756 = vmatpush1.bf16.msra.mxu0 %v3233
    %4757 = vmatprep.subr.bf16.mxu0 %v3250
    %4758 = vmatpush1.bf16.msra.mxu0 %v3249
    %4759 = vmatprep.subr.bf16.mxu0 %v3266
    %4760 = vmatpush1.bf16.msra.mxu0 %v3265
    %4761 = vmatprep.subr.bf16.mxu0 %v3282
    %4762 = vmatpush1.bf16.msra.mxu0 %v3281
    %4763 = vmatprep.subr.bf16.mxu0 %v3298
    %4764 = vmatpush1.bf16.msra.mxu0 %v3297
    %4765 = vmatprep.subr.bf16.mxu0 %v3314
    %4766 = vmatpush1.bf16.msra.mxu0 %v3313
    %4767 = vmatprep.subr.bf16.mxu0 %v3330
    %4768 = vmatpush1.bf16.msra.mxu0 %v3329
    %4769 = vmatprep.subr.bf16.mxu0 %v3346
    %4770 = vmatpush1.bf16.msra.mxu0 %v3345
    %4771 = vmatprep.subr.bf16.mxu0 %v3362
    %4772 = vmatpush1.bf16.msra.mxu0 %v3361
    %4773 = vmatprep.subr.bf16.mxu0 %v3378
    %4774 = vmatpush1.bf16.msra.mxu0 %v3377
    %4775 = vmatprep.subr.bf16.mxu0 %v3394
    %4776 = vmatpush1.bf16.msra.mxu0 %v3393
    %4777 = vmatprep.subr.bf16.mxu0 %v3410
    %4778 = vmatpush1.bf16.msra.mxu0 %v3409
    %4779 = vmatprep.subr.bf16.mxu0 %v3426
    %4780 = vmatpush1.bf16.msra.mxu0 %v3425
    %4781 = vmatprep.subr.bf16.mxu0 %v3442
    %4782 = vmatpush1.bf16.msra.mxu0 %v3441
    %4783 = vmatprep.subr.bf16.mxu0 %v3458
    %4784 = vmatpush1.bf16.msra.mxu0 %v3457
    %4785 = vmatprep.mubr.bf16.mxu0 %v140
    %4786 = vmatmul.mubr.bf16.gmra.mrb[0].mxu0 %v139
    %v4787 = vpop.f32.mrb[0].mxu0
    %v4788 = vadd.f32 0.0, %v4787
    %v4789 = vpop.f32.mrb[0].mxu0
    %v4790 = vadd.f32 0.0, %v4789
    %v4791 = vpop.f32.mrb[0].mxu0
    %v4792 = vpop.f32.mrb[0].mxu0
    %4793 = vdwg.mxu0
    %4794 = vmatprep.subr.bf16.mxu0 %v3474
    %4795 = vmatpush1.bf16.msra.mxu0 %v3473
    %4796 = vmatprep.subr.bf16.mxu0 %v3490
    %4797 = vmatpush1.bf16.msra.mxu0 %v3489
    %4798 = vmatprep.subr.bf16.mxu0 %v3506
    %4799 = vmatpush1.bf16.msra.mxu0 %v3505
    %4800 = vmatprep.subr.bf16.mxu0 %v3522
    %4801 = vmatpush1.bf16.msra.mxu0 %v3521
    %4802 = vmatprep.subr.bf16.mxu0 %v3538
    %4803 = vmatpush1.bf16.msra.mxu0 %v3537
    %4804 = vmatprep.subr.bf16.mxu0 %v3554
    %4805 = vmatpush1.bf16.msra.mxu0 %v3553
    %4806 = vmatprep.subr.bf16.mxu0 %v3570
    %4807 = vmatpush1.bf16.msra.mxu0 %v3569
    %4808 = vmatprep.subr.bf16.mxu0 %v3586
    %4809 = vmatpush1.bf16.msra.mxu0 %v3585
    %4810 = vmatprep.subr.bf16.mxu0 %v3602
    %4811 = vmatpush1.bf16.msra.mxu0 %v3601
    %4812 = vmatprep.subr.bf16.mxu0 %v3618
    %4813 = vmatpush1.bf16.msra.mxu0 %v3617
    %4814 = vmatprep.subr.bf16.mxu0 %v3634
    %4815 = vmatpush1.bf16.msra.mxu0 %v3633
    %4816 = vmatprep.subr.bf16.mxu0 %v3650
    %4817 = vmatpush1.bf16.msra.mxu0 %v3649
    %4818 = vmatprep.subr.bf16.mxu0 %v3666
    %4819 = vmatpush1.bf16.msra.mxu0 %v3665
    %4820 = vmatprep.subr.bf16.mxu0 %v3682
    %4821 = vmatpush1.bf16.msra.mxu0 %v3681
    %4822 = vmatprep.subr.bf16.mxu0 %v3698
    %4823 = vmatpush1.bf16.msra.mxu0 %v3697
    %4824 = vmatprep.subr.bf16.mxu0 %v3714
    %4825 = vmatpush1.bf16.msra.mxu0 %v3713
    %4826 = vmatprep.mubr.bf16.mxu0 %v142
    %4827 = vmatmul.mubr.bf16.gmra.mrb[0].mxu0 %v141
    %v4828 = vpop.f32.mrb[0].mxu0
    %v4829 = vadd.f32 %v4788, %v4828
    %v4830 = vpop.f32.mrb[0].mxu0
    %v4831 = vadd.f32 %v4790, %v4830
    %v4832 = vpop.f32.mrb[0].mxu0
    %v4833 = vpop.f32.mrb[0].mxu0
    %4834 = vdwg.mxu0
    %4835 = vmatprep.subr.bf16.mxu0 %v3730
    %4836 = vmatpush1.bf16.msra.mxu0 %v3729
    %4837 = vmatprep.subr.bf16.mxu0 %v3746
    %4838 = vmatpush1.bf16.msra.mxu0 %v3745
    %4839 = vmatprep.subr.bf16.mxu0 %v3762
    %4840 = vmatpush1.bf16.msra.mxu0 %v3761
    %4841 = vmatprep.subr.bf16.mxu0 %v3778
    %4842 = vmatpush1.bf16.msra.mxu0 %v3777
    %4843 = vmatprep.subr.bf16.mxu0 %v3794
    %4844 = vmatpush1.bf16.msra.mxu0 %v3793
    %4845 = vmatprep.subr.bf16.mxu0 %v3810
    %4846 = vmatpush1.bf16.msra.mxu0 %v3809
    %4847 = vmatprep.subr.bf16.mxu0 %v3826
    %4848 = vmatpush1.bf16.msra.mxu0 %v3825
    %4849 = vmatprep.subr.bf16.mxu0 %v3842
    %4850 = vmatpush1.bf16.msra.mxu0 %v3841
    %4851 = vmatprep.subr.bf16.mxu0 %v3858
    %4852 = vmatpush1.bf16.msra.mxu0 %v3857
    %4853 = vmatprep.subr.bf16.mxu0 %v3874
    %4854 = vmatpush1.bf16.msra.mxu0 %v3873
    %4855 = vmatprep.subr.bf16.mxu0 %v3890
    %4856 = vmatpush1.bf16.msra.mxu0 %v3889
    %4857 = vmatprep.subr.bf16.mxu0 %v3906
    %4858 = vmatpush1.bf16.msra.mxu0 %v3905
    %4859 = vmatprep.subr.bf16.mxu0 %v3922
    %4860 = vmatpush1.bf16.msra.mxu0 %v3921
    %4861 = vmatprep.subr.bf16.mxu0 %v3938
    %4862 = vmatpush1.bf16.msra.mxu0 %v3937
    %4863 = vmatprep.subr.bf16.mxu0 %v3954
    %4864 = vmatpush1.bf16.msra.mxu0 %v3953
    %4865 = vmatprep.subr.bf16.mxu0 %v3970
    %4866 = vmatpush1.bf16.msra.mxu0 %v3969
    %4867 = vmatprep.mubr.bf16.mxu0 %v144
    %4868 = vmatmul.mubr.bf16.gmra.mrb[0].mxu0 %v143
    %v4869 = vpop.f32.mrb[0].mxu0
    %v4870 = vadd.f32 %v4829, %v4869
    %v4871 = vpop.f32.mrb[0].mxu0
    %v4872 = vadd.f32 %v4831, %v4871
    %v4873 = vpop.f32.mrb[0].mxu0
    %v4874 = vpop.f32.mrb[0].mxu0
    %4875 = vdwg.mxu0
    %4876 = vmatprep.subr.bf16.mxu0 %v3220
    %4877 = vmatpush1.bf16.msra.mxu0 %v3219
    %4878 = vmatprep.subr.bf16.mxu0 %v3236
    %4879 = vmatpush1.bf16.msra.mxu0 %v3235
    %4880 = vmatprep.subr.bf16.mxu0 %v3252
    %4881 = vmatpush1.bf16.msra.mxu0 %v3251
    %4882 = vmatprep.subr.bf16.mxu0 %v3268
    %4883 = vmatpush1.bf16.msra.mxu0 %v3267
    %4884 = vmatprep.subr.bf16.mxu0 %v3284
    %4885 = vmatpush1.bf16.msra.mxu0 %v3283
    %4886 = vmatprep.subr.bf16.mxu0 %v3300
    %4887 = vmatpush1.bf16.msra.mxu0 %v3299
    %4888 = vmatprep.subr.bf16.mxu0 %v3316
    %4889 = vmatpush1.bf16.msra.mxu0 %v3315
    %4890 = vmatprep.subr.bf16.mxu0 %v3332
    %4891 = vmatpush1.bf16.msra.mxu0 %v3331
    %4892 = vmatprep.subr.bf16.mxu0 %v3348
    %4893 = vmatpush1.bf16.msra.mxu0 %v3347
    %4894 = vmatprep.subr.bf16.mxu0 %v3364
    %4895 = vmatpush1.bf16.msra.mxu0 %v3363
    %4896 = vmatprep.subr.bf16.mxu0 %v3380
    %4897 = vmatpush1.bf16.msra.mxu0 %v3379
    %4898 = vmatprep.subr.bf16.mxu0 %v3396
    %4899 = vmatpush1.bf16.msra.mxu0 %v3395
    %4900 = vmatprep.subr.bf16.mxu0 %v3412
    %4901 = vmatpush1.bf16.msra.mxu0 %v3411
    %4902 = vmatprep.subr.bf16.mxu0 %v3428
    %4903 = vmatpush1.bf16.msra.mxu0 %v3427
    %4904 = vmatprep.subr.bf16.mxu0 %v3444
    %4905 = vmatpush1.bf16.msra.mxu0 %v3443
    %4906 = vmatprep.subr.bf16.mxu0 %v3460
    %4907 = vmatpush1.bf16.msra.mxu0 %v3459
    %4908 = vmatprep.mubr.bf16.mxu0 %v140
    %4909 = vmatmul.mubr.bf16.gmra.mrb[0].mxu0 %v139
    %v4910 = vpop.f32.mrb[0].mxu0
    %v4911 = vadd.f32 0.0, %v4910
    %v4912 = vpop.f32.mrb[0].mxu0
    %v4913 = vadd.f32 0.0, %v4912
    %v4914 = vpop.f32.mrb[0].mxu0
    %v4915 = vpop.f32.mrb[0].mxu0
    %4916 = vdwg.mxu0
    %4917 = vmatprep.subr.bf16.mxu0 %v3476
    %4918 = vmatpush1.bf16.msra.mxu0 %v3475
    %4919 = vmatprep.subr.bf16.mxu0 %v3492
    %4920 = vmatpush1.bf16.msra.mxu0 %v3491
    %4921 = vmatprep.subr.bf16.mxu0 %v3508
    %4922 = vmatpush1.bf16.msra.mxu0 %v3507
    %4923 = vmatprep.subr.bf16.mxu0 %v3524
    %4924 = vmatpush1.bf16.msra.mxu0 %v3523
    %4925 = vmatprep.subr.bf16.mxu0 %v3540
    %4926 = vmatpush1.bf16.msra.mxu0 %v3539
    %4927 = vmatprep.subr.bf16.mxu0 %v3556
    %4928 = vmatpush1.bf16.msra.mxu0 %v3555
    %4929 = vmatprep.subr.bf16.mxu0 %v3572
    %4930 = vmatpush1.bf16.msra.mxu0 %v3571
    %4931 = vmatprep.subr.bf16.mxu0 %v3588
    %4932 = vmatpush1.bf16.msra.mxu0 %v3587
    %4933 = vmatprep.subr.bf16.mxu0 %v3604
    %4934 = vmatpush1.bf16.msra.mxu0 %v3603
    %4935 = vmatprep.subr.bf16.mxu0 %v3620
    %4936 = vmatpush1.bf16.msra.mxu0 %v3619
    %4937 = vmatprep.subr.bf16.mxu0 %v3636
    %4938 = vmatpush1.bf16.msra.mxu0 %v3635
    %4939 = vmatprep.subr.bf16.mxu0 %v3652
    %4940 = vmatpush1.bf16.msra.mxu0 %v3651
    %4941 = vmatprep.subr.bf16.mxu0 %v3668
    %4942 = vmatpush1.bf16.msra.mxu0 %v3667
    %4943 = vmatprep.subr.bf16.mxu0 %v3684
    %4944 = vmatpush1.bf16.msra.mxu0 %v3683
    %4945 = vmatprep.subr.bf16.mxu0 %v3700
    %4946 = vmatpush1.bf16.msra.mxu0 %v3699
    %4947 = vmatprep.subr.bf16.mxu0 %v3716
    %4948 = vmatpush1.bf16.msra.mxu0 %v3715
    %4949 = vmatprep.mubr.bf16.mxu0 %v142
    %4950 = vmatmul.mubr.bf16.gmra.mrb[0].mxu0 %v141
    %v4951 = vpop.f32.mrb[0].mxu0
    %v4952 = vadd.f32 %v4911, %v4951
    %v4953 = vpop.f32.mrb[0].mxu0
    %v4954 = vadd.f32 %v4913, %v4953
    %v4955 = vpop.f32.mrb[0].mxu0
    %v4956 = vpop.f32.mrb[0].mxu0
    %4957 = vdwg.mxu0
    %4958 = vmatprep.subr.bf16.mxu0 %v3732
    %4959 = vmatpush1.bf16.msra.mxu0 %v3731
    %4960 = vmatprep.subr.bf16.mxu0 %v3748
    %4961 = vmatpush1.bf16.msra.mxu0 %v3747
    %4962 = vmatprep.subr.bf16.mxu0 %v3764
    %4963 = vmatpush1.bf16.msra.mxu0 %v3763
    %4964 = vmatprep.subr.bf16.mxu0 %v3780
    %4965 = vmatpush1.bf16.msra.mxu0 %v3779
    %4966 = vmatprep.subr.bf16.mxu0 %v3796
    %4967 = vmatpush1.bf16.msra.mxu0 %v3795
    %4968 = vmatprep.subr.bf16.mxu0 %v3812
    %4969 = vmatpush1.bf16.msra.mxu0 %v3811
    %4970 = vmatprep.subr.bf16.mxu0 %v3828
    %4971 = vmatpush1.bf16.msra.mxu0 %v3827
    %4972 = vmatprep.subr.bf16.mxu0 %v3844
    %4973 = vmatpush1.bf16.msra.mxu0 %v3843
    %4974 = vmatprep.subr.bf16.mxu0 %v3860
    %4975 = vmatpush1.bf16.msra.mxu0 %v3859
    %4976 = vmatprep.subr.bf16.mxu0 %v3876
    %4977 = vmatpush1.bf16.msra.mxu0 %v3875
    %4978 = vmatprep.subr.bf16.mxu0 %v3892
    %4979 = vmatpush1.bf16.msra.mxu0 %v3891
    %4980 = vmatprep.subr.bf16.mxu0 %v3908
    %4981 = vmatpush1.bf16.msra.mxu0 %v3907
    %4982 = vmatprep.subr.bf16.mxu0 %v3924
    %4983 = vmatpush1.bf16.msra.mxu0 %v3923
    %4984 = vmatprep.subr.bf16.mxu0 %v3940
    %4985 = vmatpush1.bf16.msra.mxu0 %v3939
    %4986 = vmatprep.subr.bf16.mxu0 %v3956
    %4987 = vmatpush1.bf16.msra.mxu0 %v3955
    %4988 = vmatprep.subr.bf16.mxu0 %v3972
    %4989 = vmatpush1.bf16.msra.mxu0 %v3971
    %4990 = vmatprep.mubr.bf16.mxu0 %v144
    %4991 = vmatmul.mubr.bf16.gmra.mrb[0].mxu0 %v143
    %v4992 = vpop.f32.mrb[0].mxu0
    %v4993 = vadd.f32 %v4952, %v4992
    %v4994 = vpop.f32.mrb[0].mxu0
    %v4995 = vadd.f32 %v4954, %v4994
    %v4996 = vpop.f32.mrb[0].mxu0
    %v4997 = vpop.f32.mrb[0].mxu0
    %4998 = vdwg.mxu0
    %4999 = vmatprep.subr.bf16.mxu0 %v3222
    %5000 = vmatpush1.bf16.msra.mxu0 %v3221
    %5001 = vmatprep.subr.bf16.mxu0 %v3238
    %5002 = vmatpush1.bf16.msra.mxu0 %v3237
    %5003 = vmatprep.subr.bf16.mxu0 %v3254
    %5004 = vmatpush1.bf16.msra.mxu0 %v3253
    %5005 = vmatprep.subr.bf16.mxu0 %v3270
    %5006 = vmatpush1.bf16.msra.mxu0 %v3269
    %5007 = vmatprep.subr.bf16.mxu0 %v3286
    %5008 = vmatpush1.bf16.msra.mxu0 %v3285
    %5009 = vmatprep.subr.bf16.mxu0 %v3302
    %5010 = vmatpush1.bf16.msra.mxu0 %v3301
    %5011 = vmatprep.subr.bf16.mxu0 %v3318
    %5012 = vmatpush1.bf16.msra.mxu0 %v3317
    %5013 = vmatprep.subr.bf16.mxu0 %v3334
    %5014 = vmatpush1.bf16.msra.mxu0 %v3333
    %5015 = vmatprep.subr.bf16.mxu0 %v3350
    %5016 = vmatpush1.bf16.msra.mxu0 %v3349
    %5017 = vmatprep.subr.bf16.mxu0 %v3366
    %5018 = vmatpush1.bf16.msra.mxu0 %v3365
    %5019 = vmatprep.subr.bf16.mxu0 %v3382
    %5020 = vmatpush1.bf16.msra.mxu0 %v3381
    %5021 = vmatprep.subr.bf16.mxu0 %v3398
    %5022 = vmatpush1.bf16.msra.mxu0 %v3397
    %5023 = vmatprep.subr.bf16.mxu0 %v3414
    %5024 = vmatpush1.bf16.msra.mxu0 %v3413
    %5025 = vmatprep.subr.bf16.mxu0 %v3430
    %5026 = vmatpush1.bf16.msra.mxu0 %v3429
    %5027 = vmatprep.subr.bf16.mxu0 %v3446
    %5028 = vmatpush1.bf16.msra.mxu0 %v3445
    %5029 = vmatprep.subr.bf16.mxu0 %v3462
    %5030 = vmatpush1.bf16.msra.mxu0 %v3461
    %5031 = vmatprep.mubr.bf16.mxu0 %v140
    %5032 = vmatmul.mubr.bf16.gmra.mrb[0].mxu0 %v139
    %v5033 = vpop.f32.mrb[0].mxu0
    %v5034 = vadd.f32 0.0, %v5033
    %v5035 = vpop.f32.mrb[0].mxu0
    %v5036 = vadd.f32 0.0, %v5035
    %v5037 = vpop.f32.mrb[0].mxu0
    %v5038 = vpop.f32.mrb[0].mxu0
    %5039 = vdwg.mxu0
    %5040 = vmatprep.subr.bf16.mxu0 %v3478
    %5041 = vmatpush1.bf16.msra.mxu0 %v3477
    %5042 = vmatprep.subr.bf16.mxu0 %v3494
    %5043 = vmatpush1.bf16.msra.mxu0 %v3493
    %5044 = vmatprep.subr.bf16.mxu0 %v3510
    %5045 = vmatpush1.bf16.msra.mxu0 %v3509
    %5046 = vmatprep.subr.bf16.mxu0 %v3526
    %5047 = vmatpush1.bf16.msra.mxu0 %v3525
    %5048 = vmatprep.subr.bf16.mxu0 %v3542
    %5049 = vmatpush1.bf16.msra.mxu0 %v3541
    %5050 = vmatprep.subr.bf16.mxu0 %v3558
    %5051 = vmatpush1.bf16.msra.mxu0 %v3557
    %5052 = vmatprep.subr.bf16.mxu0 %v3574
    %5053 = vmatpush1.bf16.msra.mxu0 %v3573
    %5054 = vmatprep.subr.bf16.mxu0 %v3590
    %5055 = vmatpush1.bf16.msra.mxu0 %v3589
    %5056 = vmatprep.subr.bf16.mxu0 %v3606
    %5057 = vmatpush1.bf16.msra.mxu0 %v3605
    %5058 = vmatprep.subr.bf16.mxu0 %v3622
    %5059 = vmatpush1.bf16.msra.mxu0 %v3621
    %5060 = vmatprep.subr.bf16.mxu0 %v3638
    %5061 = vmatpush1.bf16.msra.mxu0 %v3637
    %5062 = vmatprep.subr.bf16.mxu0 %v3654
    %5063 = vmatpush1.bf16.msra.mxu0 %v3653
    %5064 = vmatprep.subr.bf16.mxu0 %v3670
    %5065 = vmatpush1.bf16.msra.mxu0 %v3669
    %5066 = vmatprep.subr.bf16.mxu0 %v3686
    %5067 = vmatpush1.bf16.msra.mxu0 %v3685
    %5068 = vmatprep.subr.bf16.mxu0 %v3702
    %5069 = vmatpush1.bf16.msra.mxu0 %v3701
    %5070 = vmatprep.subr.bf16.mxu0 %v3718
    %5071 = vmatpush1.bf16.msra.mxu0 %v3717
    %5072 = vmatprep.mubr.bf16.mxu0 %v142
    %5073 = vmatmul.mubr.bf16.gmra.mrb[0].mxu0 %v141
    %v5074 = vpop.f32.mrb[0].mxu0
    %v5075 = vadd.f32 %v5034, %v5074
    %v5076 = vpop.f32.mrb[0].mxu0
    %v5077 = vadd.f32 %v5036, %v5076
    %v5078 = vpop.f32.mrb[0].mxu0
    %v5079 = vpop.f32.mrb[0].mxu0
    %5080 = vdwg.mxu0
    %5081 = vmatprep.subr.bf16.mxu0 %v3734
    %5082 = vmatpush1.bf16.msra.mxu0 %v3733
    %5083 = vmatprep.subr.bf16.mxu0 %v3750
    %5084 = vmatpush1.bf16.msra.mxu0 %v3749
    %5085 = vmatprep.subr.bf16.mxu0 %v3766
    %5086 = vmatpush1.bf16.msra.mxu0 %v3765
    %5087 = vmatprep.subr.bf16.mxu0 %v3782
    %5088 = vmatpush1.bf16.msra.mxu0 %v3781
    %5089 = vmatprep.subr.bf16.mxu0 %v3798
    %5090 = vmatpush1.bf16.msra.mxu0 %v3797
    %5091 = vmatprep.subr.bf16.mxu0 %v3814
    %5092 = vmatpush1.bf16.msra.mxu0 %v3813
    %5093 = vmatprep.subr.bf16.mxu0 %v3830
    %5094 = vmatpush1.bf16.msra.mxu0 %v3829
    %5095 = vmatprep.subr.bf16.mxu0 %v3846
    %5096 = vmatpush1.bf16.msra.mxu0 %v3845
    %5097 = vmatprep.subr.bf16.mxu0 %v3862
    %5098 = vmatpush1.bf16.msra.mxu0 %v3861
    %5099 = vmatprep.subr.bf16.mxu0 %v3878
    %5100 = vmatpush1.bf16.msra.mxu0 %v3877
    %5101 = vmatprep.subr.bf16.mxu0 %v3894
    %5102 = vmatpush1.bf16.msra.mxu0 %v3893
    %5103 = vmatprep.subr.bf16.mxu0 %v3910
    %5104 = vmatpush1.bf16.msra.mxu0 %v3909
    %5105 = vmatprep.subr.bf16.mxu0 %v3926
    %5106 = vmatpush1.bf16.msra.mxu0 %v3925
    %5107 = vmatprep.subr.bf16.mxu0 %v3942
    %5108 = vmatpush1.bf16.msra.mxu0 %v3941
    %5109 = vmatprep.subr.bf16.mxu0 %v3958
    %5110 = vmatpush1.bf16.msra.mxu0 %v3957
    %5111 = vmatprep.subr.bf16.mxu0 %v3974
    %5112 = vmatpush1.bf16.msra.mxu0 %v3973
    %5113 = vmatprep.mubr.bf16.mxu0 %v144
    %5114 = vmatmul.mubr.bf16.gmra.mrb[0].mxu0 %v143
    %v5115 = vpop.f32.mrb[0].mxu0
    %v5116 = vadd.f32 %v5075, %v5115
    %v5117 = vpop.f32.mrb[0].mxu0
    %v5118 = vadd.f32 %v5077, %v5117
    %v5119 = vpop.f32.mrb[0].mxu0
    %v5120 = vpop.f32.mrb[0].mxu0
    %5121 = vdwg.mxu0
    %5122 = vmatprep.subr.bf16.mxu0 %v3224
    %5123 = vmatpush1.bf16.msra.mxu0 %v3223
    %5124 = vmatprep.subr.bf16.mxu0 %v3240
    %5125 = vmatpush1.bf16.msra.mxu0 %v3239
    %5126 = vmatprep.subr.bf16.mxu0 %v3256
    %5127 = vmatpush1.bf16.msra.mxu0 %v3255
    %5128 = vmatprep.subr.bf16.mxu0 %v3272
    %5129 = vmatpush1.bf16.msra.mxu0 %v3271
    %5130 = vmatprep.subr.bf16.mxu0 %v3288
    %5131 = vmatpush1.bf16.msra.mxu0 %v3287
    %5132 = vmatprep.subr.bf16.mxu0 %v3304
    %5133 = vmatpush1.bf16.msra.mxu0 %v3303
    %5134 = vmatprep.subr.bf16.mxu0 %v3320
    %5135 = vmatpush1.bf16.msra.mxu0 %v3319
    %5136 = vmatprep.subr.bf16.mxu0 %v3336
    %5137 = vmatpush1.bf16.msra.mxu0 %v3335
    %5138 = vmatprep.subr.bf16.mxu0 %v3352
    %5139 = vmatpush1.bf16.msra.mxu0 %v3351
    %5140 = vmatprep.subr.bf16.mxu0 %v3368
    %5141 = vmatpush1.bf16.msra.mxu0 %v3367
    %5142 = vmatprep.subr.bf16.mxu0 %v3384
    %5143 = vmatpush1.bf16.msra.mxu0 %v3383
    %5144 = vmatprep.subr.bf16.mxu0 %v3400
    %5145 = vmatpush1.bf16.msra.mxu0 %v3399
    %5146 = vmatprep.subr.bf16.mxu0 %v3416
    %5147 = vmatpush1.bf16.msra.mxu0 %v3415
    %5148 = vmatprep.subr.bf16.mxu0 %v3432
    %5149 = vmatpush1.bf16.msra.mxu0 %v3431
    %5150 = vmatprep.subr.bf16.mxu0 %v3448
    %5151 = vmatpush1.bf16.msra.mxu0 %v3447
    %5152 = vmatprep.subr.bf16.mxu0 %v3464
    %5153 = vmatpush1.bf16.msra.mxu0 %v3463
    %5154 = vmatprep.mubr.bf16.mxu0 %v140
    %5155 = vmatmul.mubr.bf16.gmra.mrb[0].mxu0 %v139
    %v5156 = vpop.f32.mrb[0].mxu0
    %v5157 = vadd.f32 0.0, %v5156
    %v5158 = vpop.f32.mrb[0].mxu0
    %v5159 = vadd.f32 0.0, %v5158
    %v5160 = vpop.f32.mrb[0].mxu0
    %v5161 = vpop.f32.mrb[0].mxu0
    %5162 = vdwg.mxu0
    %5163 = vmatprep.subr.bf16.mxu0 %v3480
    %5164 = vmatpush1.bf16.msra.mxu0 %v3479
    %5165 = vmatprep.subr.bf16.mxu0 %v3496
    %5166 = vmatpush1.bf16.msra.mxu0 %v3495
    %5167 = vmatprep.subr.bf16.mxu0 %v3512
    %5168 = vmatpush1.bf16.msra.mxu0 %v3511
    %5169 = vmatprep.subr.bf16.mxu0 %v3528
    %5170 = vmatpush1.bf16.msra.mxu0 %v3527
    %5171 = vmatprep.subr.bf16.mxu0 %v3544
    %5172 = vmatpush1.bf16.msra.mxu0 %v3543
    %5173 = vmatprep.subr.bf16.mxu0 %v3560
    %5174 = vmatpush1.bf16.msra.mxu0 %v3559
    %5175 = vmatprep.subr.bf16.mxu0 %v3576
    %5176 = vmatpush1.bf16.msra.mxu0 %v3575
    %5177 = vmatprep.subr.bf16.mxu0 %v3592
    %5178 = vmatpush1.bf16.msra.mxu0 %v3591
    %5179 = vmatprep.subr.bf16.mxu0 %v3608
    %5180 = vmatpush1.bf16.msra.mxu0 %v3607
    %5181 = vmatprep.subr.bf16.mxu0 %v3624
    %5182 = vmatpush1.bf16.msra.mxu0 %v3623
    %5183 = vmatprep.subr.bf16.mxu0 %v3640
    %5184 = vmatpush1.bf16.msra.mxu0 %v3639
    %5185 = vmatprep.subr.bf16.mxu0 %v3656
    %5186 = vmatpush1.bf16.msra.mxu0 %v3655
    %5187 = vmatprep.subr.bf16.mxu0 %v3672
    %5188 = vmatpush1.bf16.msra.mxu0 %v3671
    %5189 = vmatprep.subr.bf16.mxu0 %v3688
    %5190 = vmatpush1.bf16.msra.mxu0 %v3687
    %5191 = vmatprep.subr.bf16.mxu0 %v3704
    %5192 = vmatpush1.bf16.msra.mxu0 %v3703
    %5193 = vmatprep.subr.bf16.mxu0 %v3720
    %5194 = vmatpush1.bf16.msra.mxu0 %v3719
    %5195 = vmatprep.mubr.bf16.mxu0 %v142
    %5196 = vmatmul.mubr.bf16.gmra.mrb[0].mxu0 %v141
    %v5197 = vpop.f32.mrb[0].mxu0
    %v5198 = vadd.f32 %v5157, %v5197
    %v5199 = vpop.f32.mrb[0].mxu0
    %v5200 = vadd.f32 %v5159, %v5199
    %v5201 = vpop.f32.mrb[0].mxu0
    %v5202 = vpop.f32.mrb[0].mxu0
    %5203 = vdwg.mxu0
    %5204 = vmatprep.subr.bf16.mxu0 %v3736
    %5205 = vmatpush1.bf16.msra.mxu0 %v3735
    %5206 = vmatprep.subr.bf16.mxu0 %v3752
    %5207 = vmatpush1.bf16.msra.mxu0 %v3751
    %5208 = vmatprep.subr.bf16.mxu0 %v3768
    %5209 = vmatpush1.bf16.msra.mxu0 %v3767
    %5210 = vmatprep.subr.bf16.mxu0 %v3784
    %5211 = vmatpush1.bf16.msra.mxu0 %v3783
    %5212 = vmatprep.subr.bf16.mxu0 %v3800
    %5213 = vmatpush1.bf16.msra.mxu0 %v3799
    %5214 = vmatprep.subr.bf16.mxu0 %v3816
    %5215 = vmatpush1.bf16.msra.mxu0 %v3815
    %5216 = vmatprep.subr.bf16.mxu0 %v3832
    %5217 = vmatpush1.bf16.msra.mxu0 %v3831
    %5218 = vmatprep.subr.bf16.mxu0 %v3848
    %5219 = vmatpush1.bf16.msra.mxu0 %v3847
    %5220 = vmatprep.subr.bf16.mxu0 %v3864
    %5221 = vmatpush1.bf16.msra.mxu0 %v3863
    %5222 = vmatprep.subr.bf16.mxu0 %v3880
    %5223 = vmatpush1.bf16.msra.mxu0 %v3879
    %5224 = vmatprep.subr.bf16.mxu0 %v3896
    %5225 = vmatpush1.bf16.msra.mxu0 %v3895
    %5226 = vmatprep.subr.bf16.mxu0 %v3912
    %5227 = vmatpush1.bf16.msra.mxu0 %v3911
    %5228 = vmatprep.subr.bf16.mxu0 %v3928
    %5229 = vmatpush1.bf16.msra.mxu0 %v3927
    %5230 = vmatprep.subr.bf16.mxu0 %v3944
    %5231 = vmatpush1.bf16.msra.mxu0 %v3943
    %5232 = vmatprep.subr.bf16.mxu0 %v3960
    %5233 = vmatpush1.bf16.msra.mxu0 %v3959
    %5234 = vmatprep.subr.bf16.mxu0 %v3976
    %5235 = vmatpush1.bf16.msra.mxu0 %v3975
    %5236 = vmatprep.mubr.bf16.mxu0 %v144
    %5237 = vmatmul.mubr.bf16.gmra.mrb[0].mxu0 %v143
    %v5238 = vpop.f32.mrb[0].mxu0
    %v5239 = vadd.f32 %v5198, %v5238
    %v5240 = vpop.f32.mrb[0].mxu0
    %v5241 = vadd.f32 %v5200, %v5240
    %v5242 = vpop.f32.mrb[0].mxu0
    %v5243 = vpop.f32.mrb[0].mxu0
    %5244 = vdwg.mxu0
    %5245 = vmatprep.subr.bf16.mxu0 %v3226
    %5246 = vmatpush1.bf16.msra.mxu0 %v3225
    %5247 = vmatprep.subr.bf16.mxu0 %v3242
    %5248 = vmatpush1.bf16.msra.mxu0 %v3241
    %5249 = vmatprep.subr.bf16.mxu0 %v3258
    %5250 = vmatpush1.bf16.msra.mxu0 %v3257
    %5251 = vmatprep.subr.bf16.mxu0 %v3274
    %5252 = vmatpush1.bf16.msra.mxu0 %v3273
    %5253 = vmatprep.subr.bf16.mxu0 %v3290
    %5254 = vmatpush1.bf16.msra.mxu0 %v3289
    %5255 = vmatprep.subr.bf16.mxu0 %v3306
    %5256 = vmatpush1.bf16.msra.mxu0 %v3305
    %5257 = vmatprep.subr.bf16.mxu0 %v3322
    %5258 = vmatpush1.bf16.msra.mxu0 %v3321
    %5259 = vmatprep.subr.bf16.mxu0 %v3338
    %5260 = vmatpush1.bf16.msra.mxu0 %v3337
    %5261 = vmatprep.subr.bf16.mxu0 %v3354
    %5262 = vmatpush1.bf16.msra.mxu0 %v3353
    %5263 = vmatprep.subr.bf16.mxu0 %v3370
    %5264 = vmatpush1.bf16.msra.mxu0 %v3369
    %5265 = vmatprep.subr.bf16.mxu0 %v3386
    %5266 = vmatpush1.bf16.msra.mxu0 %v3385
    %5267 = vmatprep.subr.bf16.mxu0 %v3402
    %5268 = vmatpush1.bf16.msra.mxu0 %v3401
    %5269 = vmatprep.subr.bf16.mxu0 %v3418
    %5270 = vmatpush1.bf16.msra.mxu0 %v3417
    %5271 = vmatprep.subr.bf16.mxu0 %v3434
    %5272 = vmatpush1.bf16.msra.mxu0 %v3433
    %5273 = vmatprep.subr.bf16.mxu0 %v3450
    %5274 = vmatpush1.bf16.msra.mxu0 %v3449
    %5275 = vmatprep.subr.bf16.mxu0 %v3466
    %5276 = vmatpush1.bf16.msra.mxu0 %v3465
    %5277 = vmatprep.mubr.bf16.mxu0 %v140
    %5278 = vmatmul.mubr.bf16.gmra.mrb[0].mxu0 %v139
    %v5279 = vpop.f32.mrb[0].mxu0
    %v5280 = vadd.f32 0.0, %v5279
    %v5281 = vpop.f32.mrb[0].mxu0
    %v5282 = vadd.f32 0.0, %v5281
    %v5283 = vpop.f32.mrb[0].mxu0
    %v5284 = vpop.f32.mrb[0].mxu0
    %5285 = vdwg.mxu0
    %5286 = vmatprep.subr.bf16.mxu0 %v3482
    %5287 = vmatpush1.bf16.msra.mxu0 %v3481
    %5288 = vmatprep.subr.bf16.mxu0 %v3498
    %5289 = vmatpush1.bf16.msra.mxu0 %v3497
    %5290 = vmatprep.subr.bf16.mxu0 %v3514
    %5291 = vmatpush1.bf16.msra.mxu0 %v3513
    %5292 = vmatprep.subr.bf16.mxu0 %v3530
    %5293 = vmatpush1.bf16.msra.mxu0 %v3529
    %5294 = vmatprep.subr.bf16.mxu0 %v3546
    %5295 = vmatpush1.bf16.msra.mxu0 %v3545
    %5296 = vmatprep.subr.bf16.mxu0 %v3562
    %5297 = vmatpush1.bf16.msra.mxu0 %v3561
    %5298 = vmatprep.subr.bf16.mxu0 %v3578
    %5299 = vmatpush1.bf16.msra.mxu0 %v3577
    %5300 = vmatprep.subr.bf16.mxu0 %v3594
    %5301 = vmatpush1.bf16.msra.mxu0 %v3593
    %5302 = vmatprep.subr.bf16.mxu0 %v3610
    %5303 = vmatpush1.bf16.msra.mxu0 %v3609
    %5304 = vmatprep.subr.bf16.mxu0 %v3626
    %5305 = vmatpush1.bf16.msra.mxu0 %v3625
    %5306 = vmatprep.subr.bf16.mxu0 %v3642
    %5307 = vmatpush1.bf16.msra.mxu0 %v3641
    %5308 = vmatprep.subr.bf16.mxu0 %v3658
    %5309 = vmatpush1.bf16.msra.mxu0 %v3657
    %5310 = vmatprep.subr.bf16.mxu0 %v3674
    %5311 = vmatpush1.bf16.msra.mxu0 %v3673
    %5312 = vmatprep.subr.bf16.mxu0 %v3690
    %5313 = vmatpush1.bf16.msra.mxu0 %v3689
    %5314 = vmatprep.subr.bf16.mxu0 %v3706
    %5315 = vmatpush1.bf16.msra.mxu0 %v3705
    %5316 = vmatprep.subr.bf16.mxu0 %v3722
    %5317 = vmatpush1.bf16.msra.mxu0 %v3721
    %5318 = vmatprep.mubr.bf16.mxu0 %v142
    %5319 = vmatmul.mubr.bf16.gmra.mrb[0].mxu0 %v141
    %v5320 = vpop.f32.mrb[0].mxu0
    %v5321 = vadd.f32 %v5280, %v5320
    %v5322 = vpop.f32.mrb[0].mxu0
    %v5323 = vadd.f32 %v5282, %v5322
    %v5324 = vpop.f32.mrb[0].mxu0
    %v5325 = vpop.f32.mrb[0].mxu0
    %5326 = vdwg.mxu0
    %5327 = vmatprep.subr.bf16.mxu0 %v3738
    %5328 = vmatpush1.bf16.msra.mxu0 %v3737
    %5329 = vmatprep.subr.bf16.mxu0 %v3754
    %5330 = vmatpush1.bf16.msra.mxu0 %v3753
    %5331 = vmatprep.subr.bf16.mxu0 %v3770
    %5332 = vmatpush1.bf16.msra.mxu0 %v3769
    %5333 = vmatprep.subr.bf16.mxu0 %v3786
    %5334 = vmatpush1.bf16.msra.mxu0 %v3785
    %5335 = vmatprep.subr.bf16.mxu0 %v3802
    %5336 = vmatpush1.bf16.msra.mxu0 %v3801
    %5337 = vmatprep.subr.bf16.mxu0 %v3818
    %5338 = vmatpush1.bf16.msra.mxu0 %v3817
    %5339 = vmatprep.subr.bf16.mxu0 %v3834
    %5340 = vmatpush1.bf16.msra.mxu0 %v3833
    %5341 = vmatprep.subr.bf16.mxu0 %v3850
    %5342 = vmatpush1.bf16.msra.mxu0 %v3849
    %5343 = vmatprep.subr.bf16.mxu0 %v3866
    %5344 = vmatpush1.bf16.msra.mxu0 %v3865
    %5345 = vmatprep.subr.bf16.mxu0 %v3882
    %5346 = vmatpush1.bf16.msra.mxu0 %v3881
    %5347 = vmatprep.subr.bf16.mxu0 %v3898
    %5348 = vmatpush1.bf16.msra.mxu0 %v3897
    %5349 = vmatprep.subr.bf16.mxu0 %v3914
    %5350 = vmatpush1.bf16.msra.mxu0 %v3913
    %5351 = vmatprep.subr.bf16.mxu0 %v3930
    %5352 = vmatpush1.bf16.msra.mxu0 %v3929
    %5353 = vmatprep.subr.bf16.mxu0 %v3946
    %5354 = vmatpush1.bf16.msra.mxu0 %v3945
    %5355 = vmatprep.subr.bf16.mxu0 %v3962
    %5356 = vmatpush1.bf16.msra.mxu0 %v3961
    %5357 = vmatprep.subr.bf16.mxu0 %v3978
    %5358 = vmatpush1.bf16.msra.mxu0 %v3977
    %5359 = vmatprep.mubr.bf16.mxu0 %v144
    %5360 = vmatmul.mubr.bf16.gmra.mrb[0].mxu0 %v143
    %v5361 = vpop.f32.mrb[0].mxu0
    %v5362 = vadd.f32 %v5321, %v5361
    %v5363 = vpop.f32.mrb[0].mxu0
    %v5364 = vadd.f32 %v5323, %v5363
    %v5365 = vpop.f32.mrb[0].mxu0
    %v5366 = vpop.f32.mrb[0].mxu0
    %5367 = vdwg.mxu0
    %5368 = vmatprep.subr.bf16.mxu0 %v3228
    %5369 = vmatpush1.bf16.msra.mxu0 %v3227
    %5370 = vmatprep.subr.bf16.mxu0 %v3244
    %5371 = vmatpush1.bf16.msra.mxu0 %v3243
    %5372 = vmatprep.subr.bf16.mxu0 %v3260
    %5373 = vmatpush1.bf16.msra.mxu0 %v3259
    %5374 = vmatprep.subr.bf16.mxu0 %v3276
    %5375 = vmatpush1.bf16.msra.mxu0 %v3275
    %5376 = vmatprep.subr.bf16.mxu0 %v3292
    %5377 = vmatpush1.bf16.msra.mxu0 %v3291
    %5378 = vmatprep.subr.bf16.mxu0 %v3308
    %5379 = vmatpush1.bf16.msra.mxu0 %v3307
    %5380 = vmatprep.subr.bf16.mxu0 %v3324
    %5381 = vmatpush1.bf16.msra.mxu0 %v3323
    %5382 = vmatprep.subr.bf16.mxu0 %v3340
    %5383 = vmatpush1.bf16.msra.mxu0 %v3339
    %5384 = vmatprep.subr.bf16.mxu0 %v3356
    %5385 = vmatpush1.bf16.msra.mxu0 %v3355
    %5386 = vmatprep.subr.bf16.mxu0 %v3372
    %5387 = vmatpush1.bf16.msra.mxu0 %v3371
    %5388 = vmatprep.subr.bf16.mxu0 %v3388
    %5389 = vmatpush1.bf16.msra.mxu0 %v3387
    %5390 = vmatprep.subr.bf16.mxu0 %v3404
    %5391 = vmatpush1.bf16.msra.mxu0 %v3403
    %5392 = vmatprep.subr.bf16.mxu0 %v3420
    %5393 = vmatpush1.bf16.msra.mxu0 %v3419
    %5394 = vmatprep.subr.bf16.mxu0 %v3436
    %5395 = vmatpush1.bf16.msra.mxu0 %v3435
    %5396 = vmatprep.subr.bf16.mxu0 %v3452
    %5397 = vmatpush1.bf16.msra.mxu0 %v3451
    %5398 = vmatprep.subr.bf16.mxu0 %v3468
    %5399 = vmatpush1.bf16.msra.mxu0 %v3467
    %5400 = vmatprep.mubr.bf16.mxu0 %v140
    %5401 = vmatmul.mubr.bf16.gmra.mrb[0].mxu0 %v139
    %v5402 = vpop.f32.mrb[0].mxu0
    %v5403 = vadd.f32 0.0, %v5402
    %v5404 = vpop.f32.mrb[0].mxu0
    %v5405 = vadd.f32 0.0, %v5404
    %v5406 = vpop.f32.mrb[0].mxu0
    %v5407 = vpop.f32.mrb[0].mxu0
    %5408 = vdwg.mxu0
    %5409 = vmatprep.subr.bf16.mxu0 %v3484
    %5410 = vmatpush1.bf16.msra.mxu0 %v3483
    %5411 = vmatprep.subr.bf16.mxu0 %v3500
    %5412 = vmatpush1.bf16.msra.mxu0 %v3499
    %5413 = vmatprep.subr.bf16.mxu0 %v3516
    %5414 = vmatpush1.bf16.msra.mxu0 %v3515
    %5415 = vmatprep.subr.bf16.mxu0 %v3532
    %5416 = vmatpush1.bf16.msra.mxu0 %v3531
    %5417 = vmatprep.subr.bf16.mxu0 %v3548
    %5418 = vmatpush1.bf16.msra.mxu0 %v3547
    %5419 = vmatprep.subr.bf16.mxu0 %v3564
    %5420 = vmatpush1.bf16.msra.mxu0 %v3563
    %5421 = vmatprep.subr.bf16.mxu0 %v3580
    %5422 = vmatpush1.bf16.msra.mxu0 %v3579
    %5423 = vmatprep.subr.bf16.mxu0 %v3596
    %5424 = vmatpush1.bf16.msra.mxu0 %v3595
    %5425 = vmatprep.subr.bf16.mxu0 %v3612
    %5426 = vmatpush1.bf16.msra.mxu0 %v3611
    %5427 = vmatprep.subr.bf16.mxu0 %v3628
    %5428 = vmatpush1.bf16.msra.mxu0 %v3627
    %5429 = vmatprep.subr.bf16.mxu0 %v3644
    %5430 = vmatpush1.bf16.msra.mxu0 %v3643
    %5431 = vmatprep.subr.bf16.mxu0 %v3660
    %5432 = vmatpush1.bf16.msra.mxu0 %v3659
    %5433 = vmatprep.subr.bf16.mxu0 %v3676
    %5434 = vmatpush1.bf16.msra.mxu0 %v3675
    %5435 = vmatprep.subr.bf16.mxu0 %v3692
    %5436 = vmatpush1.bf16.msra.mxu0 %v3691
    %5437 = vmatprep.subr.bf16.mxu0 %v3708
    %5438 = vmatpush1.bf16.msra.mxu0 %v3707
    %5439 = vmatprep.subr.bf16.mxu0 %v3724
    %5440 = vmatpush1.bf16.msra.mxu0 %v3723
    %5441 = vmatprep.mubr.bf16.mxu0 %v142
    %5442 = vmatmul.mubr.bf16.gmra.mrb[0].mxu0 %v141
    %v5443 = vpop.f32.mrb[0].mxu0
    %v5444 = vadd.f32 %v5403, %v5443
    %v5445 = vpop.f32.mrb[0].mxu0
    %v5446 = vadd.f32 %v5405, %v5445
    %v5447 = vpop.f32.mrb[0].mxu0
    %v5448 = vpop.f32.mrb[0].mxu0
    %5449 = vdwg.mxu0
    %5450 = vmatprep.subr.bf16.mxu0 %v3740
    %5451 = vmatpush1.bf16.msra.mxu0 %v3739
    %5452 = vmatprep.subr.bf16.mxu0 %v3756
    %5453 = vmatpush1.bf16.msra.mxu0 %v3755
    %5454 = vmatprep.subr.bf16.mxu0 %v3772
    %5455 = vmatpush1.bf16.msra.mxu0 %v3771
    %5456 = vmatprep.subr.bf16.mxu0 %v3788
    %5457 = vmatpush1.bf16.msra.mxu0 %v3787
    %5458 = vmatprep.subr.bf16.mxu0 %v3804
    %5459 = vmatpush1.bf16.msra.mxu0 %v3803
    %5460 = vmatprep.subr.bf16.mxu0 %v3820
    %5461 = vmatpush1.bf16.msra.mxu0 %v3819
    %5462 = vmatprep.subr.bf16.mxu0 %v3836
    %5463 = vmatpush1.bf16.msra.mxu0 %v3835
    %5464 = vmatprep.subr.bf16.mxu0 %v3852
    %5465 = vmatpush1.bf16.msra.mxu0 %v3851
    %5466 = vmatprep.subr.bf16.mxu0 %v3868
    %5467 = vmatpush1.bf16.msra.mxu0 %v3867
    %5468 = vmatprep.subr.bf16.mxu0 %v3884
    %5469 = vmatpush1.bf16.msra.mxu0 %v3883
    %5470 = vmatprep.subr.bf16.mxu0 %v3900
    %5471 = vmatpush1.bf16.msra.mxu0 %v3899
    %5472 = vmatprep.subr.bf16.mxu0 %v3916
    %5473 = vmatpush1.bf16.msra.mxu0 %v3915
    %5474 = vmatprep.subr.bf16.mxu0 %v3932
    %5475 = vmatpush1.bf16.msra.mxu0 %v3931
    %5476 = vmatprep.subr.bf16.mxu0 %v3948
    %5477 = vmatpush1.bf16.msra.mxu0 %v3947
    %5478 = vmatprep.subr.bf16.mxu0 %v3964
    %5479 = vmatpush1.bf16.msra.mxu0 %v3963
    %5480 = vmatprep.subr.bf16.mxu0 %v3980
    %5481 = vmatpush1.bf16.msra.mxu0 %v3979
    %5482 = vmatprep.mubr.bf16.mxu0 %v144
    %5483 = vmatmul.mubr.bf16.gmra.mrb[0].mxu0 %v143
    %v5484 = vpop.f32.mrb[0].mxu0
    %v5485 = vadd.f32 %v5444, %v5484
    %v5486 = vpop.f32.mrb[0].mxu0
    %v5487 = vadd.f32 %v5446, %v5486
    %v5488 = vpop.f32.mrb[0].mxu0
    %v5489 = vpop.f32.mrb[0].mxu0
    %5490 = vdwg.mxu0
    %5491 = vmatprep.subr.bf16.mxu0 %v3230
    %5492 = vmatpush1.bf16.msra.mxu0 %v3229
    %5493 = vmatprep.subr.bf16.mxu0 %v3246
    %5494 = vmatpush1.bf16.msra.mxu0 %v3245
    %5495 = vmatprep.subr.bf16.mxu0 %v3262
    %5496 = vmatpush1.bf16.msra.mxu0 %v3261
    %5497 = vmatprep.subr.bf16.mxu0 %v3278
    %5498 = vmatpush1.bf16.msra.mxu0 %v3277
    %5499 = vmatprep.subr.bf16.mxu0 %v3294
    %5500 = vmatpush1.bf16.msra.mxu0 %v3293
    %5501 = vmatprep.subr.bf16.mxu0 %v3310
    %5502 = vmatpush1.bf16.msra.mxu0 %v3309
    %5503 = vmatprep.subr.bf16.mxu0 %v3326
    %5504 = vmatpush1.bf16.msra.mxu0 %v3325
    %5505 = vmatprep.subr.bf16.mxu0 %v3342
    %5506 = vmatpush1.bf16.msra.mxu0 %v3341
    %5507 = vmatprep.subr.bf16.mxu0 %v3358
    %5508 = vmatpush1.bf16.msra.mxu0 %v3357
    %5509 = vmatprep.subr.bf16.mxu0 %v3374
    %5510 = vmatpush1.bf16.msra.mxu0 %v3373
    %5511 = vmatprep.subr.bf16.mxu0 %v3390
    %5512 = vmatpush1.bf16.msra.mxu0 %v3389
    %5513 = vmatprep.subr.bf16.mxu0 %v3406
    %5514 = vmatpush1.bf16.msra.mxu0 %v3405
    %5515 = vmatprep.subr.bf16.mxu0 %v3422
    %5516 = vmatpush1.bf16.msra.mxu0 %v3421
    %5517 = vmatprep.subr.bf16.mxu0 %v3438
    %5518 = vmatpush1.bf16.msra.mxu0 %v3437
    %5519 = vmatprep.subr.bf16.mxu0 %v3454
    %5520 = vmatpush1.bf16.msra.mxu0 %v3453
    %5521 = vmatprep.subr.bf16.mxu0 %v3470
    %5522 = vmatpush1.bf16.msra.mxu0 %v3469
    %5523 = vmatprep.mubr.bf16.mxu0 %v140
    %5524 = vmatmul.mubr.bf16.gmra.mrb[0].mxu0 %v139
    %v5525 = vpop.f32.mrb[0].mxu0
    %v5526 = vadd.f32 0.0, %v5525
    %v5527 = vpop.f32.mrb[0].mxu0
    %v5528 = vadd.f32 0.0, %v5527
    %v5529 = vpop.f32.mrb[0].mxu0
    %v5530 = vpop.f32.mrb[0].mxu0
    %5531 = vdwg.mxu0
    %5532 = vmatprep.subr.bf16.mxu0 %v3486
    %5533 = vmatpush1.bf16.msra.mxu0 %v3485
    %5534 = vmatprep.subr.bf16.mxu0 %v3502
    %5535 = vmatpush1.bf16.msra.mxu0 %v3501
    %5536 = vmatprep.subr.bf16.mxu0 %v3518
    %5537 = vmatpush1.bf16.msra.mxu0 %v3517
    %5538 = vmatprep.subr.bf16.mxu0 %v3534
    %5539 = vmatpush1.bf16.msra.mxu0 %v3533
    %5540 = vmatprep.subr.bf16.mxu0 %v3550
    %5541 = vmatpush1.bf16.msra.mxu0 %v3549
    %5542 = vmatprep.subr.bf16.mxu0 %v3566
    %5543 = vmatpush1.bf16.msra.mxu0 %v3565
    %5544 = vmatprep.subr.bf16.mxu0 %v3582
    %5545 = vmatpush1.bf16.msra.mxu0 %v3581
    %5546 = vmatprep.subr.bf16.mxu0 %v3598
    %5547 = vmatpush1.bf16.msra.mxu0 %v3597
    %5548 = vmatprep.subr.bf16.mxu0 %v3614
    %5549 = vmatpush1.bf16.msra.mxu0 %v3613
    %5550 = vmatprep.subr.bf16.mxu0 %v3630
    %5551 = vmatpush1.bf16.msra.mxu0 %v3629
    %5552 = vmatprep.subr.bf16.mxu0 %v3646
    %5553 = vmatpush1.bf16.msra.mxu0 %v3645
    %5554 = vmatprep.subr.bf16.mxu0 %v3662
    %5555 = vmatpush1.bf16.msra.mxu0 %v3661
    %5556 = vmatprep.subr.bf16.mxu0 %v3678
    %5557 = vmatpush1.bf16.msra.mxu0 %v3677
    %5558 = vmatprep.subr.bf16.mxu0 %v3694
    %5559 = vmatpush1.bf16.msra.mxu0 %v3693
    %5560 = vmatprep.subr.bf16.mxu0 %v3710
    %5561 = vmatpush1.bf16.msra.mxu0 %v3709
    %5562 = vmatprep.subr.bf16.mxu0 %v3726
    %5563 = vmatpush1.bf16.msra.mxu0 %v3725
    %5564 = vmatprep.mubr.bf16.mxu0 %v142
    %5565 = vmatmul.mubr.bf16.gmra.mrb[0].mxu0 %v141
    %v5566 = vpop.f32.mrb[0].mxu0
    %v5567 = vadd.f32 %v5526, %v5566
    %v5568 = vpop.f32.mrb[0].mxu0
    %v5569 = vadd.f32 %v5528, %v5568
    %v5570 = vpop.f32.mrb[0].mxu0
    %v5571 = vpop.f32.mrb[0].mxu0
    %5572 = vdwg.mxu0
    %5573 = vmatprep.subr.bf16.mxu0 %v3742
    %5574 = vmatpush1.bf16.msra.mxu0 %v3741
    %5575 = vmatprep.subr.bf16.mxu0 %v3758
    %5576 = vmatpush1.bf16.msra.mxu0 %v3757
    %5577 = vmatprep.subr.bf16.mxu0 %v3774
    %5578 = vmatpush1.bf16.msra.mxu0 %v3773
    %5579 = vmatprep.subr.bf16.mxu0 %v3790
    %5580 = vmatpush1.bf16.msra.mxu0 %v3789
    %5581 = vmatprep.subr.bf16.mxu0 %v3806
    %5582 = vmatpush1.bf16.msra.mxu0 %v3805
    %5583 = vmatprep.subr.bf16.mxu0 %v3822
    %5584 = vmatpush1.bf16.msra.mxu0 %v3821
    %5585 = vmatprep.subr.bf16.mxu0 %v3838
    %5586 = vmatpush1.bf16.msra.mxu0 %v3837
    %5587 = vmatprep.subr.bf16.mxu0 %v3854
    %5588 = vmatpush1.bf16.msra.mxu0 %v3853
    %5589 = vmatprep.subr.bf16.mxu0 %v3870
    %5590 = vmatpush1.bf16.msra.mxu0 %v3869
    %5591 = vmatprep.subr.bf16.mxu0 %v3886
    %5592 = vmatpush1.bf16.msra.mxu0 %v3885
    %5593 = vmatprep.subr.bf16.mxu0 %v3902
    %5594 = vmatpush1.bf16.msra.mxu0 %v3901
    %5595 = vmatprep.subr.bf16.mxu0 %v3918
    %5596 = vmatpush1.bf16.msra.mxu0 %v3917
    %5597 = vmatprep.subr.bf16.mxu0 %v3934
    %5598 = vmatpush1.bf16.msra.mxu0 %v3933
    %5599 = vmatprep.subr.bf16.mxu0 %v3950
    %5600 = vmatpush1.bf16.msra.mxu0 %v3949
    %5601 = vmatprep.subr.bf16.mxu0 %v3966
    %5602 = vmatpush1.bf16.msra.mxu0 %v3965
    %5603 = vmatprep.subr.bf16.mxu0 %v3982
    %5604 = vmatpush1.bf16.msra.mxu0 %v3981
    %5605 = vmatprep.mubr.bf16.mxu0 %v144
    %5606 = vmatmul.mubr.bf16.gmra.mrb[0].mxu0 %v143
    %v5607 = vpop.f32.mrb[0].mxu0
    %v5608 = vadd.f32 %v5567, %v5607
    %v5609 = vpop.f32.mrb[0].mxu0
    %v5610 = vadd.f32 %v5569, %v5609
    %v5611 = vpop.f32.mrb[0].mxu0
    %v5612 = vpop.f32.mrb[0].mxu0
    %5613 = vdwg.mxu0
    %5614 = vmatprep.subr.bf16.mxu0 %v3232
    %5615 = vmatpush1.bf16.msra.mxu0 %v3231
    %5616 = vmatprep.subr.bf16.mxu0 %v3248
    %5617 = vmatpush1.bf16.msra.mxu0 %v3247
    %5618 = vmatprep.subr.bf16.mxu0 %v3264
    %5619 = vmatpush1.bf16.msra.mxu0 %v3263
    %5620 = vmatprep.subr.bf16.mxu0 %v3280
    %5621 = vmatpush1.bf16.msra.mxu0 %v3279
    %5622 = vmatprep.subr.bf16.mxu0 %v3296
    %5623 = vmatpush1.bf16.msra.mxu0 %v3295
    %5624 = vmatprep.subr.bf16.mxu0 %v3312
    %5625 = vmatpush1.bf16.msra.mxu0 %v3311
    %5626 = vmatprep.subr.bf16.mxu0 %v3328
    %5627 = vmatpush1.bf16.msra.mxu0 %v3327
    %5628 = vmatprep.subr.bf16.mxu0 %v3344
    %5629 = vmatpush1.bf16.msra.mxu0 %v3343
    %5630 = vmatprep.subr.bf16.mxu0 %v3360
    %5631 = vmatpush1.bf16.msra.mxu0 %v3359
    %5632 = vmatprep.subr.bf16.mxu0 %v3376
    %5633 = vmatpush1.bf16.msra.mxu0 %v3375
    %5634 = vmatprep.subr.bf16.mxu0 %v3392
    %5635 = vmatpush1.bf16.msra.mxu0 %v3391
    %5636 = vmatprep.subr.bf16.mxu0 %v3408
    %5637 = vmatpush1.bf16.msra.mxu0 %v3407
    %5638 = vmatprep.subr.bf16.mxu0 %v3424
    %5639 = vmatpush1.bf16.msra.mxu0 %v3423
    %5640 = vmatprep.subr.bf16.mxu0 %v3440
    %5641 = vmatpush1.bf16.msra.mxu0 %v3439
    %5642 = vmatprep.subr.bf16.mxu0 %v3456
    %5643 = vmatpush1.bf16.msra.mxu0 %v3455
    %5644 = vmatprep.subr.bf16.mxu0 %v3472
    %5645 = vmatpush1.bf16.msra.mxu0 %v3471
    %5646 = vmatprep.mubr.bf16.mxu0 %v140
    %5647 = vmatmul.mubr.bf16.gmra.mrb[0].mxu0 %v139
    %v5648 = vpop.f32.mrb[0].mxu0
    %v5649 = vadd.f32 0.0, %v5648
    %v5650 = vpop.f32.mrb[0].mxu0
    %v5651 = vadd.f32 0.0, %v5650
    %v5652 = vpop.f32.mrb[0].mxu0
    %v5653 = vpop.f32.mrb[0].mxu0
    %5654 = vdwg.mxu0
    %5655 = vmatprep.subr.bf16.mxu0 %v3488
    %5656 = vmatpush1.bf16.msra.mxu0 %v3487
    %5657 = vmatprep.subr.bf16.mxu0 %v3504
    %5658 = vmatpush1.bf16.msra.mxu0 %v3503
    %5659 = vmatprep.subr.bf16.mxu0 %v3520
    %5660 = vmatpush1.bf16.msra.mxu0 %v3519
    %5661 = vmatprep.subr.bf16.mxu0 %v3536
    %5662 = vmatpush1.bf16.msra.mxu0 %v3535
    %5663 = vmatprep.subr.bf16.mxu0 %v3552
    %5664 = vmatpush1.bf16.msra.mxu0 %v3551
    %5665 = vmatprep.subr.bf16.mxu0 %v3568
    %5666 = vmatpush1.bf16.msra.mxu0 %v3567
    %5667 = vmatprep.subr.bf16.mxu0 %v3584
    %5668 = vmatpush1.bf16.msra.mxu0 %v3583
    %5669 = vmatprep.subr.bf16.mxu0 %v3600
    %5670 = vmatpush1.bf16.msra.mxu0 %v3599
    %5671 = vmatprep.subr.bf16.mxu0 %v3616
    %5672 = vmatpush1.bf16.msra.mxu0 %v3615
    %5673 = vmatprep.subr.bf16.mxu0 %v3632
    %5674 = vmatpush1.bf16.msra.mxu0 %v3631
    %5675 = vmatprep.subr.bf16.mxu0 %v3648
    %5676 = vmatpush1.bf16.msra.mxu0 %v3647
    %5677 = vmatprep.subr.bf16.mxu0 %v3664
    %5678 = vmatpush1.bf16.msra.mxu0 %v3663
    %5679 = vmatprep.subr.bf16.mxu0 %v3680
    %5680 = vmatpush1.bf16.msra.mxu0 %v3679
    %5681 = vmatprep.subr.bf16.mxu0 %v3696
    %5682 = vmatpush1.bf16.msra.mxu0 %v3695
    %5683 = vmatprep.subr.bf16.mxu0 %v3712
    %5684 = vmatpush1.bf16.msra.mxu0 %v3711
    %5685 = vmatprep.subr.bf16.mxu0 %v3728
    %5686 = vmatpush1.bf16.msra.mxu0 %v3727
    %5687 = vmatprep.mubr.bf16.mxu0 %v142
    %5688 = vmatmul.mubr.bf16.gmra.mrb[0].mxu0 %v141
    %v5689 = vpop.f32.mrb[0].mxu0
    %v5690 = vadd.f32 %v5649, %v5689
    %v5691 = vpop.f32.mrb[0].mxu0
    %v5692 = vadd.f32 %v5651, %v5691
    %v5693 = vpop.f32.mrb[0].mxu0
    %v5694 = vpop.f32.mrb[0].mxu0
    %5695 = vdwg.mxu0
    %5696 = vmatprep.subr.bf16.mxu0 %v3744
    %5697 = vmatpush1.bf16.msra.mxu0 %v3743
    %5698 = vmatprep.subr.bf16.mxu0 %v3760
    %5699 = vmatpush1.bf16.msra.mxu0 %v3759
    %5700 = vmatprep.subr.bf16.mxu0 %v3776
    %5701 = vmatpush1.bf16.msra.mxu0 %v3775
    %5702 = vmatprep.subr.bf16.mxu0 %v3792
    %5703 = vmatpush1.bf16.msra.mxu0 %v3791
    %5704 = vmatprep.subr.bf16.mxu0 %v3808
    %5705 = vmatpush1.bf16.msra.mxu0 %v3807
    %5706 = vmatprep.subr.bf16.mxu0 %v3824
    %5707 = vmatpush1.bf16.msra.mxu0 %v3823
    %5708 = vmatprep.subr.bf16.mxu0 %v3840
    %5709 = vmatpush1.bf16.msra.mxu0 %v3839
    %5710 = vmatprep.subr.bf16.mxu0 %v3856
    %5711 = vmatpush1.bf16.msra.mxu0 %v3855
    %5712 = vmatprep.subr.bf16.mxu0 %v3872
    %5713 = vmatpush1.bf16.msra.mxu0 %v3871
    %5714 = vmatprep.subr.bf16.mxu0 %v3888
    %5715 = vmatpush1.bf16.msra.mxu0 %v3887
    %5716 = vmatprep.subr.bf16.mxu0 %v3904
    %5717 = vmatpush1.bf16.msra.mxu0 %v3903
    %5718 = vmatprep.subr.bf16.mxu0 %v3920
    %5719 = vmatpush1.bf16.msra.mxu0 %v3919
    %5720 = vmatprep.subr.bf16.mxu0 %v3936
    %5721 = vmatpush1.bf16.msra.mxu0 %v3935
    %5722 = vmatprep.subr.bf16.mxu0 %v3952
    %5723 = vmatpush1.bf16.msra.mxu0 %v3951
    %5724 = vmatprep.subr.bf16.mxu0 %v3968
    %5725 = vmatpush1.bf16.msra.mxu0 %v3967
    %5726 = vmatprep.subr.bf16.mxu0 %v3984
    %5727 = vmatpush1.bf16.msra.mxu0 %v3983
    %5728 = vmatprep.mubr.bf16.mxu0 %v144
    %5729 = vmatmul.mubr.bf16.gmra.mrb[0].mxu0 %v143
    %v5730 = vpop.f32.mrb[0].mxu0
    %v5731 = vadd.f32 %v5690, %v5730
    %v5732 = vpop.f32.mrb[0].mxu0
    %v5733 = vadd.f32 %v5692, %v5732
    %v5734 = vpop.f32.mrb[0].mxu0
    %v5735 = vpop.f32.mrb[0].mxu0
    %5736 = vdwg.mxu0
    %v5737 = vmax.f32 %v4870, 0.0
    %v5738 = vmax.f32 %v4872, 0.0
    %v5739 = vmax.f32 %v4993, 0.0
    %v5740 = vmax.f32 %v4995, 0.0
    %v5741 = vmax.f32 %v5116, 0.0
    %v5742 = vmax.f32 %v5118, 0.0
    %v5743 = vmax.f32 %v5239, 0.0
    %v5744 = vmax.f32 %v5241, 0.0
    %v5745 = vmax.f32 %v5362, 0.0
    %v5746 = vmax.f32 %v5364, 0.0
    %v5747 = vmax.f32 %v5485, 0.0
    %v5748 = vmax.f32 %v5487, 0.0
    %v5749 = vmax.f32 %v5608, 0.0
    %v5750 = vmax.f32 %v5610, 0.0
    %v5751 = vmax.f32 %v5731, 0.0
    %v5752 = vmax.f32 %v5733, 0.0
    %v5753 = vpack.c.bf16 %v5737, %v5737
    %v5754 = vpack.c.bf16 %v5738, %v5738
    %v5755 = vpack.c.bf16 %v5739, %v5739
    %v5756 = vpack.c.bf16 %v5740, %v5740
    %v5757 = vpack.c.bf16 %v5741, %v5741
    %v5758 = vpack.c.bf16 %v5742, %v5742
    %v5759 = vpack.c.bf16 %v5743, %v5743
    %v5760 = vpack.c.bf16 %v5744, %v5744
    %v5761 = vpack.c.bf16 %v5745, %v5745
    %v5762 = vpack.c.bf16 %v5746, %v5746
    %v5763 = vpack.c.bf16 %v5747, %v5747
    %v5764 = vpack.c.bf16 %v5748, %v5748
    %v5765 = vpack.c.bf16 %v5749, %v5749
    %v5766 = vpack.c.bf16 %v5750, %v5750
    %v5767 = vpack.c.bf16 %v5751, %v5751
    %v5768 = vpack.c.bf16 %v5752, %v5752
    %v5769 = vld [vmem:[#allocation5] sm:$0xf]
    %v5770 = vld [vmem:[#allocation5 + $0x4] sm:$0xf]
    %v5771 = vld [vmem:[#allocation5 + $0x8] sm:$0xf]
    %v5772 = vld [vmem:[#allocation5 + $0xc] sm:$0xf]
    %v5773 = vld [vmem:[#allocation5 + $0x10] sm:$0xf]
    %v5774 = vld [vmem:[#allocation5 + $0x14] sm:$0xf]
    %v5775 = vld [vmem:[#allocation5 + $0x18] sm:$0xf]
    %v5776 = vld [vmem:[#allocation5 + $0x1c] sm:$0xf]
    %v5777 = vld [vmem:[#allocation5 + $0x20] sm:$0xf]
    %v5778 = vld [vmem:[#allocation5 + $0x24] sm:$0xf]
    %v5779 = vld [vmem:[#allocation5 + $0x28] sm:$0xf]
    %v5780 = vld [vmem:[#allocation5 + $0x2c] sm:$0xf]
    %v5781 = vld [vmem:[#allocation5 + $0x30] sm:$0xf]
    %v5782 = vld [vmem:[#allocation5 + $0x34] sm:$0xf]
    %v5783 = vld [vmem:[#allocation5 + $0x38] sm:$0xf]
    %v5784 = vld [vmem:[#allocation5 + $0x3c] sm:$0xf]
    %v5785 = vld [vmem:[#allocation5 + $0x40] sm:$0xf]
    %v5786 = vld [vmem:[#allocation5 + $0x44] sm:$0xf]
    %v5787 = vld [vmem:[#allocation5 + $0x48] sm:$0xf]
    %v5788 = vld [vmem:[#allocation5 + $0x4c] sm:$0xf]
    %v5789 = vld [vmem:[#allocation5 + $0x50] sm:$0xf]
    %v5790 = vld [vmem:[#allocation5 + $0x54] sm:$0xf]
    %v5791 = vld [vmem:[#allocation5 + $0x58] sm:$0xf]
    %v5792 = vld [vmem:[#allocation5 + $0x5c] sm:$0xf]
    %v5793 = vld [vmem:[#allocation5 + $0x60] sm:$0xf]
    %v5794 = vld [vmem:[#allocation5 + $0x64] sm:$0xf]
    %v5795 = vld [vmem:[#allocation5 + $0x68] sm:$0xf]
    %v5796 = vld [vmem:[#allocation5 + $0x6c] sm:$0xf]
    %v5797 = vld [vmem:[#allocation5 + $0x70] sm:$0xf]
    %v5798 = vld [vmem:[#allocation5 + $0x74] sm:$0xf]
    %v5799 = vld [vmem:[#allocation5 + $0x78] sm:$0xf]
    %v5800 = vld [vmem:[#allocation5 + $0x7c] sm:$0xf]
    %v5801 = vld [vmem:[#allocation5 + $0x80] sm:$0xf]
    %v5802 = vld [vmem:[#allocation5 + $0x84] sm:$0xf]
    %v5803 = vld [vmem:[#allocation5 + $0x88] sm:$0xf]
    %v5804 = vld [vmem:[#allocation5 + $0x8c] sm:$0xf]
    %v5805 = vld [vmem:[#allocation5 + $0x90] sm:$0xf]
    %v5806 = vld [vmem:[#allocation5 + $0x94] sm:$0xf]
    %v5807 = vld [vmem:[#allocation5 + $0x98] sm:$0xf]
    %v5808 = vld [vmem:[#allocation5 + $0x9c] sm:$0xf]
    %v5809 = vld [vmem:[#allocation5 + $0xa0] sm:$0xf]
    %v5810 = vld [vmem:[#allocation5 + $0xa4] sm:$0xf]
    %v5811 = vld [vmem:[#allocation5 + $0xa8] sm:$0xf]
    %v5812 = vld [vmem:[#allocation5 + $0xac] sm:$0xf]
    %v5813 = vld [vmem:[#allocation5 + $0xb0] sm:$0xf]
    %v5814 = vld [vmem:[#allocation5 + $0xb4] sm:$0xf]
    %v5815 = vld [vmem:[#allocation5 + $0xb8] sm:$0xf]
    %v5816 = vld [vmem:[#allocation5 + $0xbc] sm:$0xf]
    %v5817 = vld [vmem:[#allocation5 + $0xc0] sm:$0xf]
    %v5818 = vld [vmem:[#allocation5 + $0xc4] sm:$0xf]
    %v5819 = vld [vmem:[#allocation5 + $0xc8] sm:$0xf]
    %v5820 = vld [vmem:[#allocation5 + $0xcc] sm:$0xf]
    %v5821 = vld [vmem:[#allocation5 + $0xd0] sm:$0xf]
    %v5822 = vld [vmem:[#allocation5 + $0xd4] sm:$0xf]
    %v5823 = vld [vmem:[#allocation5 + $0xd8] sm:$0xf]
    %v5824 = vld [vmem:[#allocation5 + $0xdc] sm:$0xf]
    %v5825 = vld [vmem:[#allocation5 + $0xe0] sm:$0xf]
    %v5826 = vld [vmem:[#allocation5 + $0xe4] sm:$0xf]
    %v5827 = vld [vmem:[#allocation5 + $0xe8] sm:$0xf]
    %v5828 = vld [vmem:[#allocation5 + $0xec] sm:$0xf]
    %v5829 = vld [vmem:[#allocation5 + $0xf0] sm:$0xf]
    %v5830 = vld [vmem:[#allocation5 + $0xf4] sm:$0xf]
    %v5831 = vld [vmem:[#allocation5 + $0xf8] sm:$0xf]
    %v5832 = vld [vmem:[#allocation5 + $0xfc] sm:$0xf]
    %v5833 = vld [vmem:[#allocation5 + $0x100] sm:$0xf]
    %v5834 = vld [vmem:[#allocation5 + $0x104] sm:$0xf]
    %v5835 = vld [vmem:[#allocation5 + $0x108] sm:$0xf]
    %v5836 = vld [vmem:[#allocation5 + $0x10c] sm:$0xf]
    %v5837 = vld [vmem:[#allocation5 + $0x110] sm:$0xf]
    %v5838 = vld [vmem:[#allocation5 + $0x114] sm:$0xf]
    %v5839 = vld [vmem:[#allocation5 + $0x118] sm:$0xf]
    %v5840 = vld [vmem:[#allocation5 + $0x11c] sm:$0xf]
    %v5841 = vld [vmem:[#allocation5 + $0x120] sm:$0xf]
    %v5842 = vld [vmem:[#allocation5 + $0x124] sm:$0xf]
    %v5843 = vld [vmem:[#allocation5 + $0x128] sm:$0xf]
    %v5844 = vld [vmem:[#allocation5 + $0x12c] sm:$0xf]
    %v5845 = vld [vmem:[#allocation5 + $0x130] sm:$0xf]
    %v5846 = vld [vmem:[#allocation5 + $0x134] sm:$0xf]
    %v5847 = vld [vmem:[#allocation5 + $0x138] sm:$0xf]
    %v5848 = vld [vmem:[#allocation5 + $0x13c] sm:$0xf]
    %v5849 = vld [vmem:[#allocation5 + $0x140] sm:$0xf]
    %v5850 = vld [vmem:[#allocation5 + $0x144] sm:$0xf]
    %v5851 = vld [vmem:[#allocation5 + $0x148] sm:$0xf]
    %v5852 = vld [vmem:[#allocation5 + $0x14c] sm:$0xf]
    %v5853 = vld [vmem:[#allocation5 + $0x150] sm:$0xf]
    %v5854 = vld [vmem:[#allocation5 + $0x154] sm:$0xf]
    %v5855 = vld [vmem:[#allocation5 + $0x158] sm:$0xf]
    %v5856 = vld [vmem:[#allocation5 + $0x15c] sm:$0xf]
    %v5857 = vld [vmem:[#allocation5 + $0x160] sm:$0xf]
    %v5858 = vld [vmem:[#allocation5 + $0x164] sm:$0xf]
    %v5859 = vld [vmem:[#allocation5 + $0x168] sm:$0xf]
    %v5860 = vld [vmem:[#allocation5 + $0x16c] sm:$0xf]
    %v5861 = vld [vmem:[#allocation5 + $0x170] sm:$0xf]
    %v5862 = vld [vmem:[#allocation5 + $0x174] sm:$0xf]
    %v5863 = vld [vmem:[#allocation5 + $0x178] sm:$0xf]
    %v5864 = vld [vmem:[#allocation5 + $0x17c] sm:$0xf]
    %v5865 = vld [vmem:[#allocation5 + $0x180] sm:$0xf]
    %v5866 = vld [vmem:[#allocation5 + $0x184] sm:$0xf]
    %v5867 = vld [vmem:[#allocation5 + $0x188] sm:$0xf]
    %v5868 = vld [vmem:[#allocation5 + $0x18c] sm:$0xf]
    %v5869 = vld [vmem:[#allocation5 + $0x190] sm:$0xf]
    %v5870 = vld [vmem:[#allocation5 + $0x194] sm:$0xf]
    %v5871 = vld [vmem:[#allocation5 + $0x198] sm:$0xf]
    %v5872 = vld [vmem:[#allocation5 + $0x19c] sm:$0xf]
    %v5873 = vld [vmem:[#allocation5 + $0x1a0] sm:$0xf]
    %v5874 = vld [vmem:[#allocation5 + $0x1a4] sm:$0xf]
    %v5875 = vld [vmem:[#allocation5 + $0x1a8] sm:$0xf]
    %v5876 = vld [vmem:[#allocation5 + $0x1ac] sm:$0xf]
    %v5877 = vld [vmem:[#allocation5 + $0x1b0] sm:$0xf]
    %v5878 = vld [vmem:[#allocation5 + $0x1b4] sm:$0xf]
    %v5879 = vld [vmem:[#allocation5 + $0x1b8] sm:$0xf]
    %v5880 = vld [vmem:[#allocation5 + $0x1bc] sm:$0xf]
    %v5881 = vld [vmem:[#allocation5 + $0x1c0] sm:$0xf]
    %v5882 = vld [vmem:[#allocation5 + $0x1c4] sm:$0xf]
    %v5883 = vld [vmem:[#allocation5 + $0x1c8] sm:$0xf]
    %v5884 = vld [vmem:[#allocation5 + $0x1cc] sm:$0xf]
    %v5885 = vld [vmem:[#allocation5 + $0x1d0] sm:$0xf]
    %v5886 = vld [vmem:[#allocation5 + $0x1d4] sm:$0xf]
    %v5887 = vld [vmem:[#allocation5 + $0x1d8] sm:$0xf]
    %v5888 = vld [vmem:[#allocation5 + $0x1dc] sm:$0xf]
    %v5889 = vld [vmem:[#allocation5 + $0x1e0] sm:$0xf]
    %v5890 = vld [vmem:[#allocation5 + $0x1e4] sm:$0xf]
    %v5891 = vld [vmem:[#allocation5 + $0x1e8] sm:$0xf]
    %v5892 = vld [vmem:[#allocation5 + $0x1ec] sm:$0xf]
    %v5893 = vld [vmem:[#allocation5 + $0x1f0] sm:$0xf]
    %v5894 = vld [vmem:[#allocation5 + $0x1f4] sm:$0xf]
    %v5895 = vld [vmem:[#allocation5 + $0x1f8] sm:$0xf]
    %v5896 = vld [vmem:[#allocation5 + $0x1fc] sm:$0xf]
    %v5897 = vld [vmem:[#allocation5 + $0x200] sm:$0xf]
    %v5898 = vld [vmem:[#allocation5 + $0x204] sm:$0xf]
    %v5899 = vld [vmem:[#allocation5 + $0x208] sm:$0xf]
    %v5900 = vld [vmem:[#allocation5 + $0x20c] sm:$0xf]
    %v5901 = vld [vmem:[#allocation5 + $0x210] sm:$0xf]
    %v5902 = vld [vmem:[#allocation5 + $0x214] sm:$0xf]
    %v5903 = vld [vmem:[#allocation5 + $0x218] sm:$0xf]
    %v5904 = vld [vmem:[#allocation5 + $0x21c] sm:$0xf]
    %v5905 = vld [vmem:[#allocation5 + $0x220] sm:$0xf]
    %v5906 = vld [vmem:[#allocation5 + $0x224] sm:$0xf]
    %v5907 = vld [vmem:[#allocation5 + $0x228] sm:$0xf]
    %v5908 = vld [vmem:[#allocation5 + $0x22c] sm:$0xf]
    %v5909 = vld [vmem:[#allocation5 + $0x230] sm:$0xf]
    %v5910 = vld [vmem:[#allocation5 + $0x234] sm:$0xf]
    %v5911 = vld [vmem:[#allocation5 + $0x238] sm:$0xf]
    %v5912 = vld [vmem:[#allocation5 + $0x23c] sm:$0xf]
    %v5913 = vld [vmem:[#allocation5 + $0x240] sm:$0xf]
    %v5914 = vld [vmem:[#allocation5 + $0x244] sm:$0xf]
    %v5915 = vld [vmem:[#allocation5 + $0x248] sm:$0xf]
    %v5916 = vld [vmem:[#allocation5 + $0x24c] sm:$0xf]
    %v5917 = vld [vmem:[#allocation5 + $0x250] sm:$0xf]
    %v5918 = vld [vmem:[#allocation5 + $0x254] sm:$0xf]
    %v5919 = vld [vmem:[#allocation5 + $0x258] sm:$0xf]
    %v5920 = vld [vmem:[#allocation5 + $0x25c] sm:$0xf]
    %v5921 = vld [vmem:[#allocation5 + $0x260] sm:$0xf]
    %v5922 = vld [vmem:[#allocation5 + $0x264] sm:$0xf]
    %v5923 = vld [vmem:[#allocation5 + $0x268] sm:$0xf]
    %v5924 = vld [vmem:[#allocation5 + $0x26c] sm:$0xf]
    %v5925 = vld [vmem:[#allocation5 + $0x270] sm:$0xf]
    %v5926 = vld [vmem:[#allocation5 + $0x274] sm:$0xf]
    %v5927 = vld [vmem:[#allocation5 + $0x278] sm:$0xf]
    %v5928 = vld [vmem:[#allocation5 + $0x27c] sm:$0xf]
    %v5929 = vld [vmem:[#allocation5 + $0x280] sm:$0xf]
    %v5930 = vld [vmem:[#allocation5 + $0x284] sm:$0xf]
    %v5931 = vld [vmem:[#allocation5 + $0x288] sm:$0xf]
    %v5932 = vld [vmem:[#allocation5 + $0x28c] sm:$0xf]
    %v5933 = vld [vmem:[#allocation5 + $0x290] sm:$0xf]
    %v5934 = vld [vmem:[#allocation5 + $0x294] sm:$0xf]
    %v5935 = vld [vmem:[#allocation5 + $0x298] sm:$0xf]
    %v5936 = vld [vmem:[#allocation5 + $0x29c] sm:$0xf]
    %v5937 = vld [vmem:[#allocation5 + $0x2a0] sm:$0xf]
    %v5938 = vld [vmem:[#allocation5 + $0x2a4] sm:$0xf]
    %v5939 = vld [vmem:[#allocation5 + $0x2a8] sm:$0xf]
    %v5940 = vld [vmem:[#allocation5 + $0x2ac] sm:$0xf]
    %v5941 = vld [vmem:[#allocation5 + $0x2b0] sm:$0xf]
    %v5942 = vld [vmem:[#allocation5 + $0x2b4] sm:$0xf]
    %v5943 = vld [vmem:[#allocation5 + $0x2b8] sm:$0xf]
    %v5944 = vld [vmem:[#allocation5 + $0x2bc] sm:$0xf]
    %v5945 = vld [vmem:[#allocation5 + $0x2c0] sm:$0xf]
    %v5946 = vld [vmem:[#allocation5 + $0x2c4] sm:$0xf]
    %v5947 = vld [vmem:[#allocation5 + $0x2c8] sm:$0xf]
    %v5948 = vld [vmem:[#allocation5 + $0x2cc] sm:$0xf]
    %v5949 = vld [vmem:[#allocation5 + $0x2d0] sm:$0xf]
    %v5950 = vld [vmem:[#allocation5 + $0x2d4] sm:$0xf]
    %v5951 = vld [vmem:[#allocation5 + $0x2d8] sm:$0xf]
    %v5952 = vld [vmem:[#allocation5 + $0x2dc] sm:$0xf]
    %v5953 = vld [vmem:[#allocation5 + $0x2e0] sm:$0xf]
    %v5954 = vld [vmem:[#allocation5 + $0x2e4] sm:$0xf]
    %v5955 = vld [vmem:[#allocation5 + $0x2e8] sm:$0xf]
    %v5956 = vld [vmem:[#allocation5 + $0x2ec] sm:$0xf]
    %v5957 = vld [vmem:[#allocation5 + $0x2f0] sm:$0xf]
    %v5958 = vld [vmem:[#allocation5 + $0x2f4] sm:$0xf]
    %v5959 = vld [vmem:[#allocation5 + $0x2f8] sm:$0xf]
    %v5960 = vld [vmem:[#allocation5 + $0x2fc] sm:$0xf]
    %v5961 = vld [vmem:[#allocation5 + $0x300] sm:$0xf]
    %v5962 = vld [vmem:[#allocation5 + $0x304] sm:$0xf]
    %v5963 = vld [vmem:[#allocation5 + $0x308] sm:$0xf]
    %v5964 = vld [vmem:[#allocation5 + $0x30c] sm:$0xf]
    %v5965 = vld [vmem:[#allocation5 + $0x310] sm:$0xf]
    %v5966 = vld [vmem:[#allocation5 + $0x314] sm:$0xf]
    %v5967 = vld [vmem:[#allocation5 + $0x318] sm:$0xf]
    %v5968 = vld [vmem:[#allocation5 + $0x31c] sm:$0xf]
    %v5969 = vld [vmem:[#allocation5 + $0x320] sm:$0xf]
    %v5970 = vld [vmem:[#allocation5 + $0x324] sm:$0xf]
    %v5971 = vld [vmem:[#allocation5 + $0x328] sm:$0xf]
    %v5972 = vld [vmem:[#allocation5 + $0x32c] sm:$0xf]
    %v5973 = vld [vmem:[#allocation5 + $0x330] sm:$0xf]
    %v5974 = vld [vmem:[#allocation5 + $0x334] sm:$0xf]
    %v5975 = vld [vmem:[#allocation5 + $0x338] sm:$0xf]
    %v5976 = vld [vmem:[#allocation5 + $0x33c] sm:$0xf]
    %v5977 = vld [vmem:[#allocation5 + $0x340] sm:$0xf]
    %v5978 = vld [vmem:[#allocation5 + $0x344] sm:$0xf]
    %v5979 = vld [vmem:[#allocation5 + $0x348] sm:$0xf]
    %v5980 = vld [vmem:[#allocation5 + $0x34c] sm:$0xf]
    %v5981 = vld [vmem:[#allocation5 + $0x350] sm:$0xf]
    %v5982 = vld [vmem:[#allocation5 + $0x354] sm:$0xf]
    %v5983 = vld [vmem:[#allocation5 + $0x358] sm:$0xf]
    %v5984 = vld [vmem:[#allocation5 + $0x35c] sm:$0xf]
    %v5985 = vld [vmem:[#allocation5 + $0x360] sm:$0xf]
    %v5986 = vld [vmem:[#allocation5 + $0x364] sm:$0xf]
    %v5987 = vld [vmem:[#allocation5 + $0x368] sm:$0xf]
    %v5988 = vld [vmem:[#allocation5 + $0x36c] sm:$0xf]
    %v5989 = vld [vmem:[#allocation5 + $0x370] sm:$0xf]
    %v5990 = vld [vmem:[#allocation5 + $0x374] sm:$0xf]
    %v5991 = vld [vmem:[#allocation5 + $0x378] sm:$0xf]
    %v5992 = vld [vmem:[#allocation5 + $0x37c] sm:$0xf]
    %v5993 = vld [vmem:[#allocation5 + $0x380] sm:$0xf]
    %v5994 = vld [vmem:[#allocation5 + $0x384] sm:$0xf]
    %v5995 = vld [vmem:[#allocation5 + $0x388] sm:$0xf]
    %v5996 = vld [vmem:[#allocation5 + $0x38c] sm:$0xf]
    %v5997 = vld [vmem:[#allocation5 + $0x390] sm:$0xf]
    %v5998 = vld [vmem:[#allocation5 + $0x394] sm:$0xf]
    %v5999 = vld [vmem:[#allocation5 + $0x398] sm:$0xf]
    %v6000 = vld [vmem:[#allocation5 + $0x39c] sm:$0xf]
    %v6001 = vld [vmem:[#allocation5 + $0x3a0] sm:$0xf]
    %v6002 = vld [vmem:[#allocation5 + $0x3a4] sm:$0xf]
    %v6003 = vld [vmem:[#allocation5 + $0x3a8] sm:$0xf]
    %v6004 = vld [vmem:[#allocation5 + $0x3ac] sm:$0xf]
    %v6005 = vld [vmem:[#allocation5 + $0x3b0] sm:$0xf]
    %v6006 = vld [vmem:[#allocation5 + $0x3b4] sm:$0xf]
    %v6007 = vld [vmem:[#allocation5 + $0x3b8] sm:$0xf]
    %v6008 = vld [vmem:[#allocation5 + $0x3bc] sm:$0xf]
    %v6009 = vld [vmem:[#allocation5 + $0x3c0] sm:$0xf]
    %v6010 = vld [vmem:[#allocation5 + $0x3c4] sm:$0xf]
    %v6011 = vld [vmem:[#allocation5 + $0x3c8] sm:$0xf]
    %v6012 = vld [vmem:[#allocation5 + $0x3cc] sm:$0xf]
    %v6013 = vld [vmem:[#allocation5 + $0x3d0] sm:$0xf]
    %v6014 = vld [vmem:[#allocation5 + $0x3d4] sm:$0xf]
    %v6015 = vld [vmem:[#allocation5 + $0x3d8] sm:$0xf]
    %v6016 = vld [vmem:[#allocation5 + $0x3dc] sm:$0xf]
    %v6017 = vld [vmem:[#allocation5 + $0x3e0] sm:$0xf]
    %v6018 = vld [vmem:[#allocation5 + $0x3e4] sm:$0xf]
    %v6019 = vld [vmem:[#allocation5 + $0x3e8] sm:$0xf]
    %v6020 = vld [vmem:[#allocation5 + $0x3ec] sm:$0xf]
    %v6021 = vld [vmem:[#allocation5 + $0x3f0] sm:$0xf]
    %v6022 = vld [vmem:[#allocation5 + $0x3f4] sm:$0xf]
    %v6023 = vld [vmem:[#allocation5 + $0x3f8] sm:$0xf]
    %v6024 = vld [vmem:[#allocation5 + $0x3fc] sm:$0xf]
    %v6281 = vunpack.c.l.b16 %v5769
    %v6282 = vunpack.c.l.b16 %v5770
    %v6283 = vunpack.c.l.b16 %v5771
    %v6284 = vunpack.c.l.b16 %v5772
    %v6285 = vunpack.c.l.b16 %v5773
    %v6286 = vunpack.c.l.b16 %v5774
    %v6287 = vunpack.c.l.b16 %v5775
    %v6288 = vunpack.c.l.b16 %v5776
    %v6289 = vunpack.c.l.b16 %v5777
    %v6290 = vunpack.c.l.b16 %v5778
    %v6291 = vunpack.c.l.b16 %v5779
    %v6292 = vunpack.c.l.b16 %v5780
    %v6293 = vunpack.c.l.b16 %v5781
    %v6294 = vunpack.c.l.b16 %v5782
    %v6295 = vunpack.c.l.b16 %v5783
    %v6296 = vunpack.c.l.b16 %v5784
    %v6297 = vunpack.c.l.b16 %v5785
    %v6298 = vunpack.c.l.b16 %v5786
    %v6299 = vunpack.c.l.b16 %v5787
    %v6300 = vunpack.c.l.b16 %v5788
    %v6301 = vunpack.c.l.b16 %v5789
    %v6302 = vunpack.c.l.b16 %v5790
    %v6303 = vunpack.c.l.b16 %v5791
    %v6304 = vunpack.c.l.b16 %v5792
    %v6305 = vunpack.c.l.b16 %v5793
    %v6306 = vunpack.c.l.b16 %v5794
    %v6307 = vunpack.c.l.b16 %v5795
    %v6308 = vunpack.c.l.b16 %v5796
    %v6309 = vunpack.c.l.b16 %v5797
    %v6310 = vunpack.c.l.b16 %v5798
    %v6311 = vunpack.c.l.b16 %v5799
    %v6312 = vunpack.c.l.b16 %v5800
    %v6313 = vunpack.c.l.b16 %v5801
    %v6314 = vunpack.c.l.b16 %v5802
    %v6315 = vunpack.c.l.b16 %v5803
    %v6316 = vunpack.c.l.b16 %v5804
    %v6317 = vunpack.c.l.b16 %v5805
    %v6318 = vunpack.c.l.b16 %v5806
    %v6319 = vunpack.c.l.b16 %v5807
    %v6320 = vunpack.c.l.b16 %v5808
    %v6321 = vunpack.c.l.b16 %v5809
    %v6322 = vunpack.c.l.b16 %v5810
    %v6323 = vunpack.c.l.b16 %v5811
    %v6324 = vunpack.c.l.b16 %v5812
    %v6325 = vunpack.c.l.b16 %v5813
    %v6326 = vunpack.c.l.b16 %v5814
    %v6327 = vunpack.c.l.b16 %v5815
    %v6328 = vunpack.c.l.b16 %v5816
    %v6329 = vunpack.c.l.b16 %v5817
    %v6330 = vunpack.c.l.b16 %v5818
    %v6331 = vunpack.c.l.b16 %v5819
    %v6332 = vunpack.c.l.b16 %v5820
    %v6333 = vunpack.c.l.b16 %v5821
    %v6334 = vunpack.c.l.b16 %v5822
    %v6335 = vunpack.c.l.b16 %v5823
    %v6336 = vunpack.c.l.b16 %v5824
    %v6337 = vunpack.c.l.b16 %v5825
    %v6338 = vunpack.c.l.b16 %v5826
    %v6339 = vunpack.c.l.b16 %v5827
    %v6340 = vunpack.c.l.b16 %v5828
    %v6341 = vunpack.c.l.b16 %v5829
    %v6342 = vunpack.c.l.b16 %v5830
    %v6343 = vunpack.c.l.b16 %v5831
    %v6344 = vunpack.c.l.b16 %v5832
    %v6345 = vunpack.c.l.b16 %v5833
    %v6346 = vunpack.c.l.b16 %v5834
    %v6347 = vunpack.c.l.b16 %v5835
    %v6348 = vunpack.c.l.b16 %v5836
    %v6349 = vunpack.c.l.b16 %v5837
    %v6350 = vunpack.c.l.b16 %v5838
    %v6351 = vunpack.c.l.b16 %v5839
    %v6352 = vunpack.c.l.b16 %v5840
    %v6353 = vunpack.c.l.b16 %v5841
    %v6354 = vunpack.c.l.b16 %v5842
    %v6355 = vunpack.c.l.b16 %v5843
    %v6356 = vunpack.c.l.b16 %v5844
    %v6357 = vunpack.c.l.b16 %v5845
    %v6358 = vunpack.c.l.b16 %v5846
    %v6359 = vunpack.c.l.b16 %v5847
    %v6360 = vunpack.c.l.b16 %v5848
    %v6361 = vunpack.c.l.b16 %v5849
    %v6362 = vunpack.c.l.b16 %v5850
    %v6363 = vunpack.c.l.b16 %v5851
    %v6364 = vunpack.c.l.b16 %v5852
    %v6365 = vunpack.c.l.b16 %v5853
    %v6366 = vunpack.c.l.b16 %v5854
    %v6367 = vunpack.c.l.b16 %v5855
    %v6368 = vunpack.c.l.b16 %v5856
    %v6369 = vunpack.c.l.b16 %v5857
    %v6370 = vunpack.c.l.b16 %v5858
    %v6371 = vunpack.c.l.b16 %v5859
    %v6372 = vunpack.c.l.b16 %v5860
    %v6373 = vunpack.c.l.b16 %v5861
    %v6374 = vunpack.c.l.b16 %v5862
    %v6375 = vunpack.c.l.b16 %v5863
    %v6376 = vunpack.c.l.b16 %v5864
    %v6377 = vunpack.c.l.b16 %v5865
    %v6378 = vunpack.c.l.b16 %v5866
    %v6379 = vunpack.c.l.b16 %v5867
    %v6380 = vunpack.c.l.b16 %v5868
    %v6381 = vunpack.c.l.b16 %v5869
    %v6382 = vunpack.c.l.b16 %v5870
    %v6383 = vunpack.c.l.b16 %v5871
    %v6384 = vunpack.c.l.b16 %v5872
    %v6385 = vunpack.c.l.b16 %v5873
    %v6386 = vunpack.c.l.b16 %v5874
    %v6387 = vunpack.c.l.b16 %v5875
    %v6388 = vunpack.c.l.b16 %v5876
    %v6389 = vunpack.c.l.b16 %v5877
    %v6390 = vunpack.c.l.b16 %v5878
    %v6391 = vunpack.c.l.b16 %v5879
    %v6392 = vunpack.c.l.b16 %v5880
    %v6393 = vunpack.c.l.b16 %v5881
    %v6394 = vunpack.c.l.b16 %v5882
    %v6395 = vunpack.c.l.b16 %v5883
    %v6396 = vunpack.c.l.b16 %v5884
    %v6397 = vunpack.c.l.b16 %v5885
    %v6398 = vunpack.c.l.b16 %v5886
    %v6399 = vunpack.c.l.b16 %v5887
    %v6400 = vunpack.c.l.b16 %v5888
    %v6401 = vunpack.c.l.b16 %v5889
    %v6402 = vunpack.c.l.b16 %v5890
    %v6403 = vunpack.c.l.b16 %v5891
    %v6404 = vunpack.c.l.b16 %v5892
    %v6405 = vunpack.c.l.b16 %v5893
    %v6406 = vunpack.c.l.b16 %v5894
    %v6407 = vunpack.c.l.b16 %v5895
    %v6408 = vunpack.c.l.b16 %v5896
    %v6409 = vunpack.c.l.b16 %v5897
    %v6410 = vunpack.c.l.b16 %v5898
    %v6411 = vunpack.c.l.b16 %v5899
    %v6412 = vunpack.c.l.b16 %v5900
    %v6413 = vunpack.c.l.b16 %v5901
    %v6414 = vunpack.c.l.b16 %v5902
    %v6415 = vunpack.c.l.b16 %v5903
    %v6416 = vunpack.c.l.b16 %v5904
    %v6417 = vunpack.c.l.b16 %v5905
    %v6418 = vunpack.c.l.b16 %v5906
    %v6419 = vunpack.c.l.b16 %v5907
    %v6420 = vunpack.c.l.b16 %v5908
    %v6421 = vunpack.c.l.b16 %v5909
    %v6422 = vunpack.c.l.b16 %v5910
    %v6423 = vunpack.c.l.b16 %v5911
    %v6424 = vunpack.c.l.b16 %v5912
    %v6425 = vunpack.c.l.b16 %v5913
    %v6426 = vunpack.c.l.b16 %v5914
    %v6427 = vunpack.c.l.b16 %v5915
    %v6428 = vunpack.c.l.b16 %v5916
    %v6429 = vunpack.c.l.b16 %v5917
    %v6430 = vunpack.c.l.b16 %v5918
    %v6431 = vunpack.c.l.b16 %v5919
    %v6432 = vunpack.c.l.b16 %v5920
    %v6433 = vunpack.c.l.b16 %v5921
    %v6434 = vunpack.c.l.b16 %v5922
    %v6435 = vunpack.c.l.b16 %v5923
    %v6436 = vunpack.c.l.b16 %v5924
    %v6437 = vunpack.c.l.b16 %v5925
    %v6438 = vunpack.c.l.b16 %v5926
    %v6439 = vunpack.c.l.b16 %v5927
    %v6440 = vunpack.c.l.b16 %v5928
    %v6441 = vunpack.c.l.b16 %v5929
    %v6442 = vunpack.c.l.b16 %v5930
    %v6443 = vunpack.c.l.b16 %v5931
    %v6444 = vunpack.c.l.b16 %v5932
    %v6445 = vunpack.c.l.b16 %v5933
    %v6446 = vunpack.c.l.b16 %v5934
    %v6447 = vunpack.c.l.b16 %v5935
    %v6448 = vunpack.c.l.b16 %v5936
    %v6449 = vunpack.c.l.b16 %v5937
    %v6450 = vunpack.c.l.b16 %v5938
    %v6451 = vunpack.c.l.b16 %v5939
    %v6452 = vunpack.c.l.b16 %v5940
    %v6453 = vunpack.c.l.b16 %v5941
    %v6454 = vunpack.c.l.b16 %v5942
    %v6455 = vunpack.c.l.b16 %v5943
    %v6456 = vunpack.c.l.b16 %v5944
    %v6457 = vunpack.c.l.b16 %v5945
    %v6458 = vunpack.c.l.b16 %v5946
    %v6459 = vunpack.c.l.b16 %v5947
    %v6460 = vunpack.c.l.b16 %v5948
    %v6461 = vunpack.c.l.b16 %v5949
    %v6462 = vunpack.c.l.b16 %v5950
    %v6463 = vunpack.c.l.b16 %v5951
    %v6464 = vunpack.c.l.b16 %v5952
    %v6465 = vunpack.c.l.b16 %v5953
    %v6466 = vunpack.c.l.b16 %v5954
    %v6467 = vunpack.c.l.b16 %v5955
    %v6468 = vunpack.c.l.b16 %v5956
    %v6469 = vunpack.c.l.b16 %v5957
    %v6470 = vunpack.c.l.b16 %v5958
    %v6471 = vunpack.c.l.b16 %v5959
    %v6472 = vunpack.c.l.b16 %v5960
    %v6473 = vunpack.c.l.b16 %v5961
    %v6474 = vunpack.c.l.b16 %v5962
    %v6475 = vunpack.c.l.b16 %v5963
    %v6476 = vunpack.c.l.b16 %v5964
    %v6477 = vunpack.c.l.b16 %v5965
    %v6478 = vunpack.c.l.b16 %v5966
    %v6479 = vunpack.c.l.b16 %v5967
    %v6480 = vunpack.c.l.b16 %v5968
    %v6481 = vunpack.c.l.b16 %v5969
    %v6482 = vunpack.c.l.b16 %v5970
    %v6483 = vunpack.c.l.b16 %v5971
    %v6484 = vunpack.c.l.b16 %v5972
    %v6485 = vunpack.c.l.b16 %v5973
    %v6486 = vunpack.c.l.b16 %v5974
    %v6487 = vunpack.c.l.b16 %v5975
    %v6488 = vunpack.c.l.b16 %v5976
    %v6489 = vunpack.c.l.b16 %v5977
    %v6490 = vunpack.c.l.b16 %v5978
    %v6491 = vunpack.c.l.b16 %v5979
    %v6492 = vunpack.c.l.b16 %v5980
    %v6493 = vunpack.c.l.b16 %v5981
    %v6494 = vunpack.c.l.b16 %v5982
    %v6495 = vunpack.c.l.b16 %v5983
    %v6496 = vunpack.c.l.b16 %v5984
    %v6497 = vunpack.c.l.b16 %v5985
    %v6498 = vunpack.c.l.b16 %v5986
    %v6499 = vunpack.c.l.b16 %v5987
    %v6500 = vunpack.c.l.b16 %v5988
    %v6501 = vunpack.c.l.b16 %v5989
    %v6502 = vunpack.c.l.b16 %v5990
    %v6503 = vunpack.c.l.b16 %v5991
    %v6504 = vunpack.c.l.b16 %v5992
    %v6505 = vunpack.c.l.b16 %v5993
    %v6506 = vunpack.c.l.b16 %v5994
    %v6507 = vunpack.c.l.b16 %v5995
    %v6508 = vunpack.c.l.b16 %v5996
    %v6509 = vunpack.c.l.b16 %v5997
    %v6510 = vunpack.c.l.b16 %v5998
    %v6511 = vunpack.c.l.b16 %v5999
    %v6512 = vunpack.c.l.b16 %v6000
    %v6513 = vunpack.c.l.b16 %v6001
    %v6514 = vunpack.c.l.b16 %v6002
    %v6515 = vunpack.c.l.b16 %v6003
    %v6516 = vunpack.c.l.b16 %v6004
    %v6517 = vunpack.c.l.b16 %v6005
    %v6518 = vunpack.c.l.b16 %v6006
    %v6519 = vunpack.c.l.b16 %v6007
    %v6520 = vunpack.c.l.b16 %v6008
    %v6521 = vunpack.c.l.b16 %v6009
    %v6522 = vunpack.c.l.b16 %v6010
    %v6523 = vunpack.c.l.b16 %v6011
    %v6524 = vunpack.c.l.b16 %v6012
    %v6525 = vunpack.c.l.b16 %v6013
    %v6526 = vunpack.c.l.b16 %v6014
    %v6527 = vunpack.c.l.b16 %v6015
    %v6528 = vunpack.c.l.b16 %v6016
    %v6529 = vunpack.c.l.b16 %v6017
    %v6530 = vunpack.c.l.b16 %v6018
    %v6531 = vunpack.c.l.b16 %v6019
    %v6532 = vunpack.c.l.b16 %v6020
    %v6533 = vunpack.c.l.b16 %v6021
    %v6534 = vunpack.c.l.b16 %v6022
    %v6535 = vunpack.c.l.b16 %v6023
    %v6536 = vunpack.c.l.b16 %v6024
    %v6537 = vpack.c.b16 %v6282, %v6281
    %v6538 = vpack.c.b16 %v6284, %v6283
    %v6539 = vpack.c.b16 %v6286, %v6285
    %v6540 = vpack.c.b16 %v6288, %v6287
    %v6541 = vpack.c.b16 %v6290, %v6289
    %v6542 = vpack.c.b16 %v6292, %v6291
    %v6543 = vpack.c.b16 %v6294, %v6293
    %v6544 = vpack.c.b16 %v6296, %v6295
    %v6545 = vpack.c.b16 %v6298, %v6297
    %v6546 = vpack.c.b16 %v6300, %v6299
    %v6547 = vpack.c.b16 %v6302, %v6301
    %v6548 = vpack.c.b16 %v6304, %v6303
    %v6549 = vpack.c.b16 %v6306, %v6305
    %v6550 = vpack.c.b16 %v6308, %v6307
    %v6551 = vpack.c.b16 %v6310, %v6309
    %v6552 = vpack.c.b16 %v6312, %v6311
    %v6553 = vpack.c.b16 %v6314, %v6313
    %v6554 = vpack.c.b16 %v6316, %v6315
    %v6555 = vpack.c.b16 %v6318, %v6317
    %v6556 = vpack.c.b16 %v6320, %v6319
    %v6557 = vpack.c.b16 %v6322, %v6321
    %v6558 = vpack.c.b16 %v6324, %v6323
    %v6559 = vpack.c.b16 %v6326, %v6325
    %v6560 = vpack.c.b16 %v6328, %v6327
    %v6561 = vpack.c.b16 %v6330, %v6329
    %v6562 = vpack.c.b16 %v6332, %v6331
    %v6563 = vpack.c.b16 %v6334, %v6333
    %v6564 = vpack.c.b16 %v6336, %v6335
    %v6565 = vpack.c.b16 %v6338, %v6337
    %v6566 = vpack.c.b16 %v6340, %v6339
    %v6567 = vpack.c.b16 %v6342, %v6341
    %v6568 = vpack.c.b16 %v6344, %v6343
    %v6569 = vpack.c.b16 %v6346, %v6345
    %v6570 = vpack.c.b16 %v6348, %v6347
    %v6571 = vpack.c.b16 %v6350, %v6349
    %v6572 = vpack.c.b16 %v6352, %v6351
    %v6573 = vpack.c.b16 %v6354, %v6353
    %v6574 = vpack.c.b16 %v6356, %v6355
    %v6575 = vpack.c.b16 %v6358, %v6357
    %v6576 = vpack.c.b16 %v6360, %v6359
    %v6577 = vpack.c.b16 %v6362, %v6361
    %v6578 = vpack.c.b16 %v6364, %v6363
    %v6579 = vpack.c.b16 %v6366, %v6365
    %v6580 = vpack.c.b16 %v6368, %v6367
    %v6581 = vpack.c.b16 %v6370, %v6369
    %v6582 = vpack.c.b16 %v6372, %v6371
    %v6583 = vpack.c.b16 %v6374, %v6373
    %v6584 = vpack.c.b16 %v6376, %v6375
    %v6585 = vpack.c.b16 %v6378, %v6377
    %v6586 = vpack.c.b16 %v6380, %v6379
    %v6587 = vpack.c.b16 %v6382, %v6381
    %v6588 = vpack.c.b16 %v6384, %v6383
    %v6589 = vpack.c.b16 %v6386, %v6385
    %v6590 = vpack.c.b16 %v6388, %v6387
    %v6591 = vpack.c.b16 %v6390, %v6389
    %v6592 = vpack.c.b16 %v6392, %v6391
    %v6593 = vpack.c.b16 %v6394, %v6393
    %v6594 = vpack.c.b16 %v6396, %v6395
    %v6595 = vpack.c.b16 %v6398, %v6397
    %v6596 = vpack.c.b16 %v6400, %v6399
    %v6597 = vpack.c.b16 %v6402, %v6401
    %v6598 = vpack.c.b16 %v6404, %v6403
    %v6599 = vpack.c.b16 %v6406, %v6405
    %v6600 = vpack.c.b16 %v6408, %v6407
    %v6601 = vpack.c.b16 %v6410, %v6409
    %v6602 = vpack.c.b16 %v6412, %v6411
    %v6603 = vpack.c.b16 %v6414, %v6413
    %v6604 = vpack.c.b16 %v6416, %v6415
    %v6605 = vpack.c.b16 %v6418, %v6417
    %v6606 = vpack.c.b16 %v6420, %v6419
    %v6607 = vpack.c.b16 %v6422, %v6421
    %v6608 = vpack.c.b16 %v6424, %v6423
    %v6609 = vpack.c.b16 %v6426, %v6425
    %v6610 = vpack.c.b16 %v6428, %v6427
    %v6611 = vpack.c.b16 %v6430, %v6429
    %v6612 = vpack.c.b16 %v6432, %v6431
    %v6613 = vpack.c.b16 %v6434, %v6433
    %v6614 = vpack.c.b16 %v6436, %v6435
    %v6615 = vpack.c.b16 %v6438, %v6437
    %v6616 = vpack.c.b16 %v6440, %v6439
    %v6617 = vpack.c.b16 %v6442, %v6441
    %v6618 = vpack.c.b16 %v6444, %v6443
    %v6619 = vpack.c.b16 %v6446, %v6445
    %v6620 = vpack.c.b16 %v6448, %v6447
    %v6621 = vpack.c.b16 %v6450, %v6449
    %v6622 = vpack.c.b16 %v6452, %v6451
    %v6623 = vpack.c.b16 %v6454, %v6453
    %v6624 = vpack.c.b16 %v6456, %v6455
    %v6625 = vpack.c.b16 %v6458, %v6457
    %v6626 = vpack.c.b16 %v6460, %v6459
    %v6627 = vpack.c.b16 %v6462, %v6461
    %v6628 = vpack.c.b16 %v6464, %v6463
    %v6629 = vpack.c.b16 %v6466, %v6465
    %v6630 = vpack.c.b16 %v6468, %v6467
    %v6631 = vpack.c.b16 %v6470, %v6469
    %v6632 = vpack.c.b16 %v6472, %v6471
    %v6633 = vpack.c.b16 %v6474, %v6473
    %v6634 = vpack.c.b16 %v6476, %v6475
    %v6635 = vpack.c.b16 %v6478, %v6477
    %v6636 = vpack.c.b16 %v6480, %v6479
    %v6637 = vpack.c.b16 %v6482, %v6481
    %v6638 = vpack.c.b16 %v6484, %v6483
    %v6639 = vpack.c.b16 %v6486, %v6485
    %v6640 = vpack.c.b16 %v6488, %v6487
    %v6641 = vpack.c.b16 %v6490, %v6489
    %v6642 = vpack.c.b16 %v6492, %v6491
    %v6643 = vpack.c.b16 %v6494, %v6493
    %v6644 = vpack.c.b16 %v6496, %v6495
    %v6645 = vpack.c.b16 %v6498, %v6497
    %v6646 = vpack.c.b16 %v6500, %v6499
    %v6647 = vpack.c.b16 %v6502, %v6501
    %v6648 = vpack.c.b16 %v6504, %v6503
    %v6649 = vpack.c.b16 %v6506, %v6505
    %v6650 = vpack.c.b16 %v6508, %v6507
    %v6651 = vpack.c.b16 %v6510, %v6509
    %v6652 = vpack.c.b16 %v6512, %v6511
    %v6653 = vpack.c.b16 %v6514, %v6513
    %v6654 = vpack.c.b16 %v6516, %v6515
    %v6655 = vpack.c.b16 %v6518, %v6517
    %v6656 = vpack.c.b16 %v6520, %v6519
    %v6657 = vpack.c.b16 %v6522, %v6521
    %v6658 = vpack.c.b16 %v6524, %v6523
    %v6659 = vpack.c.b16 %v6526, %v6525
    %v6660 = vpack.c.b16 %v6528, %v6527
    %v6661 = vpack.c.b16 %v6530, %v6529
    %v6662 = vpack.c.b16 %v6532, %v6531
    %v6663 = vpack.c.b16 %v6534, %v6533
    %v6664 = vpack.c.b16 %v6536, %v6535
    %6793 = vmatprep.subr.bf16.mxu0 0
    %6794 = vmatpush1.bf16.msra.mxu0 %v6537
    %6795 = vmatprep.subr.bf16.mxu0 0
    %6796 = vmatpush1.bf16.msra.mxu0 %v6538
    %6797 = vmatprep.subr.bf16.mxu0 0
    %6798 = vmatpush1.bf16.msra.mxu0 %v6539
    %6799 = vmatprep.subr.bf16.mxu0 0
    %6800 = vmatpush1.bf16.msra.mxu0 %v6540
    %6801 = vmatprep.subr.bf16.mxu0 0
    %6802 = vmatpush1.bf16.msra.mxu0 %v6541
    %6803 = vmatprep.subr.bf16.mxu0 0
    %6804 = vmatpush1.bf16.msra.mxu0 %v6542
    %6805 = vmatprep.subr.bf16.mxu0 0
    %6806 = vmatpush1.bf16.msra.mxu0 %v6543
    %6807 = vmatprep.subr.bf16.mxu0 0
    %6808 = vmatpush1.bf16.msra.mxu0 %v6544
    %6809 = vmatprep.subr.bf16.mxu0 0
    %6810 = vmatpush1.bf16.msra.mxu0 %v6545
    %6811 = vmatprep.subr.bf16.mxu0 0
    %6812 = vmatpush1.bf16.msra.mxu0 %v6546
    %6813 = vmatprep.subr.bf16.mxu0 0
    %6814 = vmatpush1.bf16.msra.mxu0 %v6547
    %6815 = vmatprep.subr.bf16.mxu0 0
    %6816 = vmatpush1.bf16.msra.mxu0 %v6548
    %6817 = vmatprep.subr.bf16.mxu0 0
    %6818 = vmatpush1.bf16.msra.mxu0 %v6549
    %6819 = vmatprep.subr.bf16.mxu0 0
    %6820 = vmatpush1.bf16.msra.mxu0 %v6550
    %6821 = vmatprep.subr.bf16.mxu0 0
    %6822 = vmatpush1.bf16.msra.mxu0 %v6551
    %6823 = vmatprep.subr.bf16.mxu0 0
    %6824 = vmatpush1.bf16.msra.mxu0 %v6552
    %6825 = vmatprep.mubr.bf16.mxu0 %v5754
    %6826 = vmatmul.mubr.bf16.gmra.mrb[0].mxu0 %v5753
    %v6827 = vpop.f32.mrb[0].mxu0
    %v6828 = vadd.f32 0.0, %v6827
    %v6829 = vpop.f32.mrb[0].mxu0
    %v6830 = vpop.f32.mrb[0].mxu0
    %v6831 = vpop.f32.mrb[0].mxu0
    %6832 = vdwg.mxu0
    %6833 = vmatprep.subr.bf16.mxu0 0
    %6834 = vmatpush1.bf16.msra.mxu0 %v6553
    %6835 = vmatprep.subr.bf16.mxu0 0
    %6836 = vmatpush1.bf16.msra.mxu0 %v6554
    %6837 = vmatprep.subr.bf16.mxu0 0
    %6838 = vmatpush1.bf16.msra.mxu0 %v6555
    %6839 = vmatprep.subr.bf16.mxu0 0
    %6840 = vmatpush1.bf16.msra.mxu0 %v6556
    %6841 = vmatprep.subr.bf16.mxu0 0
    %6842 = vmatpush1.bf16.msra.mxu0 %v6557
    %6843 = vmatprep.subr.bf16.mxu0 0
    %6844 = vmatpush1.bf16.msra.mxu0 %v6558
    %6845 = vmatprep.subr.bf16.mxu0 0
    %6846 = vmatpush1.bf16.msra.mxu0 %v6559
    %6847 = vmatprep.subr.bf16.mxu0 0
    %6848 = vmatpush1.bf16.msra.mxu0 %v6560
    %6849 = vmatprep.subr.bf16.mxu0 0
    %6850 = vmatpush1.bf16.msra.mxu0 %v6561
    %6851 = vmatprep.subr.bf16.mxu0 0
    %6852 = vmatpush1.bf16.msra.mxu0 %v6562
    %6853 = vmatprep.subr.bf16.mxu0 0
    %6854 = vmatpush1.bf16.msra.mxu0 %v6563
    %6855 = vmatprep.subr.bf16.mxu0 0
    %6856 = vmatpush1.bf16.msra.mxu0 %v6564
    %6857 = vmatprep.subr.bf16.mxu0 0
    %6858 = vmatpush1.bf16.msra.mxu0 %v6565
    %6859 = vmatprep.subr.bf16.mxu0 0
    %6860 = vmatpush1.bf16.msra.mxu0 %v6566
    %6861 = vmatprep.subr.bf16.mxu0 0
    %6862 = vmatpush1.bf16.msra.mxu0 %v6567
    %6863 = vmatprep.subr.bf16.mxu0 0
    %6864 = vmatpush1.bf16.msra.mxu0 %v6568
    %6865 = vmatprep.mubr.bf16.mxu0 %v5756
    %6866 = vmatmul.mubr.bf16.gmra.mrb[0].mxu0 %v5755
    %v6867 = vpop.f32.mrb[0].mxu0
    %v6868 = vadd.f32 %v6828, %v6867
    %v6869 = vpop.f32.mrb[0].mxu0
    %v6870 = vpop.f32.mrb[0].mxu0
    %v6871 = vpop.f32.mrb[0].mxu0
    %6872 = vdwg.mxu0
    %6873 = vmatprep.subr.bf16.mxu0 0
    %6874 = vmatpush1.bf16.msra.mxu0 %v6569
    %6875 = vmatprep.subr.bf16.mxu0 0
    %6876 = vmatpush1.bf16.msra.mxu0 %v6570
    %6877 = vmatprep.subr.bf16.mxu0 0
    %6878 = vmatpush1.bf16.msra.mxu0 %v6571
    %6879 = vmatprep.subr.bf16.mxu0 0
    %6880 = vmatpush1.bf16.msra.mxu0 %v6572
    %6881 = vmatprep.subr.bf16.mxu0 0
    %6882 = vmatpush1.bf16.msra.mxu0 %v6573
    %6883 = vmatprep.subr.bf16.mxu0 0
    %6884 = vmatpush1.bf16.msra.mxu0 %v6574
    %6885 = vmatprep.subr.bf16.mxu0 0
    %6886 = vmatpush1.bf16.msra.mxu0 %v6575
    %6887 = vmatprep.subr.bf16.mxu0 0
    %6888 = vmatpush1.bf16.msra.mxu0 %v6576
    %6889 = vmatprep.subr.bf16.mxu0 0
    %6890 = vmatpush1.bf16.msra.mxu0 %v6577
    %6891 = vmatprep.subr.bf16.mxu0 0
    %6892 = vmatpush1.bf16.msra.mxu0 %v6578
    %6893 = vmatprep.subr.bf16.mxu0 0
    %6894 = vmatpush1.bf16.msra.mxu0 %v6579
    %6895 = vmatprep.subr.bf16.mxu0 0
    %6896 = vmatpush1.bf16.msra.mxu0 %v6580
    %6897 = vmatprep.subr.bf16.mxu0 0
    %6898 = vmatpush1.bf16.msra.mxu0 %v6581
    %6899 = vmatprep.subr.bf16.mxu0 0
    %6900 = vmatpush1.bf16.msra.mxu0 %v6582
    %6901 = vmatprep.subr.bf16.mxu0 0
    %6902 = vmatpush1.bf16.msra.mxu0 %v6583
    %6903 = vmatprep.subr.bf16.mxu0 0
    %6904 = vmatpush1.bf16.msra.mxu0 %v6584
    %6905 = vmatprep.mubr.bf16.mxu0 %v5758
    %6906 = vmatmul.mubr.bf16.gmra.mrb[0].mxu0 %v5757
    %v6907 = vpop.f32.mrb[0].mxu0
    %v6908 = vadd.f32 %v6868, %v6907
    %v6909 = vpop.f32.mrb[0].mxu0
    %v6910 = vpop.f32.mrb[0].mxu0
    %v6911 = vpop.f32.mrb[0].mxu0
    %6912 = vdwg.mxu0
    %6913 = vmatprep.subr.bf16.mxu0 0
    %6914 = vmatpush1.bf16.msra.mxu0 %v6585
    %6915 = vmatprep.subr.bf16.mxu0 0
    %6916 = vmatpush1.bf16.msra.mxu0 %v6586
    %6917 = vmatprep.subr.bf16.mxu0 0
    %6918 = vmatpush1.bf16.msra.mxu0 %v6587
    %6919 = vmatprep.subr.bf16.mxu0 0
    %6920 = vmatpush1.bf16.msra.mxu0 %v6588
    %6921 = vmatprep.subr.bf16.mxu0 0
    %6922 = vmatpush1.bf16.msra.mxu0 %v6589
    %6923 = vmatprep.subr.bf16.mxu0 0
    %6924 = vmatpush1.bf16.msra.mxu0 %v6590
    %6925 = vmatprep.subr.bf16.mxu0 0
    %6926 = vmatpush1.bf16.msra.mxu0 %v6591
    %6927 = vmatprep.subr.bf16.mxu0 0
    %6928 = vmatpush1.bf16.msra.mxu0 %v6592
    %6929 = vmatprep.subr.bf16.mxu0 0
    %6930 = vmatpush1.bf16.msra.mxu0 %v6593
    %6931 = vmatprep.subr.bf16.mxu0 0
    %6932 = vmatpush1.bf16.msra.mxu0 %v6594
    %6933 = vmatprep.subr.bf16.mxu0 0
    %6934 = vmatpush1.bf16.msra.mxu0 %v6595
    %6935 = vmatprep.subr.bf16.mxu0 0
    %6936 = vmatpush1.bf16.msra.mxu0 %v6596
    %6937 = vmatprep.subr.bf16.mxu0 0
    %6938 = vmatpush1.bf16.msra.mxu0 %v6597
    %6939 = vmatprep.subr.bf16.mxu0 0
    %6940 = vmatpush1.bf16.msra.mxu0 %v6598
    %6941 = vmatprep.subr.bf16.mxu0 0
    %6942 = vmatpush1.bf16.msra.mxu0 %v6599
    %6943 = vmatprep.subr.bf16.mxu0 0
    %6944 = vmatpush1.bf16.msra.mxu0 %v6600
    %6945 = vmatprep.mubr.bf16.mxu0 %v5760
    %6946 = vmatmul.mubr.bf16.gmra.mrb[0].mxu0 %v5759
    %v6947 = vpop.f32.mrb[0].mxu0
    %v6948 = vadd.f32 %v6908, %v6947
    %v6949 = vpop.f32.mrb[0].mxu0
    %v6950 = vpop.f32.mrb[0].mxu0
    %v6951 = vpop.f32.mrb[0].mxu0
    %6952 = vdwg.mxu0
    %6953 = vmatprep.subr.bf16.mxu0 0
    %6954 = vmatpush1.bf16.msra.mxu0 %v6601
    %6955 = vmatprep.subr.bf16.mxu0 0
    %6956 = vmatpush1.bf16.msra.mxu0 %v6602
    %6957 = vmatprep.subr.bf16.mxu0 0
    %6958 = vmatpush1.bf16.msra.mxu0 %v6603
    %6959 = vmatprep.subr.bf16.mxu0 0
    %6960 = vmatpush1.bf16.msra.mxu0 %v6604
    %6961 = vmatprep.subr.bf16.mxu0 0
    %6962 = vmatpush1.bf16.msra.mxu0 %v6605
    %6963 = vmatprep.subr.bf16.mxu0 0
    %6964 = vmatpush1.bf16.msra.mxu0 %v6606
    %6965 = vmatprep.subr.bf16.mxu0 0
    %6966 = vmatpush1.bf16.msra.mxu0 %v6607
    %6967 = vmatprep.subr.bf16.mxu0 0
    %6968 = vmatpush1.bf16.msra.mxu0 %v6608
    %6969 = vmatprep.subr.bf16.mxu0 0
    %6970 = vmatpush1.bf16.msra.mxu0 %v6609
    %6971 = vmatprep.subr.bf16.mxu0 0
    %6972 = vmatpush1.bf16.msra.mxu0 %v6610
    %6973 = vmatprep.subr.bf16.mxu0 0
    %6974 = vmatpush1.bf16.msra.mxu0 %v6611
    %6975 = vmatprep.subr.bf16.mxu0 0
    %6976 = vmatpush1.bf16.msra.mxu0 %v6612
    %6977 = vmatprep.subr.bf16.mxu0 0
    %6978 = vmatpush1.bf16.msra.mxu0 %v6613
    %6979 = vmatprep.subr.bf16.mxu0 0
    %6980 = vmatpush1.bf16.msra.mxu0 %v6614
    %6981 = vmatprep.subr.bf16.mxu0 0
    %6982 = vmatpush1.bf16.msra.mxu0 %v6615
    %6983 = vmatprep.subr.bf16.mxu0 0
    %6984 = vmatpush1.bf16.msra.mxu0 %v6616
    %6985 = vmatprep.mubr.bf16.mxu0 %v5762
    %6986 = vmatmul.mubr.bf16.gmra.mrb[0].mxu0 %v5761
    %v6987 = vpop.f32.mrb[0].mxu0
    %v6988 = vadd.f32 %v6948, %v6987
    %v6989 = vpop.f32.mrb[0].mxu0
    %v6990 = vpop.f32.mrb[0].mxu0
    %v6991 = vpop.f32.mrb[0].mxu0
    %6992 = vdwg.mxu0
    %6993 = vmatprep.subr.bf16.mxu0 0
    %6994 = vmatpush1.bf16.msra.mxu0 %v6617
    %6995 = vmatprep.subr.bf16.mxu0 0
    %6996 = vmatpush1.bf16.msra.mxu0 %v6618
    %6997 = vmatprep.subr.bf16.mxu0 0
    %6998 = vmatpush1.bf16.msra.mxu0 %v6619
    %6999 = vmatprep.subr.bf16.mxu0 0
    %7000 = vmatpush1.bf16.msra.mxu0 %v6620
    %7001 = vmatprep.subr.bf16.mxu0 0
    %7002 = vmatpush1.bf16.msra.mxu0 %v6621
    %7003 = vmatprep.subr.bf16.mxu0 0
    %7004 = vmatpush1.bf16.msra.mxu0 %v6622
    %7005 = vmatprep.subr.bf16.mxu0 0
    %7006 = vmatpush1.bf16.msra.mxu0 %v6623
    %7007 = vmatprep.subr.bf16.mxu0 0
    %7008 = vmatpush1.bf16.msra.mxu0 %v6624
    %7009 = vmatprep.subr.bf16.mxu0 0
    %7010 = vmatpush1.bf16.msra.mxu0 %v6625
    %7011 = vmatprep.subr.bf16.mxu0 0
    %7012 = vmatpush1.bf16.msra.mxu0 %v6626
    %7013 = vmatprep.subr.bf16.mxu0 0
    %7014 = vmatpush1.bf16.msra.mxu0 %v6627
    %7015 = vmatprep.subr.bf16.mxu0 0
    %7016 = vmatpush1.bf16.msra.mxu0 %v6628
    %7017 = vmatprep.subr.bf16.mxu0 0
    %7018 = vmatpush1.bf16.msra.mxu0 %v6629
    %7019 = vmatprep.subr.bf16.mxu0 0
    %7020 = vmatpush1.bf16.msra.mxu0 %v6630
    %7021 = vmatprep.subr.bf16.mxu0 0
    %7022 = vmatpush1.bf16.msra.mxu0 %v6631
    %7023 = vmatprep.subr.bf16.mxu0 0
    %7024 = vmatpush1.bf16.msra.mxu0 %v6632
    %7025 = vmatprep.mubr.bf16.mxu0 %v5764
    %7026 = vmatmul.mubr.bf16.gmra.mrb[0].mxu0 %v5763
    %v7027 = vpop.f32.mrb[0].mxu0
    %v7028 = vadd.f32 %v6988, %v7027
    %v7029 = vpop.f32.mrb[0].mxu0
    %v7030 = vpop.f32.mrb[0].mxu0
    %v7031 = vpop.f32.mrb[0].mxu0
    %7032 = vdwg.mxu0
    %7033 = vmatprep.subr.bf16.mxu0 0
    %7034 = vmatpush1.bf16.msra.mxu0 %v6633
    %7035 = vmatprep.subr.bf16.mxu0 0
    %7036 = vmatpush1.bf16.msra.mxu0 %v6634
    %7037 = vmatprep.subr.bf16.mxu0 0
    %7038 = vmatpush1.bf16.msra.mxu0 %v6635
    %7039 = vmatprep.subr.bf16.mxu0 0
    %7040 = vmatpush1.bf16.msra.mxu0 %v6636
    %7041 = vmatprep.subr.bf16.mxu0 0
    %7042 = vmatpush1.bf16.msra.mxu0 %v6637
    %7043 = vmatprep.subr.bf16.mxu0 0
    %7044 = vmatpush1.bf16.msra.mxu0 %v6638
    %7045 = vmatprep.subr.bf16.mxu0 0
    %7046 = vmatpush1.bf16.msra.mxu0 %v6639
    %7047 = vmatprep.subr.bf16.mxu0 0
    %7048 = vmatpush1.bf16.msra.mxu0 %v6640
    %7049 = vmatprep.subr.bf16.mxu0 0
    %7050 = vmatpush1.bf16.msra.mxu0 %v6641
    %7051 = vmatprep.subr.bf16.mxu0 0
    %7052 = vmatpush1.bf16.msra.mxu0 %v6642
    %7053 = vmatprep.subr.bf16.mxu0 0
    %7054 = vmatpush1.bf16.msra.mxu0 %v6643
    %7055 = vmatprep.subr.bf16.mxu0 0
    %7056 = vmatpush1.bf16.msra.mxu0 %v6644
    %7057 = vmatprep.subr.bf16.mxu0 0
    %7058 = vmatpush1.bf16.msra.mxu0 %v6645
    %7059 = vmatprep.subr.bf16.mxu0 0
    %7060 = vmatpush1.bf16.msra.mxu0 %v6646
    %7061 = vmatprep.subr.bf16.mxu0 0
    %7062 = vmatpush1.bf16.msra.mxu0 %v6647
    %7063 = vmatprep.subr.bf16.mxu0 0
    %7064 = vmatpush1.bf16.msra.mxu0 %v6648
    %7065 = vmatprep.mubr.bf16.mxu0 %v5766
    %7066 = vmatmul.mubr.bf16.gmra.mrb[0].mxu0 %v5765
    %v7067 = vpop.f32.mrb[0].mxu0
    %v7068 = vadd.f32 %v7028, %v7067
    %v7069 = vpop.f32.mrb[0].mxu0
    %v7070 = vpop.f32.mrb[0].mxu0
    %v7071 = vpop.f32.mrb[0].mxu0
    %7072 = vdwg.mxu0
    %7073 = vmatprep.subr.bf16.mxu0 0
    %7074 = vmatpush1.bf16.msra.mxu0 %v6649
    %7075 = vmatprep.subr.bf16.mxu0 0
    %7076 = vmatpush1.bf16.msra.mxu0 %v6650
    %7077 = vmatprep.subr.bf16.mxu0 0
    %7078 = vmatpush1.bf16.msra.mxu0 %v6651
    %7079 = vmatprep.subr.bf16.mxu0 0
    %7080 = vmatpush1.bf16.msra.mxu0 %v6652
    %7081 = vmatprep.subr.bf16.mxu0 0
    %7082 = vmatpush1.bf16.msra.mxu0 %v6653
    %7083 = vmatprep.subr.bf16.mxu0 0
    %7084 = vmatpush1.bf16.msra.mxu0 %v6654
    %7085 = vmatprep.subr.bf16.mxu0 0
    %7086 = vmatpush1.bf16.msra.mxu0 %v6655
    %7087 = vmatprep.subr.bf16.mxu0 0
    %7088 = vmatpush1.bf16.msra.mxu0 %v6656
    %7089 = vmatprep.subr.bf16.mxu0 0
    %7090 = vmatpush1.bf16.msra.mxu0 %v6657
    %7091 = vmatprep.subr.bf16.mxu0 0
    %7092 = vmatpush1.bf16.msra.mxu0 %v6658
    %7093 = vmatprep.subr.bf16.mxu0 0
    %7094 = vmatpush1.bf16.msra.mxu0 %v6659
    %7095 = vmatprep.subr.bf16.mxu0 0
    %7096 = vmatpush1.bf16.msra.mxu0 %v6660
    %7097 = vmatprep.subr.bf16.mxu0 0
    %7098 = vmatpush1.bf16.msra.mxu0 %v6661
    %7099 = vmatprep.subr.bf16.mxu0 0
    %7100 = vmatpush1.bf16.msra.mxu0 %v6662
    %7101 = vmatprep.subr.bf16.mxu0 0
    %7102 = vmatpush1.bf16.msra.mxu0 %v6663
    %7103 = vmatprep.subr.bf16.mxu0 0
    %7104 = vmatpush1.bf16.msra.mxu0 %v6664
    %7105 = vmatprep.mubr.bf16.mxu0 %v5768
    %7106 = vmatmul.mubr.bf16.gmra.mrb[0].mxu0 %v5767
    %v7107 = vpop.f32.mrb[0].mxu0
    %v7108 = vadd.f32 %v7068, %v7107
    %v7109 = vpop.f32.mrb[0].mxu0
    %v7110 = vpop.f32.mrb[0].mxu0
    %v7111 = vpop.f32.mrb[0].mxu0
    %7112 = vdwg.mxu0
    %v7113 = vmax.f32 %v7108, 0.0
    %v7114 = vpack.c.bf16 %v7113, %v7113
    %v7115 = vld [vmem:[#allocation7] sm:$0xff]
    %v7116 = vld [vmem:[#allocation7 + $0x8] sm:$0xff]
    %v7117 = vld [vmem:[#allocation7 + $0x10] sm:$0xff]
    %v7118 = vld [vmem:[#allocation7 + $0x18] sm:$0xff]
    %v7119 = vld [vmem:[#allocation7 + $0x20] sm:$0xff]
    %v7120 = vld [vmem:[#allocation7 + $0x28] sm:$0xff]
    %v7121 = vld [vmem:[#allocation7 + $0x30] sm:$0xff]
    %v7122 = vld [vmem:[#allocation7 + $0x38] sm:$0xff]
    %v7123 = vld [vmem:[#allocation7 + $0x40] sm:$0xff]
    %v7124 = vld [vmem:[#allocation7 + $0x48] sm:$0xff]
    %v7125 = vld [vmem:[#allocation7 + $0x50] sm:$0xff]
    %v7126 = vld [vmem:[#allocation7 + $0x58] sm:$0xff]
    %v7127 = vld [vmem:[#allocation7 + $0x60] sm:$0xff]
    %v7128 = vld [vmem:[#allocation7 + $0x68] sm:$0xff]
    %v7129 = vld [vmem:[#allocation7 + $0x70] sm:$0xff]
    %v7130 = vld [vmem:[#allocation7 + $0x78] sm:$0xff]
    %v7131 = vld [vmem:[#allocation7 + $0x80] sm:$0xff]
    %v7132 = vld [vmem:[#allocation7 + $0x88] sm:$0xff]
    %v7133 = vld [vmem:[#allocation7 + $0x90] sm:$0xff]
    %v7134 = vld [vmem:[#allocation7 + $0x98] sm:$0xff]
    %v7135 = vld [vmem:[#allocation7 + $0xa0] sm:$0xff]
    %v7136 = vld [vmem:[#allocation7 + $0xa8] sm:$0xff]
    %v7137 = vld [vmem:[#allocation7 + $0xb0] sm:$0xff]
    %v7138 = vld [vmem:[#allocation7 + $0xb8] sm:$0xff]
    %v7139 = vld [vmem:[#allocation7 + $0xc0] sm:$0xff]
    %v7140 = vld [vmem:[#allocation7 + $0xc8] sm:$0xff]
    %v7141 = vld [vmem:[#allocation7 + $0xd0] sm:$0xff]
    %v7142 = vld [vmem:[#allocation7 + $0xd8] sm:$0xff]
    %v7143 = vld [vmem:[#allocation7 + $0xe0] sm:$0xff]
    %v7144 = vld [vmem:[#allocation7 + $0xe8] sm:$0xff]
    %v7145 = vld [vmem:[#allocation7 + $0xf0] sm:$0xff]
    %v7146 = vld [vmem:[#allocation7 + $0xf8] sm:$0xff]
    %v7147 = vld [vmem:[#allocation7 + $0x100] sm:$0xff]
    %v7148 = vld [vmem:[#allocation7 + $0x108] sm:$0xff]
    %v7149 = vld [vmem:[#allocation7 + $0x110] sm:$0xff]
    %v7150 = vld [vmem:[#allocation7 + $0x118] sm:$0xff]
    %v7151 = vld [vmem:[#allocation7 + $0x120] sm:$0xff]
    %v7152 = vld [vmem:[#allocation7 + $0x128] sm:$0xff]
    %v7153 = vld [vmem:[#allocation7 + $0x130] sm:$0xff]
    %v7154 = vld [vmem:[#allocation7 + $0x138] sm:$0xff]
    %v7155 = vld [vmem:[#allocation7 + $0x140] sm:$0xff]
    %v7156 = vld [vmem:[#allocation7 + $0x148] sm:$0xff]
    %v7157 = vld [vmem:[#allocation7 + $0x150] sm:$0xff]
    %v7158 = vld [vmem:[#allocation7 + $0x158] sm:$0xff]
    %v7159 = vld [vmem:[#allocation7 + $0x160] sm:$0xff]
    %v7160 = vld [vmem:[#allocation7 + $0x168] sm:$0xff]
    %v7161 = vld [vmem:[#allocation7 + $0x170] sm:$0xff]
    %v7162 = vld [vmem:[#allocation7 + $0x178] sm:$0xff]
    %v7163 = vld [vmem:[#allocation7 + $0x180] sm:$0xff]
    %v7164 = vld [vmem:[#allocation7 + $0x188] sm:$0xff]
    %v7165 = vld [vmem:[#allocation7 + $0x190] sm:$0xff]
    %v7166 = vld [vmem:[#allocation7 + $0x198] sm:$0xff]
    %v7167 = vld [vmem:[#allocation7 + $0x1a0] sm:$0xff]
    %v7168 = vld [vmem:[#allocation7 + $0x1a8] sm:$0xff]
    %v7169 = vld [vmem:[#allocation7 + $0x1b0] sm:$0xff]
    %v7170 = vld [vmem:[#allocation7 + $0x1b8] sm:$0xff]
    %v7171 = vld [vmem:[#allocation7 + $0x1c0] sm:$0xff]
    %v7172 = vld [vmem:[#allocation7 + $0x1c8] sm:$0xff]
    %v7173 = vld [vmem:[#allocation7 + $0x1d0] sm:$0xff]
    %v7174 = vld [vmem:[#allocation7 + $0x1d8] sm:$0xff]
    %v7175 = vld [vmem:[#allocation7 + $0x1e0] sm:$0xff]
    %v7176 = vld [vmem:[#allocation7 + $0x1e8] sm:$0xff]
    %v7177 = vld [vmem:[#allocation7 + $0x1f0] sm:$0xff]
    %v7178 = vld [vmem:[#allocation7 + $0x1f8] sm:$0xff]
    %v7179 = vld [vmem:[#allocation7 + $0x200] sm:$0xff]
    %v7180 = vld [vmem:[#allocation7 + $0x208] sm:$0xff]
    %v7181 = vld [vmem:[#allocation7 + $0x210] sm:$0xff]
    %v7182 = vld [vmem:[#allocation7 + $0x218] sm:$0xff]
    %v7183 = vld [vmem:[#allocation7 + $0x220] sm:$0xff]
    %v7184 = vld [vmem:[#allocation7 + $0x228] sm:$0xff]
    %v7185 = vld [vmem:[#allocation7 + $0x230] sm:$0xff]
    %v7186 = vld [vmem:[#allocation7 + $0x238] sm:$0xff]
    %v7187 = vld [vmem:[#allocation7 + $0x240] sm:$0xff]
    %v7188 = vld [vmem:[#allocation7 + $0x248] sm:$0xff]
    %v7189 = vld [vmem:[#allocation7 + $0x250] sm:$0xff]
    %v7190 = vld [vmem:[#allocation7 + $0x258] sm:$0xff]
    %v7191 = vld [vmem:[#allocation7 + $0x260] sm:$0xff]
    %v7192 = vld [vmem:[#allocation7 + $0x268] sm:$0xff]
    %v7193 = vld [vmem:[#allocation7 + $0x270] sm:$0xff]
    %v7194 = vld [vmem:[#allocation7 + $0x278] sm:$0xff]
    %v7195 = vld [vmem:[#allocation7 + $0x280] sm:$0xff]
    %v7196 = vld [vmem:[#allocation7 + $0x288] sm:$0xff]
    %v7197 = vld [vmem:[#allocation7 + $0x290] sm:$0xff]
    %v7198 = vld [vmem:[#allocation7 + $0x298] sm:$0xff]
    %v7199 = vld [vmem:[#allocation7 + $0x2a0] sm:$0xff]
    %v7200 = vld [vmem:[#allocation7 + $0x2a8] sm:$0xff]
    %v7201 = vld [vmem:[#allocation7 + $0x2b0] sm:$0xff]
    %v7202 = vld [vmem:[#allocation7 + $0x2b8] sm:$0xff]
    %v7203 = vld [vmem:[#allocation7 + $0x2c0] sm:$0xff]
    %v7204 = vld [vmem:[#allocation7 + $0x2c8] sm:$0xff]
    %v7205 = vld [vmem:[#allocation7 + $0x2d0] sm:$0xff]
    %v7206 = vld [vmem:[#allocation7 + $0x2d8] sm:$0xff]
    %v7207 = vld [vmem:[#allocation7 + $0x2e0] sm:$0xff]
    %v7208 = vld [vmem:[#allocation7 + $0x2e8] sm:$0xff]
    %v7209 = vld [vmem:[#allocation7 + $0x2f0] sm:$0xff]
    %v7210 = vld [vmem:[#allocation7 + $0x2f8] sm:$0xff]
    %v7211 = vld [vmem:[#allocation7 + $0x300] sm:$0xff]
    %v7212 = vld [vmem:[#allocation7 + $0x308] sm:$0xff]
    %v7213 = vld [vmem:[#allocation7 + $0x310] sm:$0xff]
    %v7214 = vld [vmem:[#allocation7 + $0x318] sm:$0xff]
    %v7215 = vld [vmem:[#allocation7 + $0x320] sm:$0xff]
    %v7216 = vld [vmem:[#allocation7 + $0x328] sm:$0xff]
    %v7217 = vld [vmem:[#allocation7 + $0x330] sm:$0xff]
    %v7218 = vld [vmem:[#allocation7 + $0x338] sm:$0xff]
    %v7219 = vld [vmem:[#allocation7 + $0x340] sm:$0xff]
    %v7220 = vld [vmem:[#allocation7 + $0x348] sm:$0xff]
    %v7221 = vld [vmem:[#allocation7 + $0x350] sm:$0xff]
    %v7222 = vld [vmem:[#allocation7 + $0x358] sm:$0xff]
    %v7223 = vld [vmem:[#allocation7 + $0x360] sm:$0xff]
    %v7224 = vld [vmem:[#allocation7 + $0x368] sm:$0xff]
    %v7225 = vld [vmem:[#allocation7 + $0x370] sm:$0xff]
    %v7226 = vld [vmem:[#allocation7 + $0x378] sm:$0xff]
    %v7227 = vld [vmem:[#allocation7 + $0x380] sm:$0xff]
    %v7228 = vld [vmem:[#allocation7 + $0x388] sm:$0xff]
    %v7229 = vld [vmem:[#allocation7 + $0x390] sm:$0xff]
    %v7230 = vld [vmem:[#allocation7 + $0x398] sm:$0xff]
    %v7231 = vld [vmem:[#allocation7 + $0x3a0] sm:$0xff]
    %v7232 = vld [vmem:[#allocation7 + $0x3a8] sm:$0xff]
    %v7233 = vld [vmem:[#allocation7 + $0x3b0] sm:$0xff]
    %v7234 = vld [vmem:[#allocation7 + $0x3b8] sm:$0xff]
    %v7235 = vld [vmem:[#allocation7 + $0x3c0] sm:$0xff]
    %v7236 = vld [vmem:[#allocation7 + $0x3c8] sm:$0xff]
    %v7237 = vld [vmem:[#allocation7 + $0x3d0] sm:$0xff]
    %v7238 = vld [vmem:[#allocation7 + $0x3d8] sm:$0xff]
    %v7239 = vld [vmem:[#allocation7 + $0x3e0] sm:$0xff]
    %v7240 = vld [vmem:[#allocation7 + $0x3e8] sm:$0xff]
    %v7241 = vld [vmem:[#allocation7 + $0x3f0] sm:$0xff]
    %v7242 = vld [vmem:[#allocation7 + $0x3f8] sm:$0xff]
    %v7371 = vunpack.c.l.b16 %v7115
    %v7372 = vunpack.c.h.b16 %v7115
    %v7373 = vunpack.c.l.b16 %v7116
    %v7374 = vunpack.c.h.b16 %v7116
    %v7375 = vunpack.c.l.b16 %v7117
    %v7376 = vunpack.c.h.b16 %v7117
    %v7377 = vunpack.c.l.b16 %v7118
    %v7378 = vunpack.c.h.b16 %v7118
    %v7379 = vunpack.c.l.b16 %v7119
    %v7380 = vunpack.c.h.b16 %v7119
    %v7381 = vunpack.c.l.b16 %v7120
    %v7382 = vunpack.c.h.b16 %v7120
    %v7383 = vunpack.c.l.b16 %v7121
    %v7384 = vunpack.c.h.b16 %v7121
    %v7385 = vunpack.c.l.b16 %v7122
    %v7386 = vunpack.c.h.b16 %v7122
    %v7387 = vunpack.c.l.b16 %v7123
    %v7388 = vunpack.c.h.b16 %v7123
    %v7389 = vunpack.c.l.b16 %v7124
    %v7390 = vunpack.c.h.b16 %v7124
    %v7391 = vunpack.c.l.b16 %v7125
    %v7392 = vunpack.c.h.b16 %v7125
    %v7393 = vunpack.c.l.b16 %v7126
    %v7394 = vunpack.c.h.b16 %v7126
    %v7395 = vunpack.c.l.b16 %v7127
    %v7396 = vunpack.c.h.b16 %v7127
    %v7397 = vunpack.c.l.b16 %v7128
    %v7398 = vunpack.c.h.b16 %v7128
    %v7399 = vunpack.c.l.b16 %v7129
    %v7400 = vunpack.c.h.b16 %v7129
    %v7401 = vunpack.c.l.b16 %v7130
    %v7402 = vunpack.c.h.b16 %v7130
    %v7403 = vunpack.c.l.b16 %v7131
    %v7404 = vunpack.c.h.b16 %v7131
    %v7405 = vunpack.c.l.b16 %v7132
    %v7406 = vunpack.c.h.b16 %v7132
    %v7407 = vunpack.c.l.b16 %v7133
    %v7408 = vunpack.c.h.b16 %v7133
    %v7409 = vunpack.c.l.b16 %v7134
    %v7410 = vunpack.c.h.b16 %v7134
    %v7411 = vunpack.c.l.b16 %v7135
    %v7412 = vunpack.c.h.b16 %v7135
    %v7413 = vunpack.c.l.b16 %v7136
    %v7414 = vunpack.c.h.b16 %v7136
    %v7415 = vunpack.c.l.b16 %v7137
    %v7416 = vunpack.c.h.b16 %v7137
    %v7417 = vunpack.c.l.b16 %v7138
    %v7418 = vunpack.c.h.b16 %v7138
    %v7419 = vunpack.c.l.b16 %v7139
    %v7420 = vunpack.c.h.b16 %v7139
    %v7421 = vunpack.c.l.b16 %v7140
    %v7422 = vunpack.c.h.b16 %v7140
    %v7423 = vunpack.c.l.b16 %v7141
    %v7424 = vunpack.c.h.b16 %v7141
    %v7425 = vunpack.c.l.b16 %v7142
    %v7426 = vunpack.c.h.b16 %v7142
    %v7427 = vunpack.c.l.b16 %v7143
    %v7428 = vunpack.c.h.b16 %v7143
    %v7429 = vunpack.c.l.b16 %v7144
    %v7430 = vunpack.c.h.b16 %v7144
    %v7431 = vunpack.c.l.b16 %v7145
    %v7432 = vunpack.c.h.b16 %v7145
    %v7433 = vunpack.c.l.b16 %v7146
    %v7434 = vunpack.c.h.b16 %v7146
    %v7435 = vunpack.c.l.b16 %v7147
    %v7436 = vunpack.c.h.b16 %v7147
    %v7437 = vunpack.c.l.b16 %v7148
    %v7438 = vunpack.c.h.b16 %v7148
    %v7439 = vunpack.c.l.b16 %v7149
    %v7440 = vunpack.c.h.b16 %v7149
    %v7441 = vunpack.c.l.b16 %v7150
    %v7442 = vunpack.c.h.b16 %v7150
    %v7443 = vunpack.c.l.b16 %v7151
    %v7444 = vunpack.c.h.b16 %v7151
    %v7445 = vunpack.c.l.b16 %v7152
    %v7446 = vunpack.c.h.b16 %v7152
    %v7447 = vunpack.c.l.b16 %v7153
    %v7448 = vunpack.c.h.b16 %v7153
    %v7449 = vunpack.c.l.b16 %v7154
    %v7450 = vunpack.c.h.b16 %v7154
    %v7451 = vunpack.c.l.b16 %v7155
    %v7452 = vunpack.c.h.b16 %v7155
    %v7453 = vunpack.c.l.b16 %v7156
    %v7454 = vunpack.c.h.b16 %v7156
    %v7455 = vunpack.c.l.b16 %v7157
    %v7456 = vunpack.c.h.b16 %v7157
    %v7457 = vunpack.c.l.b16 %v7158
    %v7458 = vunpack.c.h.b16 %v7158
    %v7459 = vunpack.c.l.b16 %v7159
    %v7460 = vunpack.c.h.b16 %v7159
    %v7461 = vunpack.c.l.b16 %v7160
    %v7462 = vunpack.c.h.b16 %v7160
    %v7463 = vunpack.c.l.b16 %v7161
    %v7464 = vunpack.c.h.b16 %v7161
    %v7465 = vunpack.c.l.b16 %v7162
    %v7466 = vunpack.c.h.b16 %v7162
    %v7467 = vunpack.c.l.b16 %v7163
    %v7468 = vunpack.c.h.b16 %v7163
    %v7469 = vunpack.c.l.b16 %v7164
    %v7470 = vunpack.c.h.b16 %v7164
    %v7471 = vunpack.c.l.b16 %v7165
    %v7472 = vunpack.c.h.b16 %v7165
    %v7473 = vunpack.c.l.b16 %v7166
    %v7474 = vunpack.c.h.b16 %v7166
    %v7475 = vunpack.c.l.b16 %v7167
    %v7476 = vunpack.c.h.b16 %v7167
    %v7477 = vunpack.c.l.b16 %v7168
    %v7478 = vunpack.c.h.b16 %v7168
    %v7479 = vunpack.c.l.b16 %v7169
    %v7480 = vunpack.c.h.b16 %v7169
    %v7481 = vunpack.c.l.b16 %v7170
    %v7482 = vunpack.c.h.b16 %v7170
    %v7483 = vunpack.c.l.b16 %v7171
    %v7484 = vunpack.c.h.b16 %v7171
    %v7485 = vunpack.c.l.b16 %v7172
    %v7486 = vunpack.c.h.b16 %v7172
    %v7487 = vunpack.c.l.b16 %v7173
    %v7488 = vunpack.c.h.b16 %v7173
    %v7489 = vunpack.c.l.b16 %v7174
    %v7490 = vunpack.c.h.b16 %v7174
    %v7491 = vunpack.c.l.b16 %v7175
    %v7492 = vunpack.c.h.b16 %v7175
    %v7493 = vunpack.c.l.b16 %v7176
    %v7494 = vunpack.c.h.b16 %v7176
    %v7495 = vunpack.c.l.b16 %v7177
    %v7496 = vunpack.c.h.b16 %v7177
    %v7497 = vunpack.c.l.b16 %v7178
    %v7498 = vunpack.c.h.b16 %v7178
    %v7499 = vunpack.c.l.b16 %v7179
    %v7500 = vunpack.c.h.b16 %v7179
    %v7501 = vunpack.c.l.b16 %v7180
    %v7502 = vunpack.c.h.b16 %v7180
    %v7503 = vunpack.c.l.b16 %v7181
    %v7504 = vunpack.c.h.b16 %v7181
    %v7505 = vunpack.c.l.b16 %v7182
    %v7506 = vunpack.c.h.b16 %v7182
    %v7507 = vunpack.c.l.b16 %v7183
    %v7508 = vunpack.c.h.b16 %v7183
    %v7509 = vunpack.c.l.b16 %v7184
    %v7510 = vunpack.c.h.b16 %v7184
    %v7511 = vunpack.c.l.b16 %v7185
    %v7512 = vunpack.c.h.b16 %v7185
    %v7513 = vunpack.c.l.b16 %v7186
    %v7514 = vunpack.c.h.b16 %v7186
    %v7515 = vunpack.c.l.b16 %v7187
    %v7516 = vunpack.c.h.b16 %v7187
    %v7517 = vunpack.c.l.b16 %v7188
    %v7518 = vunpack.c.h.b16 %v7188
    %v7519 = vunpack.c.l.b16 %v7189
    %v7520 = vunpack.c.h.b16 %v7189
    %v7521 = vunpack.c.l.b16 %v7190
    %v7522 = vunpack.c.h.b16 %v7190
    %v7523 = vunpack.c.l.b16 %v7191
    %v7524 = vunpack.c.h.b16 %v7191
    %v7525 = vunpack.c.l.b16 %v7192
    %v7526 = vunpack.c.h.b16 %v7192
    %v7527 = vunpack.c.l.b16 %v7193
    %v7528 = vunpack.c.h.b16 %v7193
    %v7529 = vunpack.c.l.b16 %v7194
    %v7530 = vunpack.c.h.b16 %v7194
    %v7531 = vunpack.c.l.b16 %v7195
    %v7532 = vunpack.c.h.b16 %v7195
    %v7533 = vunpack.c.l.b16 %v7196
    %v7534 = vunpack.c.h.b16 %v7196
    %v7535 = vunpack.c.l.b16 %v7197
    %v7536 = vunpack.c.h.b16 %v7197
    %v7537 = vunpack.c.l.b16 %v7198
    %v7538 = vunpack.c.h.b16 %v7198
    %v7539 = vunpack.c.l.b16 %v7199
    %v7540 = vunpack.c.h.b16 %v7199
    %v7541 = vunpack.c.l.b16 %v7200
    %v7542 = vunpack.c.h.b16 %v7200
    %v7543 = vunpack.c.l.b16 %v7201
    %v7544 = vunpack.c.h.b16 %v7201
    %v7545 = vunpack.c.l.b16 %v7202
    %v7546 = vunpack.c.h.b16 %v7202
    %v7547 = vunpack.c.l.b16 %v7203
    %v7548 = vunpack.c.h.b16 %v7203
    %v7549 = vunpack.c.l.b16 %v7204
    %v7550 = vunpack.c.h.b16 %v7204
    %v7551 = vunpack.c.l.b16 %v7205
    %v7552 = vunpack.c.h.b16 %v7205
    %v7553 = vunpack.c.l.b16 %v7206
    %v7554 = vunpack.c.h.b16 %v7206
    %v7555 = vunpack.c.l.b16 %v7207
    %v7556 = vunpack.c.h.b16 %v7207
    %v7557 = vunpack.c.l.b16 %v7208
    %v7558 = vunpack.c.h.b16 %v7208
    %v7559 = vunpack.c.l.b16 %v7209
    %v7560 = vunpack.c.h.b16 %v7209
    %v7561 = vunpack.c.l.b16 %v7210
    %v7562 = vunpack.c.h.b16 %v7210
    %v7563 = vunpack.c.l.b16 %v7211
    %v7564 = vunpack.c.h.b16 %v7211
    %v7565 = vunpack.c.l.b16 %v7212
    %v7566 = vunpack.c.h.b16 %v7212
    %v7567 = vunpack.c.l.b16 %v7213
    %v7568 = vunpack.c.h.b16 %v7213
    %v7569 = vunpack.c.l.b16 %v7214
    %v7570 = vunpack.c.h.b16 %v7214
    %v7571 = vunpack.c.l.b16 %v7215
    %v7572 = vunpack.c.h.b16 %v7215
    %v7573 = vunpack.c.l.b16 %v7216
    %v7574 = vunpack.c.h.b16 %v7216
    %v7575 = vunpack.c.l.b16 %v7217
    %v7576 = vunpack.c.h.b16 %v7217
    %v7577 = vunpack.c.l.b16 %v7218
    %v7578 = vunpack.c.h.b16 %v7218
    %v7579 = vunpack.c.l.b16 %v7219
    %v7580 = vunpack.c.h.b16 %v7219
    %v7581 = vunpack.c.l.b16 %v7220
    %v7582 = vunpack.c.h.b16 %v7220
    %v7583 = vunpack.c.l.b16 %v7221
    %v7584 = vunpack.c.h.b16 %v7221
    %v7585 = vunpack.c.l.b16 %v7222
    %v7586 = vunpack.c.h.b16 %v7222
    %v7587 = vunpack.c.l.b16 %v7223
    %v7588 = vunpack.c.h.b16 %v7223
    %v7589 = vunpack.c.l.b16 %v7224
    %v7590 = vunpack.c.h.b16 %v7224
    %v7591 = vunpack.c.l.b16 %v7225
    %v7592 = vunpack.c.h.b16 %v7225
    %v7593 = vunpack.c.l.b16 %v7226
    %v7594 = vunpack.c.h.b16 %v7226
    %v7595 = vunpack.c.l.b16 %v7227
    %v7596 = vunpack.c.h.b16 %v7227
    %v7597 = vunpack.c.l.b16 %v7228
    %v7598 = vunpack.c.h.b16 %v7228
    %v7599 = vunpack.c.l.b16 %v7229
    %v7600 = vunpack.c.h.b16 %v7229
    %v7601 = vunpack.c.l.b16 %v7230
    %v7602 = vunpack.c.h.b16 %v7230
    %v7603 = vunpack.c.l.b16 %v7231
    %v7604 = vunpack.c.h.b16 %v7231
    %v7605 = vunpack.c.l.b16 %v7232
    %v7606 = vunpack.c.h.b16 %v7232
    %v7607 = vunpack.c.l.b16 %v7233
    %v7608 = vunpack.c.h.b16 %v7233
    %v7609 = vunpack.c.l.b16 %v7234
    %v7610 = vunpack.c.h.b16 %v7234
    %v7611 = vunpack.c.l.b16 %v7235
    %v7612 = vunpack.c.h.b16 %v7235
    %v7613 = vunpack.c.l.b16 %v7236
    %v7614 = vunpack.c.h.b16 %v7236
    %v7615 = vunpack.c.l.b16 %v7237
    %v7616 = vunpack.c.h.b16 %v7237
    %v7617 = vunpack.c.l.b16 %v7238
    %v7618 = vunpack.c.h.b16 %v7238
    %v7619 = vunpack.c.l.b16 %v7239
    %v7620 = vunpack.c.h.b16 %v7239
    %v7621 = vunpack.c.l.b16 %v7240
    %v7622 = vunpack.c.h.b16 %v7240
    %v7623 = vunpack.c.l.b16 %v7241
    %v7624 = vunpack.c.h.b16 %v7241
    %v7625 = vunpack.c.l.b16 %v7242
    %v7626 = vunpack.c.h.b16 %v7242
    %v7627 = vpack.c.b16 %v7387, %v7371
    %v7628 = vpack.c.b16 %v7388, %v7372
    %v7629 = vpack.c.b16 %v7389, %v7373
    %v7630 = vpack.c.b16 %v7390, %v7374
    %v7631 = vpack.c.b16 %v7391, %v7375
    %v7632 = vpack.c.b16 %v7392, %v7376
    %v7633 = vpack.c.b16 %v7393, %v7377
    %v7634 = vpack.c.b16 %v7394, %v7378
    %v7635 = vpack.c.b16 %v7395, %v7379
    %v7636 = vpack.c.b16 %v7396, %v7380
    %v7637 = vpack.c.b16 %v7397, %v7381
    %v7638 = vpack.c.b16 %v7398, %v7382
    %v7639 = vpack.c.b16 %v7399, %v7383
    %v7640 = vpack.c.b16 %v7400, %v7384
    %v7641 = vpack.c.b16 %v7401, %v7385
    %v7642 = vpack.c.b16 %v7402, %v7386
    %v7643 = vpack.c.b16 %v7419, %v7403
    %v7644 = vpack.c.b16 %v7420, %v7404
    %v7645 = vpack.c.b16 %v7421, %v7405
    %v7646 = vpack.c.b16 %v7422, %v7406
    %v7647 = vpack.c.b16 %v7423, %v7407
    %v7648 = vpack.c.b16 %v7424, %v7408
    %v7649 = vpack.c.b16 %v7425, %v7409
    %v7650 = vpack.c.b16 %v7426, %v7410
    %v7651 = vpack.c.b16 %v7427, %v7411
    %v7652 = vpack.c.b16 %v7428, %v7412
    %v7653 = vpack.c.b16 %v7429, %v7413
    %v7654 = vpack.c.b16 %v7430, %v7414
    %v7655 = vpack.c.b16 %v7431, %v7415
    %v7656 = vpack.c.b16 %v7432, %v7416
    %v7657 = vpack.c.b16 %v7433, %v7417
    %v7658 = vpack.c.b16 %v7434, %v7418
    %v7659 = vpack.c.b16 %v7451, %v7435
    %v7660 = vpack.c.b16 %v7452, %v7436
    %v7661 = vpack.c.b16 %v7453, %v7437
    %v7662 = vpack.c.b16 %v7454, %v7438
    %v7663 = vpack.c.b16 %v7455, %v7439
    %v7664 = vpack.c.b16 %v7456, %v7440
    %v7665 = vpack.c.b16 %v7457, %v7441
    %v7666 = vpack.c.b16 %v7458, %v7442
    %v7667 = vpack.c.b16 %v7459, %v7443
    %v7668 = vpack.c.b16 %v7460, %v7444
    %v7669 = vpack.c.b16 %v7461, %v7445
    %v7670 = vpack.c.b16 %v7462, %v7446
    %v7671 = vpack.c.b16 %v7463, %v7447
    %v7672 = vpack.c.b16 %v7464, %v7448
    %v7673 = vpack.c.b16 %v7465, %v7449
    %v7674 = vpack.c.b16 %v7466, %v7450
    %v7675 = vpack.c.b16 %v7483, %v7467
    %v7676 = vpack.c.b16 %v7484, %v7468
    %v7677 = vpack.c.b16 %v7485, %v7469
    %v7678 = vpack.c.b16 %v7486, %v7470
    %v7679 = vpack.c.b16 %v7487, %v7471
    %v7680 = vpack.c.b16 %v7488, %v7472
    %v7681 = vpack.c.b16 %v7489, %v7473
    %v7682 = vpack.c.b16 %v7490, %v7474
    %v7683 = vpack.c.b16 %v7491, %v7475
    %v7684 = vpack.c.b16 %v7492, %v7476
    %v7685 = vpack.c.b16 %v7493, %v7477
    %v7686 = vpack.c.b16 %v7494, %v7478
    %v7687 = vpack.c.b16 %v7495, %v7479
    %v7688 = vpack.c.b16 %v7496, %v7480
    %v7689 = vpack.c.b16 %v7497, %v7481
    %v7690 = vpack.c.b16 %v7498, %v7482
    %v7691 = vpack.c.b16 %v7515, %v7499
    %v7692 = vpack.c.b16 %v7516, %v7500
    %v7693 = vpack.c.b16 %v7517, %v7501
    %v7694 = vpack.c.b16 %v7518, %v7502
    %v7695 = vpack.c.b16 %v7519, %v7503
    %v7696 = vpack.c.b16 %v7520, %v7504
    %v7697 = vpack.c.b16 %v7521, %v7505
    %v7698 = vpack.c.b16 %v7522, %v7506
    %v7699 = vpack.c.b16 %v7523, %v7507
    %v7700 = vpack.c.b16 %v7524, %v7508
    %v7701 = vpack.c.b16 %v7525, %v7509
    %v7702 = vpack.c.b16 %v7526, %v7510
    %v7703 = vpack.c.b16 %v7527, %v7511
    %v7704 = vpack.c.b16 %v7528, %v7512
    %v7705 = vpack.c.b16 %v7529, %v7513
    %v7706 = vpack.c.b16 %v7530, %v7514
    %v7707 = vpack.c.b16 %v7547, %v7531
    %v7708 = vpack.c.b16 %v7548, %v7532
    %v7709 = vpack.c.b16 %v7549, %v7533
    %v7710 = vpack.c.b16 %v7550, %v7534
    %v7711 = vpack.c.b16 %v7551, %v7535
    %v7712 = vpack.c.b16 %v7552, %v7536
    %v7713 = vpack.c.b16 %v7553, %v7537
    %v7714 = vpack.c.b16 %v7554, %v7538
    %v7715 = vpack.c.b16 %v7555, %v7539
    %v7716 = vpack.c.b16 %v7556, %v7540
    %v7717 = vpack.c.b16 %v7557, %v7541
    %v7718 = vpack.c.b16 %v7558, %v7542
    %v7719 = vpack.c.b16 %v7559, %v7543
    %v7720 = vpack.c.b16 %v7560, %v7544
    %v7721 = vpack.c.b16 %v7561, %v7545
    %v7722 = vpack.c.b16 %v7562, %v7546
    %v7723 = vpack.c.b16 %v7579, %v7563
    %v7724 = vpack.c.b16 %v7580, %v7564
    %v7725 = vpack.c.b16 %v7581, %v7565
    %v7726 = vpack.c.b16 %v7582, %v7566
    %v7727 = vpack.c.b16 %v7583, %v7567
    %v7728 = vpack.c.b16 %v7584, %v7568
    %v7729 = vpack.c.b16 %v7585, %v7569
    %v7730 = vpack.c.b16 %v7586, %v7570
    %v7731 = vpack.c.b16 %v7587, %v7571
    %v7732 = vpack.c.b16 %v7588, %v7572
    %v7733 = vpack.c.b16 %v7589, %v7573
    %v7734 = vpack.c.b16 %v7590, %v7574
    %v7735 = vpack.c.b16 %v7591, %v7575
    %v7736 = vpack.c.b16 %v7592, %v7576
    %v7737 = vpack.c.b16 %v7593, %v7577
    %v7738 = vpack.c.b16 %v7594, %v7578
    %v7739 = vpack.c.b16 %v7611, %v7595
    %v7740 = vpack.c.b16 %v7612, %v7596
    %v7741 = vpack.c.b16 %v7613, %v7597
    %v7742 = vpack.c.b16 %v7614, %v7598
    %v7743 = vpack.c.b16 %v7615, %v7599
    %v7744 = vpack.c.b16 %v7616, %v7600
    %v7745 = vpack.c.b16 %v7617, %v7601
    %v7746 = vpack.c.b16 %v7618, %v7602
    %v7747 = vpack.c.b16 %v7619, %v7603
    %v7748 = vpack.c.b16 %v7620, %v7604
    %v7749 = vpack.c.b16 %v7621, %v7605
    %v7750 = vpack.c.b16 %v7622, %v7606
    %v7751 = vpack.c.b16 %v7623, %v7607
    %v7752 = vpack.c.b16 %v7624, %v7608
    %v7753 = vpack.c.b16 %v7625, %v7609
    %v7754 = vpack.c.b16 %v7626, %v7610
    %7883 = vmatprep.subr.bf16.mxu0 %v7628
    %7884 = vmatpush1.bf16.msra.mxu0 %v7627
    %7885 = vmatprep.subr.bf16.mxu0 %v7644
    %7886 = vmatpush1.bf16.msra.mxu0 %v7643
    %7887 = vmatprep.subr.bf16.mxu0 %v7660
    %7888 = vmatpush1.bf16.msra.mxu0 %v7659
    %7889 = vmatprep.subr.bf16.mxu0 %v7676
    %7890 = vmatpush1.bf16.msra.mxu0 %v7675
    %7891 = vmatprep.subr.bf16.mxu0 %v7692
    %7892 = vmatpush1.bf16.msra.mxu0 %v7691
    %7893 = vmatprep.subr.bf16.mxu0 %v7708
    %7894 = vmatpush1.bf16.msra.mxu0 %v7707
    %7895 = vmatprep.subr.bf16.mxu0 %v7724
    %7896 = vmatpush1.bf16.msra.mxu0 %v7723
    %7897 = vmatprep.subr.bf16.mxu0 %v7740
    %7898 = vmatpush1.bf16.msra.mxu0 %v7739
    %7899 = vmatprep.subr.bf16.mxu0 0
    %7900 = vmatpush1.bf16.msra.mxu0 0
    %7901 = vmatprep.subr.bf16.mxu0 0
    %7902 = vmatpush1.bf16.msra.mxu0 0
    %7903 = vmatprep.subr.bf16.mxu0 0
    %7904 = vmatpush1.bf16.msra.mxu0 0
    %7905 = vmatprep.subr.bf16.mxu0 0
    %7906 = vmatpush1.bf16.msra.mxu0 0
    %7907 = vmatprep.subr.bf16.mxu0 0
    %7908 = vmatpush1.bf16.msra.mxu0 0
    %7909 = vmatprep.subr.bf16.mxu0 0
    %7910 = vmatpush1.bf16.msra.mxu0 0
    %7911 = vmatprep.subr.bf16.mxu0 0
    %7912 = vmatpush1.bf16.msra.mxu0 0
    %7913 = vmatprep.subr.bf16.mxu0 0
    %7914 = vmatpush1.bf16.msra.mxu0 0
    %7915 = vmatprep.mubr.bf16.mxu0 0
    %7916 = vmatmul.mubr.bf16.gmra.mrb[0].mxu0 %v7114
    %v7917 = vpop.f32.mrb[0].mxu0
    %v7918 = vadd.f32 0.0, %v7917
    %v7919 = vpop.f32.mrb[0].mxu0
    %v7920 = vadd.f32 0.0, %v7919
    %v7921 = vpop.f32.mrb[0].mxu0
    %v7922 = vpop.f32.mrb[0].mxu0
    %7923 = vdwg.mxu0
    %7924 = vmatprep.subr.bf16.mxu0 %v7630
    %7925 = vmatpush1.bf16.msra.mxu0 %v7629
    %7926 = vmatprep.subr.bf16.mxu0 %v7646
    %7927 = vmatpush1.bf16.msra.mxu0 %v7645
    %7928 = vmatprep.subr.bf16.mxu0 %v7662
    %7929 = vmatpush1.bf16.msra.mxu0 %v7661
    %7930 = vmatprep.subr.bf16.mxu0 %v7678
    %7931 = vmatpush1.bf16.msra.mxu0 %v7677
    %7932 = vmatprep.subr.bf16.mxu0 %v7694
    %7933 = vmatpush1.bf16.msra.mxu0 %v7693
    %7934 = vmatprep.subr.bf16.mxu0 %v7710
    %7935 = vmatpush1.bf16.msra.mxu0 %v7709
    %7936 = vmatprep.subr.bf16.mxu0 %v7726
    %7937 = vmatpush1.bf16.msra.mxu0 %v7725
    %7938 = vmatprep.subr.bf16.mxu0 %v7742
    %7939 = vmatpush1.bf16.msra.mxu0 %v7741
    %7940 = vmatprep.subr.bf16.mxu0 0
    %7941 = vmatpush1.bf16.msra.mxu0 0
    %7942 = vmatprep.subr.bf16.mxu0 0
    %7943 = vmatpush1.bf16.msra.mxu0 0
    %7944 = vmatprep.subr.bf16.mxu0 0
    %7945 = vmatpush1.bf16.msra.mxu0 0
    %7946 = vmatprep.subr.bf16.mxu0 0
    %7947 = vmatpush1.bf16.msra.mxu0 0
    %7948 = vmatprep.subr.bf16.mxu0 0
    %7949 = vmatpush1.bf16.msra.mxu0 0
    %7950 = vmatprep.subr.bf16.mxu0 0
    %7951 = vmatpush1.bf16.msra.mxu0 0
    %7952 = vmatprep.subr.bf16.mxu0 0
    %7953 = vmatpush1.bf16.msra.mxu0 0
    %7954 = vmatprep.subr.bf16.mxu0 0
    %7955 = vmatpush1.bf16.msra.mxu0 0
    %7956 = vmatprep.mubr.bf16.mxu0 0
    %7957 = vmatmul.mubr.bf16.gmra.mrb[0].mxu0 %v7114
    %v7958 = vpop.f32.mrb[0].mxu0
    %v7959 = vadd.f32 0.0, %v7958
    %v7960 = vpop.f32.mrb[0].mxu0
    %v7961 = vadd.f32 0.0, %v7960
    %v7962 = vpop.f32.mrb[0].mxu0
    %v7963 = vpop.f32.mrb[0].mxu0
    %7964 = vdwg.mxu0
    %7965 = vmatprep.subr.bf16.mxu0 %v7632
    %7966 = vmatpush1.bf16.msra.mxu0 %v7631
    %7967 = vmatprep.subr.bf16.mxu0 %v7648
    %7968 = vmatpush1.bf16.msra.mxu0 %v7647
    %7969 = vmatprep.subr.bf16.mxu0 %v7664
    %7970 = vmatpush1.bf16.msra.mxu0 %v7663
    %7971 = vmatprep.subr.bf16.mxu0 %v7680
    %7972 = vmatpush1.bf16.msra.mxu0 %v7679
    %7973 = vmatprep.subr.bf16.mxu0 %v7696
    %7974 = vmatpush1.bf16.msra.mxu0 %v7695
    %7975 = vmatprep.subr.bf16.mxu0 %v7712
    %7976 = vmatpush1.bf16.msra.mxu0 %v7711
    %7977 = vmatprep.subr.bf16.mxu0 %v7728
    %7978 = vmatpush1.bf16.msra.mxu0 %v7727
    %7979 = vmatprep.subr.bf16.mxu0 %v7744
    %7980 = vmatpush1.bf16.msra.mxu0 %v7743
    %7981 = vmatprep.subr.bf16.mxu0 0
    %7982 = vmatpush1.bf16.msra.mxu0 0
    %7983 = vmatprep.subr.bf16.mxu0 0
    %7984 = vmatpush1.bf16.msra.mxu0 0
    %7985 = vmatprep.subr.bf16.mxu0 0
    %7986 = vmatpush1.bf16.msra.mxu0 0
    %7987 = vmatprep.subr.bf16.mxu0 0
    %7988 = vmatpush1.bf16.msra.mxu0 0
    %7989 = vmatprep.subr.bf16.mxu0 0
    %7990 = vmatpush1.bf16.msra.mxu0 0
    %7991 = vmatprep.subr.bf16.mxu0 0
    %7992 = vmatpush1.bf16.msra.mxu0 0
    %7993 = vmatprep.subr.bf16.mxu0 0
    %7994 = vmatpush1.bf16.msra.mxu0 0
    %7995 = vmatprep.subr.bf16.mxu0 0
    %7996 = vmatpush1.bf16.msra.mxu0 0
    %7997 = vmatprep.mubr.bf16.mxu0 0
    %7998 = vmatmul.mubr.bf16.gmra.mrb[0].mxu0 %v7114
    %v7999 = vpop.f32.mrb[0].mxu0
    %v8000 = vadd.f32 0.0, %v7999
    %v8001 = vpop.f32.mrb[0].mxu0
    %v8002 = vadd.f32 0.0, %v8001
    %v8003 = vpop.f32.mrb[0].mxu0
    %v8004 = vpop.f32.mrb[0].mxu0
    %8005 = vdwg.mxu0
    %8006 = vmatprep.subr.bf16.mxu0 %v7634
    %8007 = vmatpush1.bf16.msra.mxu0 %v7633
    %8008 = vmatprep.subr.bf16.mxu0 %v7650
    %8009 = vmatpush1.bf16.msra.mxu0 %v7649
    %8010 = vmatprep.subr.bf16.mxu0 %v7666
    %8011 = vmatpush1.bf16.msra.mxu0 %v7665
    %8012 = vmatprep.subr.bf16.mxu0 %v7682
    %8013 = vmatpush1.bf16.msra.mxu0 %v7681
    %8014 = vmatprep.subr.bf16.mxu0 %v7698
    %8015 = vmatpush1.bf16.msra.mxu0 %v7697
    %8016 = vmatprep.subr.bf16.mxu0 %v7714
    %8017 = vmatpush1.bf16.msra.mxu0 %v7713
    %8018 = vmatprep.subr.bf16.mxu0 %v7730
    %8019 = vmatpush1.bf16.msra.mxu0 %v7729
    %8020 = vmatprep.subr.bf16.mxu0 %v7746
    %8021 = vmatpush1.bf16.msra.mxu0 %v7745
    %8022 = vmatprep.subr.bf16.mxu0 0
    %8023 = vmatpush1.bf16.msra.mxu0 0
    %8024 = vmatprep.subr.bf16.mxu0 0
    %8025 = vmatpush1.bf16.msra.mxu0 0
    %8026 = vmatprep.subr.bf16.mxu0 0
    %8027 = vmatpush1.bf16.msra.mxu0 0
    %8028 = vmatprep.subr.bf16.mxu0 0
    %8029 = vmatpush1.bf16.msra.mxu0 0
    %8030 = vmatprep.subr.bf16.mxu0 0
    %8031 = vmatpush1.bf16.msra.mxu0 0
    %8032 = vmatprep.subr.bf16.mxu0 0
    %8033 = vmatpush1.bf16.msra.mxu0 0
    %8034 = vmatprep.subr.bf16.mxu0 0
    %8035 = vmatpush1.bf16.msra.mxu0 0
    %8036 = vmatprep.subr.bf16.mxu0 0
    %8037 = vmatpush1.bf16.msra.mxu0 0
    %8038 = vmatprep.mubr.bf16.mxu0 0
    %8039 = vmatmul.mubr.bf16.gmra.mrb[0].mxu0 %v7114
    %v8040 = vpop.f32.mrb[0].mxu0
    %v8041 = vadd.f32 0.0, %v8040
    %v8042 = vpop.f32.mrb[0].mxu0
    %v8043 = vadd.f32 0.0, %v8042
    %v8044 = vpop.f32.mrb[0].mxu0
    %v8045 = vpop.f32.mrb[0].mxu0
    %8046 = vdwg.mxu0
    %8047 = vmatprep.subr.bf16.mxu0 %v7636
    %8048 = vmatpush1.bf16.msra.mxu0 %v7635
    %8049 = vmatprep.subr.bf16.mxu0 %v7652
    %8050 = vmatpush1.bf16.msra.mxu0 %v7651
    %8051 = vmatprep.subr.bf16.mxu0 %v7668
    %8052 = vmatpush1.bf16.msra.mxu0 %v7667
    %8053 = vmatprep.subr.bf16.mxu0 %v7684
    %8054 = vmatpush1.bf16.msra.mxu0 %v7683
    %8055 = vmatprep.subr.bf16.mxu0 %v7700
    %8056 = vmatpush1.bf16.msra.mxu0 %v7699
    %8057 = vmatprep.subr.bf16.mxu0 %v7716
    %8058 = vmatpush1.bf16.msra.mxu0 %v7715
    %8059 = vmatprep.subr.bf16.mxu0 %v7732
    %8060 = vmatpush1.bf16.msra.mxu0 %v7731
    %8061 = vmatprep.subr.bf16.mxu0 %v7748
    %8062 = vmatpush1.bf16.msra.mxu0 %v7747
    %8063 = vmatprep.subr.bf16.mxu0 0
    %8064 = vmatpush1.bf16.msra.mxu0 0
    %8065 = vmatprep.subr.bf16.mxu0 0
    %8066 = vmatpush1.bf16.msra.mxu0 0
    %8067 = vmatprep.subr.bf16.mxu0 0
    %8068 = vmatpush1.bf16.msra.mxu0 0
    %8069 = vmatprep.subr.bf16.mxu0 0
    %8070 = vmatpush1.bf16.msra.mxu0 0
    %8071 = vmatprep.subr.bf16.mxu0 0
    %8072 = vmatpush1.bf16.msra.mxu0 0
    %8073 = vmatprep.subr.bf16.mxu0 0
    %8074 = vmatpush1.bf16.msra.mxu0 0
    %8075 = vmatprep.subr.bf16.mxu0 0
    %8076 = vmatpush1.bf16.msra.mxu0 0
    %8077 = vmatprep.subr.bf16.mxu0 0
    %8078 = vmatpush1.bf16.msra.mxu0 0
    %8079 = vmatprep.mubr.bf16.mxu0 0
    %8080 = vmatmul.mubr.bf16.gmra.mrb[0].mxu0 %v7114
    %v8081 = vpop.f32.mrb[0].mxu0
    %v8082 = vadd.f32 0.0, %v8081
    %v8083 = vpop.f32.mrb[0].mxu0
    %v8084 = vadd.f32 0.0, %v8083
    %v8085 = vpop.f32.mrb[0].mxu0
    %v8086 = vpop.f32.mrb[0].mxu0
    %8087 = vdwg.mxu0
    %8088 = vmatprep.subr.bf16.mxu0 %v7638
    %8089 = vmatpush1.bf16.msra.mxu0 %v7637
    %8090 = vmatprep.subr.bf16.mxu0 %v7654
    %8091 = vmatpush1.bf16.msra.mxu0 %v7653
    %8092 = vmatprep.subr.bf16.mxu0 %v7670
    %8093 = vmatpush1.bf16.msra.mxu0 %v7669
    %8094 = vmatprep.subr.bf16.mxu0 %v7686
    %8095 = vmatpush1.bf16.msra.mxu0 %v7685
    %8096 = vmatprep.subr.bf16.mxu0 %v7702
    %8097 = vmatpush1.bf16.msra.mxu0 %v7701
    %8098 = vmatprep.subr.bf16.mxu0 %v7718
    %8099 = vmatpush1.bf16.msra.mxu0 %v7717
    %8100 = vmatprep.subr.bf16.mxu0 %v7734
    %8101 = vmatpush1.bf16.msra.mxu0 %v7733
    %8102 = vmatprep.subr.bf16.mxu0 %v7750
    %8103 = vmatpush1.bf16.msra.mxu0 %v7749
    %8104 = vmatprep.subr.bf16.mxu0 0
    %8105 = vmatpush1.bf16.msra.mxu0 0
    %8106 = vmatprep.subr.bf16.mxu0 0
    %8107 = vmatpush1.bf16.msra.mxu0 0
    %8108 = vmatprep.subr.bf16.mxu0 0
    %8109 = vmatpush1.bf16.msra.mxu0 0
    %8110 = vmatprep.subr.bf16.mxu0 0
    %8111 = vmatpush1.bf16.msra.mxu0 0
    %8112 = vmatprep.subr.bf16.mxu0 0
    %8113 = vmatpush1.bf16.msra.mxu0 0
    %8114 = vmatprep.subr.bf16.mxu0 0
    %8115 = vmatpush1.bf16.msra.mxu0 0
    %8116 = vmatprep.subr.bf16.mxu0 0
    %8117 = vmatpush1.bf16.msra.mxu0 0
    %8118 = vmatprep.subr.bf16.mxu0 0
    %8119 = vmatpush1.bf16.msra.mxu0 0
    %8120 = vmatprep.mubr.bf16.mxu0 0
    %8121 = vmatmul.mubr.bf16.gmra.mrb[0].mxu0 %v7114
    %v8122 = vpop.f32.mrb[0].mxu0
    %v8123 = vadd.f32 0.0, %v8122
    %v8124 = vpop.f32.mrb[0].mxu0
    %v8125 = vadd.f32 0.0, %v8124
    %v8126 = vpop.f32.mrb[0].mxu0
    %v8127 = vpop.f32.mrb[0].mxu0
    %8128 = vdwg.mxu0
    %8129 = vmatprep.subr.bf16.mxu0 %v7640
    %8130 = vmatpush1.bf16.msra.mxu0 %v7639
    %8131 = vmatprep.subr.bf16.mxu0 %v7656
    %8132 = vmatpush1.bf16.msra.mxu0 %v7655
    %8133 = vmatprep.subr.bf16.mxu0 %v7672
    %8134 = vmatpush1.bf16.msra.mxu0 %v7671
    %8135 = vmatprep.subr.bf16.mxu0 %v7688
    %8136 = vmatpush1.bf16.msra.mxu0 %v7687
    %8137 = vmatprep.subr.bf16.mxu0 %v7704
    %8138 = vmatpush1.bf16.msra.mxu0 %v7703
    %8139 = vmatprep.subr.bf16.mxu0 %v7720
    %8140 = vmatpush1.bf16.msra.mxu0 %v7719
    %8141 = vmatprep.subr.bf16.mxu0 %v7736
    %8142 = vmatpush1.bf16.msra.mxu0 %v7735
    %8143 = vmatprep.subr.bf16.mxu0 %v7752
    %8144 = vmatpush1.bf16.msra.mxu0 %v7751
    %8145 = vmatprep.subr.bf16.mxu0 0
    %8146 = vmatpush1.bf16.msra.mxu0 0
    %8147 = vmatprep.subr.bf16.mxu0 0
    %8148 = vmatpush1.bf16.msra.mxu0 0
    %8149 = vmatprep.subr.bf16.mxu0 0
    %8150 = vmatpush1.bf16.msra.mxu0 0
    %8151 = vmatprep.subr.bf16.mxu0 0
    %8152 = vmatpush1.bf16.msra.mxu0 0
    %8153 = vmatprep.subr.bf16.mxu0 0
    %8154 = vmatpush1.bf16.msra.mxu0 0
    %8155 = vmatprep.subr.bf16.mxu0 0
    %8156 = vmatpush1.bf16.msra.mxu0 0
    %8157 = vmatprep.subr.bf16.mxu0 0
    %8158 = vmatpush1.bf16.msra.mxu0 0
    %8159 = vmatprep.subr.bf16.mxu0 0
    %8160 = vmatpush1.bf16.msra.mxu0 0
    %8161 = vmatprep.mubr.bf16.mxu0 0
    %8162 = vmatmul.mubr.bf16.gmra.mrb[0].mxu0 %v7114
    %v8163 = vpop.f32.mrb[0].mxu0
    %v8164 = vadd.f32 0.0, %v8163
    %v8165 = vpop.f32.mrb[0].mxu0
    %v8166 = vadd.f32 0.0, %v8165
    %v8167 = vpop.f32.mrb[0].mxu0
    %v8168 = vpop.f32.mrb[0].mxu0
    %8169 = vdwg.mxu0
    %8170 = vmatprep.subr.bf16.mxu0 %v7642
    %8171 = vmatpush1.bf16.msra.mxu0 %v7641
    %8172 = vmatprep.subr.bf16.mxu0 %v7658
    %8173 = vmatpush1.bf16.msra.mxu0 %v7657
    %8174 = vmatprep.subr.bf16.mxu0 %v7674
    %8175 = vmatpush1.bf16.msra.mxu0 %v7673
    %8176 = vmatprep.subr.bf16.mxu0 %v7690
    %8177 = vmatpush1.bf16.msra.mxu0 %v7689
    %8178 = vmatprep.subr.bf16.mxu0 %v7706
    %8179 = vmatpush1.bf16.msra.mxu0 %v7705
    %8180 = vmatprep.subr.bf16.mxu0 %v7722
    %8181 = vmatpush1.bf16.msra.mxu0 %v7721
    %8182 = vmatprep.subr.bf16.mxu0 %v7738
    %8183 = vmatpush1.bf16.msra.mxu0 %v7737
    %8184 = vmatprep.subr.bf16.mxu0 %v7754
    %8185 = vmatpush1.bf16.msra.mxu0 %v7753
    %8186 = vmatprep.subr.bf16.mxu0 0
    %8187 = vmatpush1.bf16.msra.mxu0 0
    %8188 = vmatprep.subr.bf16.mxu0 0
    %8189 = vmatpush1.bf16.msra.mxu0 0
    %8190 = vmatprep.subr.bf16.mxu0 0
    %8191 = vmatpush1.bf16.msra.mxu0 0
    %8192 = vmatprep.subr.bf16.mxu0 0
    %8193 = vmatpush1.bf16.msra.mxu0 0
    %8194 = vmatprep.subr.bf16.mxu0 0
    %8195 = vmatpush1.bf16.msra.mxu0 0
    %8196 = vmatprep.subr.bf16.mxu0 0
    %8197 = vmatpush1.bf16.msra.mxu0 0
    %8198 = vmatprep.subr.bf16.mxu0 0
    %8199 = vmatpush1.bf16.msra.mxu0 0
    %8200 = vmatprep.subr.bf16.mxu0 0
    %8201 = vmatpush1.bf16.msra.mxu0 0
    %8202 = vmatprep.mubr.bf16.mxu0 0
    %8203 = vmatmul.mubr.bf16.gmra.mrb[0].mxu0 %v7114
    %v8204 = vpop.f32.mrb[0].mxu0
    %v8205 = vadd.f32 0.0, %v8204
    %v8206 = vpop.f32.mrb[0].mxu0
    %v8207 = vadd.f32 0.0, %v8206
    %v8208 = vpop.f32.mrb[0].mxu0
    %v8209 = vpop.f32.mrb[0].mxu0
    %8210 = vdwg.mxu0
    %v8211 = vxor.u32 %v7918, 2147483648
    %v8212 = vxor.u32 %v7920, 2147483648
    %v8213 = vxor.u32 %v7959, 2147483648
    %v8214 = vxor.u32 %v7961, 2147483648
    %v8215 = vxor.u32 %v8000, 2147483648
    %v8216 = vxor.u32 %v8002, 2147483648
    %v8217 = vxor.u32 %v8041, 2147483648
    %v8218 = vxor.u32 %v8043, 2147483648
    %v8219 = vxor.u32 %v8082, 2147483648
    %v8220 = vxor.u32 %v8084, 2147483648
    %v8221 = vxor.u32 %v8123, 2147483648
    %v8222 = vxor.u32 %v8125, 2147483648
    %v8223 = vxor.u32 %v8164, 2147483648
    %v8224 = vxor.u32 %v8166, 2147483648
    %v8225 = vxor.u32 %v8205, 2147483648
    %v8226 = vxor.u32 %v8207, 2147483648
    %v8227 = vmul.f32 %v8211, 1.442695
    %v8228 = vpow.pop %v8227
    %v8229 = vmul.f32 %v8212, 1.442695
    %v8230 = vpow.pop %v8229
    %v8231 = vmul.f32 %v8213, 1.442695
    %v8232 = vpow.pop %v8231
    %v8233 = vmul.f32 %v8214, 1.442695
    %v8234 = vpow.pop %v8233
    %v8235 = vmul.f32 %v8215, 1.442695
    %v8236 = vpow.pop %v8235
    %v8237 = vmul.f32 %v8216, 1.442695
    %v8238 = vpow.pop %v8237
    %v8239 = vmul.f32 %v8217, 1.442695
    %v8240 = vpow.pop %v8239
    %v8241 = vmul.f32 %v8218, 1.442695
    %v8242 = vpow.pop %v8241
    %v8243 = vmul.f32 %v8219, 1.442695
    %v8244 = vpow.pop %v8243
    %v8245 = vmul.f32 %v8220, 1.442695
    %v8246 = vpow.pop %v8245
    %v8247 = vmul.f32 %v8221, 1.442695
    %v8248 = vpow.pop %v8247
    %v8249 = vmul.f32 %v8222, 1.442695
    %v8250 = vpow.pop %v8249
    %v8251 = vmul.f32 %v8223, 1.442695
    %v8252 = vpow.pop %v8251
    %v8253 = vmul.f32 %v8224, 1.442695
    %v8254 = vpow.pop %v8253
    %v8255 = vmul.f32 %v8225, 1.442695
    %v8256 = vpow.pop %v8255
    %v8257 = vmul.f32 %v8226, 1.442695
    %v8258 = vpow.pop %v8257
    %v8259 = vadd.f32 %v8228, 1.0
    %v8260 = vadd.f32 %v8230, 1.0
    %v8261 = vadd.f32 %v8232, 1.0
    %v8262 = vadd.f32 %v8234, 1.0
    %v8263 = vadd.f32 %v8236, 1.0
    %v8264 = vadd.f32 %v8238, 1.0
    %v8265 = vadd.f32 %v8240, 1.0
    %v8266 = vadd.f32 %v8242, 1.0
    %v8267 = vadd.f32 %v8244, 1.0
    %v8268 = vadd.f32 %v8246, 1.0
    %v8269 = vadd.f32 %v8248, 1.0
    %v8270 = vadd.f32 %v8250, 1.0
    %v8271 = vadd.f32 %v8252, 1.0
    %v8272 = vadd.f32 %v8254, 1.0
    %v8273 = vadd.f32 %v8256, 1.0
    %v8274 = vadd.f32 %v8258, 1.0
    %v8275 = vrcp.pop %v8259
    %v8276 = vmul.f32 1.0, %v8275
    %v8277 = vrcp.pop %v8260
    %v8278 = vmul.f32 1.0, %v8277
    %v8279 = vrcp.pop %v8261
    %v8280 = vmul.f32 1.0, %v8279
    %v8281 = vrcp.pop %v8262
    %v8282 = vmul.f32 1.0, %v8281
    %v8283 = vrcp.pop %v8263
    %v8284 = vmul.f32 1.0, %v8283
    %v8285 = vrcp.pop %v8264
    %v8286 = vmul.f32 1.0, %v8285
    %v8287 = vrcp.pop %v8265
    %v8288 = vmul.f32 1.0, %v8287
    %v8289 = vrcp.pop %v8266
    %v8290 = vmul.f32 1.0, %v8289
    %v8291 = vrcp.pop %v8267
    %v8292 = vmul.f32 1.0, %v8291
    %v8293 = vrcp.pop %v8268
    %v8294 = vmul.f32 1.0, %v8293
    %v8295 = vrcp.pop %v8269
    %v8296 = vmul.f32 1.0, %v8295
    %v8297 = vrcp.pop %v8270
    %v8298 = vmul.f32 1.0, %v8297
    %v8299 = vrcp.pop %v8271
    %v8300 = vmul.f32 1.0, %v8299
    %v8301 = vrcp.pop %v8272
    %v8302 = vmul.f32 1.0, %v8301
    %v8303 = vrcp.pop %v8273
    %v8304 = vmul.f32 1.0, %v8303
    %v8305 = vrcp.pop %v8274
    %v8306 = vmul.f32 1.0, %v8305
    %v8307 = vmul.f32 %v5737, %v8276
    %v8308 = vmul.f32 %v5738, %v8278
    %v8309 = vmul.f32 %v5739, %v8280
    %v8310 = vmul.f32 %v5740, %v8282
    %v8311 = vmul.f32 %v5741, %v8284
    %v8312 = vmul.f32 %v5742, %v8286
    %v8313 = vmul.f32 %v5743, %v8288
    %v8314 = vmul.f32 %v5744, %v8290
    %v8315 = vmul.f32 %v5745, %v8292
    %v8316 = vmul.f32 %v5746, %v8294
    %v8317 = vmul.f32 %v5747, %v8296
    %v8318 = vmul.f32 %v5748, %v8298
    %v8319 = vmul.f32 %v5749, %v8300
    %v8320 = vmul.f32 %v5750, %v8302
    %v8321 = vmul.f32 %v5751, %v8304
    %v8322 = vmul.f32 %v5752, %v8306
    %vm8323 = vcmask 1041408
    %v8324 = vsel %vm8323, %v8307, 0.0
    %v8325 = vsel %vm8323, %v8308, 0.0
    %v8326 = vadd.f32 %v8324, %v8325
    %v8327 = vsel %vm8323, %v8309, 0.0
    %v8328 = vadd.f32 %v8326, %v8327
    %v8329 = vsel %vm8323, %v8310, 0.0
    %v8330 = vadd.f32 %v8328, %v8329
    %v8331 = vsel %vm8323, %v8311, 0.0
    %v8332 = vadd.f32 %v8330, %v8331
    %v8333 = vsel %vm8323, %v8312, 0.0
    %v8334 = vadd.f32 %v8332, %v8333
    %v8335 = vsel %vm8323, %v8313, 0.0
    %v8336 = vadd.f32 %v8334, %v8335
    %v8337 = vsel %vm8323, %v8314, 0.0
    %v8338 = vadd.f32 %v8336, %v8337
    %v8339 = vsel %vm8323, %v8315, 0.0
    %v8340 = vadd.f32 %v8338, %v8339
    %v8341 = vsel %vm8323, %v8316, 0.0
    %v8342 = vadd.f32 %v8340, %v8341
    %v8343 = vsel %vm8323, %v8317, 0.0
    %v8344 = vadd.f32 %v8342, %v8343
    %v8345 = vsel %vm8323, %v8318, 0.0
    %v8346 = vadd.f32 %v8344, %v8345
    %v8347 = vsel %vm8323, %v8319, 0.0
    %v8348 = vadd.f32 %v8346, %v8347
    %v8349 = vsel %vm8323, %v8320, 0.0
    %v8350 = vadd.f32 %v8348, %v8349
    %v8351 = vsel %vm8323, %v8321, 0.0
    %v8352 = vadd.f32 %v8350, %v8351
    %v8353 = vsel %vm8323, %v8322, 0.0
    %v8354 = vadd.f32 %v8352, %v8353
    %8355 = vadd.xlane.f32.xlu0 %v8354
    %v8356 = vpop.xlane.xlu0 %8355
    %v8357 = vrcp.pop 2048.0
    %v8358 = vmul.f32 %v8356, %v8357
    %v8359 = vsel %vm8323, %v8307, -inf
    %v8360 = vsel %vm8323, %v8308, -inf
    %v8361 = vsel %vm8323, %v8309, -inf
    %v8362 = vsel %vm8323, %v8310, -inf
    %v8363 = vsel %vm8323, %v8311, -inf
    %v8364 = vmax.f32 %v8359, %v8363
    %v8365 = vsel %vm8323, %v8312, -inf
    %v8366 = vmax.f32 %v8360, %v8365
    %v8367 = vsel %vm8323, %v8313, -inf
    %v8368 = vmax.f32 %v8361, %v8367
    %v8369 = vsel %vm8323, %v8314, -inf
    %v8370 = vmax.f32 %v8362, %v8369
    %v8371 = vsel %vm8323, %v8315, -inf
    %v8372 = vmax.f32 %v8364, %v8371
    %v8373 = vsel %vm8323, %v8316, -inf
    %v8374 = vmax.f32 %v8366, %v8373
    %v8375 = vsel %vm8323, %v8317, -inf
    %v8376 = vmax.f32 %v8368, %v8375
    %v8377 = vsel %vm8323, %v8318, -inf
    %v8378 = vmax.f32 %v8370, %v8377
    %v8379 = vsel %vm8323, %v8319, -inf
    %v8380 = vmax.f32 %v8372, %v8379
    %v8381 = vsel %vm8323, %v8320, -inf
    %v8382 = vmax.f32 %v8374, %v8381
    %v8383 = vsel %vm8323, %v8321, -inf
    %v8384 = vmax.f32 %v8376, %v8383
    %v8385 = vsel %vm8323, %v8322, -inf
    %v8386 = vmax.f32 %v8378, %v8385
    %v8387 = vmax.f32 %v8380, %v8382
    %v8388 = vmax.f32 %v8384, %v8386
    %v8389 = vmax.f32 %v8387, %v8388
    %8390 = vmax.xlane.f32.xlu0 %v8389
    %v8391 = vpop.xlane.xlu0 %8390
    %s8392 = sld [smem:[#allocation8]]
    %v8393 = vstv %s8392
    %v8394 = vmul.f32 %v8393, %v8358
    %s8395 = sld [smem:[#allocation8 + $0x1]]
    %v8396 = vstv %s8395
    %v8397 = vmul.f32 %v8396, %v8391
    %v8398 = vadd.f32 %v8394, %v8397
    %v8399 = vxor.u32 %v8398, 2147483648
    %v8400 = vmul.f32 %v8399, 1.442695
    %v8401 = vpow.pop %v8400
    %v8402 = vadd.f32 %v8401, 1.0
    %v8403 = vrcp.pop %v8402
    %v8404 = vmul.f32 1.0, %v8403
    %v8405 = vmul.f32 %v8307, %v8404
    %v8406 = vmul.f32 %v8308, %v8404
    %v8407 = vmul.f32 %v8309, %v8404
    %v8408 = vmul.f32 %v8310, %v8404
    %v8409 = vmul.f32 %v8311, %v8404
    %v8410 = vmul.f32 %v8312, %v8404
    %v8411 = vmul.f32 %v8313, %v8404
    %v8412 = vmul.f32 %v8314, %v8404
    %v8413 = vmul.f32 %v8315, %v8404
    %v8414 = vmul.f32 %v8316, %v8404
    %v8415 = vmul.f32 %v8317, %v8404
    %v8416 = vmul.f32 %v8318, %v8404
    %v8417 = vmul.f32 %v8319, %v8404
    %v8418 = vmul.f32 %v8320, %v8404
    %v8419 = vmul.f32 %v8321, %v8404
    %v8420 = vmul.f32 %v8322, %v8404
    %v8421 = vpack.c.bf16 %v8405, %v8405
    %v8422 = vpack.c.bf16 %v8406, %v8406
    %v8423 = vpack.c.bf16 %v8407, %v8407
    %v8424 = vpack.c.bf16 %v8408, %v8408
    %v8425 = vpack.c.bf16 %v8409, %v8409
    %v8426 = vpack.c.bf16 %v8410, %v8410
    %v8427 = vpack.c.bf16 %v8411, %v8411
    %v8428 = vpack.c.bf16 %v8412, %v8412
    %v8429 = vpack.c.bf16 %v8413, %v8413
    %v8430 = vpack.c.bf16 %v8414, %v8414
    %v8431 = vpack.c.bf16 %v8415, %v8415
    %v8432 = vpack.c.bf16 %v8416, %v8416
    %v8433 = vpack.c.bf16 %v8417, %v8417
    %v8434 = vpack.c.bf16 %v8418, %v8418
    %v8435 = vpack.c.bf16 %v8419, %v8419
    %v8436 = vpack.c.bf16 %v8420, %v8420
    %v8437 = vld [vmem:[#allocation9] sm:$0xf]
    %v8438 = vld [vmem:[#allocation9 + $0x4] sm:$0xf]
    %v8439 = vld [vmem:[#allocation9 + $0x8] sm:$0xf]
    %v8440 = vld [vmem:[#allocation9 + $0xc] sm:$0xf]
    %v8441 = vld [vmem:[#allocation9 + $0x10] sm:$0xf]
    %v8442 = vld [vmem:[#allocation9 + $0x14] sm:$0xf]
    %v8443 = vld [vmem:[#allocation9 + $0x18] sm:$0xf]
    %v8444 = vld [vmem:[#allocation9 + $0x1c] sm:$0xf]
    %v8445 = vld [vmem:[#allocation9 + $0x20] sm:$0xf]
    %v8446 = vld [vmem:[#allocation9 + $0x24] sm:$0xf]
    %v8447 = vld [vmem:[#allocation9 + $0x28] sm:$0xf]
    %v8448 = vld [vmem:[#allocation9 + $0x2c] sm:$0xf]
    %v8449 = vld [vmem:[#allocation9 + $0x30] sm:$0xf]
    %v8450 = vld [vmem:[#allocation9 + $0x34] sm:$0xf]
    %v8451 = vld [vmem:[#allocation9 + $0x38] sm:$0xf]
    %v8452 = vld [vmem:[#allocation9 + $0x3c] sm:$0xf]
    %v8453 = vld [vmem:[#allocation9 + $0x40] sm:$0xf]
    %v8454 = vld [vmem:[#allocation9 + $0x44] sm:$0xf]
    %v8455 = vld [vmem:[#allocation9 + $0x48] sm:$0xf]
    %v8456 = vld [vmem:[#allocation9 + $0x4c] sm:$0xf]
    %v8457 = vld [vmem:[#allocation9 + $0x50] sm:$0xf]
    %v8458 = vld [vmem:[#allocation9 + $0x54] sm:$0xf]
    %v8459 = vld [vmem:[#allocation9 + $0x58] sm:$0xf]
    %v8460 = vld [vmem:[#allocation9 + $0x5c] sm:$0xf]
    %v8461 = vld [vmem:[#allocation9 + $0x60] sm:$0xf]
    %v8462 = vld [vmem:[#allocation9 + $0x64] sm:$0xf]
    %v8463 = vld [vmem:[#allocation9 + $0x68] sm:$0xf]
    %v8464 = vld [vmem:[#allocation9 + $0x6c] sm:$0xf]
    %v8465 = vld [vmem:[#allocation9 + $0x70] sm:$0xf]
    %v8466 = vld [vmem:[#allocation9 + $0x74] sm:$0xf]
    %v8467 = vld [vmem:[#allocation9 + $0x78] sm:$0xf]
    %v8468 = vld [vmem:[#allocation9 + $0x7c] sm:$0xf]
    %v8469 = vld [vmem:[#allocation9 + $0x80] sm:$0xf]
    %v8470 = vld [vmem:[#allocation9 + $0x84] sm:$0xf]
    %v8471 = vld [vmem:[#allocation9 + $0x88] sm:$0xf]
    %v8472 = vld [vmem:[#allocation9 + $0x8c] sm:$0xf]
    %v8473 = vld [vmem:[#allocation9 + $0x90] sm:$0xf]
    %v8474 = vld [vmem:[#allocation9 + $0x94] sm:$0xf]
    %v8475 = vld [vmem:[#allocation9 + $0x98] sm:$0xf]
    %v8476 = vld [vmem:[#allocation9 + $0x9c] sm:$0xf]
    %v8477 = vld [vmem:[#allocation9 + $0xa0] sm:$0xf]
    %v8478 = vld [vmem:[#allocation9 + $0xa4] sm:$0xf]
    %v8479 = vld [vmem:[#allocation9 + $0xa8] sm:$0xf]
    %v8480 = vld [vmem:[#allocation9 + $0xac] sm:$0xf]
    %v8481 = vld [vmem:[#allocation9 + $0xb0] sm:$0xf]
    %v8482 = vld [vmem:[#allocation9 + $0xb4] sm:$0xf]
    %v8483 = vld [vmem:[#allocation9 + $0xb8] sm:$0xf]
    %v8484 = vld [vmem:[#allocation9 + $0xbc] sm:$0xf]
    %v8485 = vld [vmem:[#allocation9 + $0xc0] sm:$0xf]
    %v8486 = vld [vmem:[#allocation9 + $0xc4] sm:$0xf]
    %v8487 = vld [vmem:[#allocation9 + $0xc8] sm:$0xf]
    %v8488 = vld [vmem:[#allocation9 + $0xcc] sm:$0xf]
    %v8489 = vld [vmem:[#allocation9 + $0xd0] sm:$0xf]
    %v8490 = vld [vmem:[#allocation9 + $0xd4] sm:$0xf]
    %v8491 = vld [vmem:[#allocation9 + $0xd8] sm:$0xf]
    %v8492 = vld [vmem:[#allocation9 + $0xdc] sm:$0xf]
    %v8493 = vld [vmem:[#allocation9 + $0xe0] sm:$0xf]
    %v8494 = vld [vmem:[#allocation9 + $0xe4] sm:$0xf]
    %v8495 = vld [vmem:[#allocation9 + $0xe8] sm:$0xf]
    %v8496 = vld [vmem:[#allocation9 + $0xec] sm:$0xf]
    %v8497 = vld [vmem:[#allocation9 + $0xf0] sm:$0xf]
    %v8498 = vld [vmem:[#allocation9 + $0xf4] sm:$0xf]
    %v8499 = vld [vmem:[#allocation9 + $0xf8] sm:$0xf]
    %v8500 = vld [vmem:[#allocation9 + $0xfc] sm:$0xf]
    %v8501 = vld [vmem:[#allocation9 + $0x100] sm:$0xf]
    %v8502 = vld [vmem:[#allocation9 + $0x104] sm:$0xf]
    %v8503 = vld [vmem:[#allocation9 + $0x108] sm:$0xf]
    %v8504 = vld [vmem:[#allocation9 + $0x10c] sm:$0xf]
    %v8505 = vld [vmem:[#allocation9 + $0x110] sm:$0xf]
    %v8506 = vld [vmem:[#allocation9 + $0x114] sm:$0xf]
    %v8507 = vld [vmem:[#allocation9 + $0x118] sm:$0xf]
    %v8508 = vld [vmem:[#allocation9 + $0x11c] sm:$0xf]
    %v8509 = vld [vmem:[#allocation9 + $0x120] sm:$0xf]
    %v8510 = vld [vmem:[#allocation9 + $0x124] sm:$0xf]
    %v8511 = vld [vmem:[#allocation9 + $0x128] sm:$0xf]
    %v8512 = vld [vmem:[#allocation9 + $0x12c] sm:$0xf]
    %v8513 = vld [vmem:[#allocation9 + $0x130] sm:$0xf]
    %v8514 = vld [vmem:[#allocation9 + $0x134] sm:$0xf]
    %v8515 = vld [vmem:[#allocation9 + $0x138] sm:$0xf]
    %v8516 = vld [vmem:[#allocation9 + $0x13c] sm:$0xf]
    %v8517 = vld [vmem:[#allocation9 + $0x140] sm:$0xf]
    %v8518 = vld [vmem:[#allocation9 + $0x144] sm:$0xf]
    %v8519 = vld [vmem:[#allocation9 + $0x148] sm:$0xf]
    %v8520 = vld [vmem:[#allocation9 + $0x14c] sm:$0xf]
    %v8521 = vld [vmem:[#allocation9 + $0x150] sm:$0xf]
    %v8522 = vld [vmem:[#allocation9 + $0x154] sm:$0xf]
    %v8523 = vld [vmem:[#allocation9 + $0x158] sm:$0xf]
    %v8524 = vld [vmem:[#allocation9 + $0x15c] sm:$0xf]
    %v8525 = vld [vmem:[#allocation9 + $0x160] sm:$0xf]
    %v8526 = vld [vmem:[#allocation9 + $0x164] sm:$0xf]
    %v8527 = vld [vmem:[#allocation9 + $0x168] sm:$0xf]
    %v8528 = vld [vmem:[#allocation9 + $0x16c] sm:$0xf]
    %v8529 = vld [vmem:[#allocation9 + $0x170] sm:$0xf]
    %v8530 = vld [vmem:[#allocation9 + $0x174] sm:$0xf]
    %v8531 = vld [vmem:[#allocation9 + $0x178] sm:$0xf]
    %v8532 = vld [vmem:[#allocation9 + $0x17c] sm:$0xf]
    %v8533 = vld [vmem:[#allocation9 + $0x180] sm:$0xf]
    %v8534 = vld [vmem:[#allocation9 + $0x184] sm:$0xf]
    %v8535 = vld [vmem:[#allocation9 + $0x188] sm:$0xf]
    %v8536 = vld [vmem:[#allocation9 + $0x18c] sm:$0xf]
    %v8537 = vld [vmem:[#allocation9 + $0x190] sm:$0xf]
    %v8538 = vld [vmem:[#allocation9 + $0x194] sm:$0xf]
    %v8539 = vld [vmem:[#allocation9 + $0x198] sm:$0xf]
    %v8540 = vld [vmem:[#allocation9 + $0x19c] sm:$0xf]
    %v8541 = vld [vmem:[#allocation9 + $0x1a0] sm:$0xf]
    %v8542 = vld [vmem:[#allocation9 + $0x1a4] sm:$0xf]
    %v8543 = vld [vmem:[#allocation9 + $0x1a8] sm:$0xf]
    %v8544 = vld [vmem:[#allocation9 + $0x1ac] sm:$0xf]
    %v8545 = vld [vmem:[#allocation9 + $0x1b0] sm:$0xf]
    %v8546 = vld [vmem:[#allocation9 + $0x1b4] sm:$0xf]
    %v8547 = vld [vmem:[#allocation9 + $0x1b8] sm:$0xf]
    %v8548 = vld [vmem:[#allocation9 + $0x1bc] sm:$0xf]
    %v8549 = vld [vmem:[#allocation9 + $0x1c0] sm:$0xf]
    %v8550 = vld [vmem:[#allocation9 + $0x1c4] sm:$0xf]
    %v8551 = vld [vmem:[#allocation9 + $0x1c8] sm:$0xf]
    %v8552 = vld [vmem:[#allocation9 + $0x1cc] sm:$0xf]
    %v8553 = vld [vmem:[#allocation9 + $0x1d0] sm:$0xf]
    %v8554 = vld [vmem:[#allocation9 + $0x1d4] sm:$0xf]
    %v8555 = vld [vmem:[#allocation9 + $0x1d8] sm:$0xf]
    %v8556 = vld [vmem:[#allocation9 + $0x1dc] sm:$0xf]
    %v8557 = vld [vmem:[#allocation9 + $0x1e0] sm:$0xf]
    %v8558 = vld [vmem:[#allocation9 + $0x1e4] sm:$0xf]
    %v8559 = vld [vmem:[#allocation9 + $0x1e8] sm:$0xf]
    %v8560 = vld [vmem:[#allocation9 + $0x1ec] sm:$0xf]
    %v8561 = vld [vmem:[#allocation9 + $0x1f0] sm:$0xf]
    %v8562 = vld [vmem:[#allocation9 + $0x1f4] sm:$0xf]
    %v8563 = vld [vmem:[#allocation9 + $0x1f8] sm:$0xf]
    %v8564 = vld [vmem:[#allocation9 + $0x1fc] sm:$0xf]
    %v8565 = vld [vmem:[#allocation9 + $0x200] sm:$0xf]
    %v8566 = vld [vmem:[#allocation9 + $0x204] sm:$0xf]
    %v8567 = vld [vmem:[#allocation9 + $0x208] sm:$0xf]
    %v8568 = vld [vmem:[#allocation9 + $0x20c] sm:$0xf]
    %v8569 = vld [vmem:[#allocation9 + $0x210] sm:$0xf]
    %v8570 = vld [vmem:[#allocation9 + $0x214] sm:$0xf]
    %v8571 = vld [vmem:[#allocation9 + $0x218] sm:$0xf]
    %v8572 = vld [vmem:[#allocation9 + $0x21c] sm:$0xf]
    %v8573 = vld [vmem:[#allocation9 + $0x220] sm:$0xf]
    %v8574 = vld [vmem:[#allocation9 + $0x224] sm:$0xf]
    %v8575 = vld [vmem:[#allocation9 + $0x228] sm:$0xf]
    %v8576 = vld [vmem:[#allocation9 + $0x22c] sm:$0xf]
    %v8577 = vld [vmem:[#allocation9 + $0x230] sm:$0xf]
    %v8578 = vld [vmem:[#allocation9 + $0x234] sm:$0xf]
    %v8579 = vld [vmem:[#allocation9 + $0x238] sm:$0xf]
    %v8580 = vld [vmem:[#allocation9 + $0x23c] sm:$0xf]
    %v8581 = vld [vmem:[#allocation9 + $0x240] sm:$0xf]
    %v8582 = vld [vmem:[#allocation9 + $0x244] sm:$0xf]
    %v8583 = vld [vmem:[#allocation9 + $0x248] sm:$0xf]
    %v8584 = vld [vmem:[#allocation9 + $0x24c] sm:$0xf]
    %v8585 = vld [vmem:[#allocation9 + $0x250] sm:$0xf]
    %v8586 = vld [vmem:[#allocation9 + $0x254] sm:$0xf]
    %v8587 = vld [vmem:[#allocation9 + $0x258] sm:$0xf]
    %v8588 = vld [vmem:[#allocation9 + $0x25c] sm:$0xf]
    %v8589 = vld [vmem:[#allocation9 + $0x260] sm:$0xf]
    %v8590 = vld [vmem:[#allocation9 + $0x264] sm:$0xf]
    %v8591 = vld [vmem:[#allocation9 + $0x268] sm:$0xf]
    %v8592 = vld [vmem:[#allocation9 + $0x26c] sm:$0xf]
    %v8593 = vld [vmem:[#allocation9 + $0x270] sm:$0xf]
    %v8594 = vld [vmem:[#allocation9 + $0x274] sm:$0xf]
    %v8595 = vld [vmem:[#allocation9 + $0x278] sm:$0xf]
    %v8596 = vld [vmem:[#allocation9 + $0x27c] sm:$0xf]
    %v8597 = vld [vmem:[#allocation9 + $0x280] sm:$0xf]
    %v8598 = vld [vmem:[#allocation9 + $0x284] sm:$0xf]
    %v8599 = vld [vmem:[#allocation9 + $0x288] sm:$0xf]
    %v8600 = vld [vmem:[#allocation9 + $0x28c] sm:$0xf]
    %v8601 = vld [vmem:[#allocation9 + $0x290] sm:$0xf]
    %v8602 = vld [vmem:[#allocation9 + $0x294] sm:$0xf]
    %v8603 = vld [vmem:[#allocation9 + $0x298] sm:$0xf]
    %v8604 = vld [vmem:[#allocation9 + $0x29c] sm:$0xf]
    %v8605 = vld [vmem:[#allocation9 + $0x2a0] sm:$0xf]
    %v8606 = vld [vmem:[#allocation9 + $0x2a4] sm:$0xf]
    %v8607 = vld [vmem:[#allocation9 + $0x2a8] sm:$0xf]
    %v8608 = vld [vmem:[#allocation9 + $0x2ac] sm:$0xf]
    %v8609 = vld [vmem:[#allocation9 + $0x2b0] sm:$0xf]
    %v8610 = vld [vmem:[#allocation9 + $0x2b4] sm:$0xf]
    %v8611 = vld [vmem:[#allocation9 + $0x2b8] sm:$0xf]
    %v8612 = vld [vmem:[#allocation9 + $0x2bc] sm:$0xf]
    %v8613 = vld [vmem:[#allocation9 + $0x2c0] sm:$0xf]
    %v8614 = vld [vmem:[#allocation9 + $0x2c4] sm:$0xf]
    %v8615 = vld [vmem:[#allocation9 + $0x2c8] sm:$0xf]
    %v8616 = vld [vmem:[#allocation9 + $0x2cc] sm:$0xf]
    %v8617 = vld [vmem:[#allocation9 + $0x2d0] sm:$0xf]
    %v8618 = vld [vmem:[#allocation9 + $0x2d4] sm:$0xf]
    %v8619 = vld [vmem:[#allocation9 + $0x2d8] sm:$0xf]
    %v8620 = vld [vmem:[#allocation9 + $0x2dc] sm:$0xf]
    %v8621 = vld [vmem:[#allocation9 + $0x2e0] sm:$0xf]
    %v8622 = vld [vmem:[#allocation9 + $0x2e4] sm:$0xf]
    %v8623 = vld [vmem:[#allocation9 + $0x2e8] sm:$0xf]
    %v8624 = vld [vmem:[#allocation9 + $0x2ec] sm:$0xf]
    %v8625 = vld [vmem:[#allocation9 + $0x2f0] sm:$0xf]
    %v8626 = vld [vmem:[#allocation9 + $0x2f4] sm:$0xf]
    %v8627 = vld [vmem:[#allocation9 + $0x2f8] sm:$0xf]
    %v8628 = vld [vmem:[#allocation9 + $0x2fc] sm:$0xf]
    %v8629 = vld [vmem:[#allocation9 + $0x300] sm:$0xf]
    %v8630 = vld [vmem:[#allocation9 + $0x304] sm:$0xf]
    %v8631 = vld [vmem:[#allocation9 + $0x308] sm:$0xf]
    %v8632 = vld [vmem:[#allocation9 + $0x30c] sm:$0xf]
    %v8633 = vld [vmem:[#allocation9 + $0x310] sm:$0xf]
    %v8634 = vld [vmem:[#allocation9 + $0x314] sm:$0xf]
    %v8635 = vld [vmem:[#allocation9 + $0x318] sm:$0xf]
    %v8636 = vld [vmem:[#allocation9 + $0x31c] sm:$0xf]
    %v8637 = vld [vmem:[#allocation9 + $0x320] sm:$0xf]
    %v8638 = vld [vmem:[#allocation9 + $0x324] sm:$0xf]
    %v8639 = vld [vmem:[#allocation9 + $0x328] sm:$0xf]
    %v8640 = vld [vmem:[#allocation9 + $0x32c] sm:$0xf]
    %v8641 = vld [vmem:[#allocation9 + $0x330] sm:$0xf]
    %v8642 = vld [vmem:[#allocation9 + $0x334] sm:$0xf]
    %v8643 = vld [vmem:[#allocation9 + $0x338] sm:$0xf]
    %v8644 = vld [vmem:[#allocation9 + $0x33c] sm:$0xf]
    %v8645 = vld [vmem:[#allocation9 + $0x340] sm:$0xf]
    %v8646 = vld [vmem:[#allocation9 + $0x344] sm:$0xf]
    %v8647 = vld [vmem:[#allocation9 + $0x348] sm:$0xf]
    %v8648 = vld [vmem:[#allocation9 + $0x34c] sm:$0xf]
    %v8649 = vld [vmem:[#allocation9 + $0x350] sm:$0xf]
    %v8650 = vld [vmem:[#allocation9 + $0x354] sm:$0xf]
    %v8651 = vld [vmem:[#allocation9 + $0x358] sm:$0xf]
    %v8652 = vld [vmem:[#allocation9 + $0x35c] sm:$0xf]
    %v8653 = vld [vmem:[#allocation9 + $0x360] sm:$0xf]
    %v8654 = vld [vmem:[#allocation9 + $0x364] sm:$0xf]
    %v8655 = vld [vmem:[#allocation9 + $0x368] sm:$0xf]
    %v8656 = vld [vmem:[#allocation9 + $0x36c] sm:$0xf]
    %v8657 = vld [vmem:[#allocation9 + $0x370] sm:$0xf]
    %v8658 = vld [vmem:[#allocation9 + $0x374] sm:$0xf]
    %v8659 = vld [vmem:[#allocation9 + $0x378] sm:$0xf]
    %v8660 = vld [vmem:[#allocation9 + $0x37c] sm:$0xf]
    %v8661 = vld [vmem:[#allocation9 + $0x380] sm:$0xf]
    %v8662 = vld [vmem:[#allocation9 + $0x384] sm:$0xf]
    %v8663 = vld [vmem:[#allocation9 + $0x388] sm:$0xf]
    %v8664 = vld [vmem:[#allocation9 + $0x38c] sm:$0xf]
    %v8665 = vld [vmem:[#allocation9 + $0x390] sm:$0xf]
    %v8666 = vld [vmem:[#allocation9 + $0x394] sm:$0xf]
    %v8667 = vld [vmem:[#allocation9 + $0x398] sm:$0xf]
    %v8668 = vld [vmem:[#allocation9 + $0x39c] sm:$0xf]
    %v8669 = vld [vmem:[#allocation9 + $0x3a0] sm:$0xf]
    %v8670 = vld [vmem:[#allocation9 + $0x3a4] sm:$0xf]
    %v8671 = vld [vmem:[#allocation9 + $0x3a8] sm:$0xf]
    %v8672 = vld [vmem:[#allocation9 + $0x3ac] sm:$0xf]
    %v8673 = vld [vmem:[#allocation9 + $0x3b0] sm:$0xf]
    %v8674 = vld [vmem:[#allocation9 + $0x3b4] sm:$0xf]
    %v8675 = vld [vmem:[#allocation9 + $0x3b8] sm:$0xf]
    %v8676 = vld [vmem:[#allocation9 + $0x3bc] sm:$0xf]
    %v8677 = vld [vmem:[#allocation9 + $0x3c0] sm:$0xf]
    %v8678 = vld [vmem:[#allocation9 + $0x3c4] sm:$0xf]
    %v8679 = vld [vmem:[#allocation9 + $0x3c8] sm:$0xf]
    %v8680 = vld [vmem:[#allocation9 + $0x3cc] sm:$0xf]
    %v8681 = vld [vmem:[#allocation9 + $0x3d0] sm:$0xf]
    %v8682 = vld [vmem:[#allocation9 + $0x3d4] sm:$0xf]
    %v8683 = vld [vmem:[#allocation9 + $0x3d8] sm:$0xf]
    %v8684 = vld [vmem:[#allocation9 + $0x3dc] sm:$0xf]
    %v8685 = vld [vmem:[#allocation9 + $0x3e0] sm:$0xf]
    %v8686 = vld [vmem:[#allocation9 + $0x3e4] sm:$0xf]
    %v8687 = vld [vmem:[#allocation9 + $0x3e8] sm:$0xf]
    %v8688 = vld [vmem:[#allocation9 + $0x3ec] sm:$0xf]
    %v8689 = vld [vmem:[#allocation9 + $0x3f0] sm:$0xf]
    %v8690 = vld [vmem:[#allocation9 + $0x3f4] sm:$0xf]
    %v8691 = vld [vmem:[#allocation9 + $0x3f8] sm:$0xf]
    %v8692 = vld [vmem:[#allocation9 + $0x3fc] sm:$0xf]
    %v8693 = vld [vmem:[#allocation11] sm:$0x1]
    %v8695 = vlaneseq
    %v8696 = vshrl.u32 %v8695, 7
    %v8697 = vsub.s32 0, %v8696
    %v8698 = vrot.slane %v8693, %v8697
    %v8956 = vunpack.c.l.b16 %v8437
    %v8957 = vunpack.c.l.b16 %v8438
    %v8958 = vunpack.c.l.b16 %v8439
    %v8959 = vunpack.c.l.b16 %v8440
    %v8960 = vunpack.c.l.b16 %v8441
    %v8961 = vunpack.c.l.b16 %v8442
    %v8962 = vunpack.c.l.b16 %v8443
    %v8963 = vunpack.c.l.b16 %v8444
    %v8964 = vunpack.c.l.b16 %v8445
    %v8965 = vunpack.c.l.b16 %v8446
    %v8966 = vunpack.c.l.b16 %v8447
    %v8967 = vunpack.c.l.b16 %v8448
    %v8968 = vunpack.c.l.b16 %v8449
    %v8969 = vunpack.c.l.b16 %v8450
    %v8970 = vunpack.c.l.b16 %v8451
    %v8971 = vunpack.c.l.b16 %v8452
    %v8972 = vunpack.c.l.b16 %v8453
    %v8973 = vunpack.c.l.b16 %v8454
    %v8974 = vunpack.c.l.b16 %v8455
    %v8975 = vunpack.c.l.b16 %v8456
    %v8976 = vunpack.c.l.b16 %v8457
    %v8977 = vunpack.c.l.b16 %v8458
    %v8978 = vunpack.c.l.b16 %v8459
    %v8979 = vunpack.c.l.b16 %v8460
    %v8980 = vunpack.c.l.b16 %v8461
    %v8981 = vunpack.c.l.b16 %v8462
    %v8982 = vunpack.c.l.b16 %v8463
    %v8983 = vunpack.c.l.b16 %v8464
    %v8984 = vunpack.c.l.b16 %v8465
    %v8985 = vunpack.c.l.b16 %v8466
    %v8986 = vunpack.c.l.b16 %v8467
    %v8987 = vunpack.c.l.b16 %v8468
    %v8988 = vunpack.c.l.b16 %v8469
    %v8989 = vunpack.c.l.b16 %v8470
    %v8990 = vunpack.c.l.b16 %v8471
    %v8991 = vunpack.c.l.b16 %v8472
    %v8992 = vunpack.c.l.b16 %v8473
    %v8993 = vunpack.c.l.b16 %v8474
    %v8994 = vunpack.c.l.b16 %v8475
    %v8995 = vunpack.c.l.b16 %v8476
    %v8996 = vunpack.c.l.b16 %v8477
    %v8997 = vunpack.c.l.b16 %v8478
    %v8998 = vunpack.c.l.b16 %v8479
    %v8999 = vunpack.c.l.b16 %v8480
    %v9000 = vunpack.c.l.b16 %v8481
    %v9001 = vunpack.c.l.b16 %v8482
    %v9002 = vunpack.c.l.b16 %v8483
    %v9003 = vunpack.c.l.b16 %v8484
    %v9004 = vunpack.c.l.b16 %v8485
    %v9005 = vunpack.c.l.b16 %v8486
    %v9006 = vunpack.c.l.b16 %v8487
    %v9007 = vunpack.c.l.b16 %v8488
    %v9008 = vunpack.c.l.b16 %v8489
    %v9009 = vunpack.c.l.b16 %v8490
    %v9010 = vunpack.c.l.b16 %v8491
    %v9011 = vunpack.c.l.b16 %v8492
    %v9012 = vunpack.c.l.b16 %v8493
    %v9013 = vunpack.c.l.b16 %v8494
    %v9014 = vunpack.c.l.b16 %v8495
    %v9015 = vunpack.c.l.b16 %v8496
    %v9016 = vunpack.c.l.b16 %v8497
    %v9017 = vunpack.c.l.b16 %v8498
    %v9018 = vunpack.c.l.b16 %v8499
    %v9019 = vunpack.c.l.b16 %v8500
    %v9020 = vunpack.c.l.b16 %v8501
    %v9021 = vunpack.c.l.b16 %v8502
    %v9022 = vunpack.c.l.b16 %v8503
    %v9023 = vunpack.c.l.b16 %v8504
    %v9024 = vunpack.c.l.b16 %v8505
    %v9025 = vunpack.c.l.b16 %v8506
    %v9026 = vunpack.c.l.b16 %v8507
    %v9027 = vunpack.c.l.b16 %v8508
    %v9028 = vunpack.c.l.b16 %v8509
    %v9029 = vunpack.c.l.b16 %v8510
    %v9030 = vunpack.c.l.b16 %v8511
    %v9031 = vunpack.c.l.b16 %v8512
    %v9032 = vunpack.c.l.b16 %v8513
    %v9033 = vunpack.c.l.b16 %v8514
    %v9034 = vunpack.c.l.b16 %v8515
    %v9035 = vunpack.c.l.b16 %v8516
    %v9036 = vunpack.c.l.b16 %v8517
    %v9037 = vunpack.c.l.b16 %v8518
    %v9038 = vunpack.c.l.b16 %v8519
    %v9039 = vunpack.c.l.b16 %v8520
    %v9040 = vunpack.c.l.b16 %v8521
    %v9041 = vunpack.c.l.b16 %v8522
    %v9042 = vunpack.c.l.b16 %v8523
    %v9043 = vunpack.c.l.b16 %v8524
    %v9044 = vunpack.c.l.b16 %v8525
    %v9045 = vunpack.c.l.b16 %v8526
    %v9046 = vunpack.c.l.b16 %v8527
    %v9047 = vunpack.c.l.b16 %v8528
    %v9048 = vunpack.c.l.b16 %v8529
    %v9049 = vunpack.c.l.b16 %v8530
    %v9050 = vunpack.c.l.b16 %v8531
    %v9051 = vunpack.c.l.b16 %v8532
    %v9052 = vunpack.c.l.b16 %v8533
    %v9053 = vunpack.c.l.b16 %v8534
    %v9054 = vunpack.c.l.b16 %v8535
    %v9055 = vunpack.c.l.b16 %v8536
    %v9056 = vunpack.c.l.b16 %v8537
    %v9057 = vunpack.c.l.b16 %v8538
    %v9058 = vunpack.c.l.b16 %v8539
    %v9059 = vunpack.c.l.b16 %v8540
    %v9060 = vunpack.c.l.b16 %v8541
    %v9061 = vunpack.c.l.b16 %v8542
    %v9062 = vunpack.c.l.b16 %v8543
    %v9063 = vunpack.c.l.b16 %v8544
    %v9064 = vunpack.c.l.b16 %v8545
    %v9065 = vunpack.c.l.b16 %v8546
    %v9066 = vunpack.c.l.b16 %v8547
    %v9067 = vunpack.c.l.b16 %v8548
    %v9068 = vunpack.c.l.b16 %v8549
    %v9069 = vunpack.c.l.b16 %v8550
    %v9070 = vunpack.c.l.b16 %v8551
    %v9071 = vunpack.c.l.b16 %v8552
    %v9072 = vunpack.c.l.b16 %v8553
    %v9073 = vunpack.c.l.b16 %v8554
    %v9074 = vunpack.c.l.b16 %v8555
    %v9075 = vunpack.c.l.b16 %v8556
    %v9076 = vunpack.c.l.b16 %v8557
    %v9077 = vunpack.c.l.b16 %v8558
    %v9078 = vunpack.c.l.b16 %v8559
    %v9079 = vunpack.c.l.b16 %v8560
    %v9080 = vunpack.c.l.b16 %v8561
    %v9081 = vunpack.c.l.b16 %v8562
    %v9082 = vunpack.c.l.b16 %v8563
    %v9083 = vunpack.c.l.b16 %v8564
    %v9084 = vunpack.c.l.b16 %v8565
    %v9085 = vunpack.c.l.b16 %v8566
    %v9086 = vunpack.c.l.b16 %v8567
    %v9087 = vunpack.c.l.b16 %v8568
    %v9088 = vunpack.c.l.b16 %v8569
    %v9089 = vunpack.c.l.b16 %v8570
    %v9090 = vunpack.c.l.b16 %v8571
    %v9091 = vunpack.c.l.b16 %v8572
    %v9092 = vunpack.c.l.b16 %v8573
    %v9093 = vunpack.c.l.b16 %v8574
    %v9094 = vunpack.c.l.b16 %v8575
    %v9095 = vunpack.c.l.b16 %v8576
    %v9096 = vunpack.c.l.b16 %v8577
    %v9097 = vunpack.c.l.b16 %v8578
    %v9098 = vunpack.c.l.b16 %v8579
    %v9099 = vunpack.c.l.b16 %v8580
    %v9100 = vunpack.c.l.b16 %v8581
    %v9101 = vunpack.c.l.b16 %v8582
    %v9102 = vunpack.c.l.b16 %v8583
    %v9103 = vunpack.c.l.b16 %v8584
    %v9104 = vunpack.c.l.b16 %v8585
    %v9105 = vunpack.c.l.b16 %v8586
    %v9106 = vunpack.c.l.b16 %v8587
    %v9107 = vunpack.c.l.b16 %v8588
    %v9108 = vunpack.c.l.b16 %v8589
    %v9109 = vunpack.c.l.b16 %v8590
    %v9110 = vunpack.c.l.b16 %v8591
    %v9111 = vunpack.c.l.b16 %v8592
    %v9112 = vunpack.c.l.b16 %v8593
    %v9113 = vunpack.c.l.b16 %v8594
    %v9114 = vunpack.c.l.b16 %v8595
    %v9115 = vunpack.c.l.b16 %v8596
    %v9116 = vunpack.c.l.b16 %v8597
    %v9117 = vunpack.c.l.b16 %v8598
    %v9118 = vunpack.c.l.b16 %v8599
    %v9119 = vunpack.c.l.b16 %v8600
    %v9120 = vunpack.c.l.b16 %v8601
    %v9121 = vunpack.c.l.b16 %v8602
    %v9122 = vunpack.c.l.b16 %v8603
    %v9123 = vunpack.c.l.b16 %v8604
    %v9124 = vunpack.c.l.b16 %v8605
    %v9125 = vunpack.c.l.b16 %v8606
    %v9126 = vunpack.c.l.b16 %v8607
    %v9127 = vunpack.c.l.b16 %v8608
    %v9128 = vunpack.c.l.b16 %v8609
    %v9129 = vunpack.c.l.b16 %v8610
    %v9130 = vunpack.c.l.b16 %v8611
    %v9131 = vunpack.c.l.b16 %v8612
    %v9132 = vunpack.c.l.b16 %v8613
    %v9133 = vunpack.c.l.b16 %v8614
    %v9134 = vunpack.c.l.b16 %v8615
    %v9135 = vunpack.c.l.b16 %v8616
    %v9136 = vunpack.c.l.b16 %v8617
    %v9137 = vunpack.c.l.b16 %v8618
    %v9138 = vunpack.c.l.b16 %v8619
    %v9139 = vunpack.c.l.b16 %v8620
    %v9140 = vunpack.c.l.b16 %v8621
    %v9141 = vunpack.c.l.b16 %v8622
    %v9142 = vunpack.c.l.b16 %v8623
    %v9143 = vunpack.c.l.b16 %v8624
    %v9144 = vunpack.c.l.b16 %v8625
    %v9145 = vunpack.c.l.b16 %v8626
    %v9146 = vunpack.c.l.b16 %v8627
    %v9147 = vunpack.c.l.b16 %v8628
    %v9148 = vunpack.c.l.b16 %v8629
    %v9149 = vunpack.c.l.b16 %v8630
    %v9150 = vunpack.c.l.b16 %v8631
    %v9151 = vunpack.c.l.b16 %v8632
    %v9152 = vunpack.c.l.b16 %v8633
    %v9153 = vunpack.c.l.b16 %v8634
    %v9154 = vunpack.c.l.b16 %v8635
    %v9155 = vunpack.c.l.b16 %v8636
    %v9156 = vunpack.c.l.b16 %v8637
    %v9157 = vunpack.c.l.b16 %v8638
    %v9158 = vunpack.c.l.b16 %v8639
    %v9159 = vunpack.c.l.b16 %v8640
    %v9160 = vunpack.c.l.b16 %v8641
    %v9161 = vunpack.c.l.b16 %v8642
    %v9162 = vunpack.c.l.b16 %v8643
    %v9163 = vunpack.c.l.b16 %v8644
    %v9164 = vunpack.c.l.b16 %v8645
    %v9165 = vunpack.c.l.b16 %v8646
    %v9166 = vunpack.c.l.b16 %v8647
    %v9167 = vunpack.c.l.b16 %v8648
    %v9168 = vunpack.c.l.b16 %v8649
    %v9169 = vunpack.c.l.b16 %v8650
    %v9170 = vunpack.c.l.b16 %v8651
    %v9171 = vunpack.c.l.b16 %v8652
    %v9172 = vunpack.c.l.b16 %v8653
    %v9173 = vunpack.c.l.b16 %v8654
    %v9174 = vunpack.c.l.b16 %v8655
    %v9175 = vunpack.c.l.b16 %v8656
    %v9176 = vunpack.c.l.b16 %v8657
    %v9177 = vunpack.c.l.b16 %v8658
    %v9178 = vunpack.c.l.b16 %v8659
    %v9179 = vunpack.c.l.b16 %v8660
    %v9180 = vunpack.c.l.b16 %v8661
    %v9181 = vunpack.c.l.b16 %v8662
    %v9182 = vunpack.c.l.b16 %v8663
    %v9183 = vunpack.c.l.b16 %v8664
    %v9184 = vunpack.c.l.b16 %v8665
    %v9185 = vunpack.c.l.b16 %v8666
    %v9186 = vunpack.c.l.b16 %v8667
    %v9187 = vunpack.c.l.b16 %v8668
    %v9188 = vunpack.c.l.b16 %v8669
    %v9189 = vunpack.c.l.b16 %v8670
    %v9190 = vunpack.c.l.b16 %v8671
    %v9191 = vunpack.c.l.b16 %v8672
    %v9192 = vunpack.c.l.b16 %v8673
    %v9193 = vunpack.c.l.b16 %v8674
    %v9194 = vunpack.c.l.b16 %v8675
    %v9195 = vunpack.c.l.b16 %v8676
    %v9196 = vunpack.c.l.b16 %v8677
    %v9197 = vunpack.c.l.b16 %v8678
    %v9198 = vunpack.c.l.b16 %v8679
    %v9199 = vunpack.c.l.b16 %v8680
    %v9200 = vunpack.c.l.b16 %v8681
    %v9201 = vunpack.c.l.b16 %v8682
    %v9202 = vunpack.c.l.b16 %v8683
    %v9203 = vunpack.c.l.b16 %v8684
    %v9204 = vunpack.c.l.b16 %v8685
    %v9205 = vunpack.c.l.b16 %v8686
    %v9206 = vunpack.c.l.b16 %v8687
    %v9207 = vunpack.c.l.b16 %v8688
    %v9208 = vunpack.c.l.b16 %v8689
    %v9209 = vunpack.c.l.b16 %v8690
    %v9210 = vunpack.c.l.b16 %v8691
    %v9211 = vunpack.c.l.b16 %v8692
    %v9212 = vpack.c.b16 %v8957, %v8956
    %v9213 = vpack.c.b16 %v8959, %v8958
    %v9214 = vpack.c.b16 %v8961, %v8960
    %v9215 = vpack.c.b16 %v8963, %v8962
    %v9216 = vpack.c.b16 %v8965, %v8964
    %v9217 = vpack.c.b16 %v8967, %v8966
    %v9218 = vpack.c.b16 %v8969, %v8968
    %v9219 = vpack.c.b16 %v8971, %v8970
    %v9220 = vpack.c.b16 %v8973, %v8972
    %v9221 = vpack.c.b16 %v8975, %v8974
    %v9222 = vpack.c.b16 %v8977, %v8976
    %v9223 = vpack.c.b16 %v8979, %v8978
    %v9224 = vpack.c.b16 %v8981, %v8980
    %v9225 = vpack.c.b16 %v8983, %v8982
    %v9226 = vpack.c.b16 %v8985, %v8984
    %v9227 = vpack.c.b16 %v8987, %v8986
    %v9228 = vpack.c.b16 %v8989, %v8988
    %v9229 = vpack.c.b16 %v8991, %v8990
    %v9230 = vpack.c.b16 %v8993, %v8992
    %v9231 = vpack.c.b16 %v8995, %v8994
    %v9232 = vpack.c.b16 %v8997, %v8996
    %v9233 = vpack.c.b16 %v8999, %v8998
    %v9234 = vpack.c.b16 %v9001, %v9000
    %v9235 = vpack.c.b16 %v9003, %v9002
    %v9236 = vpack.c.b16 %v9005, %v9004
    %v9237 = vpack.c.b16 %v9007, %v9006
    %v9238 = vpack.c.b16 %v9009, %v9008
    %v9239 = vpack.c.b16 %v9011, %v9010
    %v9240 = vpack.c.b16 %v9013, %v9012
    %v9241 = vpack.c.b16 %v9015, %v9014
    %v9242 = vpack.c.b16 %v9017, %v9016
    %v9243 = vpack.c.b16 %v9019, %v9018
    %v9244 = vpack.c.b16 %v9021, %v9020
    %v9245 = vpack.c.b16 %v9023, %v9022
    %v9246 = vpack.c.b16 %v9025, %v9024
    %v9247 = vpack.c.b16 %v9027, %v9026
    %v9248 = vpack.c.b16 %v9029, %v9028
    %v9249 = vpack.c.b16 %v9031, %v9030
    %v9250 = vpack.c.b16 %v9033, %v9032
    %v9251 = vpack.c.b16 %v9035, %v9034
    %v9252 = vpack.c.b16 %v9037, %v9036
    %v9253 = vpack.c.b16 %v9039, %v9038
    %v9254 = vpack.c.b16 %v9041, %v9040
    %v9255 = vpack.c.b16 %v9043, %v9042
    %v9256 = vpack.c.b16 %v9045, %v9044
    %v9257 = vpack.c.b16 %v9047, %v9046
    %v9258 = vpack.c.b16 %v9049, %v9048
    %v9259 = vpack.c.b16 %v9051, %v9050
    %v9260 = vpack.c.b16 %v9053, %v9052
    %v9261 = vpack.c.b16 %v9055, %v9054
    %v9262 = vpack.c.b16 %v9057, %v9056
    %v9263 = vpack.c.b16 %v9059, %v9058
    %v9264 = vpack.c.b16 %v9061, %v9060
    %v9265 = vpack.c.b16 %v9063, %v9062
    %v9266 = vpack.c.b16 %v9065, %v9064
    %v9267 = vpack.c.b16 %v9067, %v9066
    %v9268 = vpack.c.b16 %v9069, %v9068
    %v9269 = vpack.c.b16 %v9071, %v9070
    %v9270 = vpack.c.b16 %v9073, %v9072
    %v9271 = vpack.c.b16 %v9075, %v9074
    %v9272 = vpack.c.b16 %v9077, %v9076
    %v9273 = vpack.c.b16 %v9079, %v9078
    %v9274 = vpack.c.b16 %v9081, %v9080
    %v9275 = vpack.c.b16 %v9083, %v9082
    %v9276 = vpack.c.b16 %v9085, %v9084
    %v9277 = vpack.c.b16 %v9087, %v9086
    %v9278 = vpack.c.b16 %v9089, %v9088
    %v9279 = vpack.c.b16 %v9091, %v9090
    %v9280 = vpack.c.b16 %v9093, %v9092
    %v9281 = vpack.c.b16 %v9095, %v9094
    %v9282 = vpack.c.b16 %v9097, %v9096
    %v9283 = vpack.c.b16 %v9099, %v9098
    %v9284 = vpack.c.b16 %v9101, %v9100
    %v9285 = vpack.c.b16 %v9103, %v9102
    %v9286 = vpack.c.b16 %v9105, %v9104
    %v9287 = vpack.c.b16 %v9107, %v9106
    %v9288 = vpack.c.b16 %v9109, %v9108
    %v9289 = vpack.c.b16 %v9111, %v9110
    %v9290 = vpack.c.b16 %v9113, %v9112
    %v9291 = vpack.c.b16 %v9115, %v9114
    %v9292 = vpack.c.b16 %v9117, %v9116
    %v9293 = vpack.c.b16 %v9119, %v9118
    %v9294 = vpack.c.b16 %v9121, %v9120
    %v9295 = vpack.c.b16 %v9123, %v9122
    %v9296 = vpack.c.b16 %v9125, %v9124
    %v9297 = vpack.c.b16 %v9127, %v9126
    %v9298 = vpack.c.b16 %v9129, %v9128
    %v9299 = vpack.c.b16 %v9131, %v9130
    %v9300 = vpack.c.b16 %v9133, %v9132
    %v9301 = vpack.c.b16 %v9135, %v9134
    %v9302 = vpack.c.b16 %v9137, %v9136
    %v9303 = vpack.c.b16 %v9139, %v9138
    %v9304 = vpack.c.b16 %v9141, %v9140
    %v9305 = vpack.c.b16 %v9143, %v9142
    %v9306 = vpack.c.b16 %v9145, %v9144
    %v9307 = vpack.c.b16 %v9147, %v9146
    %v9308 = vpack.c.b16 %v9149, %v9148
    %v9309 = vpack.c.b16 %v9151, %v9150
    %v9310 = vpack.c.b16 %v9153, %v9152
    %v9311 = vpack.c.b16 %v9155, %v9154
    %v9312 = vpack.c.b16 %v9157, %v9156
    %v9313 = vpack.c.b16 %v9159, %v9158
    %v9314 = vpack.c.b16 %v9161, %v9160
    %v9315 = vpack.c.b16 %v9163, %v9162
    %v9316 = vpack.c.b16 %v9165, %v9164
    %v9317 = vpack.c.b16 %v9167, %v9166
    %v9318 = vpack.c.b16 %v9169, %v9168
    %v9319 = vpack.c.b16 %v9171, %v9170
    %v9320 = vpack.c.b16 %v9173, %v9172
    %v9321 = vpack.c.b16 %v9175, %v9174
    %v9322 = vpack.c.b16 %v9177, %v9176
    %v9323 = vpack.c.b16 %v9179, %v9178
    %v9324 = vpack.c.b16 %v9181, %v9180
    %v9325 = vpack.c.b16 %v9183, %v9182
    %v9326 = vpack.c.b16 %v9185, %v9184
    %v9327 = vpack.c.b16 %v9187, %v9186
    %v9328 = vpack.c.b16 %v9189, %v9188
    %v9329 = vpack.c.b16 %v9191, %v9190
    %v9330 = vpack.c.b16 %v9193, %v9192
    %v9331 = vpack.c.b16 %v9195, %v9194
    %v9332 = vpack.c.b16 %v9197, %v9196
    %v9333 = vpack.c.b16 %v9199, %v9198
    %v9334 = vpack.c.b16 %v9201, %v9200
    %v9335 = vpack.c.b16 %v9203, %v9202
    %v9336 = vpack.c.b16 %v9205, %v9204
    %v9337 = vpack.c.b16 %v9207, %v9206
    %v9338 = vpack.c.b16 %v9209, %v9208
    %v9339 = vpack.c.b16 %v9211, %v9210
    %9468 = vmatprep.subr.bf16.mxu0 0
    %9469 = vmatpush1.bf16.msra.mxu0 %v9212
    %9470 = vmatprep.subr.bf16.mxu0 0
    %9471 = vmatpush1.bf16.msra.mxu0 %v9213
    %9472 = vmatprep.subr.bf16.mxu0 0
    %9473 = vmatpush1.bf16.msra.mxu0 %v9214
    %9474 = vmatprep.subr.bf16.mxu0 0
    %9475 = vmatpush1.bf16.msra.mxu0 %v9215
    %9476 = vmatprep.subr.bf16.mxu0 0
    %9477 = vmatpush1.bf16.msra.mxu0 %v9216
    %9478 = vmatprep.subr.bf16.mxu0 0
    %9479 = vmatpush1.bf16.msra.mxu0 %v9217
    %9480 = vmatprep.subr.bf16.mxu0 0
    %9481 = vmatpush1.bf16.msra.mxu0 %v9218
    %9482 = vmatprep.subr.bf16.mxu0 0
    %9483 = vmatpush1.bf16.msra.mxu0 %v9219
    %9484 = vmatprep.subr.bf16.mxu0 0
    %9485 = vmatpush1.bf16.msra.mxu0 %v9220
    %9486 = vmatprep.subr.bf16.mxu0 0
    %9487 = vmatpush1.bf16.msra.mxu0 %v9221
    %9488 = vmatprep.subr.bf16.mxu0 0
    %9489 = vmatpush1.bf16.msra.mxu0 %v9222
    %9490 = vmatprep.subr.bf16.mxu0 0
    %9491 = vmatpush1.bf16.msra.mxu0 %v9223
    %9492 = vmatprep.subr.bf16.mxu0 0
    %9493 = vmatpush1.bf16.msra.mxu0 %v9224
    %9494 = vmatprep.subr.bf16.mxu0 0
    %9495 = vmatpush1.bf16.msra.mxu0 %v9225
    %9496 = vmatprep.subr.bf16.mxu0 0
    %9497 = vmatpush1.bf16.msra.mxu0 %v9226
    %9498 = vmatprep.subr.bf16.mxu0 0
    %9499 = vmatpush1.bf16.msra.mxu0 %v9227
    %9500 = vmatprep.mubr.bf16.mxu0 %v8422
    %9501 = vmatmul.mubr.bf16.gmra.mrb[0].mxu0 %v8421
    %v9502 = vpop.f32.mrb[0].mxu0
    %v9503 = vadd.f32 %v8698, %v9502
    %v9504 = vpop.f32.mrb[0].mxu0
    %v9505 = vpop.f32.mrb[0].mxu0
    %v9506 = vpop.f32.mrb[0].mxu0
    %9507 = vdwg.mxu0
    %9508 = vmatprep.subr.bf16.mxu0 0
    %9509 = vmatpush1.bf16.msra.mxu0 %v9228
    %9510 = vmatprep.subr.bf16.mxu0 0
    %9511 = vmatpush1.bf16.msra.mxu0 %v9229
    %9512 = vmatprep.subr.bf16.mxu0 0
    %9513 = vmatpush1.bf16.msra.mxu0 %v9230
    %9514 = vmatprep.subr.bf16.mxu0 0
    %9515 = vmatpush1.bf16.msra.mxu0 %v9231
    %9516 = vmatprep.subr.bf16.mxu0 0
    %9517 = vmatpush1.bf16.msra.mxu0 %v9232
    %9518 = vmatprep.subr.bf16.mxu0 0
    %9519 = vmatpush1.bf16.msra.mxu0 %v9233
    %9520 = vmatprep.subr.bf16.mxu0 0
    %9521 = vmatpush1.bf16.msra.mxu0 %v9234
    %9522 = vmatprep.subr.bf16.mxu0 0
    %9523 = vmatpush1.bf16.msra.mxu0 %v9235
    %9524 = vmatprep.subr.bf16.mxu0 0
    %9525 = vmatpush1.bf16.msra.mxu0 %v9236
    %9526 = vmatprep.subr.bf16.mxu0 0
    %9527 = vmatpush1.bf16.msra.mxu0 %v9237
    %9528 = vmatprep.subr.bf16.mxu0 0
    %9529 = vmatpush1.bf16.msra.mxu0 %v9238
    %9530 = vmatprep.subr.bf16.mxu0 0
    %9531 = vmatpush1.bf16.msra.mxu0 %v9239
    %9532 = vmatprep.subr.bf16.mxu0 0
    %9533 = vmatpush1.bf16.msra.mxu0 %v9240
    %9534 = vmatprep.subr.bf16.mxu0 0
    %9535 = vmatpush1.bf16.msra.mxu0 %v9241
    %9536 = vmatprep.subr.bf16.mxu0 0
    %9537 = vmatpush1.bf16.msra.mxu0 %v9242
    %9538 = vmatprep.subr.bf16.mxu0 0
    %9539 = vmatpush1.bf16.msra.mxu0 %v9243
    %9540 = vmatprep.mubr.bf16.mxu0 %v8424
    %9541 = vmatmul.mubr.bf16.gmra.mrb[0].mxu0 %v8423
    %v9542 = vpop.f32.mrb[0].mxu0
    %v9543 = vadd.f32 %v9503, %v9542
    %v9544 = vpop.f32.mrb[0].mxu0
    %v9545 = vpop.f32.mrb[0].mxu0
    %v9546 = vpop.f32.mrb[0].mxu0
    %9547 = vdwg.mxu0
    %9548 = vmatprep.subr.bf16.mxu0 0
    %9549 = vmatpush1.bf16.msra.mxu0 %v9244
    %9550 = vmatprep.subr.bf16.mxu0 0
    %9551 = vmatpush1.bf16.msra.mxu0 %v9245
    %9552 = vmatprep.subr.bf16.mxu0 0
    %9553 = vmatpush1.bf16.msra.mxu0 %v9246
    %9554 = vmatprep.subr.bf16.mxu0 0
    %9555 = vmatpush1.bf16.msra.mxu0 %v9247
    %9556 = vmatprep.subr.bf16.mxu0 0
    %9557 = vmatpush1.bf16.msra.mxu0 %v9248
    %9558 = vmatprep.subr.bf16.mxu0 0
    %9559 = vmatpush1.bf16.msra.mxu0 %v9249
    %9560 = vmatprep.subr.bf16.mxu0 0
    %9561 = vmatpush1.bf16.msra.mxu0 %v9250
    %9562 = vmatprep.subr.bf16.mxu0 0
    %9563 = vmatpush1.bf16.msra.mxu0 %v9251
    %9564 = vmatprep.subr.bf16.mxu0 0
    %9565 = vmatpush1.bf16.msra.mxu0 %v9252
    %9566 = vmatprep.subr.bf16.mxu0 0
    %9567 = vmatpush1.bf16.msra.mxu0 %v9253
    %9568 = vmatprep.subr.bf16.mxu0 0
    %9569 = vmatpush1.bf16.msra.mxu0 %v9254
    %9570 = vmatprep.subr.bf16.mxu0 0
    %9571 = vmatpush1.bf16.msra.mxu0 %v9255
    %9572 = vmatprep.subr.bf16.mxu0 0
    %9573 = vmatpush1.bf16.msra.mxu0 %v9256
    %9574 = vmatprep.subr.bf16.mxu0 0
    %9575 = vmatpush1.bf16.msra.mxu0 %v9257
    %9576 = vmatprep.subr.bf16.mxu0 0
    %9577 = vmatpush1.bf16.msra.mxu0 %v9258
    %9578 = vmatprep.subr.bf16.mxu0 0
    %9579 = vmatpush1.bf16.msra.mxu0 %v9259
    %9580 = vmatprep.mubr.bf16.mxu0 %v8426
    %9581 = vmatmul.mubr.bf16.gmra.mrb[0].mxu0 %v8425
    %v9582 = vpop.f32.mrb[0].mxu0
    %v9583 = vadd.f32 %v9543, %v9582
    %v9584 = vpop.f32.mrb[0].mxu0
    %v9585 = vpop.f32.mrb[0].mxu0
    %v9586 = vpop.f32.mrb[0].mxu0
    %9587 = vdwg.mxu0
    %9588 = vmatprep.subr.bf16.mxu0 0
    %9589 = vmatpush1.bf16.msra.mxu0 %v9260
    %9590 = vmatprep.subr.bf16.mxu0 0
    %9591 = vmatpush1.bf16.msra.mxu0 %v9261
    %9592 = vmatprep.subr.bf16.mxu0 0
    %9593 = vmatpush1.bf16.msra.mxu0 %v9262
    %9594 = vmatprep.subr.bf16.mxu0 0
    %9595 = vmatpush1.bf16.msra.mxu0 %v9263
    %9596 = vmatprep.subr.bf16.mxu0 0
    %9597 = vmatpush1.bf16.msra.mxu0 %v9264
    %9598 = vmatprep.subr.bf16.mxu0 0
    %9599 = vmatpush1.bf16.msra.mxu0 %v9265
    %9600 = vmatprep.subr.bf16.mxu0 0
    %9601 = vmatpush1.bf16.msra.mxu0 %v9266
    %9602 = vmatprep.subr.bf16.mxu0 0
    %9603 = vmatpush1.bf16.msra.mxu0 %v9267
    %9604 = vmatprep.subr.bf16.mxu0 0
    %9605 = vmatpush1.bf16.msra.mxu0 %v9268
    %9606 = vmatprep.subr.bf16.mxu0 0
    %9607 = vmatpush1.bf16.msra.mxu0 %v9269
    %9608 = vmatprep.subr.bf16.mxu0 0
    %9609 = vmatpush1.bf16.msra.mxu0 %v9270
    %9610 = vmatprep.subr.bf16.mxu0 0
    %9611 = vmatpush1.bf16.msra.mxu0 %v9271
    %9612 = vmatprep.subr.bf16.mxu0 0
    %9613 = vmatpush1.bf16.msra.mxu0 %v9272
    %9614 = vmatprep.subr.bf16.mxu0 0
    %9615 = vmatpush1.bf16.msra.mxu0 %v9273
    %9616 = vmatprep.subr.bf16.mxu0 0
    %9617 = vmatpush1.bf16.msra.mxu0 %v9274
    %9618 = vmatprep.subr.bf16.mxu0 0
    %9619 = vmatpush1.bf16.msra.mxu0 %v9275
    %9620 = vmatprep.mubr.bf16.mxu0 %v8428
    %9621 = vmatmul.mubr.bf16.gmra.mrb[0].mxu0 %v8427
    %v9622 = vpop.f32.mrb[0].mxu0
    %v9623 = vadd.f32 %v9583, %v9622
    %v9624 = vpop.f32.mrb[0].mxu0
    %v9625 = vpop.f32.mrb[0].mxu0
    %v9626 = vpop.f32.mrb[0].mxu0
    %9627 = vdwg.mxu0
    %9628 = vmatprep.subr.bf16.mxu0 0
    %9629 = vmatpush1.bf16.msra.mxu0 %v9276
    %9630 = vmatprep.subr.bf16.mxu0 0
    %9631 = vmatpush1.bf16.msra.mxu0 %v9277
    %9632 = vmatprep.subr.bf16.mxu0 0
    %9633 = vmatpush1.bf16.msra.mxu0 %v9278
    %9634 = vmatprep.subr.bf16.mxu0 0
    %9635 = vmatpush1.bf16.msra.mxu0 %v9279
    %9636 = vmatprep.subr.bf16.mxu0 0
    %9637 = vmatpush1.bf16.msra.mxu0 %v9280
    %9638 = vmatprep.subr.bf16.mxu0 0
    %9639 = vmatpush1.bf16.msra.mxu0 %v9281
    %9640 = vmatprep.subr.bf16.mxu0 0
    %9641 = vmatpush1.bf16.msra.mxu0 %v9282
    %9642 = vmatprep.subr.bf16.mxu0 0
    %9643 = vmatpush1.bf16.msra.mxu0 %v9283
    %9644 = vmatprep.subr.bf16.mxu0 0
    %9645 = vmatpush1.bf16.msra.mxu0 %v9284
    %9646 = vmatprep.subr.bf16.mxu0 0
    %9647 = vmatpush1.bf16.msra.mxu0 %v9285
    %9648 = vmatprep.subr.bf16.mxu0 0
    %9649 = vmatpush1.bf16.msra.mxu0 %v9286
    %9650 = vmatprep.subr.bf16.mxu0 0
    %9651 = vmatpush1.bf16.msra.mxu0 %v9287
    %9652 = vmatprep.subr.bf16.mxu0 0
    %9653 = vmatpush1.bf16.msra.mxu0 %v9288
    %9654 = vmatprep.subr.bf16.mxu0 0
    %9655 = vmatpush1.bf16.msra.mxu0 %v9289
    %9656 = vmatprep.subr.bf16.mxu0 0
    %9657 = vmatpush1.bf16.msra.mxu0 %v9290
    %9658 = vmatprep.subr.bf16.mxu0 0
    %9659 = vmatpush1.bf16.msra.mxu0 %v9291
    %9660 = vmatprep.mubr.bf16.mxu0 %v8430
    %9661 = vmatmul.mubr.bf16.gmra.mrb[0].mxu0 %v8429
    %v9662 = vpop.f32.mrb[0].mxu0
    %v9663 = vadd.f32 %v9623, %v9662
    %v9664 = vpop.f32.mrb[0].mxu0
    %v9665 = vpop.f32.mrb[0].mxu0
    %v9666 = vpop.f32.mrb[0].mxu0
    %9667 = vdwg.mxu0
    %9668 = vmatprep.subr.bf16.mxu0 0
    %9669 = vmatpush1.bf16.msra.mxu0 %v9292
    %9670 = vmatprep.subr.bf16.mxu0 0
    %9671 = vmatpush1.bf16.msra.mxu0 %v9293
    %9672 = vmatprep.subr.bf16.mxu0 0
    %9673 = vmatpush1.bf16.msra.mxu0 %v9294
    %9674 = vmatprep.subr.bf16.mxu0 0
    %9675 = vmatpush1.bf16.msra.mxu0 %v9295
    %9676 = vmatprep.subr.bf16.mxu0 0
    %9677 = vmatpush1.bf16.msra.mxu0 %v9296
    %9678 = vmatprep.subr.bf16.mxu0 0
    %9679 = vmatpush1.bf16.msra.mxu0 %v9297
    %9680 = vmatprep.subr.bf16.mxu0 0
    %9681 = vmatpush1.bf16.msra.mxu0 %v9298
    %9682 = vmatprep.subr.bf16.mxu0 0
    %9683 = vmatpush1.bf16.msra.mxu0 %v9299
    %9684 = vmatprep.subr.bf16.mxu0 0
    %9685 = vmatpush1.bf16.msra.mxu0 %v9300
    %9686 = vmatprep.subr.bf16.mxu0 0
    %9687 = vmatpush1.bf16.msra.mxu0 %v9301
    %9688 = vmatprep.subr.bf16.mxu0 0
    %9689 = vmatpush1.bf16.msra.mxu0 %v9302
    %9690 = vmatprep.subr.bf16.mxu0 0
    %9691 = vmatpush1.bf16.msra.mxu0 %v9303
    %9692 = vmatprep.subr.bf16.mxu0 0
    %9693 = vmatpush1.bf16.msra.mxu0 %v9304
    %9694 = vmatprep.subr.bf16.mxu0 0
    %9695 = vmatpush1.bf16.msra.mxu0 %v9305
    %9696 = vmatprep.subr.bf16.mxu0 0
    %9697 = vmatpush1.bf16.msra.mxu0 %v9306
    %9698 = vmatprep.subr.bf16.mxu0 0
    %9699 = vmatpush1.bf16.msra.mxu0 %v9307
    %9700 = vmatprep.mubr.bf16.mxu0 %v8432
    %9701 = vmatmul.mubr.bf16.gmra.mrb[0].mxu0 %v8431
    %v9702 = vpop.f32.mrb[0].mxu0
    %v9703 = vadd.f32 %v9663, %v9702
    %v9704 = vpop.f32.mrb[0].mxu0
    %v9705 = vpop.f32.mrb[0].mxu0
    %v9706 = vpop.f32.mrb[0].mxu0
    %9707 = vdwg.mxu0
    %9708 = vmatprep.subr.bf16.mxu0 0
    %9709 = vmatpush1.bf16.msra.mxu0 %v9308
    %9710 = vmatprep.subr.bf16.mxu0 0
    %9711 = vmatpush1.bf16.msra.mxu0 %v9309
    %9712 = vmatprep.subr.bf16.mxu0 0
    %9713 = vmatpush1.bf16.msra.mxu0 %v9310
    %9714 = vmatprep.subr.bf16.mxu0 0
    %9715 = vmatpush1.bf16.msra.mxu0 %v9311
    %9716 = vmatprep.subr.bf16.mxu0 0
    %9717 = vmatpush1.bf16.msra.mxu0 %v9312
    %9718 = vmatprep.subr.bf16.mxu0 0
    %9719 = vmatpush1.bf16.msra.mxu0 %v9313
    %9720 = vmatprep.subr.bf16.mxu0 0
    %9721 = vmatpush1.bf16.msra.mxu0 %v9314
    %9722 = vmatprep.subr.bf16.mxu0 0
    %9723 = vmatpush1.bf16.msra.mxu0 %v9315
    %9724 = vmatprep.subr.bf16.mxu0 0
    %9725 = vmatpush1.bf16.msra.mxu0 %v9316
    %9726 = vmatprep.subr.bf16.mxu0 0
    %9727 = vmatpush1.bf16.msra.mxu0 %v9317
    %9728 = vmatprep.subr.bf16.mxu0 0
    %9729 = vmatpush1.bf16.msra.mxu0 %v9318
    %9730 = vmatprep.subr.bf16.mxu0 0
    %9731 = vmatpush1.bf16.msra.mxu0 %v9319
    %9732 = vmatprep.subr.bf16.mxu0 0
    %9733 = vmatpush1.bf16.msra.mxu0 %v9320
    %9734 = vmatprep.subr.bf16.mxu0 0
    %9735 = vmatpush1.bf16.msra.mxu0 %v9321
    %9736 = vmatprep.subr.bf16.mxu0 0
    %9737 = vmatpush1.bf16.msra.mxu0 %v9322
    %9738 = vmatprep.subr.bf16.mxu0 0
    %9739 = vmatpush1.bf16.msra.mxu0 %v9323
    %9740 = vmatprep.mubr.bf16.mxu0 %v8434
    %9741 = vmatmul.mubr.bf16.gmra.mrb[0].mxu0 %v8433
    %v9742 = vpop.f32.mrb[0].mxu0
    %v9743 = vadd.f32 %v9703, %v9742
    %v9744 = vpop.f32.mrb[0].mxu0
    %v9745 = vpop.f32.mrb[0].mxu0
    %v9746 = vpop.f32.mrb[0].mxu0
    %9747 = vdwg.mxu0
    %9748 = vmatprep.subr.bf16.mxu0 0
    %9749 = vmatpush1.bf16.msra.mxu0 %v9324
    %9750 = vmatprep.subr.bf16.mxu0 0
    %9751 = vmatpush1.bf16.msra.mxu0 %v9325
    %9752 = vmatprep.subr.bf16.mxu0 0
    %9753 = vmatpush1.bf16.msra.mxu0 %v9326
    %9754 = vmatprep.subr.bf16.mxu0 0
    %9755 = vmatpush1.bf16.msra.mxu0 %v9327
    %9756 = vmatprep.subr.bf16.mxu0 0
    %9757 = vmatpush1.bf16.msra.mxu0 %v9328
    %9758 = vmatprep.subr.bf16.mxu0 0
    %9759 = vmatpush1.bf16.msra.mxu0 %v9329
    %9760 = vmatprep.subr.bf16.mxu0 0
    %9761 = vmatpush1.bf16.msra.mxu0 %v9330
    %9762 = vmatprep.subr.bf16.mxu0 0
    %9763 = vmatpush1.bf16.msra.mxu0 %v9331
    %9764 = vmatprep.subr.bf16.mxu0 0
    %9765 = vmatpush1.bf16.msra.mxu0 %v9332
    %9766 = vmatprep.subr.bf16.mxu0 0
    %9767 = vmatpush1.bf16.msra.mxu0 %v9333
    %9768 = vmatprep.subr.bf16.mxu0 0
    %9769 = vmatpush1.bf16.msra.mxu0 %v9334
    %9770 = vmatprep.subr.bf16.mxu0 0
    %9771 = vmatpush1.bf16.msra.mxu0 %v9335
    %9772 = vmatprep.subr.bf16.mxu0 0
    %9773 = vmatpush1.bf16.msra.mxu0 %v9336
    %9774 = vmatprep.subr.bf16.mxu0 0
    %9775 = vmatpush1.bf16.msra.mxu0 %v9337
    %9776 = vmatprep.subr.bf16.mxu0 0
    %9777 = vmatpush1.bf16.msra.mxu0 %v9338
    %9778 = vmatprep.subr.bf16.mxu0 0
    %9779 = vmatpush1.bf16.msra.mxu0 %v9339
    %9780 = vmatprep.mubr.bf16.mxu0 %v8436
    %9781 = vmatmul.mubr.bf16.gmra.mrb[0].mxu0 %v8435
    %v9782 = vpop.f32.mrb[0].mxu0
    %v9783 = vadd.f32 %v9743, %v9782
    %v9784 = vpop.f32.mrb[0].mxu0
    %v9785 = vpop.f32.mrb[0].mxu0
    %v9786 = vpop.f32.mrb[0].mxu0
    %9787 = vdwg.mxu0
    %9788 = vst [vmem:[%s7] sm:$0x3] %v9783
    // Predicated region
    $region54: #{digits_resnet_forward.1} parent=1 // pred_check
      _
    $region55: #{digits_resnet_forward.1} parent=1 // pred_check_branch
      %9790 = sbr.rel (0) target = $region57
    $region56: #{digits_resnet_forward.1} parent=1 // pred_region
      _
    $region57: #{digits_resnet_forward.1} parent=1 // pred_fallthru
      _
    // Predicated region
    $region58: #{digits_resnet_forward.1} parent=1 // pred_check
      _
    $region59: #{digits_resnet_forward.1} parent=1 // pred_check_branch
      %9792 = sbr.rel (0) target = $region61
    $region60: #{digits_resnet_forward.1} parent=1 // pred_region
      _
    $region61: #{digits_resnet_forward.1} parent=1 // pred_fallthru
      _
    %9793 = vsyncpa [#allocation3], 1
    %9794 = vsyncpa [#allocation6], 1
    %9795 = vsyncpa [#allocation10], 1
    %9796 = vsyncpa [#allocation4], 1

</llo_original>
